<compile_context>
chip_gen: v6e
topology: v6e:2x2x1
jax: 0.10.0
libtpu: 0.0.40
codegen_flags: <defaults>
</compile_context>

<pallas_src>
import functools

import jax
import jax.numpy as jnp
from jax import lax
from jax.experimental import pallas as pl
from jax.experimental.pallas import tpu as pltpu


def _round_up(x, m):
    return (x + m - 1) // m * m


# ----------------------------------------------------------------------------
# Fused kernel.
# Grid: (batch n, output-row-tile j).  Per-batch NHWC input stays resident in
# VMEM (constant block index across j); the expanded hidden activation lives
# only in a bf16 VMEM scratch; the depthwise output lives only in a bf16 VMEM
# scratch feeding the project matmul; output is written channel-major and
# lane-dense.
# ----------------------------------------------------------------------------
def _fused_inverted_residual_kernel(
        *refs, stride, TH, H, W, Wo, Cin, Chp, oup, identity, has_expand):
    it = iter(refs)
    x_ref = next(it)                                  # (1, H, W, Cin) f32
    xr_ref = next(it) if identity else None           # (1, Cin, TH*W) f32
    if has_expand:
        we_ref, se_ref, be_ref = next(it), next(it), next(it)
    wd_ref, sd_ref, bd_ref = next(it), next(it), next(it)
    wp_ref, sp_ref, bp_ref = next(it), next(it), next(it)
    o_ref = next(it)                                  # (1, oup, TH*Wo) f32
    yd_ref, hid_ref = next(it), next(it)              # bf16 scratches

    j = pl.program_id(1)
    RH = (TH - 1) * stride + 3                        # hidden rows (incl. halo)
    lo = j * (TH * stride) - 1                        # first needed input row

    # ---- stage 1: ONE expand matmul over all RH rows of this tile ----------
    top_i = jnp.maximum(lo, 0)
    bot_i = jnp.minimum(lo + RH - 1, H - 1)
    x_slab = jnp.concatenate(
        [x_ref[0, pl.ds(top_i, 1), :, :],
         x_ref[0, pl.ds(lo + 1, RH - 2), :, :],       # middle rows: always valid
         x_ref[0, pl.ds(bot_i, 1), :, :]], axis=0)    # (RH, W, Cin) f32

    if has_expand:
        h = jnp.dot(x_slab.reshape(RH * W, Cin).astype(jnp.bfloat16),
                    we_ref[...],                      # (Cin, Chp) bf16
                    preferred_element_type=jnp.float32)
        h = jnp.clip(h * se_ref[...] + be_ref[...], 0.0, 6.0)   # folded BN+ReLU6
        h = h.reshape(RH, W, Chp)
    else:
        # expand_ratio == 1: hidden == input, lane-padded to Chp with zeros.
        h = x_slab if Chp == Cin else jnp.concatenate(
            [x_slab, jnp.zeros((RH, W, Chp - Cin), jnp.float32)], axis=-1)

    # Zero the vertical zero-padding / out-of-range halo rows (iota row mask).
    rows = lax.broadcasted_iota(jnp.int32, (RH, 1, 1), 0) + lo
    h = jnp.where((rows >= 0) & (rows < H), h, 0.0)

    # ---- stage 2: write the hidden tile into the bf16 VMEM scratch ----------
    zc = jnp.zeros((RH, 1, Chp), jnp.bfloat16)
    if stride == 1:
        hid_ref[:, 1:W + 1, :] = h.astype(jnp.bfloat16)
        hid_ref[:, 0:1, :] = zc                       # left width pad
        hid_ref[:, W + 1:W + 2, :] = zc               # right width pad
    else:
        # Deinterleave even/odd padded columns ONCE per tile so every stride-2
        # tap below is a contiguous slice.  Plane p, index c == padded col 2c+p.
        n_even = (W + 1) // 2                         # h[:, 0::2] -> odd cols pc
        n_odd = W // 2                                # h[:, 1::2] -> even cols pc
        hid_ref[:, 1, 0:n_even, :] = h[:, 0::2, :].astype(jnp.bfloat16)
        hid_ref[:, 0, 1:1 + n_odd, :] = h[:, 1::2, :].astype(jnp.bfloat16)
        hid_ref[:, 0, 0:1, :] = zc                    # left pad (pc=0)
        rp = (W + 1) // 2
        hid_ref[:, (W + 1) % 2, rp:rp + 1, :] = zc    # right pad (pc=W+1)

    # ---- stage 3: 3x3 depthwise, one output row at a time (acc in vregs) ----
    wdw = wd_ref[...]                                 # (3, 3, Chp) f32
    sd = sd_ref[...]                                  # (1, Chp)
    bd = bd_ref[...]
    for oy in range(TH):
        acc = jnp.zeros((Wo, Chp), jnp.float32)
        for kh in range(3):
            r = oy * stride + kh
            for kw in range(3):
                if stride == 1:
                    patch = hid_ref[r, kw:kw + Wo, :]
                else:
                    patch = hid_ref[r, kw & 1, kw // 2:kw // 2 + Wo, :]
                acc = acc + patch * wdw[kh, kw]
        yd_row = jnp.clip(acc * sd + bd, 0.0, 6.0)    # folded BN + ReLU6
        yd_ref[oy * Wo:(oy + 1) * Wo, :] = yd_row.astype(jnp.bfloat16)

    # ---- stage 4: 1x1 project (channel-major result) + BN (+ residual) ------
    out_t = lax.dot_general(
        wp_ref[...], yd_ref[...],                     # (oup,Chp) x (TH*Wo,Chp)
        dimension_numbers=(((1,), (1,)), ((), ())),
        preferred_element_type=jnp.float32)           # (oup, TH*Wo)
    out_t = out_t * sp_ref[...] + bp_ref[...]         # (oup, 1) scale / bias
    if identity:
        out_t = out_t + xr_ref[0]                     # (Cin, TH*W) residual
    o_ref[...] = out_t.reshape(1, oup, TH * Wo)


# ----------------------------------------------------------------------------
# Wrapper
# ----------------------------------------------------------------------------
def inverted_residual_forward(x_nchw, params, *, inp, oup, stride, expand_ratio,
                              max_tile_rows=None):
    assert stride in (1, 2)
    identity = (stride == 1 and inp == oup)
    has_expand = (expand_ratio != 1)

    N, Cin, H, W = x_nchw.shape
    assert Cin == inp
    Ho = (H - 1) // stride + 1
    Wo = (W - 1) // stride + 1
    Chp = params["w_dw"].shape[-1]                    # lane-padded hidden chans

    # TODO(synk): fold this NCHW->NHWC transpose into the kernel's first read.
    x_nhwc = jnp.transpose(x_nchw, (0, 2, 3, 1)).astype(jnp.float32)

    # Per-generation VMEM budget (~half of physical: 64 MiB v5e/v6e, 32 MiB v7x)
    try:
        vmem_cap = int(pltpu.get_tpu_info().vmem_capacity_bytes)
    except Exception:  # noqa: BLE001 - conservative fallback
        vmem_cap = 64 * 1024 * 1024
    vmem_limit = max(32 * 1024 * 1024, min(vmem_cap // 2, 96 * 1024 * 1024))

    # Row-tile height: largest divisor of Ho within the scratch budget such
    # that the output block stays lane-dense ((TH*Wo) % 128 == 0); otherwise
    # fall back to a single row tile (full-extent block is always legal).
    if max_tile_rows is None:
        per_row = (stride * (W + 3) + Wo) * Chp * 2   # bf16 scratch bytes / row
        max_tile_rows = max(1, min(64, (vmem_limit // 4) // max(per_row, 1)))
    cands = [t for t in range(1, min(Ho, max_tile_rows) + 1)
             if Ho % t == 0 and (t * Wo) % 128 == 0]
    TH = max(cands) if cands else Ho
    nh = Ho // TH
    RH = (TH - 1) * stride + 3

    kernel = functools.partial(
        _fused_inverted_residual_kernel,
        stride=stride, TH=TH, H=H, W=W, Wo=Wo,
        Cin=Cin, Chp=Chp, oup=oup, identity=identity, has_expand=has_expand)

    in_specs = [pl.BlockSpec((1, H, W, Cin), lambda n, j: (n, 0, 0, 0))]
    args = [x_nhwc]
    if identity:
        # Residual read straight from the NCHW layout (free flat reshape).
        x_res = x_nchw.reshape(N, Cin, H * W).astype(jnp.float32)
        in_specs.append(pl.BlockSpec((1, Cin, TH * W), lambda n, j: (n, 0, j)))
        args.append(x_res)
    if has_expand:
        in_specs += [
            pl.BlockSpec((Cin, Chp), lambda n, j: (0, 0)),
            pl.BlockSpec((1, Chp), lambda n, j: (0, 0)),
            pl.BlockSpec((1, Chp), lambda n, j: (0, 0)),
        ]
        args += [params["w_exp"], params["s_exp"], params["b_exp"]]
    # TODO(synk): pipeline_mode=pl.Buffered(1) on these constant-index specs to
    # drop the pointless double buffers once that knob is load-bearing here.
    in_specs += [
        pl.BlockSpec((3, 3, Chp), lambda n, j: (0, 0, 0)),
        pl.BlockSpec((1, Chp), lambda n, j: (0, 0)),
        pl.BlockSpec((1, Chp), lambda n, j: (0, 0)),
        pl.BlockSpec((oup, Chp), lambda n, j: (0, 0)),
        pl.BlockSpec((oup, 1), lambda n, j: (0, 0)),
        pl.BlockSpec((oup, 1), lambda n, j: (0, 0)),
    ]
    args += [params["w_dw"], params["s_dw"], params["b_dw"],
             params["w_proj_t"], params["s_proj"], params["b_proj"]]

    if stride == 1:
        hid_shape = (RH, W + 2, Chp)
    else:
        hid_shape = (RH, 2, (W + 3) // 2, Chp)
    scratch_shapes = [pltpu.VMEM((TH * Wo, Chp), jnp.bfloat16),
                      pltpu.VMEM(hid_shape, jnp.bfloat16)]

    flops = (2 * N * nh * RH * W * Cin * Chp if has_expand else 0) \
        + 2 * 9 * N * Ho * Wo * Chp + 2 * N * Ho * Wo * Chp * oup
    bytes_accessed = N * Ho * Wo * oup * 4 \
        + sum(int(a.size) * a.dtype.itemsize for a in args)

    out_flat = pl.pallas_call(
        kernel,
        out_shape=jax.ShapeDtypeStruct((N, oup, Ho * Wo), jnp.float32),
        grid=(N, nh),
        in_specs=in_specs,
        out_specs=pl.BlockSpec((1, oup, TH * Wo), lambda n, j: (n, 0, j)),
        scratch_shapes=scratch_shapes,
        compiler_params=pltpu.CompilerParams(
            dimension_semantics=("parallel", "parallel"),
            vmem_limit_bytes=int(vmem_limit)),
        cost_estimate=pl.CostEstimate(
            flops=int(flops), transcendentals=0,
            bytes_accessed=int(bytes_accessed)),
    )(*args)

    # Free metadata reshape (no transpose, no HBM round trip) back to NCHW.
    return out_flat.reshape(N, oup, Ho, Wo)


# ----------------------------------------------------------------------------
# Deterministic parameter init (eval-mode BN folded into per-channel
# scale/bias; hidden channel dim zero-padded to a multiple of 128; MXU weights
# stored in bf16; projection weight stored transposed (oup, Chp)).
# ----------------------------------------------------------------------------
def init_params(key, inp, oup, expand_ratio):
    hidden = int(round(inp * expand_ratio))
    Chp = _round_up(max(hidden, 1), 128)
    ks = jax.random.split(key, 8)

    def folded_bn(k, c, cpad):
        kg, kb, km, kv = jax.random.split(k, 4)
        gamma = jax.random.uniform(kg, (c,), minval=0.5, maxval=1.5)
        beta = 0.1 * jax.random.normal(kb, (c,))
        mean = 0.1 * jax.random.normal(km, (c,))
        var = jax.random.uniform(kv, (c,), minval=0.5, maxval=1.5)
        scale = gamma / jnp.sqrt(var + 1e-5)
        bias = beta - mean * scale
        return (jnp.pad(scale, (0, cpad - c)).astype(jnp.float32),
                jnp.pad(bias, (0, cpad - c)).astype(jnp.float32))

    p = {}
    if expand_ratio != 1:
        # PyTorch weight (hidden, inp, 1, 1) -> (inp, hidden) -> pad -> bf16
        w = 0.3 * jax.random.normal(ks[0], (inp, hidden))
        p["w_exp"] = jnp.pad(w, ((0, 0), (0, Chp - hidden))).astype(jnp.bfloat16)
        se, be = folded_bn(ks[1], hidden, Chp)
        p["s_exp"], p["b_exp"] = se.reshape(1, Chp), be.reshape(1, Chp)
    # PyTorch depthwise weight (hidden, 1, 3, 3) -> (3, 3, hidden) -> pad, f32
    wdw = 0.3 * jax.random.normal(ks[2], (3, 3, hidden))
    p["w_dw"] = jnp.pad(wdw, ((0, 0), (0, 0), (0, Chp - hidden))).astype(jnp.float32)
    sd, bd = folded_bn(ks[3], hidden, Chp)
    p["s_dw"], p["b_dw"] = sd.reshape(1, Chp), bd.reshape(1, Chp)
    # PyTorch weight (oup, hidden, 1, 1) -> keep (oup, hidden) -> pad -> bf16
    wp = 0.3 * jax.random.normal(ks[4], (oup, hidden))
    p["w_proj_t"] = jnp.pad(wp, ((0, 0), (0, Chp - hidden))).astype(jnp.bfloat16)
    sp, bp = folded_bn(ks[5], oup, oup)
    p["s_proj"], p["b_proj"] = sp.reshape(oup, 1), bp.reshape(oup, 1)
    return p


# ----------------------------------------------------------------------------
# Pure-JAX reference (mirrors the kernel's numerics: bf16 MXU operands,
# bf16-rounded hidden / depthwise-output scratches, f32 accumulation; the
# zero-padded channels are mathematically inert).
# ----------------------------------------------------------------------------
def reference_forward(x_nchw, p, *, inp, oup, stride, expand_ratio):
    identity = (stride == 1 and inp == oup)

    def bf(a):
        return a.astype(jnp.bfloat16).astype(jnp.float32)

    x = jnp.transpose(x_nchw, (0, 2, 3, 1)).astype(jnp.float32)   # NHWC
    N, H, W, Cin = x.shape
    Chp = p["w_dw"].shape[-1]
    if expand_ratio != 1:
        h = jnp.einsum("nhwc,cd->nhwd", bf(x), p["w_exp"].astype(jnp.float32))
        h = jnp.clip(h * p["s_exp"][0] + p["b_exp"][0], 0.0, 6.0)
    else:
        h = jnp.pad(x, ((0, 0), (0, 0), (0, 0), (0, Chp - Cin)))
    h = bf(h)                                                      # bf16 scratch
    hp = jnp.pad(h, ((0, 0), (1, 1), (1, 1), (0, 0)))
    Ho = (H - 1) // stride + 1
    Wo = (W - 1) // stride + 1
    acc = jnp.zeros((N, Ho, Wo, Chp), jnp.float32)
    for kh in range(3):
        for kw in range(3):
            acc = acc + hp[:, kh:kh + stride * (Ho - 1) + 1:stride,
                           kw:kw + stride * (Wo - 1) + 1:stride, :] * p["w_dw"][kh, kw]
    yd = bf(jnp.clip(acc * p["s_dw"][0] + p["b_dw"][0], 0.0, 6.0))  # bf16 scratch
    y = jnp.einsum("nhwc,oc->nohw", yd, p["w_proj_t"].astype(jnp.float32))
    y = y * p["s_proj"].reshape(1, oup, 1, 1) + p["b_proj"].reshape(1, oup, 1, 1)
    if identity:
        y = y + x_nchw.astype(jnp.float32)
    return y                                                       # NCHW


# ----------------------------------------------------------------------------
if __name__ == "__main__":
    key = jax.random.PRNGKey(0)

    configs = [
        # identity + expand, single row tile (budget-chosen TH)
        dict(N=2, inp=4, oup=4, H=16, W=16, stride=1, expand_ratio=6,
             max_tile_rows=None),
        # identity, expand_ratio == 1 path, two row tiles (exercises halo reuse)
        dict(N=2, inp=4, oup=4, H=16, W=16, stride=1, expand_ratio=1,
             max_tile_rows=8),
        # stride-2 path (deinterleaved hidden scratch), no residual
        dict(N=2, inp=4, oup=8, H=16, W=16, stride=2, expand_ratio=6,
             max_tile_rows=None),
    ]

    for cfg in configs:
        key, kx, kp = jax.random.split(key, 3)
        N, inp, oup = cfg["N"], cfg["inp"], cfg["oup"]
        H, W = cfg["H"], cfg["W"]
        stride, expand_ratio = cfg["stride"], cfg["expand_ratio"]

        x = jax.random.normal(kx, (N, inp, H, W), dtype=jnp.float32)   # NCHW
        params = init_params(kp, inp, oup, expand_ratio)

        fwd = jax.jit(functools.partial(
            inverted_residual_forward, inp=inp, oup=oup, stride=stride,
            expand_ratio=expand_ratio, max_tile_rows=cfg["max_tile_rows"]))
        out = jax.block_until_ready(fwd(x, params))

        ref = reference_forward(x, params, inp=inp, oup=oup,
                                stride=stride, expand_ratio=expand_ratio)
        Ho = (H - 1) // stride + 1
        Wo = (W - 1) // stride + 1
        assert out.shape == (N, oup, Ho, Wo), (out.shape, (N, oup, Ho, Wo))
        assert jnp.allclose(out, ref, atol=1e-2, rtol=1e-2), \
            f"mismatch vs reference for config {cfg}"

    print("KERNEL_OK")
</pallas_src>

<mosaic_0001>
module attributes {stable_mosaic.version = 11 : i64} {
  func.func @_fused_inverted_residual_kernel(%arg0: i32, %arg1: i32, %arg2: memref<1x16x16x4xf32, #tpu.memory_space<vmem>>, %arg3: memref<1x4x256xf32, #tpu.memory_space<vmem>>, %arg4: memref<4x128xbf16, #tpu.memory_space<vmem>>, %arg5: memref<1x128xf32, #tpu.memory_space<vmem>>, %arg6: memref<1x128xf32, #tpu.memory_space<vmem>>, %arg7: memref<3x3x128xf32, #tpu.memory_space<vmem>>, %arg8: memref<1x128xf32, #tpu.memory_space<vmem>>, %arg9: memref<1x128xf32, #tpu.memory_space<vmem>>, %arg10: memref<4x128xbf16, #tpu.memory_space<vmem>>, %arg11: memref<4x1xf32, #tpu.memory_space<vmem>>, %arg12: memref<4x1xf32, #tpu.memory_space<vmem>>, %arg13: memref<1x4x256xf32, #tpu.memory_space<vmem>>, %arg14: memref<256x128xbf16, #tpu.memory_space<vmem>>, %arg15: memref<18x18x128xbf16, #tpu.memory_space<vmem>>) attributes {dimension_semantics = [#tpu.dimension_semantics<parallel>, #tpu.dimension_semantics<parallel>], iteration_bounds = array<i64: 2, 1>, scalar_prefetch = 0 : i64, scratch_operands = 2 : i64, tpu.core_type = #tpu.core_type<tc>, window_params = [{transform_indices = @transform_0, window_bounds = array<i64: 1, 16, 16, 4>}, {transform_indices = @transform_1, window_bounds = array<i64: 1, 4, 256>}, {pipeline_mode = #tpu.pipeline_mode<synchronous>, transform_indices = @transform_2, window_bounds = array<i64: 4, 128>}, {pipeline_mode = #tpu.pipeline_mode<synchronous>, transform_indices = @transform_3, window_bounds = array<i64: 1, 128>}, {pipeline_mode = #tpu.pipeline_mode<synchronous>, transform_indices = @transform_4, window_bounds = array<i64: 1, 128>}, {pipeline_mode = #tpu.pipeline_mode<synchronous>, transform_indices = @transform_5, window_bounds = array<i64: 3, 3, 128>}, {pipeline_mode = #tpu.pipeline_mode<synchronous>, transform_indices = @transform_6, window_bounds = array<i64: 1, 128>}, {pipeline_mode = #tpu.pipeline_mode<synchronous>, transform_indices = @transform_7, window_bounds = array<i64: 1, 128>}, {pipeline_mode = #tpu.pipeline_mode<synchronous>, transform_indices = @transform_8, window_bounds = array<i64: 4, 128>}, {pipeline_mode = #tpu.pipeline_mode<synchronous>, transform_indices = @transform_9, window_bounds = array<i64: 4, 1>}, {pipeline_mode = #tpu.pipeline_mode<synchronous>, transform_indices = @transform_10, window_bounds = array<i64: 4, 1>}, {transform_indices = @transform_11, window_bounds = array<i64: 1, 4, 256>}]} {
    %c16_i32 = arith.constant 16 : i32
    %0 = arith.muli %arg1, %c16_i32 : i32
    %c1_i32 = arith.constant 1 : i32
    %1 = arith.subi %0, %c1_i32 : i32
    %c0_i32 = arith.constant 0 : i32
    %2 = arith.maxsi %1, %c0_i32 : i32
    %c18_i32 = arith.constant 18 : i32
    %3 = arith.addi %1, %c18_i32 : i32
    %c1_i32_0 = arith.constant 1 : i32
    %4 = arith.subi %3, %c1_i32_0 : i32
    %c15_i32 = arith.constant 15 : i32
    %5 = arith.minsi %4, %c15_i32 : i32
    %c0 = arith.constant 0 : index
    %6 = arith.index_cast %2 : i32 to index
    %c0_1 = arith.constant 0 : index
    %c0_2 = arith.constant 0 : index
    %7 = vector.load %arg2[%c0, %6, %c0_1, %c0_2] : memref<1x16x16x4xf32, #tpu.memory_space<vmem>>, vector<1x1x16x4xf32>
    %8 = vector.shape_cast %7 : vector<1x1x16x4xf32> to vector<1x16x4xf32>
    %c1_i32_3 = arith.constant 1 : i32
    %9 = arith.addi %1, %c1_i32_3 : i32
    %c0_4 = arith.constant 0 : index
    %10 = arith.index_cast %9 : i32 to index
    %c0_5 = arith.constant 0 : index
    %c0_6 = arith.constant 0 : index
    %11 = vector.load %arg2[%c0_4, %10, %c0_5, %c0_6] : memref<1x16x16x4xf32, #tpu.memory_space<vmem>>, vector<1x16x16x4xf32>
    %12 = vector.shape_cast %11 : vector<1x16x16x4xf32> to vector<16x16x4xf32>
    %c0_7 = arith.constant 0 : index
    %13 = arith.index_cast %5 : i32 to index
    %c0_8 = arith.constant 0 : index
    %c0_9 = arith.constant 0 : index
    %14 = vector.load %arg2[%c0_7, %13, %c0_8, %c0_9] : memref<1x16x16x4xf32, #tpu.memory_space<vmem>>, vector<1x1x16x4xf32>
    %15 = vector.shape_cast %14 : vector<1x1x16x4xf32> to vector<1x16x4xf32>
    %16 = tpu.concatenate %8, %12, %15 in 0 : vector<1x16x4xf32>, vector<16x16x4xf32>, vector<1x16x4xf32> -> vector<18x16x4xf32>
    %17 = vector.shape_cast %16 : vector<18x16x4xf32> to vector<288x4xf32>
    %18 = arith.truncf %17 : vector<288x4xf32> to vector<288x4xbf16>
    %c0_10 = arith.constant 0 : index
    %c0_11 = arith.constant 0 : index
    %19 = vector.load %arg4[%c0_10, %c0_11] : memref<4x128xbf16, #tpu.memory_space<vmem>>, vector<4x128xbf16>
    %cst = arith.constant dense<0.000000e+00> : vector<288x128xf32>
    %20 = tpu.matmul %18, %19, %cst {dimension_numbers = #tpu.dot_dimension_numbers<[1], [0], [0], [1], [0, 0, 1, 1], [], []>} : vector<288x4xbf16>, vector<4x128xbf16>, vector<288x128xf32> -> vector<288x128xf32>
    %c0_12 = arith.constant 0 : index
    %c0_13 = arith.constant 0 : index
    %21 = vector.load %arg5[%c0_12, %c0_13] : memref<1x128xf32, #tpu.memory_space<vmem>>, vector<1x128xf32>
    %22 = vector.broadcast %21 : vector<1x128xf32> to vector<288x128xf32>
    %23 = arith.mulf %20, %22 : vector<288x128xf32>
    %c0_14 = arith.constant 0 : index
    %c0_15 = arith.constant 0 : index
    %24 = vector.load %arg6[%c0_14, %c0_15] : memref<1x128xf32, #tpu.memory_space<vmem>>, vector<1x128xf32>
    %25 = vector.broadcast %24 : vector<1x128xf32> to vector<288x128xf32>
    %26 = arith.addf %23, %25 : vector<288x128xf32>
    %cst_16 = arith.constant 0.000000e+00 : f32
    %cst_17 = arith.constant 6.000000e+00 : f32
    %27 = vector.broadcast %cst_16 : f32 to vector<288x128xf32>
    %28 = arith.maximumf %27, %26 : vector<288x128xf32>
    %29 = vector.broadcast %cst_17 : f32 to vector<288x128xf32>
    %30 = arith.minimumf %29, %28 : vector<288x128xf32>
    %31 = vector.shape_cast %30 : vector<288x128xf32> to vector<18x16x128xf32>
    %32 = tpu.iota {dimensions = array<i32: 0>} : vector<18x1x1xi32>
    %33 = vector.broadcast %1 : i32 to vector<18x1x1xi32>
    %34 = arith.addi %32, %33 : vector<18x1x1xi32>
    %c0_i32_18 = arith.constant 0 : i32
    %35 = vector.broadcast %c0_i32_18 : i32 to vector<18x1x1xi32>
    %36 = arith.cmpi sge, %34, %35 : vector<18x1x1xi32>
    %c16_i32_19 = arith.constant 16 : i32
    %37 = vector.broadcast %c16_i32_19 : i32 to vector<18x1x1xi32>
    %38 = arith.cmpi slt, %34, %37 : vector<18x1x1xi32>
    %39 = arith.andi %36, %38 : vector<18x1x1xi1>
    %cst_20 = arith.constant 0.000000e+00 : f32
    %40 = vector.shape_cast %39 : vector<18x1x1xi1> to vector<18x1x1xi1>
    %41 = vector.broadcast %40 : vector<18x1x1xi1> to vector<18x16x128xi1>
    %42 = vector.broadcast %cst_20 : f32 to vector<18x16x128xf32>
    %43 = arith.select %41, %31, %42 : vector<18x16x128xi1>, vector<18x16x128xf32>
    %cst_21 = arith.constant 0.000000e+00 : bf16
    %44 = vector.broadcast %cst_21 : bf16 to vector<18x1x128xbf16>
    %45 = arith.truncf %43 : vector<18x16x128xf32> to vector<18x16x128xbf16>
    %c0_22 = arith.constant 0 : index
    %c1 = arith.constant 1 : index
    %c0_23 = arith.constant 0 : index
    %46 = vector.load %arg15[%c0_22, %c1, %c0_23] : memref<18x18x128xbf16, #tpu.memory_space<vmem>>, vector<18x16x128xbf16>
    tpu.vector_store %arg15[%c0_22, %c1, %c0_23], %45 {strides = array<i32>} : memref<18x18x128xbf16, #tpu.memory_space<vmem>>, vector<18x16x128xbf16>,
    %c0_24 = arith.constant 0 : index
    %c0_25 = arith.constant 0 : index
    %c0_26 = arith.constant 0 : index
    %47 = vector.load %arg15[%c0_24, %c0_25, %c0_26] : memref<18x18x128xbf16, #tpu.memory_space<vmem>>, vector<18x1x128xbf16>
    tpu.vector_store %arg15[%c0_24, %c0_25, %c0_26], %44 {strides = array<i32>} : memref<18x18x128xbf16, #tpu.memory_space<vmem>>, vector<18x1x128xbf16>,
    %c0_27 = arith.constant 0 : index
    %c17 = arith.constant 17 : index
    %c0_28 = arith.constant 0 : index
    %48 = vector.load %arg15[%c0_27, %c17, %c0_28] : memref<18x18x128xbf16, #tpu.memory_space<vmem>>, vector<18x1x128xbf16>
    tpu.vector_store %arg15[%c0_27, %c17, %c0_28], %44 {strides = array<i32>} : memref<18x18x128xbf16, #tpu.memory_space<vmem>>, vector<18x1x128xbf16>,
    %c0_29 = arith.constant 0 : index
    %c0_30 = arith.constant 0 : index
    %c0_31 = arith.constant 0 : index
    %49 = vector.load %arg7[%c0_29, %c0_30, %c0_31] : memref<3x3x128xf32, #tpu.memory_space<vmem>>, vector<3x3x128xf32>
    %c0_32 = arith.constant 0 : index
    %c0_33 = arith.constant 0 : index
    %50 = vector.load %arg8[%c0_32, %c0_33] : memref<1x128xf32, #tpu.memory_space<vmem>>, vector<1x128xf32>
    %c0_34 = arith.constant 0 : index
    %c0_35 = arith.constant 0 : index
    %51 = vector.load %arg9[%c0_34, %c0_35] : memref<1x128xf32, #tpu.memory_space<vmem>>, vector<1x128xf32>
    %cst_36 = arith.constant 0.000000e+00 : f32
    %52 = vector.broadcast %cst_36 : f32 to vector<16x128xf32>
    %c0_37 = arith.constant 0 : index
    %c0_38 = arith.constant 0 : index
    %c0_39 = arith.constant 0 : index
    %53 = vector.load %arg15[%c0_37, %c0_38, %c0_39] : memref<18x18x128xbf16, #tpu.memory_space<vmem>>, vector<1x16x128xbf16>
    %54 = vector.shape_cast %53 : vector<1x16x128xbf16> to vector<16x128xbf16>
    %55 = vector.extract_strided_slice %49 {offsets = [0, 0, 0], sizes = [1, 1, 128], strides = [1, 1, 1]} : vector<3x3x128xf32> to vector<1x1x128xf32>
    %56 = vector.shape_cast %55 : vector<1x1x128xf32> to vector<128xf32>
    %57 = arith.extf %54 : vector<16x128xbf16> to vector<16x128xf32>
    %58 = vector.shape_cast %56 : vector<128xf32> to vector<1x128xf32>
    %59 = vector.broadcast %58 : vector<1x128xf32> to vector<16x128xf32>
    %60 = arith.mulf %57, %59 : vector<16x128xf32>
    %61 = arith.addf %52, %60 : vector<16x128xf32>
    %c0_40 = arith.constant 0 : index
    %c1_41 = arith.constant 1 : index
    %c0_42 = arith.constant 0 : index
    %62 = vector.load %arg15[%c0_40, %c1_41, %c0_42] : memref<18x18x128xbf16, #tpu.memory_space<vmem>>, vector<1x16x128xbf16>
    %63 = vector.shape_cast %62 : vector<1x16x128xbf16> to vector<16x128xbf16>
    %64 = vector.extract_strided_slice %49 {offsets = [0, 1, 0], sizes = [1, 1, 128], strides = [1, 1, 1]} : vector<3x3x128xf32> to vector<1x1x128xf32>
    %65 = vector.shape_cast %64 : vector<1x1x128xf32> to vector<128xf32>
    %66 = arith.extf %63 : vector<16x128xbf16> to vector<16x128xf32>
    %67 = vector.shape_cast %65 : vector<128xf32> to vector<1x128xf32>
    %68 = vector.broadcast %67 : vector<1x128xf32> to vector<16x128xf32>
    %69 = arith.mulf %66, %68 : vector<16x128xf32>
    %70 = arith.addf %61, %69 : vector<16x128xf32>
    %c0_43 = arith.constant 0 : index
    %c2 = arith.constant 2 : index
    %c0_44 = arith.constant 0 : index
    %71 = vector.load %arg15[%c0_43, %c2, %c0_44] : memref<18x18x128xbf16, #tpu.memory_space<vmem>>, vector<1x16x128xbf16>
    %72 = vector.shape_cast %71 : vector<1x16x128xbf16> to vector<16x128xbf16>
    %73 = vector.extract_strided_slice %49 {offsets = [0, 2, 0], sizes = [1, 1, 128], strides = [1, 1, 1]} : vector<3x3x128xf32> to vector<1x1x128xf32>
    %74 = vector.shape_cast %73 : vector<1x1x128xf32> to vector<128xf32>
    %75 = arith.extf %72 : vector<16x128xbf16> to vector<16x128xf32>
    %76 = vector.shape_cast %74 : vector<128xf32> to vector<1x128xf32>
    %77 = vector.broadcast %76 : vector<1x128xf32> to vector<16x128xf32>
    %78 = arith.mulf %75, %77 : vector<16x128xf32>
    %79 = arith.addf %70, %78 : vector<16x128xf32>
    %c1_45 = arith.constant 1 : index
    %c0_46 = arith.constant 0 : index
    %c0_47 = arith.constant 0 : index
    %80 = vector.load %arg15[%c1_45, %c0_46, %c0_47] : memref<18x18x128xbf16, #tpu.memory_space<vmem>>, vector<1x16x128xbf16>
    %81 = vector.shape_cast %80 : vector<1x16x128xbf16> to vector<16x128xbf16>
    %82 = vector.extract_strided_slice %49 {offsets = [1, 0, 0], sizes = [1, 1, 128], strides = [1, 1, 1]} : vector<3x3x128xf32> to vector<1x1x128xf32>
    %83 = vector.shape_cast %82 : vector<1x1x128xf32> to vector<128xf32>
    %84 = arith.extf %81 : vector<16x128xbf16> to vector<16x128xf32>
    %85 = vector.shape_cast %83 : vector<128xf32> to vector<1x128xf32>
    %86 = vector.broadcast %85 : vector<1x128xf32> to vector<16x128xf32>
    %87 = arith.mulf %84, %86 : vector<16x128xf32>
    %88 = arith.addf %79, %87 : vector<16x128xf32>
    %c1_48 = arith.constant 1 : index
    %c1_49 = arith.constant 1 : index
    %c0_50 = arith.constant 0 : index
    %89 = vector.load %arg15[%c1_48, %c1_49, %c0_50] : memref<18x18x128xbf16, #tpu.memory_space<vmem>>, vector<1x16x128xbf16>
    %90 = vector.shape_cast %89 : vector<1x16x128xbf16> to vector<16x128xbf16>
    %91 = vector.extract_strided_slice %49 {offsets = [1, 1, 0], sizes = [1, 1, 128], strides = [1, 1, 1]} : vector<3x3x128xf32> to vector<1x1x128xf32>
    %92 = vector.shape_cast %91 : vector<1x1x128xf32> to vector<128xf32>
    %93 = arith.extf %90 : vector<16x128xbf16> to vector<16x128xf32>
    %94 = vector.shape_cast %92 : vector<128xf32> to vector<1x128xf32>
    %95 = vector.broadcast %94 : vector<1x128xf32> to vector<16x128xf32>
    %96 = arith.mulf %93, %95 : vector<16x128xf32>
    %97 = arith.addf %88, %96 : vector<16x128xf32>
    %c1_51 = arith.constant 1 : index
    %c2_52 = arith.constant 2 : index
    %c0_53 = arith.constant 0 : index
    %98 = vector.load %arg15[%c1_51, %c2_52, %c0_53] : memref<18x18x128xbf16, #tpu.memory_space<vmem>>, vector<1x16x128xbf16>
    %99 = vector.shape_cast %98 : vector<1x16x128xbf16> to vector<16x128xbf16>
    %100 = vector.extract_strided_slice %49 {offsets = [1, 2, 0], sizes = [1, 1, 128], strides = [1, 1, 1]} : vector<3x3x128xf32> to vector<1x1x128xf32>
    %101 = vector.shape_cast %100 : vector<1x1x128xf32> to vector<128xf32>
    %102 = arith.extf %99 : vector<16x128xbf16> to vector<16x128xf32>
    %103 = vector.shape_cast %101 : vector<128xf32> to vector<1x128xf32>
    %104 = vector.broadcast %103 : vector<1x128xf32> to vector<16x128xf32>
    %105 = arith.mulf %102, %104 : vector<16x128xf32>
    %106 = arith.addf %97, %105 : vector<16x128xf32>
    %c2_54 = arith.constant 2 : index
    %c0_55 = arith.constant 0 : index
    %c0_56 = arith.constant 0 : index
    %107 = vector.load %arg15[%c2_54, %c0_55, %c0_56] : memref<18x18x128xbf16, #tpu.memory_space<vmem>>, vector<1x16x128xbf16>
    %108 = vector.shape_cast %107 : vector<1x16x128xbf16> to vector<16x128xbf16>
    %109 = vector.extract_strided_slice %49 {offsets = [2, 0, 0], sizes = [1, 1, 128], strides = [1, 1, 1]} : vector<3x3x128xf32> to vector<1x1x128xf32>
    %110 = vector.shape_cast %109 : vector<1x1x128xf32> to vector<128xf32>
    %111 = arith.extf %108 : vector<16x128xbf16> to vector<16x128xf32>
    %112 = vector.shape_cast %110 : vector<128xf32> to vector<1x128xf32>
    %113 = vector.broadcast %112 : vector<1x128xf32> to vector<16x128xf32>
    %114 = arith.mulf %111, %113 : vector<16x128xf32>
    %115 = arith.addf %106, %114 : vector<16x128xf32>
    %c2_57 = arith.constant 2 : index
    %c1_58 = arith.constant 1 : index
    %c0_59 = arith.constant 0 : index
    %116 = vector.load %arg15[%c2_57, %c1_58, %c0_59] : memref<18x18x128xbf16, #tpu.memory_space<vmem>>, vector<1x16x128xbf16>
    %117 = vector.shape_cast %116 : vector<1x16x128xbf16> to vector<16x128xbf16>
    %118 = vector.extract_strided_slice %49 {offsets = [2, 1, 0], sizes = [1, 1, 128], strides = [1, 1, 1]} : vector<3x3x128xf32> to vector<1x1x128xf32>
    %119 = vector.shape_cast %118 : vector<1x1x128xf32> to vector<128xf32>
    %120 = arith.extf %117 : vector<16x128xbf16> to vector<16x128xf32>
    %121 = vector.shape_cast %119 : vector<128xf32> to vector<1x128xf32>
    %122 = vector.broadcast %121 : vector<1x128xf32> to vector<16x128xf32>
    %123 = arith.mulf %120, %122 : vector<16x128xf32>
    %124 = arith.addf %115, %123 : vector<16x128xf32>
    %c2_60 = arith.constant 2 : index
    %c2_61 = arith.constant 2 : index
    %c0_62 = arith.constant 0 : index
    %125 = vector.load %arg15[%c2_60, %c2_61, %c0_62] : memref<18x18x128xbf16, #tpu.memory_space<vmem>>, vector<1x16x128xbf16>
    %126 = vector.shape_cast %125 : vector<1x16x128xbf16> to vector<16x128xbf16>
    %127 = vector.extract_strided_slice %49 {offsets = [2, 2, 0], sizes = [1, 1, 128], strides = [1, 1, 1]} : vector<3x3x128xf32> to vector<1x1x128xf32>
    %128 = vector.shape_cast %127 : vector<1x1x128xf32> to vector<128xf32>
    %129 = arith.extf %126 : vector<16x128xbf16> to vector<16x128xf32>
    %130 = vector.shape_cast %128 : vector<128xf32> to vector<1x128xf32>
    %131 = vector.broadcast %130 : vector<1x128xf32> to vector<16x128xf32>
    %132 = arith.mulf %129, %131 : vector<16x128xf32>
    %133 = arith.addf %124, %132 : vector<16x128xf32>
    %134 = vector.broadcast %50 : vector<1x128xf32> to vector<16x128xf32>
    %135 = arith.mulf %133, %134 : vector<16x128xf32>
    %136 = vector.broadcast %51 : vector<1x128xf32> to vector<16x128xf32>
    %137 = arith.addf %135, %136 : vector<16x128xf32>
    %cst_63 = arith.constant 0.000000e+00 : f32
    %cst_64 = arith.constant 6.000000e+00 : f32
    %138 = vector.broadcast %cst_63 : f32 to vector<16x128xf32>
    %139 = arith.maximumf %138, %137 : vector<16x128xf32>
    %140 = vector.broadcast %cst_64 : f32 to vector<16x128xf32>
    %141 = arith.minimumf %140, %139 : vector<16x128xf32>
    %142 = arith.truncf %141 : vector<16x128xf32> to vector<16x128xbf16>
    %c0_65 = arith.constant 0 : index
    %c0_66 = arith.constant 0 : index
    %143 = vector.load %arg14[%c0_65, %c0_66] : memref<256x128xbf16, #tpu.memory_space<vmem>>, vector<16x128xbf16>
    tpu.vector_store %arg14[%c0_65, %c0_66], %142 {strides = array<i32>} : memref<256x128xbf16, #tpu.memory_space<vmem>>, vector<16x128xbf16>,
    %cst_67 = arith.constant 0.000000e+00 : f32
    %144 = vector.broadcast %cst_67 : f32 to vector<16x128xf32>
    %c1_68 = arith.constant 1 : index
    %c0_69 = arith.constant 0 : index
    %c0_70 = arith.constant 0 : index
    %145 = vector.load %arg15[%c1_68, %c0_69, %c0_70] : memref<18x18x128xbf16, #tpu.memory_space<vmem>>, vector<1x16x128xbf16>
    %146 = vector.shape_cast %145 : vector<1x16x128xbf16> to vector<16x128xbf16>
    %147 = vector.extract_strided_slice %49 {offsets = [0, 0, 0], sizes = [1, 1, 128], strides = [1, 1, 1]} : vector<3x3x128xf32> to vector<1x1x128xf32>
    %148 = vector.shape_cast %147 : vector<1x1x128xf32> to vector<128xf32>
    %149 = arith.extf %146 : vector<16x128xbf16> to vector<16x128xf32>
    %150 = vector.shape_cast %148 : vector<128xf32> to vector<1x128xf32>
    %151 = vector.broadcast %150 : vector<1x128xf32> to vector<16x128xf32>
    %152 = arith.mulf %149, %151 : vector<16x128xf32>
    %153 = arith.addf %144, %152 : vector<16x128xf32>
    %c1_71 = arith.constant 1 : index
    %c1_72 = arith.constant 1 : index
    %c0_73 = arith.constant 0 : index
    %154 = vector.load %arg15[%c1_71, %c1_72, %c0_73] : memref<18x18x128xbf16, #tpu.memory_space<vmem>>, vector<1x16x128xbf16>
    %155 = vector.shape_cast %154 : vector<1x16x128xbf16> to vector<16x128xbf16>
    %156 = vector.extract_strided_slice %49 {offsets = [0, 1, 0], sizes = [1, 1, 128], strides = [1, 1, 1]} : vector<3x3x128xf32> to vector<1x1x128xf32>
    %157 = vector.shape_cast %156 : vector<1x1x128xf32> to vector<128xf32>
    %158 = arith.extf %155 : vector<16x128xbf16> to vector<16x128xf32>
    %159 = vector.shape_cast %157 : vector<128xf32> to vector<1x128xf32>
    %160 = vector.broadcast %159 : vector<1x128xf32> to vector<16x128xf32>
    %161 = arith.mulf %158, %160 : vector<16x128xf32>
    %162 = arith.addf %153, %161 : vector<16x128xf32>
    %c1_74 = arith.constant 1 : index
    %c2_75 = arith.constant 2 : index
    %c0_76 = arith.constant 0 : index
    %163 = vector.load %arg15[%c1_74, %c2_75, %c0_76] : memref<18x18x128xbf16, #tpu.memory_space<vmem>>, vector<1x16x128xbf16>
    %164 = vector.shape_cast %163 : vector<1x16x128xbf16> to vector<16x128xbf16>
    %165 = vector.extract_strided_slice %49 {offsets = [0, 2, 0], sizes = [1, 1, 128], strides = [1, 1, 1]} : vector<3x3x128xf32> to vector<1x1x128xf32>
    %166 = vector.shape_cast %165 : vector<1x1x128xf32> to vector<128xf32>
    %167 = arith.extf %164 : vector<16x128xbf16> to vector<16x128xf32>
    %168 = vector.shape_cast %166 : vector<128xf32> to vector<1x128xf32>
    %169 = vector.broadcast %168 : vector<1x128xf32> to vector<16x128xf32>
    %170 = arith.mulf %167, %169 : vector<16x128xf32>
    %171 = arith.addf %162, %170 : vector<16x128xf32>
    %c2_77 = arith.constant 2 : index
    %c0_78 = arith.constant 0 : index
    %c0_79 = arith.constant 0 : index
    %172 = vector.load %arg15[%c2_77, %c0_78, %c0_79] : memref<18x18x128xbf16, #tpu.memory_space<vmem>>, vector<1x16x128xbf16>
    %173 = vector.shape_cast %172 : vector<1x16x128xbf16> to vector<16x128xbf16>
    %174 = vector.extract_strided_slice %49 {offsets = [1, 0, 0], sizes = [1, 1, 128], strides = [1, 1, 1]} : vector<3x3x128xf32> to vector<1x1x128xf32>
    %175 = vector.shape_cast %174 : vector<1x1x128xf32> to vector<128xf32>
    %176 = arith.extf %173 : vector<16x128xbf16> to vector<16x128xf32>
    %177 = vector.shape_cast %175 : vector<128xf32> to vector<1x128xf32>
    %178 = vector.broadcast %177 : vector<1x128xf32> to vector<16x128xf32>
    %179 = arith.mulf %176, %178 : vector<16x128xf32>
    %180 = arith.addf %171, %179 : vector<16x128xf32>
    %c2_80 = arith.constant 2 : index
    %c1_81 = arith.constant 1 : index
    %c0_82 = arith.constant 0 : index
    %181 = vector.load %arg15[%c2_80, %c1_81, %c0_82] : memref<18x18x128xbf16, #tpu.memory_space<vmem>>, vector<1x16x128xbf16>
    %182 = vector.shape_cast %181 : vector<1x16x128xbf16> to vector<16x128xbf16>
    %183 = vector.extract_strided_slice %49 {offsets = [1, 1, 0], sizes = [1, 1, 128], strides = [1, 1, 1]} : vector<3x3x128xf32> to vector<1x1x128xf32>
    %184 = vector.shape_cast %183 : vector<1x1x128xf32> to vector<128xf32>
    %185 = arith.extf %182 : vector<16x128xbf16> to vector<16x128xf32>
    %186 = vector.shape_cast %184 : vector<128xf32> to vector<1x128xf32>
    %187 = vector.broadcast %186 : vector<1x128xf32> to vector<16x128xf32>
    %188 = arith.mulf %185, %187 : vector<16x128xf32>
    %189 = arith.addf %180, %188 : vector<16x128xf32>
    %c2_83 = arith.constant 2 : index
    %c2_84 = arith.constant 2 : index
    %c0_85 = arith.constant 0 : index
    %190 = vector.load %arg15[%c2_83, %c2_84, %c0_85] : memref<18x18x128xbf16, #tpu.memory_space<vmem>>, vector<1x16x128xbf16>
    %191 = vector.shape_cast %190 : vector<1x16x128xbf16> to vector<16x128xbf16>
    %192 = vector.extract_strided_slice %49 {offsets = [1, 2, 0], sizes = [1, 1, 128], strides = [1, 1, 1]} : vector<3x3x128xf32> to vector<1x1x128xf32>
    %193 = vector.shape_cast %192 : vector<1x1x128xf32> to vector<128xf32>
    %194 = arith.extf %191 : vector<16x128xbf16> to vector<16x128xf32>
    %195 = vector.shape_cast %193 : vector<128xf32> to vector<1x128xf32>
    %196 = vector.broadcast %195 : vector<1x128xf32> to vector<16x128xf32>
    %197 = arith.mulf %194, %196 : vector<16x128xf32>
    %198 = arith.addf %189, %197 : vector<16x128xf32>
    %c3 = arith.constant 3 : index
    %c0_86 = arith.constant 0 : index
    %c0_87 = arith.constant 0 : index
    %199 = vector.load %arg15[%c3, %c0_86, %c0_87] : memref<18x18x128xbf16, #tpu.memory_space<vmem>>, vector<1x16x128xbf16>
    %200 = vector.shape_cast %199 : vector<1x16x128xbf16> to vector<16x128xbf16>
    %201 = vector.extract_strided_slice %49 {offsets = [2, 0, 0], sizes = [1, 1, 128], strides = [1, 1, 1]} : vector<3x3x128xf32> to vector<1x1x128xf32>
    %202 = vector.shape_cast %201 : vector<1x1x128xf32> to vector<128xf32>
    %203 = arith.extf %200 : vector<16x128xbf16> to vector<16x128xf32>
    %204 = vector.shape_cast %202 : vector<128xf32> to vector<1x128xf32>
    %205 = vector.broadcast %204 : vector<1x128xf32> to vector<16x128xf32>
    %206 = arith.mulf %203, %205 : vector<16x128xf32>
    %207 = arith.addf %198, %206 : vector<16x128xf32>
    %c3_88 = arith.constant 3 : index
    %c1_89 = arith.constant 1 : index
    %c0_90 = arith.constant 0 : index
    %208 = vector.load %arg15[%c3_88, %c1_89, %c0_90] : memref<18x18x128xbf16, #tpu.memory_space<vmem>>, vector<1x16x128xbf16>
    %209 = vector.shape_cast %208 : vector<1x16x128xbf16> to vector<16x128xbf16>
    %210 = vector.extract_strided_slice %49 {offsets = [2, 1, 0], sizes = [1, 1, 128], strides = [1, 1, 1]} : vector<3x3x128xf32> to vector<1x1x128xf32>
    %211 = vector.shape_cast %210 : vector<1x1x128xf32> to vector<128xf32>
    %212 = arith.extf %209 : vector<16x128xbf16> to vector<16x128xf32>
    %213 = vector.shape_cast %211 : vector<128xf32> to vector<1x128xf32>
    %214 = vector.broadcast %213 : vector<1x128xf32> to vector<16x128xf32>
    %215 = arith.mulf %212, %214 : vector<16x128xf32>
    %216 = arith.addf %207, %215 : vector<16x128xf32>
    %c3_91 = arith.constant 3 : index
    %c2_92 = arith.constant 2 : index
    %c0_93 = arith.constant 0 : index
    %217 = vector.load %arg15[%c3_91, %c2_92, %c0_93] : memref<18x18x128xbf16, #tpu.memory_space<vmem>>, vector<1x16x128xbf16>
    %218 = vector.shape_cast %217 : vector<1x16x128xbf16> to vector<16x128xbf16>
    %219 = vector.extract_strided_slice %49 {offsets = [2, 2, 0], sizes = [1, 1, 128], strides = [1, 1, 1]} : vector<3x3x128xf32> to vector<1x1x128xf32>
    %220 = vector.shape_cast %219 : vector<1x1x128xf32> to vector<128xf32>
    %221 = arith.extf %218 : vector<16x128xbf16> to vector<16x128xf32>
    %222 = vector.shape_cast %220 : vector<128xf32> to vector<1x128xf32>
    %223 = vector.broadcast %222 : vector<1x128xf32> to vector<16x128xf32>
    %224 = arith.mulf %221, %223 : vector<16x128xf32>
    %225 = arith.addf %216, %224 : vector<16x128xf32>
    %226 = vector.broadcast %50 : vector<1x128xf32> to vector<16x128xf32>
    %227 = arith.mulf %225, %226 : vector<16x128xf32>
    %228 = vector.broadcast %51 : vector<1x128xf32> to vector<16x128xf32>
    %229 = arith.addf %227, %228 : vector<16x128xf32>
    %cst_94 = arith.constant 0.000000e+00 : f32
    %cst_95 = arith.constant 6.000000e+00 : f32
    %230 = vector.broadcast %cst_94 : f32 to vector<16x128xf32>
    %231 = arith.maximumf %230, %229 : vector<16x128xf32>
    %232 = vector.broadcast %cst_95 : f32 to vector<16x128xf32>
    %233 = arith.minimumf %232, %231 : vector<16x128xf32>
    %234 = arith.truncf %233 : vector<16x128xf32> to vector<16x128xbf16>
    %c16 = arith.constant 16 : index
    %c0_96 = arith.constant 0 : index
    %235 = vector.load %arg14[%c16, %c0_96] : memref<256x128xbf16, #tpu.memory_space<vmem>>, vector<16x128xbf16>
    tpu.vector_store %arg14[%c16, %c0_96], %234 {strides = array<i32>} : memref<256x128xbf16, #tpu.memory_space<vmem>>, vector<16x128xbf16>,
    %cst_97 = arith.constant 0.000000e+00 : f32
    %236 = vector.broadcast %cst_97 : f32 to vector<16x128xf32>
    %c2_98 = arith.constant 2 : index
    %c0_99 = arith.constant 0 : index
    %c0_100 = arith.constant 0 : index
    %237 = vector.load %arg15[%c2_98, %c0_99, %c0_100] : memref<18x18x128xbf16, #tpu.memory_space<vmem>>, vector<1x16x128xbf16>
    %238 = vector.shape_cast %237 : vector<1x16x128xbf16> to vector<16x128xbf16>
    %239 = vector.extract_strided_slice %49 {offsets = [0, 0, 0], sizes = [1, 1, 128], strides = [1, 1, 1]} : vector<3x3x128xf32> to vector<1x1x128xf32>
    %240 = vector.shape_cast %239 : vector<1x1x128xf32> to vector<128xf32>
    %241 = arith.extf %238 : vector<16x128xbf16> to vector<16x128xf32>
    %242 = vector.shape_cast %240 : vector<128xf32> to vector<1x128xf32>
    %243 = vector.broadcast %242 : vector<1x128xf32> to vector<16x128xf32>
    %244 = arith.mulf %241, %243 : vector<16x128xf32>
    %245 = arith.addf %236, %244 : vector<16x128xf32>
    %c2_101 = arith.constant 2 : index
    %c1_102 = arith.constant 1 : index
    %c0_103 = arith.constant 0 : index
    %246 = vector.load %arg15[%c2_101, %c1_102, %c0_103] : memref<18x18x128xbf16, #tpu.memory_space<vmem>>, vector<1x16x128xbf16>
    %247 = vector.shape_cast %246 : vector<1x16x128xbf16> to vector<16x128xbf16>
    %248 = vector.extract_strided_slice %49 {offsets = [0, 1, 0], sizes = [1, 1, 128], strides = [1, 1, 1]} : vector<3x3x128xf32> to vector<1x1x128xf32>
    %249 = vector.shape_cast %248 : vector<1x1x128xf32> to vector<128xf32>
    %250 = arith.extf %247 : vector<16x128xbf16> to vector<16x128xf32>
    %251 = vector.shape_cast %249 : vector<128xf32> to vector<1x128xf32>
    %252 = vector.broadcast %251 : vector<1x128xf32> to vector<16x128xf32>
    %253 = arith.mulf %250, %252 : vector<16x128xf32>
    %254 = arith.addf %245, %253 : vector<16x128xf32>
    %c2_104 = arith.constant 2 : index
    %c2_105 = arith.constant 2 : index
    %c0_106 = arith.constant 0 : index
    %255 = vector.load %arg15[%c2_104, %c2_105, %c0_106] : memref<18x18x128xbf16, #tpu.memory_space<vmem>>, vector<1x16x128xbf16>
    %256 = vector.shape_cast %255 : vector<1x16x128xbf16> to vector<16x128xbf16>
    %257 = vector.extract_strided_slice %49 {offsets = [0, 2, 0], sizes = [1, 1, 128], strides = [1, 1, 1]} : vector<3x3x128xf32> to vector<1x1x128xf32>
    %258 = vector.shape_cast %257 : vector<1x1x128xf32> to vector<128xf32>
    %259 = arith.extf %256 : vector<16x128xbf16> to vector<16x128xf32>
    %260 = vector.shape_cast %258 : vector<128xf32> to vector<1x128xf32>
    %261 = vector.broadcast %260 : vector<1x128xf32> to vector<16x128xf32>
    %262 = arith.mulf %259, %261 : vector<16x128xf32>
    %263 = arith.addf %254, %262 : vector<16x128xf32>
    %c3_107 = arith.constant 3 : index
    %c0_108 = arith.constant 0 : index
    %c0_109 = arith.constant 0 : index
    %264 = vector.load %arg15[%c3_107, %c0_108, %c0_109] : memref<18x18x128xbf16, #tpu.memory_space<vmem>>, vector<1x16x128xbf16>
    %265 = vector.shape_cast %264 : vector<1x16x128xbf16> to vector<16x128xbf16>
    %266 = vector.extract_strided_slice %49 {offsets = [1, 0, 0], sizes = [1, 1, 128], strides = [1, 1, 1]} : vector<3x3x128xf32> to vector<1x1x128xf32>
    %267 = vector.shape_cast %266 : vector<1x1x128xf32> to vector<128xf32>
    %268 = arith.extf %265 : vector<16x128xbf16> to vector<16x128xf32>
    %269 = vector.shape_cast %267 : vector<128xf32> to vector<1x128xf32>
    %270 = vector.broadcast %269 : vector<1x128xf32> to vector<16x128xf32>
    %271 = arith.mulf %268, %270 : vector<16x128xf32>
    %272 = arith.addf %263, %271 : vector<16x128xf32>
    %c3_110 = arith.constant 3 : index
    %c1_111 = arith.constant 1 : index
    %c0_112 = arith.constant 0 : index
    %273 = vector.load %arg15[%c3_110, %c1_111, %c0_112] : memref<18x18x128xbf16, #tpu.memory_space<vmem>>, vector<1x16x128xbf16>
    %274 = vector.shape_cast %273 : vector<1x16x128xbf16> to vector<16x128xbf16>
    %275 = vector.extract_strided_slice %49 {offsets = [1, 1, 0], sizes = [1, 1, 128], strides = [1, 1, 1]} : vector<3x3x128xf32> to vector<1x1x128xf32>
    %276 = vector.shape_cast %275 : vector<1x1x128xf32> to vector<128xf32>
    %277 = arith.extf %274 : vector<16x128xbf16> to vector<16x128xf32>
    %278 = vector.shape_cast %276 : vector<128xf32> to vector<1x128xf32>
    %279 = vector.broadcast %278 : vector<1x128xf32> to vector<16x128xf32>
    %280 = arith.mulf %277, %279 : vector<16x128xf32>
    %281 = arith.addf %272, %280 : vector<16x128xf32>
    %c3_113 = arith.constant 3 : index
    %c2_114 = arith.constant 2 : index
    %c0_115 = arith.constant 0 : index
    %282 = vector.load %arg15[%c3_113, %c2_114, %c0_115] : memref<18x18x128xbf16, #tpu.memory_space<vmem>>, vector<1x16x128xbf16>
    %283 = vector.shape_cast %282 : vector<1x16x128xbf16> to vector<16x128xbf16>
    %284 = vector.extract_strided_slice %49 {offsets = [1, 2, 0], sizes = [1, 1, 128], strides = [1, 1, 1]} : vector<3x3x128xf32> to vector<1x1x128xf32>
    %285 = vector.shape_cast %284 : vector<1x1x128xf32> to vector<128xf32>
    %286 = arith.extf %283 : vector<16x128xbf16> to vector<16x128xf32>
    %287 = vector.shape_cast %285 : vector<128xf32> to vector<1x128xf32>
    %288 = vector.broadcast %287 : vector<1x128xf32> to vector<16x128xf32>
    %289 = arith.mulf %286, %288 : vector<16x128xf32>
    %290 = arith.addf %281, %289 : vector<16x128xf32>
    %c4 = arith.constant 4 : index
    %c0_116 = arith.constant 0 : index
    %c0_117 = arith.constant 0 : index
    %291 = vector.load %arg15[%c4, %c0_116, %c0_117] : memref<18x18x128xbf16, #tpu.memory_space<vmem>>, vector<1x16x128xbf16>
    %292 = vector.shape_cast %291 : vector<1x16x128xbf16> to vector<16x128xbf16>
    %293 = vector.extract_strided_slice %49 {offsets = [2, 0, 0], sizes = [1, 1, 128], strides = [1, 1, 1]} : vector<3x3x128xf32> to vector<1x1x128xf32>
    %294 = vector.shape_cast %293 : vector<1x1x128xf32> to vector<128xf32>
    %295 = arith.extf %292 : vector<16x128xbf16> to vector<16x128xf32>
    %296 = vector.shape_cast %294 : vector<128xf32> to vector<1x128xf32>
    %297 = vector.broadcast %296 : vector<1x128xf32> to vector<16x128xf32>
    %298 = arith.mulf %295, %297 : vector<16x128xf32>
    %299 = arith.addf %290, %298 : vector<16x128xf32>
    %c4_118 = arith.constant 4 : index
    %c1_119 = arith.constant 1 : index
    %c0_120 = arith.constant 0 : index
    %300 = vector.load %arg15[%c4_118, %c1_119, %c0_120] : memref<18x18x128xbf16, #tpu.memory_space<vmem>>, vector<1x16x128xbf16>
    %301 = vector.shape_cast %300 : vector<1x16x128xbf16> to vector<16x128xbf16>
    %302 = vector.extract_strided_slice %49 {offsets = [2, 1, 0], sizes = [1, 1, 128], strides = [1, 1, 1]} : vector<3x3x128xf32> to vector<1x1x128xf32>
    %303 = vector.shape_cast %302 : vector<1x1x128xf32> to vector<128xf32>
    %304 = arith.extf %301 : vector<16x128xbf16> to vector<16x128xf32>
    %305 = vector.shape_cast %303 : vector<128xf32> to vector<1x128xf32>
    %306 = vector.broadcast %305 : vector<1x128xf32> to vector<16x128xf32>
    %307 = arith.mulf %304, %306 : vector<16x128xf32>
    %308 = arith.addf %299, %307 : vector<16x128xf32>
    %c4_121 = arith.constant 4 : index
    %c2_122 = arith.constant 2 : index
    %c0_123 = arith.constant 0 : index
    %309 = vector.load %arg15[%c4_121, %c2_122, %c0_123] : memref<18x18x128xbf16, #tpu.memory_space<vmem>>, vector<1x16x128xbf16>
    %310 = vector.shape_cast %309 : vector<1x16x128xbf16> to vector<16x128xbf16>
    %311 = vector.extract_strided_slice %49 {offsets = [2, 2, 0], sizes = [1, 1, 128], strides = [1, 1, 1]} : vector<3x3x128xf32> to vector<1x1x128xf32>
    %312 = vector.shape_cast %311 : vector<1x1x128xf32> to vector<128xf32>
    %313 = arith.extf %310 : vector<16x128xbf16> to vector<16x128xf32>
    %314 = vector.shape_cast %312 : vector<128xf32> to vector<1x128xf32>
    %315 = vector.broadcast %314 : vector<1x128xf32> to vector<16x128xf32>
    %316 = arith.mulf %313, %315 : vector<16x128xf32>
    %317 = arith.addf %308, %316 : vector<16x128xf32>
    %318 = vector.broadcast %50 : vector<1x128xf32> to vector<16x128xf32>
    %319 = arith.mulf %317, %318 : vector<16x128xf32>
    %320 = vector.broadcast %51 : vector<1x128xf32> to vector<16x128xf32>
    %321 = arith.addf %319, %320 : vector<16x128xf32>
    %cst_124 = arith.constant 0.000000e+00 : f32
    %cst_125 = arith.constant 6.000000e+00 : f32
    %322 = vector.broadcast %cst_124 : f32 to vector<16x128xf32>
    %323 = arith.maximumf %322, %321 : vector<16x128xf32>
    %324 = vector.broadcast %cst_125 : f32 to vector<16x128xf32>
    %325 = arith.minimumf %324, %323 : vector<16x128xf32>
    %326 = arith.truncf %325 : vector<16x128xf32> to vector<16x128xbf16>
    %c32 = arith.constant 32 : index
    %c0_126 = arith.constant 0 : index
    %327 = vector.load %arg14[%c32, %c0_126] : memref<256x128xbf16, #tpu.memory_space<vmem>>, vector<16x128xbf16>
    tpu.vector_store %arg14[%c32, %c0_126], %326 {strides = array<i32>} : memref<256x128xbf16, #tpu.memory_space<vmem>>, vector<16x128xbf16>,
    %cst_127 = arith.constant 0.000000e+00 : f32
    %328 = vector.broadcast %cst_127 : f32 to vector<16x128xf32>
    %c3_128 = arith.constant 3 : index
    %c0_129 = arith.constant 0 : index
    %c0_130 = arith.constant 0 : index
    %329 = vector.load %arg15[%c3_128, %c0_129, %c0_130] : memref<18x18x128xbf16, #tpu.memory_space<vmem>>, vector<1x16x128xbf16>
    %330 = vector.shape_cast %329 : vector<1x16x128xbf16> to vector<16x128xbf16>
    %331 = vector.extract_strided_slice %49 {offsets = [0, 0, 0], sizes = [1, 1, 128], strides = [1, 1, 1]} : vector<3x3x128xf32> to vector<1x1x128xf32>
    %332 = vector.shape_cast %331 : vector<1x1x128xf32> to vector<128xf32>
    %333 = arith.extf %330 : vector<16x128xbf16> to vector<16x128xf32>
    %334 = vector.shape_cast %332 : vector<128xf32> to vector<1x128xf32>
    %335 = vector.broadcast %334 : vector<1x128xf32> to vector<16x128xf32>
    %336 = arith.mulf %333, %335 : vector<16x128xf32>
    %337 = arith.addf %328, %336 : vector<16x128xf32>
    %c3_131 = arith.constant 3 : index
    %c1_132 = arith.constant 1 : index
    %c0_133 = arith.constant 0 : index
    %338 = vector.load %arg15[%c3_131, %c1_132, %c0_133] : memref<18x18x128xbf16, #tpu.memory_space<vmem>>, vector<1x16x128xbf16>
    %339 = vector.shape_cast %338 : vector<1x16x128xbf16> to vector<16x128xbf16>
    %340 = vector.extract_strided_slice %49 {offsets = [0, 1, 0], sizes = [1, 1, 128], strides = [1, 1, 1]} : vector<3x3x128xf32> to vector<1x1x128xf32>
    %341 = vector.shape_cast %340 : vector<1x1x128xf32> to vector<128xf32>
    %342 = arith.extf %339 : vector<16x128xbf16> to vector<16x128xf32>
    %343 = vector.shape_cast %341 : vector<128xf32> to vector<1x128xf32>
    %344 = vector.broadcast %343 : vector<1x128xf32> to vector<16x128xf32>
    %345 = arith.mulf %342, %344 : vector<16x128xf32>
    %346 = arith.addf %337, %345 : vector<16x128xf32>
    %c3_134 = arith.constant 3 : index
    %c2_135 = arith.constant 2 : index
    %c0_136 = arith.constant 0 : index
    %347 = vector.load %arg15[%c3_134, %c2_135, %c0_136] : memref<18x18x128xbf16, #tpu.memory_space<vmem>>, vector<1x16x128xbf16>
    %348 = vector.shape_cast %347 : vector<1x16x128xbf16> to vector<16x128xbf16>
    %349 = vector.extract_strided_slice %49 {offsets = [0, 2, 0], sizes = [1, 1, 128], strides = [1, 1, 1]} : vector<3x3x128xf32> to vector<1x1x128xf32>
    %350 = vector.shape_cast %349 : vector<1x1x128xf32> to vector<128xf32>
    %351 = arith.extf %348 : vector<16x128xbf16> to vector<16x128xf32>
    %352 = vector.shape_cast %350 : vector<128xf32> to vector<1x128xf32>
    %353 = vector.broadcast %352 : vector<1x128xf32> to vector<16x128xf32>
    %354 = arith.mulf %351, %353 : vector<16x128xf32>
    %355 = arith.addf %346, %354 : vector<16x128xf32>
    %c4_137 = arith.constant 4 : index
    %c0_138 = arith.constant 0 : index
    %c0_139 = arith.constant 0 : index
    %356 = vector.load %arg15[%c4_137, %c0_138, %c0_139] : memref<18x18x128xbf16, #tpu.memory_space<vmem>>, vector<1x16x128xbf16>
    %357 = vector.shape_cast %356 : vector<1x16x128xbf16> to vector<16x128xbf16>
    %358 = vector.extract_strided_slice %49 {offsets = [1, 0, 0], sizes = [1, 1, 128], strides = [1, 1, 1]} : vector<3x3x128xf32> to vector<1x1x128xf32>
    %359 = vector.shape_cast %358 : vector<1x1x128xf32> to vector<128xf32>
    %360 = arith.extf %357 : vector<16x128xbf16> to vector<16x128xf32>
    %361 = vector.shape_cast %359 : vector<128xf32> to vector<1x128xf32>
    %362 = vector.broadcast %361 : vector<1x128xf32> to vector<16x128xf32>
    %363 = arith.mulf %360, %362 : vector<16x128xf32>
    %364 = arith.addf %355, %363 : vector<16x128xf32>
    %c4_140 = arith.constant 4 : index
    %c1_141 = arith.constant 1 : index
    %c0_142 = arith.constant 0 : index
    %365 = vector.load %arg15[%c4_140, %c1_141, %c0_142] : memref<18x18x128xbf16, #tpu.memory_space<vmem>>, vector<1x16x128xbf16>
    %366 = vector.shape_cast %365 : vector<1x16x128xbf16> to vector<16x128xbf16>
    %367 = vector.extract_strided_slice %49 {offsets = [1, 1, 0], sizes = [1, 1, 128], strides = [1, 1, 1]} : vector<3x3x128xf32> to vector<1x1x128xf32>
    %368 = vector.shape_cast %367 : vector<1x1x128xf32> to vector<128xf32>
    %369 = arith.extf %366 : vector<16x128xbf16> to vector<16x128xf32>
    %370 = vector.shape_cast %368 : vector<128xf32> to vector<1x128xf32>
    %371 = vector.broadcast %370 : vector<1x128xf32> to vector<16x128xf32>
    %372 = arith.mulf %369, %371 : vector<16x128xf32>
    %373 = arith.addf %364, %372 : vector<16x128xf32>
    %c4_143 = arith.constant 4 : index
    %c2_144 = arith.constant 2 : index
    %c0_145 = arith.constant 0 : index
    %374 = vector.load %arg15[%c4_143, %c2_144, %c0_145] : memref<18x18x128xbf16, #tpu.memory_space<vmem>>, vector<1x16x128xbf16>
    %375 = vector.shape_cast %374 : vector<1x16x128xbf16> to vector<16x128xbf16>
    %376 = vector.extract_strided_slice %49 {offsets = [1, 2, 0], sizes = [1, 1, 128], strides = [1, 1, 1]} : vector<3x3x128xf32> to vector<1x1x128xf32>
    %377 = vector.shape_cast %376 : vector<1x1x128xf32> to vector<128xf32>
    %378 = arith.extf %375 : vector<16x128xbf16> to vector<16x128xf32>
    %379 = vector.shape_cast %377 : vector<128xf32> to vector<1x128xf32>
    %380 = vector.broadcast %379 : vector<1x128xf32> to vector<16x128xf32>
    %381 = arith.mulf %378, %380 : vector<16x128xf32>
    %382 = arith.addf %373, %381 : vector<16x128xf32>
    %c5 = arith.constant 5 : index
    %c0_146 = arith.constant 0 : index
    %c0_147 = arith.constant 0 : index
    %383 = vector.load %arg15[%c5, %c0_146, %c0_147] : memref<18x18x128xbf16, #tpu.memory_space<vmem>>, vector<1x16x128xbf16>
    %384 = vector.shape_cast %383 : vector<1x16x128xbf16> to vector<16x128xbf16>
    %385 = vector.extract_strided_slice %49 {offsets = [2, 0, 0], sizes = [1, 1, 128], strides = [1, 1, 1]} : vector<3x3x128xf32> to vector<1x1x128xf32>
    %386 = vector.shape_cast %385 : vector<1x1x128xf32> to vector<128xf32>
    %387 = arith.extf %384 : vector<16x128xbf16> to vector<16x128xf32>
    %388 = vector.shape_cast %386 : vector<128xf32> to vector<1x128xf32>
    %389 = vector.broadcast %388 : vector<1x128xf32> to vector<16x128xf32>
    %390 = arith.mulf %387, %389 : vector<16x128xf32>
    %391 = arith.addf %382, %390 : vector<16x128xf32>
    %c5_148 = arith.constant 5 : index
    %c1_149 = arith.constant 1 : index
    %c0_150 = arith.constant 0 : index
    %392 = vector.load %arg15[%c5_148, %c1_149, %c0_150] : memref<18x18x128xbf16, #tpu.memory_space<vmem>>, vector<1x16x128xbf16>
    %393 = vector.shape_cast %392 : vector<1x16x128xbf16> to vector<16x128xbf16>
    %394 = vector.extract_strided_slice %49 {offsets = [2, 1, 0], sizes = [1, 1, 128], strides = [1, 1, 1]} : vector<3x3x128xf32> to vector<1x1x128xf32>
    %395 = vector.shape_cast %394 : vector<1x1x128xf32> to vector<128xf32>
    %396 = arith.extf %393 : vector<16x128xbf16> to vector<16x128xf32>
    %397 = vector.shape_cast %395 : vector<128xf32> to vector<1x128xf32>
    %398 = vector.broadcast %397 : vector<1x128xf32> to vector<16x128xf32>
    %399 = arith.mulf %396, %398 : vector<16x128xf32>
    %400 = arith.addf %391, %399 : vector<16x128xf32>
    %c5_151 = arith.constant 5 : index
    %c2_152 = arith.constant 2 : index
    %c0_153 = arith.constant 0 : index
    %401 = vector.load %arg15[%c5_151, %c2_152, %c0_153] : memref<18x18x128xbf16, #tpu.memory_space<vmem>>, vector<1x16x128xbf16>
    %402 = vector.shape_cast %401 : vector<1x16x128xbf16> to vector<16x128xbf16>
    %403 = vector.extract_strided_slice %49 {offsets = [2, 2, 0], sizes = [1, 1, 128], strides = [1, 1, 1]} : vector<3x3x128xf32> to vector<1x1x128xf32>
    %404 = vector.shape_cast %403 : vector<1x1x128xf32> to vector<128xf32>
    %405 = arith.extf %402 : vector<16x128xbf16> to vector<16x128xf32>
    %406 = vector.shape_cast %404 : vector<128xf32> to vector<1x128xf32>
    %407 = vector.broadcast %406 : vector<1x128xf32> to vector<16x128xf32>
    %408 = arith.mulf %405, %407 : vector<16x128xf32>
    %409 = arith.addf %400, %408 : vector<16x128xf32>
    %410 = vector.broadcast %50 : vector<1x128xf32> to vector<16x128xf32>
    %411 = arith.mulf %409, %410 : vector<16x128xf32>
    %412 = vector.broadcast %51 : vector<1x128xf32> to vector<16x128xf32>
    %413 = arith.addf %411, %412 : vector<16x128xf32>
    %cst_154 = arith.constant 0.000000e+00 : f32
    %cst_155 = arith.constant 6.000000e+00 : f32
    %414 = vector.broadcast %cst_154 : f32 to vector<16x128xf32>
    %415 = arith.maximumf %414, %413 : vector<16x128xf32>
    %416 = vector.broadcast %cst_155 : f32 to vector<16x128xf32>
    %417 = arith.minimumf %416, %415 : vector<16x128xf32>
    %418 = arith.truncf %417 : vector<16x128xf32> to vector<16x128xbf16>
    %c48 = arith.constant 48 : index
    %c0_156 = arith.constant 0 : index
    %419 = vector.load %arg14[%c48, %c0_156] : memref<256x128xbf16, #tpu.memory_space<vmem>>, vector<16x128xbf16>
    tpu.vector_store %arg14[%c48, %c0_156], %418 {strides = array<i32>} : memref<256x128xbf16, #tpu.memory_space<vmem>>, vector<16x128xbf16>,
    %cst_157 = arith.constant 0.000000e+00 : f32
    %420 = vector.broadcast %cst_157 : f32 to vector<16x128xf32>
    %c4_158 = arith.constant 4 : index
    %c0_159 = arith.constant 0 : index
    %c0_160 = arith.constant 0 : index
    %421 = vector.load %arg15[%c4_158, %c0_159, %c0_160] : memref<18x18x128xbf16, #tpu.memory_space<vmem>>, vector<1x16x128xbf16>
    %422 = vector.shape_cast %421 : vector<1x16x128xbf16> to vector<16x128xbf16>
    %423 = vector.extract_strided_slice %49 {offsets = [0, 0, 0], sizes = [1, 1, 128], strides = [1, 1, 1]} : vector<3x3x128xf32> to vector<1x1x128xf32>
    %424 = vector.shape_cast %423 : vector<1x1x128xf32> to vector<128xf32>
    %425 = arith.extf %422 : vector<16x128xbf16> to vector<16x128xf32>
    %426 = vector.shape_cast %424 : vector<128xf32> to vector<1x128xf32>
    %427 = vector.broadcast %426 : vector<1x128xf32> to vector<16x128xf32>
    %428 = arith.mulf %425, %427 : vector<16x128xf32>
    %429 = arith.addf %420, %428 : vector<16x128xf32>
    %c4_161 = arith.constant 4 : index
    %c1_162 = arith.constant 1 : index
    %c0_163 = arith.constant 0 : index
    %430 = vector.load %arg15[%c4_161, %c1_162, %c0_163] : memref<18x18x128xbf16, #tpu.memory_space<vmem>>, vector<1x16x128xbf16>
    %431 = vector.shape_cast %430 : vector<1x16x128xbf16> to vector<16x128xbf16>
    %432 = vector.extract_strided_slice %49 {offsets = [0, 1, 0], sizes = [1, 1, 128], strides = [1, 1, 1]} : vector<3x3x128xf32> to vector<1x1x128xf32>
    %433 = vector.shape_cast %432 : vector<1x1x128xf32> to vector<128xf32>
    %434 = arith.extf %431 : vector<16x128xbf16> to vector<16x128xf32>
    %435 = vector.shape_cast %433 : vector<128xf32> to vector<1x128xf32>
    %436 = vector.broadcast %435 : vector<1x128xf32> to vector<16x128xf32>
    %437 = arith.mulf %434, %436 : vector<16x128xf32>
    %438 = arith.addf %429, %437 : vector<16x128xf32>
    %c4_164 = arith.constant 4 : index
    %c2_165 = arith.constant 2 : index
    %c0_166 = arith.constant 0 : index
    %439 = vector.load %arg15[%c4_164, %c2_165, %c0_166] : memref<18x18x128xbf16, #tpu.memory_space<vmem>>, vector<1x16x128xbf16>
    %440 = vector.shape_cast %439 : vector<1x16x128xbf16> to vector<16x128xbf16>
    %441 = vector.extract_strided_slice %49 {offsets = [0, 2, 0], sizes = [1, 1, 128], strides = [1, 1, 1]} : vector<3x3x128xf32> to vector<1x1x128xf32>
    %442 = vector.shape_cast %441 : vector<1x1x128xf32> to vector<128xf32>
    %443 = arith.extf %440 : vector<16x128xbf16> to vector<16x128xf32>
    %444 = vector.shape_cast %442 : vector<128xf32> to vector<1x128xf32>
    %445 = vector.broadcast %444 : vector<1x128xf32> to vector<16x128xf32>
    %446 = arith.mulf %443, %445 : vector<16x128xf32>
    %447 = arith.addf %438, %446 : vector<16x128xf32>
    %c5_167 = arith.constant 5 : index
    %c0_168 = arith.constant 0 : index
    %c0_169 = arith.constant 0 : index
    %448 = vector.load %arg15[%c5_167, %c0_168, %c0_169] : memref<18x18x128xbf16, #tpu.memory_space<vmem>>, vector<1x16x128xbf16>
    %449 = vector.shape_cast %448 : vector<1x16x128xbf16> to vector<16x128xbf16>
    %450 = vector.extract_strided_slice %49 {offsets = [1, 0, 0], sizes = [1, 1, 128], strides = [1, 1, 1]} : vector<3x3x128xf32> to vector<1x1x128xf32>
    %451 = vector.shape_cast %450 : vector<1x1x128xf32> to vector<128xf32>
    %452 = arith.extf %449 : vector<16x128xbf16> to vector<16x128xf32>
    %453 = vector.shape_cast %451 : vector<128xf32> to vector<1x128xf32>
    %454 = vector.broadcast %453 : vector<1x128xf32> to vector<16x128xf32>
    %455 = arith.mulf %452, %454 : vector<16x128xf32>
    %456 = arith.addf %447, %455 : vector<16x128xf32>
    %c5_170 = arith.constant 5 : index
    %c1_171 = arith.constant 1 : index
    %c0_172 = arith.constant 0 : index
    %457 = vector.load %arg15[%c5_170, %c1_171, %c0_172] : memref<18x18x128xbf16, #tpu.memory_space<vmem>>, vector<1x16x128xbf16>
    %458 = vector.shape_cast %457 : vector<1x16x128xbf16> to vector<16x128xbf16>
    %459 = vector.extract_strided_slice %49 {offsets = [1, 1, 0], sizes = [1, 1, 128], strides = [1, 1, 1]} : vector<3x3x128xf32> to vector<1x1x128xf32>
    %460 = vector.shape_cast %459 : vector<1x1x128xf32> to vector<128xf32>
    %461 = arith.extf %458 : vector<16x128xbf16> to vector<16x128xf32>
    %462 = vector.shape_cast %460 : vector<128xf32> to vector<1x128xf32>
    %463 = vector.broadcast %462 : vector<1x128xf32> to vector<16x128xf32>
    %464 = arith.mulf %461, %463 : vector<16x128xf32>
    %465 = arith.addf %456, %464 : vector<16x128xf32>
    %c5_173 = arith.constant 5 : index
    %c2_174 = arith.constant 2 : index
    %c0_175 = arith.constant 0 : index
    %466 = vector.load %arg15[%c5_173, %c2_174, %c0_175] : memref<18x18x128xbf16, #tpu.memory_space<vmem>>, vector<1x16x128xbf16>
    %467 = vector.shape_cast %466 : vector<1x16x128xbf16> to vector<16x128xbf16>
    %468 = vector.extract_strided_slice %49 {offsets = [1, 2, 0], sizes = [1, 1, 128], strides = [1, 1, 1]} : vector<3x3x128xf32> to vector<1x1x128xf32>
    %469 = vector.shape_cast %468 : vector<1x1x128xf32> to vector<128xf32>
    %470 = arith.extf %467 : vector<16x128xbf16> to vector<16x128xf32>
    %471 = vector.shape_cast %469 : vector<128xf32> to vector<1x128xf32>
    %472 = vector.broadcast %471 : vector<1x128xf32> to vector<16x128xf32>
    %473 = arith.mulf %470, %472 : vector<16x128xf32>
    %474 = arith.addf %465, %473 : vector<16x128xf32>
    %c6 = arith.constant 6 : index
    %c0_176 = arith.constant 0 : index
    %c0_177 = arith.constant 0 : index
    %475 = vector.load %arg15[%c6, %c0_176, %c0_177] : memref<18x18x128xbf16, #tpu.memory_space<vmem>>, vector<1x16x128xbf16>
    %476 = vector.shape_cast %475 : vector<1x16x128xbf16> to vector<16x128xbf16>
    %477 = vector.extract_strided_slice %49 {offsets = [2, 0, 0], sizes = [1, 1, 128], strides = [1, 1, 1]} : vector<3x3x128xf32> to vector<1x1x128xf32>
    %478 = vector.shape_cast %477 : vector<1x1x128xf32> to vector<128xf32>
    %479 = arith.extf %476 : vector<16x128xbf16> to vector<16x128xf32>
    %480 = vector.shape_cast %478 : vector<128xf32> to vector<1x128xf32>
    %481 = vector.broadcast %480 : vector<1x128xf32> to vector<16x128xf32>
    %482 = arith.mulf %479, %481 : vector<16x128xf32>
    %483 = arith.addf %474, %482 : vector<16x128xf32>
    %c6_178 = arith.constant 6 : index
    %c1_179 = arith.constant 1 : index
    %c0_180 = arith.constant 0 : index
    %484 = vector.load %arg15[%c6_178, %c1_179, %c0_180] : memref<18x18x128xbf16, #tpu.memory_space<vmem>>, vector<1x16x128xbf16>
    %485 = vector.shape_cast %484 : vector<1x16x128xbf16> to vector<16x128xbf16>
    %486 = vector.extract_strided_slice %49 {offsets = [2, 1, 0], sizes = [1, 1, 128], strides = [1, 1, 1]} : vector<3x3x128xf32> to vector<1x1x128xf32>
    %487 = vector.shape_cast %486 : vector<1x1x128xf32> to vector<128xf32>
    %488 = arith.extf %485 : vector<16x128xbf16> to vector<16x128xf32>
    %489 = vector.shape_cast %487 : vector<128xf32> to vector<1x128xf32>
    %490 = vector.broadcast %489 : vector<1x128xf32> to vector<16x128xf32>
    %491 = arith.mulf %488, %490 : vector<16x128xf32>
    %492 = arith.addf %483, %491 : vector<16x128xf32>
    %c6_181 = arith.constant 6 : index
    %c2_182 = arith.constant 2 : index
    %c0_183 = arith.constant 0 : index
    %493 = vector.load %arg15[%c6_181, %c2_182, %c0_183] : memref<18x18x128xbf16, #tpu.memory_space<vmem>>, vector<1x16x128xbf16>
    %494 = vector.shape_cast %493 : vector<1x16x128xbf16> to vector<16x128xbf16>
    %495 = vector.extract_strided_slice %49 {offsets = [2, 2, 0], sizes = [1, 1, 128], strides = [1, 1, 1]} : vector<3x3x128xf32> to vector<1x1x128xf32>
    %496 = vector.shape_cast %495 : vector<1x1x128xf32> to vector<128xf32>
    %497 = arith.extf %494 : vector<16x128xbf16> to vector<16x128xf32>
    %498 = vector.shape_cast %496 : vector<128xf32> to vector<1x128xf32>
    %499 = vector.broadcast %498 : vector<1x128xf32> to vector<16x128xf32>
    %500 = arith.mulf %497, %499 : vector<16x128xf32>
    %501 = arith.addf %492, %500 : vector<16x128xf32>
    %502 = vector.broadcast %50 : vector<1x128xf32> to vector<16x128xf32>
    %503 = arith.mulf %501, %502 : vector<16x128xf32>
    %504 = vector.broadcast %51 : vector<1x128xf32> to vector<16x128xf32>
    %505 = arith.addf %503, %504 : vector<16x128xf32>
    %cst_184 = arith.constant 0.000000e+00 : f32
    %cst_185 = arith.constant 6.000000e+00 : f32
    %506 = vector.broadcast %cst_184 : f32 to vector<16x128xf32>
    %507 = arith.maximumf %506, %505 : vector<16x128xf32>
    %508 = vector.broadcast %cst_185 : f32 to vector<16x128xf32>
    %509 = arith.minimumf %508, %507 : vector<16x128xf32>
    %510 = arith.truncf %509 : vector<16x128xf32> to vector<16x128xbf16>
    %c64 = arith.constant 64 : index
    %c0_186 = arith.constant 0 : index
    %511 = vector.load %arg14[%c64, %c0_186] : memref<256x128xbf16, #tpu.memory_space<vmem>>, vector<16x128xbf16>
    tpu.vector_store %arg14[%c64, %c0_186], %510 {strides = array<i32>} : memref<256x128xbf16, #tpu.memory_space<vmem>>, vector<16x128xbf16>,
    %cst_187 = arith.constant 0.000000e+00 : f32
    %512 = vector.broadcast %cst_187 : f32 to vector<16x128xf32>
    %c5_188 = arith.constant 5 : index
    %c0_189 = arith.constant 0 : index
    %c0_190 = arith.constant 0 : index
    %513 = vector.load %arg15[%c5_188, %c0_189, %c0_190] : memref<18x18x128xbf16, #tpu.memory_space<vmem>>, vector<1x16x128xbf16>
    %514 = vector.shape_cast %513 : vector<1x16x128xbf16> to vector<16x128xbf16>
    %515 = vector.extract_strided_slice %49 {offsets = [0, 0, 0], sizes = [1, 1, 128], strides = [1, 1, 1]} : vector<3x3x128xf32> to vector<1x1x128xf32>
    %516 = vector.shape_cast %515 : vector<1x1x128xf32> to vector<128xf32>
    %517 = arith.extf %514 : vector<16x128xbf16> to vector<16x128xf32>
    %518 = vector.shape_cast %516 : vector<128xf32> to vector<1x128xf32>
    %519 = vector.broadcast %518 : vector<1x128xf32> to vector<16x128xf32>
    %520 = arith.mulf %517, %519 : vector<16x128xf32>
    %521 = arith.addf %512, %520 : vector<16x128xf32>
    %c5_191 = arith.constant 5 : index
    %c1_192 = arith.constant 1 : index
    %c0_193 = arith.constant 0 : index
    %522 = vector.load %arg15[%c5_191, %c1_192, %c0_193] : memref<18x18x128xbf16, #tpu.memory_space<vmem>>, vector<1x16x128xbf16>
    %523 = vector.shape_cast %522 : vector<1x16x128xbf16> to vector<16x128xbf16>
    %524 = vector.extract_strided_slice %49 {offsets = [0, 1, 0], sizes = [1, 1, 128], strides = [1, 1, 1]} : vector<3x3x128xf32> to vector<1x1x128xf32>
    %525 = vector.shape_cast %524 : vector<1x1x128xf32> to vector<128xf32>
    %526 = arith.extf %523 : vector<16x128xbf16> to vector<16x128xf32>
    %527 = vector.shape_cast %525 : vector<128xf32> to vector<1x128xf32>
    %528 = vector.broadcast %527 : vector<1x128xf32> to vector<16x128xf32>
    %529 = arith.mulf %526, %528 : vector<16x128xf32>
    %530 = arith.addf %521, %529 : vector<16x128xf32>
    %c5_194 = arith.constant 5 : index
    %c2_195 = arith.constant 2 : index
    %c0_196 = arith.constant 0 : index
    %531 = vector.load %arg15[%c5_194, %c2_195, %c0_196] : memref<18x18x128xbf16, #tpu.memory_space<vmem>>, vector<1x16x128xbf16>
    %532 = vector.shape_cast %531 : vector<1x16x128xbf16> to vector<16x128xbf16>
    %533 = vector.extract_strided_slice %49 {offsets = [0, 2, 0], sizes = [1, 1, 128], strides = [1, 1, 1]} : vector<3x3x128xf32> to vector<1x1x128xf32>
    %534 = vector.shape_cast %533 : vector<1x1x128xf32> to vector<128xf32>
    %535 = arith.extf %532 : vector<16x128xbf16> to vector<16x128xf32>
    %536 = vector.shape_cast %534 : vector<128xf32> to vector<1x128xf32>
    %537 = vector.broadcast %536 : vector<1x128xf32> to vector<16x128xf32>
    %538 = arith.mulf %535, %537 : vector<16x128xf32>
    %539 = arith.addf %530, %538 : vector<16x128xf32>
    %c6_197 = arith.constant 6 : index
    %c0_198 = arith.constant 0 : index
    %c0_199 = arith.constant 0 : index
    %540 = vector.load %arg15[%c6_197, %c0_198, %c0_199] : memref<18x18x128xbf16, #tpu.memory_space<vmem>>, vector<1x16x128xbf16>
    %541 = vector.shape_cast %540 : vector<1x16x128xbf16> to vector<16x128xbf16>
    %542 = vector.extract_strided_slice %49 {offsets = [1, 0, 0], sizes = [1, 1, 128], strides = [1, 1, 1]} : vector<3x3x128xf32> to vector<1x1x128xf32>
    %543 = vector.shape_cast %542 : vector<1x1x128xf32> to vector<128xf32>
    %544 = arith.extf %541 : vector<16x128xbf16> to vector<16x128xf32>
    %545 = vector.shape_cast %543 : vector<128xf32> to vector<1x128xf32>
    %546 = vector.broadcast %545 : vector<1x128xf32> to vector<16x128xf32>
    %547 = arith.mulf %544, %546 : vector<16x128xf32>
    %548 = arith.addf %539, %547 : vector<16x128xf32>
    %c6_200 = arith.constant 6 : index
    %c1_201 = arith.constant 1 : index
    %c0_202 = arith.constant 0 : index
    %549 = vector.load %arg15[%c6_200, %c1_201, %c0_202] : memref<18x18x128xbf16, #tpu.memory_space<vmem>>, vector<1x16x128xbf16>
    %550 = vector.shape_cast %549 : vector<1x16x128xbf16> to vector<16x128xbf16>
    %551 = vector.extract_strided_slice %49 {offsets = [1, 1, 0], sizes = [1, 1, 128], strides = [1, 1, 1]} : vector<3x3x128xf32> to vector<1x1x128xf32>
    %552 = vector.shape_cast %551 : vector<1x1x128xf32> to vector<128xf32>
    %553 = arith.extf %550 : vector<16x128xbf16> to vector<16x128xf32>
    %554 = vector.shape_cast %552 : vector<128xf32> to vector<1x128xf32>
    %555 = vector.broadcast %554 : vector<1x128xf32> to vector<16x128xf32>
    %556 = arith.mulf %553, %555 : vector<16x128xf32>
    %557 = arith.addf %548, %556 : vector<16x128xf32>
    %c6_203 = arith.constant 6 : index
    %c2_204 = arith.constant 2 : index
    %c0_205 = arith.constant 0 : index
    %558 = vector.load %arg15[%c6_203, %c2_204, %c0_205] : memref<18x18x128xbf16, #tpu.memory_space<vmem>>, vector<1x16x128xbf16>
    %559 = vector.shape_cast %558 : vector<1x16x128xbf16> to vector<16x128xbf16>
    %560 = vector.extract_strided_slice %49 {offsets = [1, 2, 0], sizes = [1, 1, 128], strides = [1, 1, 1]} : vector<3x3x128xf32> to vector<1x1x128xf32>
    %561 = vector.shape_cast %560 : vector<1x1x128xf32> to vector<128xf32>
    %562 = arith.extf %559 : vector<16x128xbf16> to vector<16x128xf32>
    %563 = vector.shape_cast %561 : vector<128xf32> to vector<1x128xf32>
    %564 = vector.broadcast %563 : vector<1x128xf32> to vector<16x128xf32>
    %565 = arith.mulf %562, %564 : vector<16x128xf32>
    %566 = arith.addf %557, %565 : vector<16x128xf32>
    %c7 = arith.constant 7 : index
    %c0_206 = arith.constant 0 : index
    %c0_207 = arith.constant 0 : index
    %567 = vector.load %arg15[%c7, %c0_206, %c0_207] : memref<18x18x128xbf16, #tpu.memory_space<vmem>>, vector<1x16x128xbf16>
    %568 = vector.shape_cast %567 : vector<1x16x128xbf16> to vector<16x128xbf16>
    %569 = vector.extract_strided_slice %49 {offsets = [2, 0, 0], sizes = [1, 1, 128], strides = [1, 1, 1]} : vector<3x3x128xf32> to vector<1x1x128xf32>
    %570 = vector.shape_cast %569 : vector<1x1x128xf32> to vector<128xf32>
    %571 = arith.extf %568 : vector<16x128xbf16> to vector<16x128xf32>
    %572 = vector.shape_cast %570 : vector<128xf32> to vector<1x128xf32>
    %573 = vector.broadcast %572 : vector<1x128xf32> to vector<16x128xf32>
    %574 = arith.mulf %571, %573 : vector<16x128xf32>
    %575 = arith.addf %566, %574 : vector<16x128xf32>
    %c7_208 = arith.constant 7 : index
    %c1_209 = arith.constant 1 : index
    %c0_210 = arith.constant 0 : index
    %576 = vector.load %arg15[%c7_208, %c1_209, %c0_210] : memref<18x18x128xbf16, #tpu.memory_space<vmem>>, vector<1x16x128xbf16>
    %577 = vector.shape_cast %576 : vector<1x16x128xbf16> to vector<16x128xbf16>
    %578 = vector.extract_strided_slice %49 {offsets = [2, 1, 0], sizes = [1, 1, 128], strides = [1, 1, 1]} : vector<3x3x128xf32> to vector<1x1x128xf32>
    %579 = vector.shape_cast %578 : vector<1x1x128xf32> to vector<128xf32>
    %580 = arith.extf %577 : vector<16x128xbf16> to vector<16x128xf32>
    %581 = vector.shape_cast %579 : vector<128xf32> to vector<1x128xf32>
    %582 = vector.broadcast %581 : vector<1x128xf32> to vector<16x128xf32>
    %583 = arith.mulf %580, %582 : vector<16x128xf32>
    %584 = arith.addf %575, %583 : vector<16x128xf32>
    %c7_211 = arith.constant 7 : index
    %c2_212 = arith.constant 2 : index
    %c0_213 = arith.constant 0 : index
    %585 = vector.load %arg15[%c7_211, %c2_212, %c0_213] : memref<18x18x128xbf16, #tpu.memory_space<vmem>>, vector<1x16x128xbf16>
    %586 = vector.shape_cast %585 : vector<1x16x128xbf16> to vector<16x128xbf16>
    %587 = vector.extract_strided_slice %49 {offsets = [2, 2, 0], sizes = [1, 1, 128], strides = [1, 1, 1]} : vector<3x3x128xf32> to vector<1x1x128xf32>
    %588 = vector.shape_cast %587 : vector<1x1x128xf32> to vector<128xf32>
    %589 = arith.extf %586 : vector<16x128xbf16> to vector<16x128xf32>
    %590 = vector.shape_cast %588 : vector<128xf32> to vector<1x128xf32>
    %591 = vector.broadcast %590 : vector<1x128xf32> to vector<16x128xf32>
    %592 = arith.mulf %589, %591 : vector<16x128xf32>
    %593 = arith.addf %584, %592 : vector<16x128xf32>
    %594 = vector.broadcast %50 : vector<1x128xf32> to vector<16x128xf32>
    %595 = arith.mulf %593, %594 : vector<16x128xf32>
    %596 = vector.broadcast %51 : vector<1x128xf32> to vector<16x128xf32>
    %597 = arith.addf %595, %596 : vector<16x128xf32>
    %cst_214 = arith.constant 0.000000e+00 : f32
    %cst_215 = arith.constant 6.000000e+00 : f32
    %598 = vector.broadcast %cst_214 : f32 to vector<16x128xf32>
    %599 = arith.maximumf %598, %597 : vector<16x128xf32>
    %600 = vector.broadcast %cst_215 : f32 to vector<16x128xf32>
    %601 = arith.minimumf %600, %599 : vector<16x128xf32>
    %602 = arith.truncf %601 : vector<16x128xf32> to vector<16x128xbf16>
    %c80 = arith.constant 80 : index
    %c0_216 = arith.constant 0 : index
    %603 = vector.load %arg14[%c80, %c0_216] : memref<256x128xbf16, #tpu.memory_space<vmem>>, vector<16x128xbf16>
    tpu.vector_store %arg14[%c80, %c0_216], %602 {strides = array<i32>} : memref<256x128xbf16, #tpu.memory_space<vmem>>, vector<16x128xbf16>,
    %cst_217 = arith.constant 0.000000e+00 : f32
    %604 = vector.broadcast %cst_217 : f32 to vector<16x128xf32>
    %c6_218 = arith.constant 6 : index
    %c0_219 = arith.constant 0 : index
    %c0_220 = arith.constant 0 : index
    %605 = vector.load %arg15[%c6_218, %c0_219, %c0_220] : memref<18x18x128xbf16, #tpu.memory_space<vmem>>, vector<1x16x128xbf16>
    %606 = vector.shape_cast %605 : vector<1x16x128xbf16> to vector<16x128xbf16>
    %607 = vector.extract_strided_slice %49 {offsets = [0, 0, 0], sizes = [1, 1, 128], strides = [1, 1, 1]} : vector<3x3x128xf32> to vector<1x1x128xf32>
    %608 = vector.shape_cast %607 : vector<1x1x128xf32> to vector<128xf32>
    %609 = arith.extf %606 : vector<16x128xbf16> to vector<16x128xf32>
    %610 = vector.shape_cast %608 : vector<128xf32> to vector<1x128xf32>
    %611 = vector.broadcast %610 : vector<1x128xf32> to vector<16x128xf32>
    %612 = arith.mulf %609, %611 : vector<16x128xf32>
    %613 = arith.addf %604, %612 : vector<16x128xf32>
    %c6_221 = arith.constant 6 : index
    %c1_222 = arith.constant 1 : index
    %c0_223 = arith.constant 0 : index
    %614 = vector.load %arg15[%c6_221, %c1_222, %c0_223] : memref<18x18x128xbf16, #tpu.memory_space<vmem>>, vector<1x16x128xbf16>
    %615 = vector.shape_cast %614 : vector<1x16x128xbf16> to vector<16x128xbf16>
    %616 = vector.extract_strided_slice %49 {offsets = [0, 1, 0], sizes = [1, 1, 128], strides = [1, 1, 1]} : vector<3x3x128xf32> to vector<1x1x128xf32>
    %617 = vector.shape_cast %616 : vector<1x1x128xf32> to vector<128xf32>
    %618 = arith.extf %615 : vector<16x128xbf16> to vector<16x128xf32>
    %619 = vector.shape_cast %617 : vector<128xf32> to vector<1x128xf32>
    %620 = vector.broadcast %619 : vector<1x128xf32> to vector<16x128xf32>
    %621 = arith.mulf %618, %620 : vector<16x128xf32>
    %622 = arith.addf %613, %621 : vector<16x128xf32>
    %c6_224 = arith.constant 6 : index
    %c2_225 = arith.constant 2 : index
    %c0_226 = arith.constant 0 : index
    %623 = vector.load %arg15[%c6_224, %c2_225, %c0_226] : memref<18x18x128xbf16, #tpu.memory_space<vmem>>, vector<1x16x128xbf16>
    %624 = vector.shape_cast %623 : vector<1x16x128xbf16> to vector<16x128xbf16>
    %625 = vector.extract_strided_slice %49 {offsets = [0, 2, 0], sizes = [1, 1, 128], strides = [1, 1, 1]} : vector<3x3x128xf32> to vector<1x1x128xf32>
    %626 = vector.shape_cast %625 : vector<1x1x128xf32> to vector<128xf32>
    %627 = arith.extf %624 : vector<16x128xbf16> to vector<16x128xf32>
    %628 = vector.shape_cast %626 : vector<128xf32> to vector<1x128xf32>
    %629 = vector.broadcast %628 : vector<1x128xf32> to vector<16x128xf32>
    %630 = arith.mulf %627, %629 : vector<16x128xf32>
    %631 = arith.addf %622, %630 : vector<16x128xf32>
    %c7_227 = arith.constant 7 : index
    %c0_228 = arith.constant 0 : index
    %c0_229 = arith.constant 0 : index
    %632 = vector.load %arg15[%c7_227, %c0_228, %c0_229] : memref<18x18x128xbf16, #tpu.memory_space<vmem>>, vector<1x16x128xbf16>
    %633 = vector.shape_cast %632 : vector<1x16x128xbf16> to vector<16x128xbf16>
    %634 = vector.extract_strided_slice %49 {offsets = [1, 0, 0], sizes = [1, 1, 128], strides = [1, 1, 1]} : vector<3x3x128xf32> to vector<1x1x128xf32>
    %635 = vector.shape_cast %634 : vector<1x1x128xf32> to vector<128xf32>
    %636 = arith.extf %633 : vector<16x128xbf16> to vector<16x128xf32>
    %637 = vector.shape_cast %635 : vector<128xf32> to vector<1x128xf32>
    %638 = vector.broadcast %637 : vector<1x128xf32> to vector<16x128xf32>
    %639 = arith.mulf %636, %638 : vector<16x128xf32>
    %640 = arith.addf %631, %639 : vector<16x128xf32>
    %c7_230 = arith.constant 7 : index
    %c1_231 = arith.constant 1 : index
    %c0_232 = arith.constant 0 : index
    %641 = vector.load %arg15[%c7_230, %c1_231, %c0_232] : memref<18x18x128xbf16, #tpu.memory_space<vmem>>, vector<1x16x128xbf16>
    %642 = vector.shape_cast %641 : vector<1x16x128xbf16> to vector<16x128xbf16>
    %643 = vector.extract_strided_slice %49 {offsets = [1, 1, 0], sizes = [1, 1, 128], strides = [1, 1, 1]} : vector<3x3x128xf32> to vector<1x1x128xf32>
    %644 = vector.shape_cast %643 : vector<1x1x128xf32> to vector<128xf32>
    %645 = arith.extf %642 : vector<16x128xbf16> to vector<16x128xf32>
    %646 = vector.shape_cast %644 : vector<128xf32> to vector<1x128xf32>
    %647 = vector.broadcast %646 : vector<1x128xf32> to vector<16x128xf32>
    %648 = arith.mulf %645, %647 : vector<16x128xf32>
    %649 = arith.addf %640, %648 : vector<16x128xf32>
    %c7_233 = arith.constant 7 : index
    %c2_234 = arith.constant 2 : index
    %c0_235 = arith.constant 0 : index
    %650 = vector.load %arg15[%c7_233, %c2_234, %c0_235] : memref<18x18x128xbf16, #tpu.memory_space<vmem>>, vector<1x16x128xbf16>
    %651 = vector.shape_cast %650 : vector<1x16x128xbf16> to vector<16x128xbf16>
    %652 = vector.extract_strided_slice %49 {offsets = [1, 2, 0], sizes = [1, 1, 128], strides = [1, 1, 1]} : vector<3x3x128xf32> to vector<1x1x128xf32>
    %653 = vector.shape_cast %652 : vector<1x1x128xf32> to vector<128xf32>
    %654 = arith.extf %651 : vector<16x128xbf16> to vector<16x128xf32>
    %655 = vector.shape_cast %653 : vector<128xf32> to vector<1x128xf32>
    %656 = vector.broadcast %655 : vector<1x128xf32> to vector<16x128xf32>
    %657 = arith.mulf %654, %656 : vector<16x128xf32>
    %658 = arith.addf %649, %657 : vector<16x128xf32>
    %c8 = arith.constant 8 : index
    %c0_236 = arith.constant 0 : index
    %c0_237 = arith.constant 0 : index
    %659 = vector.load %arg15[%c8, %c0_236, %c0_237] : memref<18x18x128xbf16, #tpu.memory_space<vmem>>, vector<1x16x128xbf16>
    %660 = vector.shape_cast %659 : vector<1x16x128xbf16> to vector<16x128xbf16>
    %661 = vector.extract_strided_slice %49 {offsets = [2, 0, 0], sizes = [1, 1, 128], strides = [1, 1, 1]} : vector<3x3x128xf32> to vector<1x1x128xf32>
    %662 = vector.shape_cast %661 : vector<1x1x128xf32> to vector<128xf32>
    %663 = arith.extf %660 : vector<16x128xbf16> to vector<16x128xf32>
    %664 = vector.shape_cast %662 : vector<128xf32> to vector<1x128xf32>
    %665 = vector.broadcast %664 : vector<1x128xf32> to vector<16x128xf32>
    %666 = arith.mulf %663, %665 : vector<16x128xf32>
    %667 = arith.addf %658, %666 : vector<16x128xf32>
    %c8_238 = arith.constant 8 : index
    %c1_239 = arith.constant 1 : index
    %c0_240 = arith.constant 0 : index
    %668 = vector.load %arg15[%c8_238, %c1_239, %c0_240] : memref<18x18x128xbf16, #tpu.memory_space<vmem>>, vector<1x16x128xbf16>
    %669 = vector.shape_cast %668 : vector<1x16x128xbf16> to vector<16x128xbf16>
    %670 = vector.extract_strided_slice %49 {offsets = [2, 1, 0], sizes = [1, 1, 128], strides = [1, 1, 1]} : vector<3x3x128xf32> to vector<1x1x128xf32>
    %671 = vector.shape_cast %670 : vector<1x1x128xf32> to vector<128xf32>
    %672 = arith.extf %669 : vector<16x128xbf16> to vector<16x128xf32>
    %673 = vector.shape_cast %671 : vector<128xf32> to vector<1x128xf32>
    %674 = vector.broadcast %673 : vector<1x128xf32> to vector<16x128xf32>
    %675 = arith.mulf %672, %674 : vector<16x128xf32>
    %676 = arith.addf %667, %675 : vector<16x128xf32>
    %c8_241 = arith.constant 8 : index
    %c2_242 = arith.constant 2 : index
    %c0_243 = arith.constant 0 : index
    %677 = vector.load %arg15[%c8_241, %c2_242, %c0_243] : memref<18x18x128xbf16, #tpu.memory_space<vmem>>, vector<1x16x128xbf16>
    %678 = vector.shape_cast %677 : vector<1x16x128xbf16> to vector<16x128xbf16>
    %679 = vector.extract_strided_slice %49 {offsets = [2, 2, 0], sizes = [1, 1, 128], strides = [1, 1, 1]} : vector<3x3x128xf32> to vector<1x1x128xf32>
    %680 = vector.shape_cast %679 : vector<1x1x128xf32> to vector<128xf32>
    %681 = arith.extf %678 : vector<16x128xbf16> to vector<16x128xf32>
    %682 = vector.shape_cast %680 : vector<128xf32> to vector<1x128xf32>
    %683 = vector.broadcast %682 : vector<1x128xf32> to vector<16x128xf32>
    %684 = arith.mulf %681, %683 : vector<16x128xf32>
    %685 = arith.addf %676, %684 : vector<16x128xf32>
    %686 = vector.broadcast %50 : vector<1x128xf32> to vector<16x128xf32>
    %687 = arith.mulf %685, %686 : vector<16x128xf32>
    %688 = vector.broadcast %51 : vector<1x128xf32> to vector<16x128xf32>
    %689 = arith.addf %687, %688 : vector<16x128xf32>
    %cst_244 = arith.constant 0.000000e+00 : f32
    %cst_245 = arith.constant 6.000000e+00 : f32
    %690 = vector.broadcast %cst_244 : f32 to vector<16x128xf32>
    %691 = arith.maximumf %690, %689 : vector<16x128xf32>
    %692 = vector.broadcast %cst_245 : f32 to vector<16x128xf32>
    %693 = arith.minimumf %692, %691 : vector<16x128xf32>
    %694 = arith.truncf %693 : vector<16x128xf32> to vector<16x128xbf16>
    %c96 = arith.constant 96 : index
    %c0_246 = arith.constant 0 : index
    %695 = vector.load %arg14[%c96, %c0_246] : memref<256x128xbf16, #tpu.memory_space<vmem>>, vector<16x128xbf16>
    tpu.vector_store %arg14[%c96, %c0_246], %694 {strides = array<i32>} : memref<256x128xbf16, #tpu.memory_space<vmem>>, vector<16x128xbf16>,
    %cst_247 = arith.constant 0.000000e+00 : f32
    %696 = vector.broadcast %cst_247 : f32 to vector<16x128xf32>
    %c7_248 = arith.constant 7 : index
    %c0_249 = arith.constant 0 : index
    %c0_250 = arith.constant 0 : index
    %697 = vector.load %arg15[%c7_248, %c0_249, %c0_250] : memref<18x18x128xbf16, #tpu.memory_space<vmem>>, vector<1x16x128xbf16>
    %698 = vector.shape_cast %697 : vector<1x16x128xbf16> to vector<16x128xbf16>
    %699 = vector.extract_strided_slice %49 {offsets = [0, 0, 0], sizes = [1, 1, 128], strides = [1, 1, 1]} : vector<3x3x128xf32> to vector<1x1x128xf32>
    %700 = vector.shape_cast %699 : vector<1x1x128xf32> to vector<128xf32>
    %701 = arith.extf %698 : vector<16x128xbf16> to vector<16x128xf32>
    %702 = vector.shape_cast %700 : vector<128xf32> to vector<1x128xf32>
    %703 = vector.broadcast %702 : vector<1x128xf32> to vector<16x128xf32>
    %704 = arith.mulf %701, %703 : vector<16x128xf32>
    %705 = arith.addf %696, %704 : vector<16x128xf32>
    %c7_251 = arith.constant 7 : index
    %c1_252 = arith.constant 1 : index
    %c0_253 = arith.constant 0 : index
    %706 = vector.load %arg15[%c7_251, %c1_252, %c0_253] : memref<18x18x128xbf16, #tpu.memory_space<vmem>>, vector<1x16x128xbf16>
    %707 = vector.shape_cast %706 : vector<1x16x128xbf16> to vector<16x128xbf16>
    %708 = vector.extract_strided_slice %49 {offsets = [0, 1, 0], sizes = [1, 1, 128], strides = [1, 1, 1]} : vector<3x3x128xf32> to vector<1x1x128xf32>
    %709 = vector.shape_cast %708 : vector<1x1x128xf32> to vector<128xf32>
    %710 = arith.extf %707 : vector<16x128xbf16> to vector<16x128xf32>
    %711 = vector.shape_cast %709 : vector<128xf32> to vector<1x128xf32>
    %712 = vector.broadcast %711 : vector<1x128xf32> to vector<16x128xf32>
    %713 = arith.mulf %710, %712 : vector<16x128xf32>
    %714 = arith.addf %705, %713 : vector<16x128xf32>
    %c7_254 = arith.constant 7 : index
    %c2_255 = arith.constant 2 : index
    %c0_256 = arith.constant 0 : index
    %715 = vector.load %arg15[%c7_254, %c2_255, %c0_256] : memref<18x18x128xbf16, #tpu.memory_space<vmem>>, vector<1x16x128xbf16>
    %716 = vector.shape_cast %715 : vector<1x16x128xbf16> to vector<16x128xbf16>
    %717 = vector.extract_strided_slice %49 {offsets = [0, 2, 0], sizes = [1, 1, 128], strides = [1, 1, 1]} : vector<3x3x128xf32> to vector<1x1x128xf32>
    %718 = vector.shape_cast %717 : vector<1x1x128xf32> to vector<128xf32>
    %719 = arith.extf %716 : vector<16x128xbf16> to vector<16x128xf32>
    %720 = vector.shape_cast %718 : vector<128xf32> to vector<1x128xf32>
    %721 = vector.broadcast %720 : vector<1x128xf32> to vector<16x128xf32>
    %722 = arith.mulf %719, %721 : vector<16x128xf32>
    %723 = arith.addf %714, %722 : vector<16x128xf32>
    %c8_257 = arith.constant 8 : index
    %c0_258 = arith.constant 0 : index
    %c0_259 = arith.constant 0 : index
    %724 = vector.load %arg15[%c8_257, %c0_258, %c0_259] : memref<18x18x128xbf16, #tpu.memory_space<vmem>>, vector<1x16x128xbf16>
    %725 = vector.shape_cast %724 : vector<1x16x128xbf16> to vector<16x128xbf16>
    %726 = vector.extract_strided_slice %49 {offsets = [1, 0, 0], sizes = [1, 1, 128], strides = [1, 1, 1]} : vector<3x3x128xf32> to vector<1x1x128xf32>
    %727 = vector.shape_cast %726 : vector<1x1x128xf32> to vector<128xf32>
    %728 = arith.extf %725 : vector<16x128xbf16> to vector<16x128xf32>
    %729 = vector.shape_cast %727 : vector<128xf32> to vector<1x128xf32>
    %730 = vector.broadcast %729 : vector<1x128xf32> to vector<16x128xf32>
    %731 = arith.mulf %728, %730 : vector<16x128xf32>
    %732 = arith.addf %723, %731 : vector<16x128xf32>
    %c8_260 = arith.constant 8 : index
    %c1_261 = arith.constant 1 : index
    %c0_262 = arith.constant 0 : index
    %733 = vector.load %arg15[%c8_260, %c1_261, %c0_262] : memref<18x18x128xbf16, #tpu.memory_space<vmem>>, vector<1x16x128xbf16>
    %734 = vector.shape_cast %733 : vector<1x16x128xbf16> to vector<16x128xbf16>
    %735 = vector.extract_strided_slice %49 {offsets = [1, 1, 0], sizes = [1, 1, 128], strides = [1, 1, 1]} : vector<3x3x128xf32> to vector<1x1x128xf32>
    %736 = vector.shape_cast %735 : vector<1x1x128xf32> to vector<128xf32>
    %737 = arith.extf %734 : vector<16x128xbf16> to vector<16x128xf32>
    %738 = vector.shape_cast %736 : vector<128xf32> to vector<1x128xf32>
    %739 = vector.broadcast %738 : vector<1x128xf32> to vector<16x128xf32>
    %740 = arith.mulf %737, %739 : vector<16x128xf32>
    %741 = arith.addf %732, %740 : vector<16x128xf32>
    %c8_263 = arith.constant 8 : index
    %c2_264 = arith.constant 2 : index
    %c0_265 = arith.constant 0 : index
    %742 = vector.load %arg15[%c8_263, %c2_264, %c0_265] : memref<18x18x128xbf16, #tpu.memory_space<vmem>>, vector<1x16x128xbf16>
    %743 = vector.shape_cast %742 : vector<1x16x128xbf16> to vector<16x128xbf16>
    %744 = vector.extract_strided_slice %49 {offsets = [1, 2, 0], sizes = [1, 1, 128], strides = [1, 1, 1]} : vector<3x3x128xf32> to vector<1x1x128xf32>
    %745 = vector.shape_cast %744 : vector<1x1x128xf32> to vector<128xf32>
    %746 = arith.extf %743 : vector<16x128xbf16> to vector<16x128xf32>
    %747 = vector.shape_cast %745 : vector<128xf32> to vector<1x128xf32>
    %748 = vector.broadcast %747 : vector<1x128xf32> to vector<16x128xf32>
    %749 = arith.mulf %746, %748 : vector<16x128xf32>
    %750 = arith.addf %741, %749 : vector<16x128xf32>
    %c9 = arith.constant 9 : index
    %c0_266 = arith.constant 0 : index
    %c0_267 = arith.constant 0 : index
    %751 = vector.load %arg15[%c9, %c0_266, %c0_267] : memref<18x18x128xbf16, #tpu.memory_space<vmem>>, vector<1x16x128xbf16>
    %752 = vector.shape_cast %751 : vector<1x16x128xbf16> to vector<16x128xbf16>
    %753 = vector.extract_strided_slice %49 {offsets = [2, 0, 0], sizes = [1, 1, 128], strides = [1, 1, 1]} : vector<3x3x128xf32> to vector<1x1x128xf32>
    %754 = vector.shape_cast %753 : vector<1x1x128xf32> to vector<128xf32>
    %755 = arith.extf %752 : vector<16x128xbf16> to vector<16x128xf32>
    %756 = vector.shape_cast %754 : vector<128xf32> to vector<1x128xf32>
    %757 = vector.broadcast %756 : vector<1x128xf32> to vector<16x128xf32>
    %758 = arith.mulf %755, %757 : vector<16x128xf32>
    %759 = arith.addf %750, %758 : vector<16x128xf32>
    %c9_268 = arith.constant 9 : index
    %c1_269 = arith.constant 1 : index
    %c0_270 = arith.constant 0 : index
    %760 = vector.load %arg15[%c9_268, %c1_269, %c0_270] : memref<18x18x128xbf16, #tpu.memory_space<vmem>>, vector<1x16x128xbf16>
    %761 = vector.shape_cast %760 : vector<1x16x128xbf16> to vector<16x128xbf16>
    %762 = vector.extract_strided_slice %49 {offsets = [2, 1, 0], sizes = [1, 1, 128], strides = [1, 1, 1]} : vector<3x3x128xf32> to vector<1x1x128xf32>
    %763 = vector.shape_cast %762 : vector<1x1x128xf32> to vector<128xf32>
    %764 = arith.extf %761 : vector<16x128xbf16> to vector<16x128xf32>
    %765 = vector.shape_cast %763 : vector<128xf32> to vector<1x128xf32>
    %766 = vector.broadcast %765 : vector<1x128xf32> to vector<16x128xf32>
    %767 = arith.mulf %764, %766 : vector<16x128xf32>
    %768 = arith.addf %759, %767 : vector<16x128xf32>
    %c9_271 = arith.constant 9 : index
    %c2_272 = arith.constant 2 : index
    %c0_273 = arith.constant 0 : index
    %769 = vector.load %arg15[%c9_271, %c2_272, %c0_273] : memref<18x18x128xbf16, #tpu.memory_space<vmem>>, vector<1x16x128xbf16>
    %770 = vector.shape_cast %769 : vector<1x16x128xbf16> to vector<16x128xbf16>
    %771 = vector.extract_strided_slice %49 {offsets = [2, 2, 0], sizes = [1, 1, 128], strides = [1, 1, 1]} : vector<3x3x128xf32> to vector<1x1x128xf32>
    %772 = vector.shape_cast %771 : vector<1x1x128xf32> to vector<128xf32>
    %773 = arith.extf %770 : vector<16x128xbf16> to vector<16x128xf32>
    %774 = vector.shape_cast %772 : vector<128xf32> to vector<1x128xf32>
    %775 = vector.broadcast %774 : vector<1x128xf32> to vector<16x128xf32>
    %776 = arith.mulf %773, %775 : vector<16x128xf32>
    %777 = arith.addf %768, %776 : vector<16x128xf32>
    %778 = vector.broadcast %50 : vector<1x128xf32> to vector<16x128xf32>
    %779 = arith.mulf %777, %778 : vector<16x128xf32>
    %780 = vector.broadcast %51 : vector<1x128xf32> to vector<16x128xf32>
    %781 = arith.addf %779, %780 : vector<16x128xf32>
    %cst_274 = arith.constant 0.000000e+00 : f32
    %cst_275 = arith.constant 6.000000e+00 : f32
    %782 = vector.broadcast %cst_274 : f32 to vector<16x128xf32>
    %783 = arith.maximumf %782, %781 : vector<16x128xf32>
    %784 = vector.broadcast %cst_275 : f32 to vector<16x128xf32>
    %785 = arith.minimumf %784, %783 : vector<16x128xf32>
    %786 = arith.truncf %785 : vector<16x128xf32> to vector<16x128xbf16>
    %c112 = arith.constant 112 : index
    %c0_276 = arith.constant 0 : index
    %787 = vector.load %arg14[%c112, %c0_276] : memref<256x128xbf16, #tpu.memory_space<vmem>>, vector<16x128xbf16>
    tpu.vector_store %arg14[%c112, %c0_276], %786 {strides = array<i32>} : memref<256x128xbf16, #tpu.memory_space<vmem>>, vector<16x128xbf16>,
    %cst_277 = arith.constant 0.000000e+00 : f32
    %788 = vector.broadcast %cst_277 : f32 to vector<16x128xf32>
    %c8_278 = arith.constant 8 : index
    %c0_279 = arith.constant 0 : index
    %c0_280 = arith.constant 0 : index
    %789 = vector.load %arg15[%c8_278, %c0_279, %c0_280] : memref<18x18x128xbf16, #tpu.memory_space<vmem>>, vector<1x16x128xbf16>
    %790 = vector.shape_cast %789 : vector<1x16x128xbf16> to vector<16x128xbf16>
    %791 = vector.extract_strided_slice %49 {offsets = [0, 0, 0], sizes = [1, 1, 128], strides = [1, 1, 1]} : vector<3x3x128xf32> to vector<1x1x128xf32>
    %792 = vector.shape_cast %791 : vector<1x1x128xf32> to vector<128xf32>
    %793 = arith.extf %790 : vector<16x128xbf16> to vector<16x128xf32>
    %794 = vector.shape_cast %792 : vector<128xf32> to vector<1x128xf32>
    %795 = vector.broadcast %794 : vector<1x128xf32> to vector<16x128xf32>
    %796 = arith.mulf %793, %795 : vector<16x128xf32>
    %797 = arith.addf %788, %796 : vector<16x128xf32>
    %c8_281 = arith.constant 8 : index
    %c1_282 = arith.constant 1 : index
    %c0_283 = arith.constant 0 : index
    %798 = vector.load %arg15[%c8_281, %c1_282, %c0_283] : memref<18x18x128xbf16, #tpu.memory_space<vmem>>, vector<1x16x128xbf16>
    %799 = vector.shape_cast %798 : vector<1x16x128xbf16> to vector<16x128xbf16>
    %800 = vector.extract_strided_slice %49 {offsets = [0, 1, 0], sizes = [1, 1, 128], strides = [1, 1, 1]} : vector<3x3x128xf32> to vector<1x1x128xf32>
    %801 = vector.shape_cast %800 : vector<1x1x128xf32> to vector<128xf32>
    %802 = arith.extf %799 : vector<16x128xbf16> to vector<16x128xf32>
    %803 = vector.shape_cast %801 : vector<128xf32> to vector<1x128xf32>
    %804 = vector.broadcast %803 : vector<1x128xf32> to vector<16x128xf32>
    %805 = arith.mulf %802, %804 : vector<16x128xf32>
    %806 = arith.addf %797, %805 : vector<16x128xf32>
    %c8_284 = arith.constant 8 : index
    %c2_285 = arith.constant 2 : index
    %c0_286 = arith.constant 0 : index
    %807 = vector.load %arg15[%c8_284, %c2_285, %c0_286] : memref<18x18x128xbf16, #tpu.memory_space<vmem>>, vector<1x16x128xbf16>
    %808 = vector.shape_cast %807 : vector<1x16x128xbf16> to vector<16x128xbf16>
    %809 = vector.extract_strided_slice %49 {offsets = [0, 2, 0], sizes = [1, 1, 128], strides = [1, 1, 1]} : vector<3x3x128xf32> to vector<1x1x128xf32>
    %810 = vector.shape_cast %809 : vector<1x1x128xf32> to vector<128xf32>
    %811 = arith.extf %808 : vector<16x128xbf16> to vector<16x128xf32>
    %812 = vector.shape_cast %810 : vector<128xf32> to vector<1x128xf32>
    %813 = vector.broadcast %812 : vector<1x128xf32> to vector<16x128xf32>
    %814 = arith.mulf %811, %813 : vector<16x128xf32>
    %815 = arith.addf %806, %814 : vector<16x128xf32>
    %c9_287 = arith.constant 9 : index
    %c0_288 = arith.constant 0 : index
    %c0_289 = arith.constant 0 : index
    %816 = vector.load %arg15[%c9_287, %c0_288, %c0_289] : memref<18x18x128xbf16, #tpu.memory_space<vmem>>, vector<1x16x128xbf16>
    %817 = vector.shape_cast %816 : vector<1x16x128xbf16> to vector<16x128xbf16>
    %818 = vector.extract_strided_slice %49 {offsets = [1, 0, 0], sizes = [1, 1, 128], strides = [1, 1, 1]} : vector<3x3x128xf32> to vector<1x1x128xf32>
    %819 = vector.shape_cast %818 : vector<1x1x128xf32> to vector<128xf32>
    %820 = arith.extf %817 : vector<16x128xbf16> to vector<16x128xf32>
    %821 = vector.shape_cast %819 : vector<128xf32> to vector<1x128xf32>
    %822 = vector.broadcast %821 : vector<1x128xf32> to vector<16x128xf32>
    %823 = arith.mulf %820, %822 : vector<16x128xf32>
    %824 = arith.addf %815, %823 : vector<16x128xf32>
    %c9_290 = arith.constant 9 : index
    %c1_291 = arith.constant 1 : index
    %c0_292 = arith.constant 0 : index
    %825 = vector.load %arg15[%c9_290, %c1_291, %c0_292] : memref<18x18x128xbf16, #tpu.memory_space<vmem>>, vector<1x16x128xbf16>
    %826 = vector.shape_cast %825 : vector<1x16x128xbf16> to vector<16x128xbf16>
    %827 = vector.extract_strided_slice %49 {offsets = [1, 1, 0], sizes = [1, 1, 128], strides = [1, 1, 1]} : vector<3x3x128xf32> to vector<1x1x128xf32>
    %828 = vector.shape_cast %827 : vector<1x1x128xf32> to vector<128xf32>
    %829 = arith.extf %826 : vector<16x128xbf16> to vector<16x128xf32>
    %830 = vector.shape_cast %828 : vector<128xf32> to vector<1x128xf32>
    %831 = vector.broadcast %830 : vector<1x128xf32> to vector<16x128xf32>
    %832 = arith.mulf %829, %831 : vector<16x128xf32>
    %833 = arith.addf %824, %832 : vector<16x128xf32>
    %c9_293 = arith.constant 9 : index
    %c2_294 = arith.constant 2 : index
    %c0_295 = arith.constant 0 : index
    %834 = vector.load %arg15[%c9_293, %c2_294, %c0_295] : memref<18x18x128xbf16, #tpu.memory_space<vmem>>, vector<1x16x128xbf16>
    %835 = vector.shape_cast %834 : vector<1x16x128xbf16> to vector<16x128xbf16>
    %836 = vector.extract_strided_slice %49 {offsets = [1, 2, 0], sizes = [1, 1, 128], strides = [1, 1, 1]} : vector<3x3x128xf32> to vector<1x1x128xf32>
    %837 = vector.shape_cast %836 : vector<1x1x128xf32> to vector<128xf32>
    %838 = arith.extf %835 : vector<16x128xbf16> to vector<16x128xf32>
    %839 = vector.shape_cast %837 : vector<128xf32> to vector<1x128xf32>
    %840 = vector.broadcast %839 : vector<1x128xf32> to vector<16x128xf32>
    %841 = arith.mulf %838, %840 : vector<16x128xf32>
    %842 = arith.addf %833, %841 : vector<16x128xf32>
    %c10 = arith.constant 10 : index
    %c0_296 = arith.constant 0 : index
    %c0_297 = arith.constant 0 : index
    %843 = vector.load %arg15[%c10, %c0_296, %c0_297] : memref<18x18x128xbf16, #tpu.memory_space<vmem>>, vector<1x16x128xbf16>
    %844 = vector.shape_cast %843 : vector<1x16x128xbf16> to vector<16x128xbf16>
    %845 = vector.extract_strided_slice %49 {offsets = [2, 0, 0], sizes = [1, 1, 128], strides = [1, 1, 1]} : vector<3x3x128xf32> to vector<1x1x128xf32>
    %846 = vector.shape_cast %845 : vector<1x1x128xf32> to vector<128xf32>
    %847 = arith.extf %844 : vector<16x128xbf16> to vector<16x128xf32>
    %848 = vector.shape_cast %846 : vector<128xf32> to vector<1x128xf32>
    %849 = vector.broadcast %848 : vector<1x128xf32> to vector<16x128xf32>
    %850 = arith.mulf %847, %849 : vector<16x128xf32>
    %851 = arith.addf %842, %850 : vector<16x128xf32>
    %c10_298 = arith.constant 10 : index
    %c1_299 = arith.constant 1 : index
    %c0_300 = arith.constant 0 : index
    %852 = vector.load %arg15[%c10_298, %c1_299, %c0_300] : memref<18x18x128xbf16, #tpu.memory_space<vmem>>, vector<1x16x128xbf16>
    %853 = vector.shape_cast %852 : vector<1x16x128xbf16> to vector<16x128xbf16>
    %854 = vector.extract_strided_slice %49 {offsets = [2, 1, 0], sizes = [1, 1, 128], strides = [1, 1, 1]} : vector<3x3x128xf32> to vector<1x1x128xf32>
    %855 = vector.shape_cast %854 : vector<1x1x128xf32> to vector<128xf32>
    %856 = arith.extf %853 : vector<16x128xbf16> to vector<16x128xf32>
    %857 = vector.shape_cast %855 : vector<128xf32> to vector<1x128xf32>
    %858 = vector.broadcast %857 : vector<1x128xf32> to vector<16x128xf32>
    %859 = arith.mulf %856, %858 : vector<16x128xf32>
    %860 = arith.addf %851, %859 : vector<16x128xf32>
    %c10_301 = arith.constant 10 : index
    %c2_302 = arith.constant 2 : index
    %c0_303 = arith.constant 0 : index
    %861 = vector.load %arg15[%c10_301, %c2_302, %c0_303] : memref<18x18x128xbf16, #tpu.memory_space<vmem>>, vector<1x16x128xbf16>
    %862 = vector.shape_cast %861 : vector<1x16x128xbf16> to vector<16x128xbf16>
    %863 = vector.extract_strided_slice %49 {offsets = [2, 2, 0], sizes = [1, 1, 128], strides = [1, 1, 1]} : vector<3x3x128xf32> to vector<1x1x128xf32>
    %864 = vector.shape_cast %863 : vector<1x1x128xf32> to vector<128xf32>
    %865 = arith.extf %862 : vector<16x128xbf16> to vector<16x128xf32>
    %866 = vector.shape_cast %864 : vector<128xf32> to vector<1x128xf32>
    %867 = vector.broadcast %866 : vector<1x128xf32> to vector<16x128xf32>
    %868 = arith.mulf %865, %867 : vector<16x128xf32>
    %869 = arith.addf %860, %868 : vector<16x128xf32>
    %870 = vector.broadcast %50 : vector<1x128xf32> to vector<16x128xf32>
    %871 = arith.mulf %869, %870 : vector<16x128xf32>
    %872 = vector.broadcast %51 : vector<1x128xf32> to vector<16x128xf32>
    %873 = arith.addf %871, %872 : vector<16x128xf32>
    %cst_304 = arith.constant 0.000000e+00 : f32
    %cst_305 = arith.constant 6.000000e+00 : f32
    %874 = vector.broadcast %cst_304 : f32 to vector<16x128xf32>
    %875 = arith.maximumf %874, %873 : vector<16x128xf32>
    %876 = vector.broadcast %cst_305 : f32 to vector<16x128xf32>
    %877 = arith.minimumf %876, %875 : vector<16x128xf32>
    %878 = arith.truncf %877 : vector<16x128xf32> to vector<16x128xbf16>
    %c128 = arith.constant 128 : index
    %c0_306 = arith.constant 0 : index
    %879 = vector.load %arg14[%c128, %c0_306] : memref<256x128xbf16, #tpu.memory_space<vmem>>, vector<16x128xbf16>
    tpu.vector_store %arg14[%c128, %c0_306], %878 {strides = array<i32>} : memref<256x128xbf16, #tpu.memory_space<vmem>>, vector<16x128xbf16>,
    %cst_307 = arith.constant 0.000000e+00 : f32
    %880 = vector.broadcast %cst_307 : f32 to vector<16x128xf32>
    %c9_308 = arith.constant 9 : index
    %c0_309 = arith.constant 0 : index
    %c0_310 = arith.constant 0 : index
    %881 = vector.load %arg15[%c9_308, %c0_309, %c0_310] : memref<18x18x128xbf16, #tpu.memory_space<vmem>>, vector<1x16x128xbf16>
    %882 = vector.shape_cast %881 : vector<1x16x128xbf16> to vector<16x128xbf16>
    %883 = vector.extract_strided_slice %49 {offsets = [0, 0, 0], sizes = [1, 1, 128], strides = [1, 1, 1]} : vector<3x3x128xf32> to vector<1x1x128xf32>
    %884 = vector.shape_cast %883 : vector<1x1x128xf32> to vector<128xf32>
    %885 = arith.extf %882 : vector<16x128xbf16> to vector<16x128xf32>
    %886 = vector.shape_cast %884 : vector<128xf32> to vector<1x128xf32>
    %887 = vector.broadcast %886 : vector<1x128xf32> to vector<16x128xf32>
    %888 = arith.mulf %885, %887 : vector<16x128xf32>
    %889 = arith.addf %880, %888 : vector<16x128xf32>
    %c9_311 = arith.constant 9 : index
    %c1_312 = arith.constant 1 : index
    %c0_313 = arith.constant 0 : index
    %890 = vector.load %arg15[%c9_311, %c1_312, %c0_313] : memref<18x18x128xbf16, #tpu.memory_space<vmem>>, vector<1x16x128xbf16>
    %891 = vector.shape_cast %890 : vector<1x16x128xbf16> to vector<16x128xbf16>
    %892 = vector.extract_strided_slice %49 {offsets = [0, 1, 0], sizes = [1, 1, 128], strides = [1, 1, 1]} : vector<3x3x128xf32> to vector<1x1x128xf32>
    %893 = vector.shape_cast %892 : vector<1x1x128xf32> to vector<128xf32>
    %894 = arith.extf %891 : vector<16x128xbf16> to vector<16x128xf32>
    %895 = vector.shape_cast %893 : vector<128xf32> to vector<1x128xf32>
    %896 = vector.broadcast %895 : vector<1x128xf32> to vector<16x128xf32>
    %897 = arith.mulf %894, %896 : vector<16x128xf32>
    %898 = arith.addf %889, %897 : vector<16x128xf32>
    %c9_314 = arith.constant 9 : index
    %c2_315 = arith.constant 2 : index
    %c0_316 = arith.constant 0 : index
    %899 = vector.load %arg15[%c9_314, %c2_315, %c0_316] : memref<18x18x128xbf16, #tpu.memory_space<vmem>>, vector<1x16x128xbf16>
    %900 = vector.shape_cast %899 : vector<1x16x128xbf16> to vector<16x128xbf16>
    %901 = vector.extract_strided_slice %49 {offsets = [0, 2, 0], sizes = [1, 1, 128], strides = [1, 1, 1]} : vector<3x3x128xf32> to vector<1x1x128xf32>
    %902 = vector.shape_cast %901 : vector<1x1x128xf32> to vector<128xf32>
    %903 = arith.extf %900 : vector<16x128xbf16> to vector<16x128xf32>
    %904 = vector.shape_cast %902 : vector<128xf32> to vector<1x128xf32>
    %905 = vector.broadcast %904 : vector<1x128xf32> to vector<16x128xf32>
    %906 = arith.mulf %903, %905 : vector<16x128xf32>
    %907 = arith.addf %898, %906 : vector<16x128xf32>
    %c10_317 = arith.constant 10 : index
    %c0_318 = arith.constant 0 : index
    %c0_319 = arith.constant 0 : index
    %908 = vector.load %arg15[%c10_317, %c0_318, %c0_319] : memref<18x18x128xbf16, #tpu.memory_space<vmem>>, vector<1x16x128xbf16>
    %909 = vector.shape_cast %908 : vector<1x16x128xbf16> to vector<16x128xbf16>
    %910 = vector.extract_strided_slice %49 {offsets = [1, 0, 0], sizes = [1, 1, 128], strides = [1, 1, 1]} : vector<3x3x128xf32> to vector<1x1x128xf32>
    %911 = vector.shape_cast %910 : vector<1x1x128xf32> to vector<128xf32>
    %912 = arith.extf %909 : vector<16x128xbf16> to vector<16x128xf32>
    %913 = vector.shape_cast %911 : vector<128xf32> to vector<1x128xf32>
    %914 = vector.broadcast %913 : vector<1x128xf32> to vector<16x128xf32>
    %915 = arith.mulf %912, %914 : vector<16x128xf32>
    %916 = arith.addf %907, %915 : vector<16x128xf32>
    %c10_320 = arith.constant 10 : index
    %c1_321 = arith.constant 1 : index
    %c0_322 = arith.constant 0 : index
    %917 = vector.load %arg15[%c10_320, %c1_321, %c0_322] : memref<18x18x128xbf16, #tpu.memory_space<vmem>>, vector<1x16x128xbf16>
    %918 = vector.shape_cast %917 : vector<1x16x128xbf16> to vector<16x128xbf16>
    %919 = vector.extract_strided_slice %49 {offsets = [1, 1, 0], sizes = [1, 1, 128], strides = [1, 1, 1]} : vector<3x3x128xf32> to vector<1x1x128xf32>
    %920 = vector.shape_cast %919 : vector<1x1x128xf32> to vector<128xf32>
    %921 = arith.extf %918 : vector<16x128xbf16> to vector<16x128xf32>
    %922 = vector.shape_cast %920 : vector<128xf32> to vector<1x128xf32>
    %923 = vector.broadcast %922 : vector<1x128xf32> to vector<16x128xf32>
    %924 = arith.mulf %921, %923 : vector<16x128xf32>
    %925 = arith.addf %916, %924 : vector<16x128xf32>
    %c10_323 = arith.constant 10 : index
    %c2_324 = arith.constant 2 : index
    %c0_325 = arith.constant 0 : index
    %926 = vector.load %arg15[%c10_323, %c2_324, %c0_325] : memref<18x18x128xbf16, #tpu.memory_space<vmem>>, vector<1x16x128xbf16>
    %927 = vector.shape_cast %926 : vector<1x16x128xbf16> to vector<16x128xbf16>
    %928 = vector.extract_strided_slice %49 {offsets = [1, 2, 0], sizes = [1, 1, 128], strides = [1, 1, 1]} : vector<3x3x128xf32> to vector<1x1x128xf32>
    %929 = vector.shape_cast %928 : vector<1x1x128xf32> to vector<128xf32>
    %930 = arith.extf %927 : vector<16x128xbf16> to vector<16x128xf32>
    %931 = vector.shape_cast %929 : vector<128xf32> to vector<1x128xf32>
    %932 = vector.broadcast %931 : vector<1x128xf32> to vector<16x128xf32>
    %933 = arith.mulf %930, %932 : vector<16x128xf32>
    %934 = arith.addf %925, %933 : vector<16x128xf32>
    %c11 = arith.constant 11 : index
    %c0_326 = arith.constant 0 : index
    %c0_327 = arith.constant 0 : index
    %935 = vector.load %arg15[%c11, %c0_326, %c0_327] : memref<18x18x128xbf16, #tpu.memory_space<vmem>>, vector<1x16x128xbf16>
    %936 = vector.shape_cast %935 : vector<1x16x128xbf16> to vector<16x128xbf16>
    %937 = vector.extract_strided_slice %49 {offsets = [2, 0, 0], sizes = [1, 1, 128], strides = [1, 1, 1]} : vector<3x3x128xf32> to vector<1x1x128xf32>
    %938 = vector.shape_cast %937 : vector<1x1x128xf32> to vector<128xf32>
    %939 = arith.extf %936 : vector<16x128xbf16> to vector<16x128xf32>
    %940 = vector.shape_cast %938 : vector<128xf32> to vector<1x128xf32>
    %941 = vector.broadcast %940 : vector<1x128xf32> to vector<16x128xf32>
    %942 = arith.mulf %939, %941 : vector<16x128xf32>
    %943 = arith.addf %934, %942 : vector<16x128xf32>
    %c11_328 = arith.constant 11 : index
    %c1_329 = arith.constant 1 : index
    %c0_330 = arith.constant 0 : index
    %944 = vector.load %arg15[%c11_328, %c1_329, %c0_330] : memref<18x18x128xbf16, #tpu.memory_space<vmem>>, vector<1x16x128xbf16>
    %945 = vector.shape_cast %944 : vector<1x16x128xbf16> to vector<16x128xbf16>
    %946 = vector.extract_strided_slice %49 {offsets = [2, 1, 0], sizes = [1, 1, 128], strides = [1, 1, 1]} : vector<3x3x128xf32> to vector<1x1x128xf32>
    %947 = vector.shape_cast %946 : vector<1x1x128xf32> to vector<128xf32>
    %948 = arith.extf %945 : vector<16x128xbf16> to vector<16x128xf32>
    %949 = vector.shape_cast %947 : vector<128xf32> to vector<1x128xf32>
    %950 = vector.broadcast %949 : vector<1x128xf32> to vector<16x128xf32>
    %951 = arith.mulf %948, %950 : vector<16x128xf32>
    %952 = arith.addf %943, %951 : vector<16x128xf32>
    %c11_331 = arith.constant 11 : index
    %c2_332 = arith.constant 2 : index
    %c0_333 = arith.constant 0 : index
    %953 = vector.load %arg15[%c11_331, %c2_332, %c0_333] : memref<18x18x128xbf16, #tpu.memory_space<vmem>>, vector<1x16x128xbf16>
    %954 = vector.shape_cast %953 : vector<1x16x128xbf16> to vector<16x128xbf16>
    %955 = vector.extract_strided_slice %49 {offsets = [2, 2, 0], sizes = [1, 1, 128], strides = [1, 1, 1]} : vector<3x3x128xf32> to vector<1x1x128xf32>
    %956 = vector.shape_cast %955 : vector<1x1x128xf32> to vector<128xf32>
    %957 = arith.extf %954 : vector<16x128xbf16> to vector<16x128xf32>
    %958 = vector.shape_cast %956 : vector<128xf32> to vector<1x128xf32>
    %959 = vector.broadcast %958 : vector<1x128xf32> to vector<16x128xf32>
    %960 = arith.mulf %957, %959 : vector<16x128xf32>
    %961 = arith.addf %952, %960 : vector<16x128xf32>
    %962 = vector.broadcast %50 : vector<1x128xf32> to vector<16x128xf32>
    %963 = arith.mulf %961, %962 : vector<16x128xf32>
    %964 = vector.broadcast %51 : vector<1x128xf32> to vector<16x128xf32>
    %965 = arith.addf %963, %964 : vector<16x128xf32>
    %cst_334 = arith.constant 0.000000e+00 : f32
    %cst_335 = arith.constant 6.000000e+00 : f32
    %966 = vector.broadcast %cst_334 : f32 to vector<16x128xf32>
    %967 = arith.maximumf %966, %965 : vector<16x128xf32>
    %968 = vector.broadcast %cst_335 : f32 to vector<16x128xf32>
    %969 = arith.minimumf %968, %967 : vector<16x128xf32>
    %970 = arith.truncf %969 : vector<16x128xf32> to vector<16x128xbf16>
    %c144 = arith.constant 144 : index
    %c0_336 = arith.constant 0 : index
    %971 = vector.load %arg14[%c144, %c0_336] : memref<256x128xbf16, #tpu.memory_space<vmem>>, vector<16x128xbf16>
    tpu.vector_store %arg14[%c144, %c0_336], %970 {strides = array<i32>} : memref<256x128xbf16, #tpu.memory_space<vmem>>, vector<16x128xbf16>,
    %cst_337 = arith.constant 0.000000e+00 : f32
    %972 = vector.broadcast %cst_337 : f32 to vector<16x128xf32>
    %c10_338 = arith.constant 10 : index
    %c0_339 = arith.constant 0 : index
    %c0_340 = arith.constant 0 : index
    %973 = vector.load %arg15[%c10_338, %c0_339, %c0_340] : memref<18x18x128xbf16, #tpu.memory_space<vmem>>, vector<1x16x128xbf16>
    %974 = vector.shape_cast %973 : vector<1x16x128xbf16> to vector<16x128xbf16>
    %975 = vector.extract_strided_slice %49 {offsets = [0, 0, 0], sizes = [1, 1, 128], strides = [1, 1, 1]} : vector<3x3x128xf32> to vector<1x1x128xf32>
    %976 = vector.shape_cast %975 : vector<1x1x128xf32> to vector<128xf32>
    %977 = arith.extf %974 : vector<16x128xbf16> to vector<16x128xf32>
    %978 = vector.shape_cast %976 : vector<128xf32> to vector<1x128xf32>
    %979 = vector.broadcast %978 : vector<1x128xf32> to vector<16x128xf32>
    %980 = arith.mulf %977, %979 : vector<16x128xf32>
    %981 = arith.addf %972, %980 : vector<16x128xf32>
    %c10_341 = arith.constant 10 : index
    %c1_342 = arith.constant 1 : index
    %c0_343 = arith.constant 0 : index
    %982 = vector.load %arg15[%c10_341, %c1_342, %c0_343] : memref<18x18x128xbf16, #tpu.memory_space<vmem>>, vector<1x16x128xbf16>
    %983 = vector.shape_cast %982 : vector<1x16x128xbf16> to vector<16x128xbf16>
    %984 = vector.extract_strided_slice %49 {offsets = [0, 1, 0], sizes = [1, 1, 128], strides = [1, 1, 1]} : vector<3x3x128xf32> to vector<1x1x128xf32>
    %985 = vector.shape_cast %984 : vector<1x1x128xf32> to vector<128xf32>
    %986 = arith.extf %983 : vector<16x128xbf16> to vector<16x128xf32>
    %987 = vector.shape_cast %985 : vector<128xf32> to vector<1x128xf32>
    %988 = vector.broadcast %987 : vector<1x128xf32> to vector<16x128xf32>
    %989 = arith.mulf %986, %988 : vector<16x128xf32>
    %990 = arith.addf %981, %989 : vector<16x128xf32>
    %c10_344 = arith.constant 10 : index
    %c2_345 = arith.constant 2 : index
    %c0_346 = arith.constant 0 : index
    %991 = vector.load %arg15[%c10_344, %c2_345, %c0_346] : memref<18x18x128xbf16, #tpu.memory_space<vmem>>, vector<1x16x128xbf16>
    %992 = vector.shape_cast %991 : vector<1x16x128xbf16> to vector<16x128xbf16>
    %993 = vector.extract_strided_slice %49 {offsets = [0, 2, 0], sizes = [1, 1, 128], strides = [1, 1, 1]} : vector<3x3x128xf32> to vector<1x1x128xf32>
    %994 = vector.shape_cast %993 : vector<1x1x128xf32> to vector<128xf32>
    %995 = arith.extf %992 : vector<16x128xbf16> to vector<16x128xf32>
    %996 = vector.shape_cast %994 : vector<128xf32> to vector<1x128xf32>
    %997 = vector.broadcast %996 : vector<1x128xf32> to vector<16x128xf32>
    %998 = arith.mulf %995, %997 : vector<16x128xf32>
    %999 = arith.addf %990, %998 : vector<16x128xf32>
    %c11_347 = arith.constant 11 : index
    %c0_348 = arith.constant 0 : index
    %c0_349 = arith.constant 0 : index
    %1000 = vector.load %arg15[%c11_347, %c0_348, %c0_349] : memref<18x18x128xbf16, #tpu.memory_space<vmem>>, vector<1x16x128xbf16>
    %1001 = vector.shape_cast %1000 : vector<1x16x128xbf16> to vector<16x128xbf16>
    %1002 = vector.extract_strided_slice %49 {offsets = [1, 0, 0], sizes = [1, 1, 128], strides = [1, 1, 1]} : vector<3x3x128xf32> to vector<1x1x128xf32>
    %1003 = vector.shape_cast %1002 : vector<1x1x128xf32> to vector<128xf32>
    %1004 = arith.extf %1001 : vector<16x128xbf16> to vector<16x128xf32>
    %1005 = vector.shape_cast %1003 : vector<128xf32> to vector<1x128xf32>
    %1006 = vector.broadcast %1005 : vector<1x128xf32> to vector<16x128xf32>
    %1007 = arith.mulf %1004, %1006 : vector<16x128xf32>
    %1008 = arith.addf %999, %1007 : vector<16x128xf32>
    %c11_350 = arith.constant 11 : index
    %c1_351 = arith.constant 1 : index
    %c0_352 = arith.constant 0 : index
    %1009 = vector.load %arg15[%c11_350, %c1_351, %c0_352] : memref<18x18x128xbf16, #tpu.memory_space<vmem>>, vector<1x16x128xbf16>
    %1010 = vector.shape_cast %1009 : vector<1x16x128xbf16> to vector<16x128xbf16>
    %1011 = vector.extract_strided_slice %49 {offsets = [1, 1, 0], sizes = [1, 1, 128], strides = [1, 1, 1]} : vector<3x3x128xf32> to vector<1x1x128xf32>
    %1012 = vector.shape_cast %1011 : vector<1x1x128xf32> to vector<128xf32>
    %1013 = arith.extf %1010 : vector<16x128xbf16> to vector<16x128xf32>
    %1014 = vector.shape_cast %1012 : vector<128xf32> to vector<1x128xf32>
    %1015 = vector.broadcast %1014 : vector<1x128xf32> to vector<16x128xf32>
    %1016 = arith.mulf %1013, %1015 : vector<16x128xf32>
    %1017 = arith.addf %1008, %1016 : vector<16x128xf32>
    %c11_353 = arith.constant 11 : index
    %c2_354 = arith.constant 2 : index
    %c0_355 = arith.constant 0 : index
    %1018 = vector.load %arg15[%c11_353, %c2_354, %c0_355] : memref<18x18x128xbf16, #tpu.memory_space<vmem>>, vector<1x16x128xbf16>
    %1019 = vector.shape_cast %1018 : vector<1x16x128xbf16> to vector<16x128xbf16>
    %1020 = vector.extract_strided_slice %49 {offsets = [1, 2, 0], sizes = [1, 1, 128], strides = [1, 1, 1]} : vector<3x3x128xf32> to vector<1x1x128xf32>
    %1021 = vector.shape_cast %1020 : vector<1x1x128xf32> to vector<128xf32>
    %1022 = arith.extf %1019 : vector<16x128xbf16> to vector<16x128xf32>
    %1023 = vector.shape_cast %1021 : vector<128xf32> to vector<1x128xf32>
    %1024 = vector.broadcast %1023 : vector<1x128xf32> to vector<16x128xf32>
    %1025 = arith.mulf %1022, %1024 : vector<16x128xf32>
    %1026 = arith.addf %1017, %1025 : vector<16x128xf32>
    %c12 = arith.constant 12 : index
    %c0_356 = arith.constant 0 : index
    %c0_357 = arith.constant 0 : index
    %1027 = vector.load %arg15[%c12, %c0_356, %c0_357] : memref<18x18x128xbf16, #tpu.memory_space<vmem>>, vector<1x16x128xbf16>
    %1028 = vector.shape_cast %1027 : vector<1x16x128xbf16> to vector<16x128xbf16>
    %1029 = vector.extract_strided_slice %49 {offsets = [2, 0, 0], sizes = [1, 1, 128], strides = [1, 1, 1]} : vector<3x3x128xf32> to vector<1x1x128xf32>
    %1030 = vector.shape_cast %1029 : vector<1x1x128xf32> to vector<128xf32>
    %1031 = arith.extf %1028 : vector<16x128xbf16> to vector<16x128xf32>
    %1032 = vector.shape_cast %1030 : vector<128xf32> to vector<1x128xf32>
    %1033 = vector.broadcast %1032 : vector<1x128xf32> to vector<16x128xf32>
    %1034 = arith.mulf %1031, %1033 : vector<16x128xf32>
    %1035 = arith.addf %1026, %1034 : vector<16x128xf32>
    %c12_358 = arith.constant 12 : index
    %c1_359 = arith.constant 1 : index
    %c0_360 = arith.constant 0 : index
    %1036 = vector.load %arg15[%c12_358, %c1_359, %c0_360] : memref<18x18x128xbf16, #tpu.memory_space<vmem>>, vector<1x16x128xbf16>
    %1037 = vector.shape_cast %1036 : vector<1x16x128xbf16> to vector<16x128xbf16>
    %1038 = vector.extract_strided_slice %49 {offsets = [2, 1, 0], sizes = [1, 1, 128], strides = [1, 1, 1]} : vector<3x3x128xf32> to vector<1x1x128xf32>
    %1039 = vector.shape_cast %1038 : vector<1x1x128xf32> to vector<128xf32>
    %1040 = arith.extf %1037 : vector<16x128xbf16> to vector<16x128xf32>
    %1041 = vector.shape_cast %1039 : vector<128xf32> to vector<1x128xf32>
    %1042 = vector.broadcast %1041 : vector<1x128xf32> to vector<16x128xf32>
    %1043 = arith.mulf %1040, %1042 : vector<16x128xf32>
    %1044 = arith.addf %1035, %1043 : vector<16x128xf32>
    %c12_361 = arith.constant 12 : index
    %c2_362 = arith.constant 2 : index
    %c0_363 = arith.constant 0 : index
    %1045 = vector.load %arg15[%c12_361, %c2_362, %c0_363] : memref<18x18x128xbf16, #tpu.memory_space<vmem>>, vector<1x16x128xbf16>
    %1046 = vector.shape_cast %1045 : vector<1x16x128xbf16> to vector<16x128xbf16>
    %1047 = vector.extract_strided_slice %49 {offsets = [2, 2, 0], sizes = [1, 1, 128], strides = [1, 1, 1]} : vector<3x3x128xf32> to vector<1x1x128xf32>
    %1048 = vector.shape_cast %1047 : vector<1x1x128xf32> to vector<128xf32>
    %1049 = arith.extf %1046 : vector<16x128xbf16> to vector<16x128xf32>
    %1050 = vector.shape_cast %1048 : vector<128xf32> to vector<1x128xf32>
    %1051 = vector.broadcast %1050 : vector<1x128xf32> to vector<16x128xf32>
    %1052 = arith.mulf %1049, %1051 : vector<16x128xf32>
    %1053 = arith.addf %1044, %1052 : vector<16x128xf32>
    %1054 = vector.broadcast %50 : vector<1x128xf32> to vector<16x128xf32>
    %1055 = arith.mulf %1053, %1054 : vector<16x128xf32>
    %1056 = vector.broadcast %51 : vector<1x128xf32> to vector<16x128xf32>
    %1057 = arith.addf %1055, %1056 : vector<16x128xf32>
    %cst_364 = arith.constant 0.000000e+00 : f32
    %cst_365 = arith.constant 6.000000e+00 : f32
    %1058 = vector.broadcast %cst_364 : f32 to vector<16x128xf32>
    %1059 = arith.maximumf %1058, %1057 : vector<16x128xf32>
    %1060 = vector.broadcast %cst_365 : f32 to vector<16x128xf32>
    %1061 = arith.minimumf %1060, %1059 : vector<16x128xf32>
    %1062 = arith.truncf %1061 : vector<16x128xf32> to vector<16x128xbf16>
    %c160 = arith.constant 160 : index
    %c0_366 = arith.constant 0 : index
    %1063 = vector.load %arg14[%c160, %c0_366] : memref<256x128xbf16, #tpu.memory_space<vmem>>, vector<16x128xbf16>
    tpu.vector_store %arg14[%c160, %c0_366], %1062 {strides = array<i32>} : memref<256x128xbf16, #tpu.memory_space<vmem>>, vector<16x128xbf16>,
    %cst_367 = arith.constant 0.000000e+00 : f32
    %1064 = vector.broadcast %cst_367 : f32 to vector<16x128xf32>
    %c11_368 = arith.constant 11 : index
    %c0_369 = arith.constant 0 : index
    %c0_370 = arith.constant 0 : index
    %1065 = vector.load %arg15[%c11_368, %c0_369, %c0_370] : memref<18x18x128xbf16, #tpu.memory_space<vmem>>, vector<1x16x128xbf16>
    %1066 = vector.shape_cast %1065 : vector<1x16x128xbf16> to vector<16x128xbf16>
    %1067 = vector.extract_strided_slice %49 {offsets = [0, 0, 0], sizes = [1, 1, 128], strides = [1, 1, 1]} : vector<3x3x128xf32> to vector<1x1x128xf32>
    %1068 = vector.shape_cast %1067 : vector<1x1x128xf32> to vector<128xf32>
    %1069 = arith.extf %1066 : vector<16x128xbf16> to vector<16x128xf32>
    %1070 = vector.shape_cast %1068 : vector<128xf32> to vector<1x128xf32>
    %1071 = vector.broadcast %1070 : vector<1x128xf32> to vector<16x128xf32>
    %1072 = arith.mulf %1069, %1071 : vector<16x128xf32>
    %1073 = arith.addf %1064, %1072 : vector<16x128xf32>
    %c11_371 = arith.constant 11 : index
    %c1_372 = arith.constant 1 : index
    %c0_373 = arith.constant 0 : index
    %1074 = vector.load %arg15[%c11_371, %c1_372, %c0_373] : memref<18x18x128xbf16, #tpu.memory_space<vmem>>, vector<1x16x128xbf16>
    %1075 = vector.shape_cast %1074 : vector<1x16x128xbf16> to vector<16x128xbf16>
    %1076 = vector.extract_strided_slice %49 {offsets = [0, 1, 0], sizes = [1, 1, 128], strides = [1, 1, 1]} : vector<3x3x128xf32> to vector<1x1x128xf32>
    %1077 = vector.shape_cast %1076 : vector<1x1x128xf32> to vector<128xf32>
    %1078 = arith.extf %1075 : vector<16x128xbf16> to vector<16x128xf32>
    %1079 = vector.shape_cast %1077 : vector<128xf32> to vector<1x128xf32>
    %1080 = vector.broadcast %1079 : vector<1x128xf32> to vector<16x128xf32>
    %1081 = arith.mulf %1078, %1080 : vector<16x128xf32>
    %1082 = arith.addf %1073, %1081 : vector<16x128xf32>
    %c11_374 = arith.constant 11 : index
    %c2_375 = arith.constant 2 : index
    %c0_376 = arith.constant 0 : index
    %1083 = vector.load %arg15[%c11_374, %c2_375, %c0_376] : memref<18x18x128xbf16, #tpu.memory_space<vmem>>, vector<1x16x128xbf16>
    %1084 = vector.shape_cast %1083 : vector<1x16x128xbf16> to vector<16x128xbf16>
    %1085 = vector.extract_strided_slice %49 {offsets = [0, 2, 0], sizes = [1, 1, 128], strides = [1, 1, 1]} : vector<3x3x128xf32> to vector<1x1x128xf32>
    %1086 = vector.shape_cast %1085 : vector<1x1x128xf32> to vector<128xf32>
    %1087 = arith.extf %1084 : vector<16x128xbf16> to vector<16x128xf32>
    %1088 = vector.shape_cast %1086 : vector<128xf32> to vector<1x128xf32>
    %1089 = vector.broadcast %1088 : vector<1x128xf32> to vector<16x128xf32>
    %1090 = arith.mulf %1087, %1089 : vector<16x128xf32>
    %1091 = arith.addf %1082, %1090 : vector<16x128xf32>
    %c12_377 = arith.constant 12 : index
    %c0_378 = arith.constant 0 : index
    %c0_379 = arith.constant 0 : index
    %1092 = vector.load %arg15[%c12_377, %c0_378, %c0_379] : memref<18x18x128xbf16, #tpu.memory_space<vmem>>, vector<1x16x128xbf16>
    %1093 = vector.shape_cast %1092 : vector<1x16x128xbf16> to vector<16x128xbf16>
    %1094 = vector.extract_strided_slice %49 {offsets = [1, 0, 0], sizes = [1, 1, 128], strides = [1, 1, 1]} : vector<3x3x128xf32> to vector<1x1x128xf32>
    %1095 = vector.shape_cast %1094 : vector<1x1x128xf32> to vector<128xf32>
    %1096 = arith.extf %1093 : vector<16x128xbf16> to vector<16x128xf32>
    %1097 = vector.shape_cast %1095 : vector<128xf32> to vector<1x128xf32>
    %1098 = vector.broadcast %1097 : vector<1x128xf32> to vector<16x128xf32>
    %1099 = arith.mulf %1096, %1098 : vector<16x128xf32>
    %1100 = arith.addf %1091, %1099 : vector<16x128xf32>
    %c12_380 = arith.constant 12 : index
    %c1_381 = arith.constant 1 : index
    %c0_382 = arith.constant 0 : index
    %1101 = vector.load %arg15[%c12_380, %c1_381, %c0_382] : memref<18x18x128xbf16, #tpu.memory_space<vmem>>, vector<1x16x128xbf16>
    %1102 = vector.shape_cast %1101 : vector<1x16x128xbf16> to vector<16x128xbf16>
    %1103 = vector.extract_strided_slice %49 {offsets = [1, 1, 0], sizes = [1, 1, 128], strides = [1, 1, 1]} : vector<3x3x128xf32> to vector<1x1x128xf32>
    %1104 = vector.shape_cast %1103 : vector<1x1x128xf32> to vector<128xf32>
    %1105 = arith.extf %1102 : vector<16x128xbf16> to vector<16x128xf32>
    %1106 = vector.shape_cast %1104 : vector<128xf32> to vector<1x128xf32>
    %1107 = vector.broadcast %1106 : vector<1x128xf32> to vector<16x128xf32>
    %1108 = arith.mulf %1105, %1107 : vector<16x128xf32>
    %1109 = arith.addf %1100, %1108 : vector<16x128xf32>
    %c12_383 = arith.constant 12 : index
    %c2_384 = arith.constant 2 : index
    %c0_385 = arith.constant 0 : index
    %1110 = vector.load %arg15[%c12_383, %c2_384, %c0_385] : memref<18x18x128xbf16, #tpu.memory_space<vmem>>, vector<1x16x128xbf16>
    %1111 = vector.shape_cast %1110 : vector<1x16x128xbf16> to vector<16x128xbf16>
    %1112 = vector.extract_strided_slice %49 {offsets = [1, 2, 0], sizes = [1, 1, 128], strides = [1, 1, 1]} : vector<3x3x128xf32> to vector<1x1x128xf32>
    %1113 = vector.shape_cast %1112 : vector<1x1x128xf32> to vector<128xf32>
    %1114 = arith.extf %1111 : vector<16x128xbf16> to vector<16x128xf32>
    %1115 = vector.shape_cast %1113 : vector<128xf32> to vector<1x128xf32>
    %1116 = vector.broadcast %1115 : vector<1x128xf32> to vector<16x128xf32>
    %1117 = arith.mulf %1114, %1116 : vector<16x128xf32>
    %1118 = arith.addf %1109, %1117 : vector<16x128xf32>
    %c13 = arith.constant 13 : index
    %c0_386 = arith.constant 0 : index
    %c0_387 = arith.constant 0 : index
    %1119 = vector.load %arg15[%c13, %c0_386, %c0_387] : memref<18x18x128xbf16, #tpu.memory_space<vmem>>, vector<1x16x128xbf16>
    %1120 = vector.shape_cast %1119 : vector<1x16x128xbf16> to vector<16x128xbf16>
    %1121 = vector.extract_strided_slice %49 {offsets = [2, 0, 0], sizes = [1, 1, 128], strides = [1, 1, 1]} : vector<3x3x128xf32> to vector<1x1x128xf32>
    %1122 = vector.shape_cast %1121 : vector<1x1x128xf32> to vector<128xf32>
    %1123 = arith.extf %1120 : vector<16x128xbf16> to vector<16x128xf32>
    %1124 = vector.shape_cast %1122 : vector<128xf32> to vector<1x128xf32>
    %1125 = vector.broadcast %1124 : vector<1x128xf32> to vector<16x128xf32>
    %1126 = arith.mulf %1123, %1125 : vector<16x128xf32>
    %1127 = arith.addf %1118, %1126 : vector<16x128xf32>
    %c13_388 = arith.constant 13 : index
    %c1_389 = arith.constant 1 : index
    %c0_390 = arith.constant 0 : index
    %1128 = vector.load %arg15[%c13_388, %c1_389, %c0_390] : memref<18x18x128xbf16, #tpu.memory_space<vmem>>, vector<1x16x128xbf16>
    %1129 = vector.shape_cast %1128 : vector<1x16x128xbf16> to vector<16x128xbf16>
    %1130 = vector.extract_strided_slice %49 {offsets = [2, 1, 0], sizes = [1, 1, 128], strides = [1, 1, 1]} : vector<3x3x128xf32> to vector<1x1x128xf32>
    %1131 = vector.shape_cast %1130 : vector<1x1x128xf32> to vector<128xf32>
    %1132 = arith.extf %1129 : vector<16x128xbf16> to vector<16x128xf32>
    %1133 = vector.shape_cast %1131 : vector<128xf32> to vector<1x128xf32>
    %1134 = vector.broadcast %1133 : vector<1x128xf32> to vector<16x128xf32>
    %1135 = arith.mulf %1132, %1134 : vector<16x128xf32>
    %1136 = arith.addf %1127, %1135 : vector<16x128xf32>
    %c13_391 = arith.constant 13 : index
    %c2_392 = arith.constant 2 : index
    %c0_393 = arith.constant 0 : index
    %1137 = vector.load %arg15[%c13_391, %c2_392, %c0_393] : memref<18x18x128xbf16, #tpu.memory_space<vmem>>, vector<1x16x128xbf16>
    %1138 = vector.shape_cast %1137 : vector<1x16x128xbf16> to vector<16x128xbf16>
    %1139 = vector.extract_strided_slice %49 {offsets = [2, 2, 0], sizes = [1, 1, 128], strides = [1, 1, 1]} : vector<3x3x128xf32> to vector<1x1x128xf32>
    %1140 = vector.shape_cast %1139 : vector<1x1x128xf32> to vector<128xf32>
    %1141 = arith.extf %1138 : vector<16x128xbf16> to vector<16x128xf32>
    %1142 = vector.shape_cast %1140 : vector<128xf32> to vector<1x128xf32>
    %1143 = vector.broadcast %1142 : vector<1x128xf32> to vector<16x128xf32>
    %1144 = arith.mulf %1141, %1143 : vector<16x128xf32>
    %1145 = arith.addf %1136, %1144 : vector<16x128xf32>
    %1146 = vector.broadcast %50 : vector<1x128xf32> to vector<16x128xf32>
    %1147 = arith.mulf %1145, %1146 : vector<16x128xf32>
    %1148 = vector.broadcast %51 : vector<1x128xf32> to vector<16x128xf32>
    %1149 = arith.addf %1147, %1148 : vector<16x128xf32>
    %cst_394 = arith.constant 0.000000e+00 : f32
    %cst_395 = arith.constant 6.000000e+00 : f32
    %1150 = vector.broadcast %cst_394 : f32 to vector<16x128xf32>
    %1151 = arith.maximumf %1150, %1149 : vector<16x128xf32>
    %1152 = vector.broadcast %cst_395 : f32 to vector<16x128xf32>
    %1153 = arith.minimumf %1152, %1151 : vector<16x128xf32>
    %1154 = arith.truncf %1153 : vector<16x128xf32> to vector<16x128xbf16>
    %c176 = arith.constant 176 : index
    %c0_396 = arith.constant 0 : index
    %1155 = vector.load %arg14[%c176, %c0_396] : memref<256x128xbf16, #tpu.memory_space<vmem>>, vector<16x128xbf16>
    tpu.vector_store %arg14[%c176, %c0_396], %1154 {strides = array<i32>} : memref<256x128xbf16, #tpu.memory_space<vmem>>, vector<16x128xbf16>,
    %cst_397 = arith.constant 0.000000e+00 : f32
    %1156 = vector.broadcast %cst_397 : f32 to vector<16x128xf32>
    %c12_398 = arith.constant 12 : index
    %c0_399 = arith.constant 0 : index
    %c0_400 = arith.constant 0 : index
    %1157 = vector.load %arg15[%c12_398, %c0_399, %c0_400] : memref<18x18x128xbf16, #tpu.memory_space<vmem>>, vector<1x16x128xbf16>
    %1158 = vector.shape_cast %1157 : vector<1x16x128xbf16> to vector<16x128xbf16>
    %1159 = vector.extract_strided_slice %49 {offsets = [0, 0, 0], sizes = [1, 1, 128], strides = [1, 1, 1]} : vector<3x3x128xf32> to vector<1x1x128xf32>
    %1160 = vector.shape_cast %1159 : vector<1x1x128xf32> to vector<128xf32>
    %1161 = arith.extf %1158 : vector<16x128xbf16> to vector<16x128xf32>
    %1162 = vector.shape_cast %1160 : vector<128xf32> to vector<1x128xf32>
    %1163 = vector.broadcast %1162 : vector<1x128xf32> to vector<16x128xf32>
    %1164 = arith.mulf %1161, %1163 : vector<16x128xf32>
    %1165 = arith.addf %1156, %1164 : vector<16x128xf32>
    %c12_401 = arith.constant 12 : index
    %c1_402 = arith.constant 1 : index
    %c0_403 = arith.constant 0 : index
    %1166 = vector.load %arg15[%c12_401, %c1_402, %c0_403] : memref<18x18x128xbf16, #tpu.memory_space<vmem>>, vector<1x16x128xbf16>
    %1167 = vector.shape_cast %1166 : vector<1x16x128xbf16> to vector<16x128xbf16>
    %1168 = vector.extract_strided_slice %49 {offsets = [0, 1, 0], sizes = [1, 1, 128], strides = [1, 1, 1]} : vector<3x3x128xf32> to vector<1x1x128xf32>
    %1169 = vector.shape_cast %1168 : vector<1x1x128xf32> to vector<128xf32>
    %1170 = arith.extf %1167 : vector<16x128xbf16> to vector<16x128xf32>
    %1171 = vector.shape_cast %1169 : vector<128xf32> to vector<1x128xf32>
    %1172 = vector.broadcast %1171 : vector<1x128xf32> to vector<16x128xf32>
    %1173 = arith.mulf %1170, %1172 : vector<16x128xf32>
    %1174 = arith.addf %1165, %1173 : vector<16x128xf32>
    %c12_404 = arith.constant 12 : index
    %c2_405 = arith.constant 2 : index
    %c0_406 = arith.constant 0 : index
    %1175 = vector.load %arg15[%c12_404, %c2_405, %c0_406] : memref<18x18x128xbf16, #tpu.memory_space<vmem>>, vector<1x16x128xbf16>
    %1176 = vector.shape_cast %1175 : vector<1x16x128xbf16> to vector<16x128xbf16>
    %1177 = vector.extract_strided_slice %49 {offsets = [0, 2, 0], sizes = [1, 1, 128], strides = [1, 1, 1]} : vector<3x3x128xf32> to vector<1x1x128xf32>
    %1178 = vector.shape_cast %1177 : vector<1x1x128xf32> to vector<128xf32>
    %1179 = arith.extf %1176 : vector<16x128xbf16> to vector<16x128xf32>
    %1180 = vector.shape_cast %1178 : vector<128xf32> to vector<1x128xf32>
    %1181 = vector.broadcast %1180 : vector<1x128xf32> to vector<16x128xf32>
    %1182 = arith.mulf %1179, %1181 : vector<16x128xf32>
    %1183 = arith.addf %1174, %1182 : vector<16x128xf32>
    %c13_407 = arith.constant 13 : index
    %c0_408 = arith.constant 0 : index
    %c0_409 = arith.constant 0 : index
    %1184 = vector.load %arg15[%c13_407, %c0_408, %c0_409] : memref<18x18x128xbf16, #tpu.memory_space<vmem>>, vector<1x16x128xbf16>
    %1185 = vector.shape_cast %1184 : vector<1x16x128xbf16> to vector<16x128xbf16>
    %1186 = vector.extract_strided_slice %49 {offsets = [1, 0, 0], sizes = [1, 1, 128], strides = [1, 1, 1]} : vector<3x3x128xf32> to vector<1x1x128xf32>
    %1187 = vector.shape_cast %1186 : vector<1x1x128xf32> to vector<128xf32>
    %1188 = arith.extf %1185 : vector<16x128xbf16> to vector<16x128xf32>
    %1189 = vector.shape_cast %1187 : vector<128xf32> to vector<1x128xf32>
    %1190 = vector.broadcast %1189 : vector<1x128xf32> to vector<16x128xf32>
    %1191 = arith.mulf %1188, %1190 : vector<16x128xf32>
    %1192 = arith.addf %1183, %1191 : vector<16x128xf32>
    %c13_410 = arith.constant 13 : index
    %c1_411 = arith.constant 1 : index
    %c0_412 = arith.constant 0 : index
    %1193 = vector.load %arg15[%c13_410, %c1_411, %c0_412] : memref<18x18x128xbf16, #tpu.memory_space<vmem>>, vector<1x16x128xbf16>
    %1194 = vector.shape_cast %1193 : vector<1x16x128xbf16> to vector<16x128xbf16>
    %1195 = vector.extract_strided_slice %49 {offsets = [1, 1, 0], sizes = [1, 1, 128], strides = [1, 1, 1]} : vector<3x3x128xf32> to vector<1x1x128xf32>
    %1196 = vector.shape_cast %1195 : vector<1x1x128xf32> to vector<128xf32>
    %1197 = arith.extf %1194 : vector<16x128xbf16> to vector<16x128xf32>
    %1198 = vector.shape_cast %1196 : vector<128xf32> to vector<1x128xf32>
    %1199 = vector.broadcast %1198 : vector<1x128xf32> to vector<16x128xf32>
    %1200 = arith.mulf %1197, %1199 : vector<16x128xf32>
    %1201 = arith.addf %1192, %1200 : vector<16x128xf32>
    %c13_413 = arith.constant 13 : index
    %c2_414 = arith.constant 2 : index
    %c0_415 = arith.constant 0 : index
    %1202 = vector.load %arg15[%c13_413, %c2_414, %c0_415] : memref<18x18x128xbf16, #tpu.memory_space<vmem>>, vector<1x16x128xbf16>
    %1203 = vector.shape_cast %1202 : vector<1x16x128xbf16> to vector<16x128xbf16>
    %1204 = vector.extract_strided_slice %49 {offsets = [1, 2, 0], sizes = [1, 1, 128], strides = [1, 1, 1]} : vector<3x3x128xf32> to vector<1x1x128xf32>
    %1205 = vector.shape_cast %1204 : vector<1x1x128xf32> to vector<128xf32>
    %1206 = arith.extf %1203 : vector<16x128xbf16> to vector<16x128xf32>
    %1207 = vector.shape_cast %1205 : vector<128xf32> to vector<1x128xf32>
    %1208 = vector.broadcast %1207 : vector<1x128xf32> to vector<16x128xf32>
    %1209 = arith.mulf %1206, %1208 : vector<16x128xf32>
    %1210 = arith.addf %1201, %1209 : vector<16x128xf32>
    %c14 = arith.constant 14 : index
    %c0_416 = arith.constant 0 : index
    %c0_417 = arith.constant 0 : index
    %1211 = vector.load %arg15[%c14, %c0_416, %c0_417] : memref<18x18x128xbf16, #tpu.memory_space<vmem>>, vector<1x16x128xbf16>
    %1212 = vector.shape_cast %1211 : vector<1x16x128xbf16> to vector<16x128xbf16>
    %1213 = vector.extract_strided_slice %49 {offsets = [2, 0, 0], sizes = [1, 1, 128], strides = [1, 1, 1]} : vector<3x3x128xf32> to vector<1x1x128xf32>
    %1214 = vector.shape_cast %1213 : vector<1x1x128xf32> to vector<128xf32>
    %1215 = arith.extf %1212 : vector<16x128xbf16> to vector<16x128xf32>
    %1216 = vector.shape_cast %1214 : vector<128xf32> to vector<1x128xf32>
    %1217 = vector.broadcast %1216 : vector<1x128xf32> to vector<16x128xf32>
    %1218 = arith.mulf %1215, %1217 : vector<16x128xf32>
    %1219 = arith.addf %1210, %1218 : vector<16x128xf32>
    %c14_418 = arith.constant 14 : index
    %c1_419 = arith.constant 1 : index
    %c0_420 = arith.constant 0 : index
    %1220 = vector.load %arg15[%c14_418, %c1_419, %c0_420] : memref<18x18x128xbf16, #tpu.memory_space<vmem>>, vector<1x16x128xbf16>
    %1221 = vector.shape_cast %1220 : vector<1x16x128xbf16> to vector<16x128xbf16>
    %1222 = vector.extract_strided_slice %49 {offsets = [2, 1, 0], sizes = [1, 1, 128], strides = [1, 1, 1]} : vector<3x3x128xf32> to vector<1x1x128xf32>
    %1223 = vector.shape_cast %1222 : vector<1x1x128xf32> to vector<128xf32>
    %1224 = arith.extf %1221 : vector<16x128xbf16> to vector<16x128xf32>
    %1225 = vector.shape_cast %1223 : vector<128xf32> to vector<1x128xf32>
    %1226 = vector.broadcast %1225 : vector<1x128xf32> to vector<16x128xf32>
    %1227 = arith.mulf %1224, %1226 : vector<16x128xf32>
    %1228 = arith.addf %1219, %1227 : vector<16x128xf32>
    %c14_421 = arith.constant 14 : index
    %c2_422 = arith.constant 2 : index
    %c0_423 = arith.constant 0 : index
    %1229 = vector.load %arg15[%c14_421, %c2_422, %c0_423] : memref<18x18x128xbf16, #tpu.memory_space<vmem>>, vector<1x16x128xbf16>
    %1230 = vector.shape_cast %1229 : vector<1x16x128xbf16> to vector<16x128xbf16>
    %1231 = vector.extract_strided_slice %49 {offsets = [2, 2, 0], sizes = [1, 1, 128], strides = [1, 1, 1]} : vector<3x3x128xf32> to vector<1x1x128xf32>
    %1232 = vector.shape_cast %1231 : vector<1x1x128xf32> to vector<128xf32>
    %1233 = arith.extf %1230 : vector<16x128xbf16> to vector<16x128xf32>
    %1234 = vector.shape_cast %1232 : vector<128xf32> to vector<1x128xf32>
    %1235 = vector.broadcast %1234 : vector<1x128xf32> to vector<16x128xf32>
    %1236 = arith.mulf %1233, %1235 : vector<16x128xf32>
    %1237 = arith.addf %1228, %1236 : vector<16x128xf32>
    %1238 = vector.broadcast %50 : vector<1x128xf32> to vector<16x128xf32>
    %1239 = arith.mulf %1237, %1238 : vector<16x128xf32>
    %1240 = vector.broadcast %51 : vector<1x128xf32> to vector<16x128xf32>
    %1241 = arith.addf %1239, %1240 : vector<16x128xf32>
    %cst_424 = arith.constant 0.000000e+00 : f32
    %cst_425 = arith.constant 6.000000e+00 : f32
    %1242 = vector.broadcast %cst_424 : f32 to vector<16x128xf32>
    %1243 = arith.maximumf %1242, %1241 : vector<16x128xf32>
    %1244 = vector.broadcast %cst_425 : f32 to vector<16x128xf32>
    %1245 = arith.minimumf %1244, %1243 : vector<16x128xf32>
    %1246 = arith.truncf %1245 : vector<16x128xf32> to vector<16x128xbf16>
    %c192 = arith.constant 192 : index
    %c0_426 = arith.constant 0 : index
    %1247 = vector.load %arg14[%c192, %c0_426] : memref<256x128xbf16, #tpu.memory_space<vmem>>, vector<16x128xbf16>
    tpu.vector_store %arg14[%c192, %c0_426], %1246 {strides = array<i32>} : memref<256x128xbf16, #tpu.memory_space<vmem>>, vector<16x128xbf16>,
    %cst_427 = arith.constant 0.000000e+00 : f32
    %1248 = vector.broadcast %cst_427 : f32 to vector<16x128xf32>
    %c13_428 = arith.constant 13 : index
    %c0_429 = arith.constant 0 : index
    %c0_430 = arith.constant 0 : index
    %1249 = vector.load %arg15[%c13_428, %c0_429, %c0_430] : memref<18x18x128xbf16, #tpu.memory_space<vmem>>, vector<1x16x128xbf16>
    %1250 = vector.shape_cast %1249 : vector<1x16x128xbf16> to vector<16x128xbf16>
    %1251 = vector.extract_strided_slice %49 {offsets = [0, 0, 0], sizes = [1, 1, 128], strides = [1, 1, 1]} : vector<3x3x128xf32> to vector<1x1x128xf32>
    %1252 = vector.shape_cast %1251 : vector<1x1x128xf32> to vector<128xf32>
    %1253 = arith.extf %1250 : vector<16x128xbf16> to vector<16x128xf32>
    %1254 = vector.shape_cast %1252 : vector<128xf32> to vector<1x128xf32>
    %1255 = vector.broadcast %1254 : vector<1x128xf32> to vector<16x128xf32>
    %1256 = arith.mulf %1253, %1255 : vector<16x128xf32>
    %1257 = arith.addf %1248, %1256 : vector<16x128xf32>
    %c13_431 = arith.constant 13 : index
    %c1_432 = arith.constant 1 : index
    %c0_433 = arith.constant 0 : index
    %1258 = vector.load %arg15[%c13_431, %c1_432, %c0_433] : memref<18x18x128xbf16, #tpu.memory_space<vmem>>, vector<1x16x128xbf16>
    %1259 = vector.shape_cast %1258 : vector<1x16x128xbf16> to vector<16x128xbf16>
    %1260 = vector.extract_strided_slice %49 {offsets = [0, 1, 0], sizes = [1, 1, 128], strides = [1, 1, 1]} : vector<3x3x128xf32> to vector<1x1x128xf32>
    %1261 = vector.shape_cast %1260 : vector<1x1x128xf32> to vector<128xf32>
    %1262 = arith.extf %1259 : vector<16x128xbf16> to vector<16x128xf32>
    %1263 = vector.shape_cast %1261 : vector<128xf32> to vector<1x128xf32>
    %1264 = vector.broadcast %1263 : vector<1x128xf32> to vector<16x128xf32>
    %1265 = arith.mulf %1262, %1264 : vector<16x128xf32>
    %1266 = arith.addf %1257, %1265 : vector<16x128xf32>
    %c13_434 = arith.constant 13 : index
    %c2_435 = arith.constant 2 : index
    %c0_436 = arith.constant 0 : index
    %1267 = vector.load %arg15[%c13_434, %c2_435, %c0_436] : memref<18x18x128xbf16, #tpu.memory_space<vmem>>, vector<1x16x128xbf16>
    %1268 = vector.shape_cast %1267 : vector<1x16x128xbf16> to vector<16x128xbf16>
    %1269 = vector.extract_strided_slice %49 {offsets = [0, 2, 0], sizes = [1, 1, 128], strides = [1, 1, 1]} : vector<3x3x128xf32> to vector<1x1x128xf32>
    %1270 = vector.shape_cast %1269 : vector<1x1x128xf32> to vector<128xf32>
    %1271 = arith.extf %1268 : vector<16x128xbf16> to vector<16x128xf32>
    %1272 = vector.shape_cast %1270 : vector<128xf32> to vector<1x128xf32>
    %1273 = vector.broadcast %1272 : vector<1x128xf32> to vector<16x128xf32>
    %1274 = arith.mulf %1271, %1273 : vector<16x128xf32>
    %1275 = arith.addf %1266, %1274 : vector<16x128xf32>
    %c14_437 = arith.constant 14 : index
    %c0_438 = arith.constant 0 : index
    %c0_439 = arith.constant 0 : index
    %1276 = vector.load %arg15[%c14_437, %c0_438, %c0_439] : memref<18x18x128xbf16, #tpu.memory_space<vmem>>, vector<1x16x128xbf16>
    %1277 = vector.shape_cast %1276 : vector<1x16x128xbf16> to vector<16x128xbf16>
    %1278 = vector.extract_strided_slice %49 {offsets = [1, 0, 0], sizes = [1, 1, 128], strides = [1, 1, 1]} : vector<3x3x128xf32> to vector<1x1x128xf32>
    %1279 = vector.shape_cast %1278 : vector<1x1x128xf32> to vector<128xf32>
    %1280 = arith.extf %1277 : vector<16x128xbf16> to vector<16x128xf32>
    %1281 = vector.shape_cast %1279 : vector<128xf32> to vector<1x128xf32>
    %1282 = vector.broadcast %1281 : vector<1x128xf32> to vector<16x128xf32>
    %1283 = arith.mulf %1280, %1282 : vector<16x128xf32>
    %1284 = arith.addf %1275, %1283 : vector<16x128xf32>
    %c14_440 = arith.constant 14 : index
    %c1_441 = arith.constant 1 : index
    %c0_442 = arith.constant 0 : index
    %1285 = vector.load %arg15[%c14_440, %c1_441, %c0_442] : memref<18x18x128xbf16, #tpu.memory_space<vmem>>, vector<1x16x128xbf16>
    %1286 = vector.shape_cast %1285 : vector<1x16x128xbf16> to vector<16x128xbf16>
    %1287 = vector.extract_strided_slice %49 {offsets = [1, 1, 0], sizes = [1, 1, 128], strides = [1, 1, 1]} : vector<3x3x128xf32> to vector<1x1x128xf32>
    %1288 = vector.shape_cast %1287 : vector<1x1x128xf32> to vector<128xf32>
    %1289 = arith.extf %1286 : vector<16x128xbf16> to vector<16x128xf32>
    %1290 = vector.shape_cast %1288 : vector<128xf32> to vector<1x128xf32>
    %1291 = vector.broadcast %1290 : vector<1x128xf32> to vector<16x128xf32>
    %1292 = arith.mulf %1289, %1291 : vector<16x128xf32>
    %1293 = arith.addf %1284, %1292 : vector<16x128xf32>
    %c14_443 = arith.constant 14 : index
    %c2_444 = arith.constant 2 : index
    %c0_445 = arith.constant 0 : index
    %1294 = vector.load %arg15[%c14_443, %c2_444, %c0_445] : memref<18x18x128xbf16, #tpu.memory_space<vmem>>, vector<1x16x128xbf16>
    %1295 = vector.shape_cast %1294 : vector<1x16x128xbf16> to vector<16x128xbf16>
    %1296 = vector.extract_strided_slice %49 {offsets = [1, 2, 0], sizes = [1, 1, 128], strides = [1, 1, 1]} : vector<3x3x128xf32> to vector<1x1x128xf32>
    %1297 = vector.shape_cast %1296 : vector<1x1x128xf32> to vector<128xf32>
    %1298 = arith.extf %1295 : vector<16x128xbf16> to vector<16x128xf32>
    %1299 = vector.shape_cast %1297 : vector<128xf32> to vector<1x128xf32>
    %1300 = vector.broadcast %1299 : vector<1x128xf32> to vector<16x128xf32>
    %1301 = arith.mulf %1298, %1300 : vector<16x128xf32>
    %1302 = arith.addf %1293, %1301 : vector<16x128xf32>
    %c15 = arith.constant 15 : index
    %c0_446 = arith.constant 0 : index
    %c0_447 = arith.constant 0 : index
    %1303 = vector.load %arg15[%c15, %c0_446, %c0_447] : memref<18x18x128xbf16, #tpu.memory_space<vmem>>, vector<1x16x128xbf16>
    %1304 = vector.shape_cast %1303 : vector<1x16x128xbf16> to vector<16x128xbf16>
    %1305 = vector.extract_strided_slice %49 {offsets = [2, 0, 0], sizes = [1, 1, 128], strides = [1, 1, 1]} : vector<3x3x128xf32> to vector<1x1x128xf32>
    %1306 = vector.shape_cast %1305 : vector<1x1x128xf32> to vector<128xf32>
    %1307 = arith.extf %1304 : vector<16x128xbf16> to vector<16x128xf32>
    %1308 = vector.shape_cast %1306 : vector<128xf32> to vector<1x128xf32>
    %1309 = vector.broadcast %1308 : vector<1x128xf32> to vector<16x128xf32>
    %1310 = arith.mulf %1307, %1309 : vector<16x128xf32>
    %1311 = arith.addf %1302, %1310 : vector<16x128xf32>
    %c15_448 = arith.constant 15 : index
    %c1_449 = arith.constant 1 : index
    %c0_450 = arith.constant 0 : index
    %1312 = vector.load %arg15[%c15_448, %c1_449, %c0_450] : memref<18x18x128xbf16, #tpu.memory_space<vmem>>, vector<1x16x128xbf16>
    %1313 = vector.shape_cast %1312 : vector<1x16x128xbf16> to vector<16x128xbf16>
    %1314 = vector.extract_strided_slice %49 {offsets = [2, 1, 0], sizes = [1, 1, 128], strides = [1, 1, 1]} : vector<3x3x128xf32> to vector<1x1x128xf32>
    %1315 = vector.shape_cast %1314 : vector<1x1x128xf32> to vector<128xf32>
    %1316 = arith.extf %1313 : vector<16x128xbf16> to vector<16x128xf32>
    %1317 = vector.shape_cast %1315 : vector<128xf32> to vector<1x128xf32>
    %1318 = vector.broadcast %1317 : vector<1x128xf32> to vector<16x128xf32>
    %1319 = arith.mulf %1316, %1318 : vector<16x128xf32>
    %1320 = arith.addf %1311, %1319 : vector<16x128xf32>
    %c15_451 = arith.constant 15 : index
    %c2_452 = arith.constant 2 : index
    %c0_453 = arith.constant 0 : index
    %1321 = vector.load %arg15[%c15_451, %c2_452, %c0_453] : memref<18x18x128xbf16, #tpu.memory_space<vmem>>, vector<1x16x128xbf16>
    %1322 = vector.shape_cast %1321 : vector<1x16x128xbf16> to vector<16x128xbf16>
    %1323 = vector.extract_strided_slice %49 {offsets = [2, 2, 0], sizes = [1, 1, 128], strides = [1, 1, 1]} : vector<3x3x128xf32> to vector<1x1x128xf32>
    %1324 = vector.shape_cast %1323 : vector<1x1x128xf32> to vector<128xf32>
    %1325 = arith.extf %1322 : vector<16x128xbf16> to vector<16x128xf32>
    %1326 = vector.shape_cast %1324 : vector<128xf32> to vector<1x128xf32>
    %1327 = vector.broadcast %1326 : vector<1x128xf32> to vector<16x128xf32>
    %1328 = arith.mulf %1325, %1327 : vector<16x128xf32>
    %1329 = arith.addf %1320, %1328 : vector<16x128xf32>
    %1330 = vector.broadcast %50 : vector<1x128xf32> to vector<16x128xf32>
    %1331 = arith.mulf %1329, %1330 : vector<16x128xf32>
    %1332 = vector.broadcast %51 : vector<1x128xf32> to vector<16x128xf32>
    %1333 = arith.addf %1331, %1332 : vector<16x128xf32>
    %cst_454 = arith.constant 0.000000e+00 : f32
    %cst_455 = arith.constant 6.000000e+00 : f32
    %1334 = vector.broadcast %cst_454 : f32 to vector<16x128xf32>
    %1335 = arith.maximumf %1334, %1333 : vector<16x128xf32>
    %1336 = vector.broadcast %cst_455 : f32 to vector<16x128xf32>
    %1337 = arith.minimumf %1336, %1335 : vector<16x128xf32>
    %1338 = arith.truncf %1337 : vector<16x128xf32> to vector<16x128xbf16>
    %c208 = arith.constant 208 : index
    %c0_456 = arith.constant 0 : index
    %1339 = vector.load %arg14[%c208, %c0_456] : memref<256x128xbf16, #tpu.memory_space<vmem>>, vector<16x128xbf16>
    tpu.vector_store %arg14[%c208, %c0_456], %1338 {strides = array<i32>} : memref<256x128xbf16, #tpu.memory_space<vmem>>, vector<16x128xbf16>,
    %cst_457 = arith.constant 0.000000e+00 : f32
    %1340 = vector.broadcast %cst_457 : f32 to vector<16x128xf32>
    %c14_458 = arith.constant 14 : index
    %c0_459 = arith.constant 0 : index
    %c0_460 = arith.constant 0 : index
    %1341 = vector.load %arg15[%c14_458, %c0_459, %c0_460] : memref<18x18x128xbf16, #tpu.memory_space<vmem>>, vector<1x16x128xbf16>
    %1342 = vector.shape_cast %1341 : vector<1x16x128xbf16> to vector<16x128xbf16>
    %1343 = vector.extract_strided_slice %49 {offsets = [0, 0, 0], sizes = [1, 1, 128], strides = [1, 1, 1]} : vector<3x3x128xf32> to vector<1x1x128xf32>
    %1344 = vector.shape_cast %1343 : vector<1x1x128xf32> to vector<128xf32>
    %1345 = arith.extf %1342 : vector<16x128xbf16> to vector<16x128xf32>
    %1346 = vector.shape_cast %1344 : vector<128xf32> to vector<1x128xf32>
    %1347 = vector.broadcast %1346 : vector<1x128xf32> to vector<16x128xf32>
    %1348 = arith.mulf %1345, %1347 : vector<16x128xf32>
    %1349 = arith.addf %1340, %1348 : vector<16x128xf32>
    %c14_461 = arith.constant 14 : index
    %c1_462 = arith.constant 1 : index
    %c0_463 = arith.constant 0 : index
    %1350 = vector.load %arg15[%c14_461, %c1_462, %c0_463] : memref<18x18x128xbf16, #tpu.memory_space<vmem>>, vector<1x16x128xbf16>
    %1351 = vector.shape_cast %1350 : vector<1x16x128xbf16> to vector<16x128xbf16>
    %1352 = vector.extract_strided_slice %49 {offsets = [0, 1, 0], sizes = [1, 1, 128], strides = [1, 1, 1]} : vector<3x3x128xf32> to vector<1x1x128xf32>
    %1353 = vector.shape_cast %1352 : vector<1x1x128xf32> to vector<128xf32>
    %1354 = arith.extf %1351 : vector<16x128xbf16> to vector<16x128xf32>
    %1355 = vector.shape_cast %1353 : vector<128xf32> to vector<1x128xf32>
    %1356 = vector.broadcast %1355 : vector<1x128xf32> to vector<16x128xf32>
    %1357 = arith.mulf %1354, %1356 : vector<16x128xf32>
    %1358 = arith.addf %1349, %1357 : vector<16x128xf32>
    %c14_464 = arith.constant 14 : index
    %c2_465 = arith.constant 2 : index
    %c0_466 = arith.constant 0 : index
    %1359 = vector.load %arg15[%c14_464, %c2_465, %c0_466] : memref<18x18x128xbf16, #tpu.memory_space<vmem>>, vector<1x16x128xbf16>
    %1360 = vector.shape_cast %1359 : vector<1x16x128xbf16> to vector<16x128xbf16>
    %1361 = vector.extract_strided_slice %49 {offsets = [0, 2, 0], sizes = [1, 1, 128], strides = [1, 1, 1]} : vector<3x3x128xf32> to vector<1x1x128xf32>
    %1362 = vector.shape_cast %1361 : vector<1x1x128xf32> to vector<128xf32>
    %1363 = arith.extf %1360 : vector<16x128xbf16> to vector<16x128xf32>
    %1364 = vector.shape_cast %1362 : vector<128xf32> to vector<1x128xf32>
    %1365 = vector.broadcast %1364 : vector<1x128xf32> to vector<16x128xf32>
    %1366 = arith.mulf %1363, %1365 : vector<16x128xf32>
    %1367 = arith.addf %1358, %1366 : vector<16x128xf32>
    %c15_467 = arith.constant 15 : index
    %c0_468 = arith.constant 0 : index
    %c0_469 = arith.constant 0 : index
    %1368 = vector.load %arg15[%c15_467, %c0_468, %c0_469] : memref<18x18x128xbf16, #tpu.memory_space<vmem>>, vector<1x16x128xbf16>
    %1369 = vector.shape_cast %1368 : vector<1x16x128xbf16> to vector<16x128xbf16>
    %1370 = vector.extract_strided_slice %49 {offsets = [1, 0, 0], sizes = [1, 1, 128], strides = [1, 1, 1]} : vector<3x3x128xf32> to vector<1x1x128xf32>
    %1371 = vector.shape_cast %1370 : vector<1x1x128xf32> to vector<128xf32>
    %1372 = arith.extf %1369 : vector<16x128xbf16> to vector<16x128xf32>
    %1373 = vector.shape_cast %1371 : vector<128xf32> to vector<1x128xf32>
    %1374 = vector.broadcast %1373 : vector<1x128xf32> to vector<16x128xf32>
    %1375 = arith.mulf %1372, %1374 : vector<16x128xf32>
    %1376 = arith.addf %1367, %1375 : vector<16x128xf32>
    %c15_470 = arith.constant 15 : index
    %c1_471 = arith.constant 1 : index
    %c0_472 = arith.constant 0 : index
    %1377 = vector.load %arg15[%c15_470, %c1_471, %c0_472] : memref<18x18x128xbf16, #tpu.memory_space<vmem>>, vector<1x16x128xbf16>
    %1378 = vector.shape_cast %1377 : vector<1x16x128xbf16> to vector<16x128xbf16>
    %1379 = vector.extract_strided_slice %49 {offsets = [1, 1, 0], sizes = [1, 1, 128], strides = [1, 1, 1]} : vector<3x3x128xf32> to vector<1x1x128xf32>
    %1380 = vector.shape_cast %1379 : vector<1x1x128xf32> to vector<128xf32>
    %1381 = arith.extf %1378 : vector<16x128xbf16> to vector<16x128xf32>
    %1382 = vector.shape_cast %1380 : vector<128xf32> to vector<1x128xf32>
    %1383 = vector.broadcast %1382 : vector<1x128xf32> to vector<16x128xf32>
    %1384 = arith.mulf %1381, %1383 : vector<16x128xf32>
    %1385 = arith.addf %1376, %1384 : vector<16x128xf32>
    %c15_473 = arith.constant 15 : index
    %c2_474 = arith.constant 2 : index
    %c0_475 = arith.constant 0 : index
    %1386 = vector.load %arg15[%c15_473, %c2_474, %c0_475] : memref<18x18x128xbf16, #tpu.memory_space<vmem>>, vector<1x16x128xbf16>
    %1387 = vector.shape_cast %1386 : vector<1x16x128xbf16> to vector<16x128xbf16>
    %1388 = vector.extract_strided_slice %49 {offsets = [1, 2, 0], sizes = [1, 1, 128], strides = [1, 1, 1]} : vector<3x3x128xf32> to vector<1x1x128xf32>
    %1389 = vector.shape_cast %1388 : vector<1x1x128xf32> to vector<128xf32>
    %1390 = arith.extf %1387 : vector<16x128xbf16> to vector<16x128xf32>
    %1391 = vector.shape_cast %1389 : vector<128xf32> to vector<1x128xf32>
    %1392 = vector.broadcast %1391 : vector<1x128xf32> to vector<16x128xf32>
    %1393 = arith.mulf %1390, %1392 : vector<16x128xf32>
    %1394 = arith.addf %1385, %1393 : vector<16x128xf32>
    %c16_476 = arith.constant 16 : index
    %c0_477 = arith.constant 0 : index
    %c0_478 = arith.constant 0 : index
    %1395 = vector.load %arg15[%c16_476, %c0_477, %c0_478] : memref<18x18x128xbf16, #tpu.memory_space<vmem>>, vector<1x16x128xbf16>
    %1396 = vector.shape_cast %1395 : vector<1x16x128xbf16> to vector<16x128xbf16>
    %1397 = vector.extract_strided_slice %49 {offsets = [2, 0, 0], sizes = [1, 1, 128], strides = [1, 1, 1]} : vector<3x3x128xf32> to vector<1x1x128xf32>
    %1398 = vector.shape_cast %1397 : vector<1x1x128xf32> to vector<128xf32>
    %1399 = arith.extf %1396 : vector<16x128xbf16> to vector<16x128xf32>
    %1400 = vector.shape_cast %1398 : vector<128xf32> to vector<1x128xf32>
    %1401 = vector.broadcast %1400 : vector<1x128xf32> to vector<16x128xf32>
    %1402 = arith.mulf %1399, %1401 : vector<16x128xf32>
    %1403 = arith.addf %1394, %1402 : vector<16x128xf32>
    %c16_479 = arith.constant 16 : index
    %c1_480 = arith.constant 1 : index
    %c0_481 = arith.constant 0 : index
    %1404 = vector.load %arg15[%c16_479, %c1_480, %c0_481] : memref<18x18x128xbf16, #tpu.memory_space<vmem>>, vector<1x16x128xbf16>
    %1405 = vector.shape_cast %1404 : vector<1x16x128xbf16> to vector<16x128xbf16>
    %1406 = vector.extract_strided_slice %49 {offsets = [2, 1, 0], sizes = [1, 1, 128], strides = [1, 1, 1]} : vector<3x3x128xf32> to vector<1x1x128xf32>
    %1407 = vector.shape_cast %1406 : vector<1x1x128xf32> to vector<128xf32>
    %1408 = arith.extf %1405 : vector<16x128xbf16> to vector<16x128xf32>
    %1409 = vector.shape_cast %1407 : vector<128xf32> to vector<1x128xf32>
    %1410 = vector.broadcast %1409 : vector<1x128xf32> to vector<16x128xf32>
    %1411 = arith.mulf %1408, %1410 : vector<16x128xf32>
    %1412 = arith.addf %1403, %1411 : vector<16x128xf32>
    %c16_482 = arith.constant 16 : index
    %c2_483 = arith.constant 2 : index
    %c0_484 = arith.constant 0 : index
    %1413 = vector.load %arg15[%c16_482, %c2_483, %c0_484] : memref<18x18x128xbf16, #tpu.memory_space<vmem>>, vector<1x16x128xbf16>
    %1414 = vector.shape_cast %1413 : vector<1x16x128xbf16> to vector<16x128xbf16>
    %1415 = vector.extract_strided_slice %49 {offsets = [2, 2, 0], sizes = [1, 1, 128], strides = [1, 1, 1]} : vector<3x3x128xf32> to vector<1x1x128xf32>
    %1416 = vector.shape_cast %1415 : vector<1x1x128xf32> to vector<128xf32>
    %1417 = arith.extf %1414 : vector<16x128xbf16> to vector<16x128xf32>
    %1418 = vector.shape_cast %1416 : vector<128xf32> to vector<1x128xf32>
    %1419 = vector.broadcast %1418 : vector<1x128xf32> to vector<16x128xf32>
    %1420 = arith.mulf %1417, %1419 : vector<16x128xf32>
    %1421 = arith.addf %1412, %1420 : vector<16x128xf32>
    %1422 = vector.broadcast %50 : vector<1x128xf32> to vector<16x128xf32>
    %1423 = arith.mulf %1421, %1422 : vector<16x128xf32>
    %1424 = vector.broadcast %51 : vector<1x128xf32> to vector<16x128xf32>
    %1425 = arith.addf %1423, %1424 : vector<16x128xf32>
    %cst_485 = arith.constant 0.000000e+00 : f32
    %cst_486 = arith.constant 6.000000e+00 : f32
    %1426 = vector.broadcast %cst_485 : f32 to vector<16x128xf32>
    %1427 = arith.maximumf %1426, %1425 : vector<16x128xf32>
    %1428 = vector.broadcast %cst_486 : f32 to vector<16x128xf32>
    %1429 = arith.minimumf %1428, %1427 : vector<16x128xf32>
    %1430 = arith.truncf %1429 : vector<16x128xf32> to vector<16x128xbf16>
    %c224 = arith.constant 224 : index
    %c0_487 = arith.constant 0 : index
    %1431 = vector.load %arg14[%c224, %c0_487] : memref<256x128xbf16, #tpu.memory_space<vmem>>, vector<16x128xbf16>
    tpu.vector_store %arg14[%c224, %c0_487], %1430 {strides = array<i32>} : memref<256x128xbf16, #tpu.memory_space<vmem>>, vector<16x128xbf16>,
    %cst_488 = arith.constant 0.000000e+00 : f32
    %1432 = vector.broadcast %cst_488 : f32 to vector<16x128xf32>
    %c15_489 = arith.constant 15 : index
    %c0_490 = arith.constant 0 : index
    %c0_491 = arith.constant 0 : index
    %1433 = vector.load %arg15[%c15_489, %c0_490, %c0_491] : memref<18x18x128xbf16, #tpu.memory_space<vmem>>, vector<1x16x128xbf16>
    %1434 = vector.shape_cast %1433 : vector<1x16x128xbf16> to vector<16x128xbf16>
    %1435 = vector.extract_strided_slice %49 {offsets = [0, 0, 0], sizes = [1, 1, 128], strides = [1, 1, 1]} : vector<3x3x128xf32> to vector<1x1x128xf32>
    %1436 = vector.shape_cast %1435 : vector<1x1x128xf32> to vector<128xf32>
    %1437 = arith.extf %1434 : vector<16x128xbf16> to vector<16x128xf32>
    %1438 = vector.shape_cast %1436 : vector<128xf32> to vector<1x128xf32>
    %1439 = vector.broadcast %1438 : vector<1x128xf32> to vector<16x128xf32>
    %1440 = arith.mulf %1437, %1439 : vector<16x128xf32>
    %1441 = arith.addf %1432, %1440 : vector<16x128xf32>
    %c15_492 = arith.constant 15 : index
    %c1_493 = arith.constant 1 : index
    %c0_494 = arith.constant 0 : index
    %1442 = vector.load %arg15[%c15_492, %c1_493, %c0_494] : memref<18x18x128xbf16, #tpu.memory_space<vmem>>, vector<1x16x128xbf16>
    %1443 = vector.shape_cast %1442 : vector<1x16x128xbf16> to vector<16x128xbf16>
    %1444 = vector.extract_strided_slice %49 {offsets = [0, 1, 0], sizes = [1, 1, 128], strides = [1, 1, 1]} : vector<3x3x128xf32> to vector<1x1x128xf32>
    %1445 = vector.shape_cast %1444 : vector<1x1x128xf32> to vector<128xf32>
    %1446 = arith.extf %1443 : vector<16x128xbf16> to vector<16x128xf32>
    %1447 = vector.shape_cast %1445 : vector<128xf32> to vector<1x128xf32>
    %1448 = vector.broadcast %1447 : vector<1x128xf32> to vector<16x128xf32>
    %1449 = arith.mulf %1446, %1448 : vector<16x128xf32>
    %1450 = arith.addf %1441, %1449 : vector<16x128xf32>
    %c15_495 = arith.constant 15 : index
    %c2_496 = arith.constant 2 : index
    %c0_497 = arith.constant 0 : index
    %1451 = vector.load %arg15[%c15_495, %c2_496, %c0_497] : memref<18x18x128xbf16, #tpu.memory_space<vmem>>, vector<1x16x128xbf16>
    %1452 = vector.shape_cast %1451 : vector<1x16x128xbf16> to vector<16x128xbf16>
    %1453 = vector.extract_strided_slice %49 {offsets = [0, 2, 0], sizes = [1, 1, 128], strides = [1, 1, 1]} : vector<3x3x128xf32> to vector<1x1x128xf32>
    %1454 = vector.shape_cast %1453 : vector<1x1x128xf32> to vector<128xf32>
    %1455 = arith.extf %1452 : vector<16x128xbf16> to vector<16x128xf32>
    %1456 = vector.shape_cast %1454 : vector<128xf32> to vector<1x128xf32>
    %1457 = vector.broadcast %1456 : vector<1x128xf32> to vector<16x128xf32>
    %1458 = arith.mulf %1455, %1457 : vector<16x128xf32>
    %1459 = arith.addf %1450, %1458 : vector<16x128xf32>
    %c16_498 = arith.constant 16 : index
    %c0_499 = arith.constant 0 : index
    %c0_500 = arith.constant 0 : index
    %1460 = vector.load %arg15[%c16_498, %c0_499, %c0_500] : memref<18x18x128xbf16, #tpu.memory_space<vmem>>, vector<1x16x128xbf16>
    %1461 = vector.shape_cast %1460 : vector<1x16x128xbf16> to vector<16x128xbf16>
    %1462 = vector.extract_strided_slice %49 {offsets = [1, 0, 0], sizes = [1, 1, 128], strides = [1, 1, 1]} : vector<3x3x128xf32> to vector<1x1x128xf32>
    %1463 = vector.shape_cast %1462 : vector<1x1x128xf32> to vector<128xf32>
    %1464 = arith.extf %1461 : vector<16x128xbf16> to vector<16x128xf32>
    %1465 = vector.shape_cast %1463 : vector<128xf32> to vector<1x128xf32>
    %1466 = vector.broadcast %1465 : vector<1x128xf32> to vector<16x128xf32>
    %1467 = arith.mulf %1464, %1466 : vector<16x128xf32>
    %1468 = arith.addf %1459, %1467 : vector<16x128xf32>
    %c16_501 = arith.constant 16 : index
    %c1_502 = arith.constant 1 : index
    %c0_503 = arith.constant 0 : index
    %1469 = vector.load %arg15[%c16_501, %c1_502, %c0_503] : memref<18x18x128xbf16, #tpu.memory_space<vmem>>, vector<1x16x128xbf16>
    %1470 = vector.shape_cast %1469 : vector<1x16x128xbf16> to vector<16x128xbf16>
    %1471 = vector.extract_strided_slice %49 {offsets = [1, 1, 0], sizes = [1, 1, 128], strides = [1, 1, 1]} : vector<3x3x128xf32> to vector<1x1x128xf32>
    %1472 = vector.shape_cast %1471 : vector<1x1x128xf32> to vector<128xf32>
    %1473 = arith.extf %1470 : vector<16x128xbf16> to vector<16x128xf32>
    %1474 = vector.shape_cast %1472 : vector<128xf32> to vector<1x128xf32>
    %1475 = vector.broadcast %1474 : vector<1x128xf32> to vector<16x128xf32>
    %1476 = arith.mulf %1473, %1475 : vector<16x128xf32>
    %1477 = arith.addf %1468, %1476 : vector<16x128xf32>
    %c16_504 = arith.constant 16 : index
    %c2_505 = arith.constant 2 : index
    %c0_506 = arith.constant 0 : index
    %1478 = vector.load %arg15[%c16_504, %c2_505, %c0_506] : memref<18x18x128xbf16, #tpu.memory_space<vmem>>, vector<1x16x128xbf16>
    %1479 = vector.shape_cast %1478 : vector<1x16x128xbf16> to vector<16x128xbf16>
    %1480 = vector.extract_strided_slice %49 {offsets = [1, 2, 0], sizes = [1, 1, 128], strides = [1, 1, 1]} : vector<3x3x128xf32> to vector<1x1x128xf32>
    %1481 = vector.shape_cast %1480 : vector<1x1x128xf32> to vector<128xf32>
    %1482 = arith.extf %1479 : vector<16x128xbf16> to vector<16x128xf32>
    %1483 = vector.shape_cast %1481 : vector<128xf32> to vector<1x128xf32>
    %1484 = vector.broadcast %1483 : vector<1x128xf32> to vector<16x128xf32>
    %1485 = arith.mulf %1482, %1484 : vector<16x128xf32>
    %1486 = arith.addf %1477, %1485 : vector<16x128xf32>
    %c17_507 = arith.constant 17 : index
    %c0_508 = arith.constant 0 : index
    %c0_509 = arith.constant 0 : index
    %1487 = vector.load %arg15[%c17_507, %c0_508, %c0_509] : memref<18x18x128xbf16, #tpu.memory_space<vmem>>, vector<1x16x128xbf16>
    %1488 = vector.shape_cast %1487 : vector<1x16x128xbf16> to vector<16x128xbf16>
    %1489 = vector.extract_strided_slice %49 {offsets = [2, 0, 0], sizes = [1, 1, 128], strides = [1, 1, 1]} : vector<3x3x128xf32> to vector<1x1x128xf32>
    %1490 = vector.shape_cast %1489 : vector<1x1x128xf32> to vector<128xf32>
    %1491 = arith.extf %1488 : vector<16x128xbf16> to vector<16x128xf32>
    %1492 = vector.shape_cast %1490 : vector<128xf32> to vector<1x128xf32>
    %1493 = vector.broadcast %1492 : vector<1x128xf32> to vector<16x128xf32>
    %1494 = arith.mulf %1491, %1493 : vector<16x128xf32>
    %1495 = arith.addf %1486, %1494 : vector<16x128xf32>
    %c17_510 = arith.constant 17 : index
    %c1_511 = arith.constant 1 : index
    %c0_512 = arith.constant 0 : index
    %1496 = vector.load %arg15[%c17_510, %c1_511, %c0_512] : memref<18x18x128xbf16, #tpu.memory_space<vmem>>, vector<1x16x128xbf16>
    %1497 = vector.shape_cast %1496 : vector<1x16x128xbf16> to vector<16x128xbf16>
    %1498 = vector.extract_strided_slice %49 {offsets = [2, 1, 0], sizes = [1, 1, 128], strides = [1, 1, 1]} : vector<3x3x128xf32> to vector<1x1x128xf32>
    %1499 = vector.shape_cast %1498 : vector<1x1x128xf32> to vector<128xf32>
    %1500 = arith.extf %1497 : vector<16x128xbf16> to vector<16x128xf32>
    %1501 = vector.shape_cast %1499 : vector<128xf32> to vector<1x128xf32>
    %1502 = vector.broadcast %1501 : vector<1x128xf32> to vector<16x128xf32>
    %1503 = arith.mulf %1500, %1502 : vector<16x128xf32>
    %1504 = arith.addf %1495, %1503 : vector<16x128xf32>
    %c17_513 = arith.constant 17 : index
    %c2_514 = arith.constant 2 : index
    %c0_515 = arith.constant 0 : index
    %1505 = vector.load %arg15[%c17_513, %c2_514, %c0_515] : memref<18x18x128xbf16, #tpu.memory_space<vmem>>, vector<1x16x128xbf16>
    %1506 = vector.shape_cast %1505 : vector<1x16x128xbf16> to vector<16x128xbf16>
    %1507 = vector.extract_strided_slice %49 {offsets = [2, 2, 0], sizes = [1, 1, 128], strides = [1, 1, 1]} : vector<3x3x128xf32> to vector<1x1x128xf32>
    %1508 = vector.shape_cast %1507 : vector<1x1x128xf32> to vector<128xf32>
    %1509 = arith.extf %1506 : vector<16x128xbf16> to vector<16x128xf32>
    %1510 = vector.shape_cast %1508 : vector<128xf32> to vector<1x128xf32>
    %1511 = vector.broadcast %1510 : vector<1x128xf32> to vector<16x128xf32>
    %1512 = arith.mulf %1509, %1511 : vector<16x128xf32>
    %1513 = arith.addf %1504, %1512 : vector<16x128xf32>
    %1514 = vector.broadcast %50 : vector<1x128xf32> to vector<16x128xf32>
    %1515 = arith.mulf %1513, %1514 : vector<16x128xf32>
    %1516 = vector.broadcast %51 : vector<1x128xf32> to vector<16x128xf32>
    %1517 = arith.addf %1515, %1516 : vector<16x128xf32>
    %cst_516 = arith.constant 0.000000e+00 : f32
    %cst_517 = arith.constant 6.000000e+00 : f32
    %1518 = vector.broadcast %cst_516 : f32 to vector<16x128xf32>
    %1519 = arith.maximumf %1518, %1517 : vector<16x128xf32>
    %1520 = vector.broadcast %cst_517 : f32 to vector<16x128xf32>
    %1521 = arith.minimumf %1520, %1519 : vector<16x128xf32>
    %1522 = arith.truncf %1521 : vector<16x128xf32> to vector<16x128xbf16>
    %c240 = arith.constant 240 : index
    %c0_518 = arith.constant 0 : index
    %1523 = vector.load %arg14[%c240, %c0_518] : memref<256x128xbf16, #tpu.memory_space<vmem>>, vector<16x128xbf16>
    tpu.vector_store %arg14[%c240, %c0_518], %1522 {strides = array<i32>} : memref<256x128xbf16, #tpu.memory_space<vmem>>, vector<16x128xbf16>,
    %c0_519 = arith.constant 0 : index
    %c0_520 = arith.constant 0 : index
    %1524 = vector.load %arg10[%c0_519, %c0_520] : memref<4x128xbf16, #tpu.memory_space<vmem>>, vector<4x128xbf16>
    %c0_521 = arith.constant 0 : index
    %c0_522 = arith.constant 0 : index
    %1525 = vector.load %arg14[%c0_521, %c0_522] : memref<256x128xbf16, #tpu.memory_space<vmem>>, vector<256x128xbf16>
    %cst_523 = arith.constant dense<0.000000e+00> : vector<4x256xf32>
    %1526 = tpu.matmul %1524, %1525, %cst_523 {dimension_numbers = #tpu.dot_dimension_numbers<[1], [1], [0], [0], [0, 0, 1, 0], [], []>} : vector<4x128xbf16>, vector<256x128xbf16>, vector<4x256xf32> -> vector<4x256xf32>
    %c0_524 = arith.constant 0 : index
    %c0_525 = arith.constant 0 : index
    %1527 = vector.load %arg11[%c0_524, %c0_525] : memref<4x1xf32, #tpu.memory_space<vmem>>, vector<4x1xf32>
    %1528 = vector.broadcast %1527 : vector<4x1xf32> to vector<4x256xf32>
    %1529 = arith.mulf %1526, %1528 : vector<4x256xf32>
    %c0_526 = arith.constant 0 : index
    %c0_527 = arith.constant 0 : index
    %1530 = vector.load %arg12[%c0_526, %c0_527] : memref<4x1xf32, #tpu.memory_space<vmem>>, vector<4x1xf32>
    %1531 = vector.broadcast %1530 : vector<4x1xf32> to vector<4x256xf32>
    %1532 = arith.addf %1529, %1531 : vector<4x256xf32>
    %c0_528 = arith.constant 0 : index
    %c0_529 = arith.constant 0 : index
    %c0_530 = arith.constant 0 : index
    %1533 = vector.load %arg3[%c0_528, %c0_529, %c0_530] : memref<1x4x256xf32, #tpu.memory_space<vmem>>, vector<1x4x256xf32>
    %1534 = vector.shape_cast %1533 : vector<1x4x256xf32> to vector<4x256xf32>
    %1535 = arith.addf %1532, %1534 : vector<4x256xf32>
    %1536 = vector.shape_cast %1535 : vector<4x256xf32> to vector<1x4x256xf32>
    %c0_531 = arith.constant 0 : index
    %c0_532 = arith.constant 0 : index
    %c0_533 = arith.constant 0 : index
    %1537 = vector.load %arg13[%c0_531, %c0_532, %c0_533] : memref<1x4x256xf32, #tpu.memory_space<vmem>>, vector<1x4x256xf32>
    tpu.vector_store %arg13[%c0_531, %c0_532, %c0_533], %1536 {strides = array<i32>} : memref<1x4x256xf32, #tpu.memory_space<vmem>>, vector<1x4x256xf32>,
    return
  }
  func.func @transform_0(%arg0: i32, %arg1: i32) -> (i32, i32, i32, i32) {
    %c0_i32 = arith.constant 0 : i32
    %c0_i32_0 = arith.constant 0 : i32
    %c0_i32_1 = arith.constant 0 : i32
    %c0_i32_2 = arith.constant 0 : i32
    return %arg0, %c0_i32, %c0_i32_0, %c0_i32_1 : i32, i32, i32, i32
  }
  func.func @transform_1(%arg0: i32, %arg1: i32) -> (i32, i32, i32) {
    %c0_i32 = arith.constant 0 : i32
    %c0_i32_0 = arith.constant 0 : i32
    return %arg0, %c0_i32, %arg1 : i32, i32, i32
  }
  func.func @transform_2(%arg0: i32, %arg1: i32) -> (i32, i32) {
    %c0_i32 = arith.constant 0 : i32
    %c0_i32_0 = arith.constant 0 : i32
    %c0_i32_1 = arith.constant 0 : i32
    return %c0_i32, %c0_i32_0 : i32, i32
  }
  func.func @transform_3(%arg0: i32, %arg1: i32) -> (i32, i32) {
    %c0_i32 = arith.constant 0 : i32
    %c0_i32_0 = arith.constant 0 : i32
    %c0_i32_1 = arith.constant 0 : i32
    return %c0_i32, %c0_i32_0 : i32, i32
  }
  func.func @transform_4(%arg0: i32, %arg1: i32) -> (i32, i32) {
    %c0_i32 = arith.constant 0 : i32
    %c0_i32_0 = arith.constant 0 : i32
    %c0_i32_1 = arith.constant 0 : i32
    return %c0_i32, %c0_i32_0 : i32, i32
  }
  func.func @transform_5(%arg0: i32, %arg1: i32) -> (i32, i32, i32) {
    %c0_i32 = arith.constant 0 : i32
    %c0_i32_0 = arith.constant 0 : i32
    %c0_i32_1 = arith.constant 0 : i32
    %c0_i32_2 = arith.constant 0 : i32
    return %c0_i32, %c0_i32_0, %c0_i32_1 : i32, i32, i32
  }
  func.func @transform_6(%arg0: i32, %arg1: i32) -> (i32, i32) {
    %c0_i32 = arith.constant 0 : i32
    %c0_i32_0 = arith.constant 0 : i32
    %c0_i32_1 = arith.constant 0 : i32
    return %c0_i32, %c0_i32_0 : i32, i32
  }
  func.func @transform_7(%arg0: i32, %arg1: i32) -> (i32, i32) {
    %c0_i32 = arith.constant 0 : i32
    %c0_i32_0 = arith.constant 0 : i32
    %c0_i32_1 = arith.constant 0 : i32
    return %c0_i32, %c0_i32_0 : i32, i32
  }
  func.func @transform_8(%arg0: i32, %arg1: i32) -> (i32, i32) {
    %c0_i32 = arith.constant 0 : i32
    %c0_i32_0 = arith.constant 0 : i32
    %c0_i32_1 = arith.constant 0 : i32
    return %c0_i32, %c0_i32_0 : i32, i32
  }
  func.func @transform_9(%arg0: i32, %arg1: i32) -> (i32, i32) {
    %c0_i32 = arith.constant 0 : i32
    %c0_i32_0 = arith.constant 0 : i32
    %c0_i32_1 = arith.constant 0 : i32
    return %c0_i32, %c0_i32_0 : i32, i32
  }
  func.func @transform_10(%arg0: i32, %arg1: i32) -> (i32, i32) {
    %c0_i32 = arith.constant 0 : i32
    %c0_i32_0 = arith.constant 0 : i32
    %c0_i32_1 = arith.constant 0 : i32
    return %c0_i32, %c0_i32_0 : i32, i32
  }
  func.func @transform_11(%arg0: i32, %arg1: i32) -> (i32, i32, i32) {
    %c0_i32 = arith.constant 0 : i32
    %c0_i32_0 = arith.constant 0 : i32
    return %arg0, %c0_i32, %arg1 : i32, i32, i32
  }
}

</mosaic_0001>

<llo_original>
// kernel: inverted_residual_forward.1
$region0: #{inverted_residual_forward.1}
  #allocation0 [shape = 'u32[]', space=smem, size = 0x4, offset = 0x4, fixed_abs, tag = 'smem constant byte address 0x4 - core index']
  #allocation1 [shape = 'u32[144,128]{1,0:T(1,128)}', space=vmem, size = 0x12000, scoped, tag = 'internal scratch']
  #allocation2 [shape = 'bf16[256,128]{1,0:T(8,128)(2,1)}', space=vmem, size = 0x10000, scoped, tag = 'scratch operand']
  #allocation3 [shape = 'bf16[18,18,128]{2,1,0:T(8,128)(2,1)}', space=vmem, size = 0x1b000, scoped, tag = 'scratch operand']
  %s0 = inlined_call_operand.vmem [shape: f32[2,16,16,4], index: 0, kind: input, shape index: {}]
  %s1 = inlined_call_operand.vmem [shape: f32[2,4,256], index: 1, kind: input, shape index: {}]
  %s2 = inlined_call_operand.vmem [shape: bf16[4,128], index: 2, kind: input, shape index: {}]
  %s3 = inlined_call_operand.vmem [shape: f32[1,128], index: 3, kind: input, shape index: {}]
  %s4 = inlined_call_operand.vmem [shape: f32[1,128], index: 4, kind: input, shape index: {}]
  %s5 = inlined_call_operand.vmem [shape: f32[3,3,128], index: 5, kind: input, shape index: {}]
  %s6 = inlined_call_operand.vmem [shape: f32[1,128], index: 6, kind: input, shape index: {}]
  %s7 = inlined_call_operand.vmem [shape: f32[1,128], index: 7, kind: input, shape index: {}]
  %s8 = inlined_call_operand.vmem [shape: bf16[4,128], index: 8, kind: input, shape index: {}]
  %s9 = inlined_call_operand.vmem [shape: f32[4,1], index: 9, kind: input, shape index: {}]
  %s10 = inlined_call_operand.vmem [shape: f32[4,1], index: 10, kind: input, shape index: {}]
  %s11 = inlined_call_operand.vmem [shape: f32[2,4,256], index: 11, kind: output, shape index: {}]
  %s12 = sld [smem:[#allocation0]]
  $region77: #{inverted_residual_forward.1} parent=0
    _
  %s14 = ssub.s32 1, %s12
  %s15 = scalar_select 0, %s14, %s12
  loop: start=0, step=1, limit=4
  $region2: #{inverted_residual_forward.1} parent=0 // loop_pre_header
    _
  $region3: #{inverted_residual_forward.1} parent=0 // loop_header
    %s17 = sphi 0, %s21
    %p18 = scmp.ge.s32.totalorder %s17, 4
    %s24 = sphi 0, %s36
    %s25 = sphi 0, %s32
    %s26 = sphi 0, %s24
    %s27 = sphi 0, %s25
    %s28 = sphi 0, %s26
    %s29 = sphi 0, %s27
    %s39 = sphi 0, %s41
    %s42 = sphi 0, %s39
    %s43 = sphi 0, %s42
    %s59 = sphi 0, %s43
    %s67 = sphi 0, %s69
    %s70 = sphi 0, %s67
    %s71 = sphi 0, %s70
    %s87 = sphi 0, %s71
    %s91 = sphi 0, %s91
    %s93 = sphi 0, %s91
    %s94 = sphi 0, %s93
    %s108 = sphi 0, %s94
    %s112 = sphi 0, %s112
    %s114 = sphi 0, %s112
    %s115 = sphi 0, %s114
    %s129 = sphi 0, %s115
    %s133 = sphi 0, %s133
    %s135 = sphi 0, %s133
    %s136 = sphi 0, %s135
    %s150 = sphi 0, %s136
    %s154 = sphi 0, %s154
    %s156 = sphi 0, %s154
    %s157 = sphi 0, %s156
    %s171 = sphi 0, %s157
    %s175 = sphi 0, %s175
    %s177 = sphi 0, %s175
    %s178 = sphi 0, %s177
    %s192 = sphi 0, %s178
    %s196 = sphi 0, %s196
    %s198 = sphi 0, %s196
    %s199 = sphi 0, %s198
    %s213 = sphi 0, %s199
    %s217 = sphi 0, %s217
    %s219 = sphi 0, %s217
    %s220 = sphi 0, %s219
    %s234 = sphi 0, %s220
    %s238 = sphi 0, %s238
    %s240 = sphi 0, %s238
    %s241 = sphi 0, %s240
    %s255 = sphi 0, %s241
    %s259 = sphi 0, %s259
    %s261 = sphi 0, %s259
    %s262 = sphi 0, %s261
    %s276 = sphi 0, %s262
    %s284 = sphi 0, %s286
    %s287 = sphi 0, %s284
    %s288 = sphi 0, %s287
    %s304 = sphi 0, %s288
  $region4: #{inverted_residual_forward.1} parent=0 // loop_header_branch
    %20 = sbr.rel (%p18) target = $region8
  $region5: #{inverted_residual_forward.1} parent=0 // loop_body
    %s22 = ssub.s32 %s17, 1
    %s23 = ssub.s32 %s17, 2
    %s30 = sadd.s32 1, %s25
    %p31 = scmp.ge.s32.totalorder %s30, 1
    %s32 = scalar_select %p31, 0, %s30
    %s33 = sadd.s32 1, %s24
    %s34 = scalar_select %p31, %s33, %s24
    %p35 = scmp.ge.s32.totalorder %s34, 2
    %s36 = scalar_select %p35, 0, %s34
    %s37 = ssub.s32 %s24, %s36
    %p38 = scmp.eq.s32.totalorder %s37, 0
    %s40 = sadd.s32 %s39, 1
    %s41 = scalar_select %p38, %s39, %s40
    %p44 = pneg %p38
    %p45 = scmp.eq.s32.totalorder %s17, 1
    %p46 = por %p44, %p45
    %p47 = scmp.ne.s32.totalorder %s39, %s42
    %p48 = scmp.eq.s32.totalorder %s17, 0
    %p49 = por %p47, %p48
    %p50 = scmp.ne.s32.totalorder %s39, %s42
    %p51 = scmp.eq.s32.totalorder %s22, 1
    %p52 = por %p50, %p51
    %p53 = scmp.ne.s32.totalorder %s42, %s43
    %p54 = scmp.eq.s32.totalorder %s22, 0
    %p55 = por %p53, %p54
    %p56 = scmp.ne.s32.totalorder %s42, %s43
    %p57 = scmp.eq.s32.totalorder %s23, 1
    %p58 = por %p56, %p57
    %p60 = scmp.ne.s32.totalorder %s43, %s59
    %p61 = scmp.eq.s32.totalorder %s23, 0
    %p62 = por %p60, %p61
    %s63 = ssub.s32 %s24, %s36
    %s64 = ssub.s32 %s25, %s32
    %s65 = sor.u32 %s63, %s64
    %p66 = scmp.eq.s32.totalorder %s65, 0
    %s68 = sadd.s32 %s67, 1
    %s69 = scalar_select %p66, %s67, %s68
    %p72 = pneg %p66
    %p73 = scmp.eq.s32.totalorder %s17, 1
    %p74 = por %p72, %p73
    %p75 = scmp.ne.s32.totalorder %s67, %s70
    %p76 = scmp.eq.s32.totalorder %s17, 0
    %p77 = por %p75, %p76
    %p78 = scmp.ne.s32.totalorder %s67, %s70
    %p79 = scmp.eq.s32.totalorder %s22, 1
    %p80 = por %p78, %p79
    %p81 = scmp.ne.s32.totalorder %s70, %s71
    %p82 = scmp.eq.s32.totalorder %s22, 0
    %p83 = por %p81, %p82
    %p84 = scmp.ne.s32.totalorder %s70, %s71
    %p85 = scmp.eq.s32.totalorder %s23, 1
    %p86 = por %p84, %p85
    %p88 = scmp.ne.s32.totalorder %s71, %s87
    %p89 = scmp.eq.s32.totalorder %s23, 0
    %p90 = por %p88, %p89
    %s92 = sadd.s32 %s91, 1
    %p95 = scmp.eq.s32.totalorder %s17, 1
    %p96 = scmp.ne.s32.totalorder %s91, %s93
    %p97 = scmp.eq.s32.totalorder %s17, 0
    %p98 = por %p96, %p97
    %p99 = scmp.ne.s32.totalorder %s91, %s93
    %p100 = scmp.eq.s32.totalorder %s22, 1
    %p101 = por %p99, %p100
    %p102 = scmp.ne.s32.totalorder %s93, %s94
    %p103 = scmp.eq.s32.totalorder %s22, 0
    %p104 = por %p102, %p103
    %p105 = scmp.ne.s32.totalorder %s93, %s94
    %p106 = scmp.eq.s32.totalorder %s23, 1
    %p107 = por %p105, %p106
    %p109 = scmp.ne.s32.totalorder %s94, %s108
    %p110 = scmp.eq.s32.totalorder %s23, 0
    %p111 = por %p109, %p110
    %s113 = sadd.s32 %s112, 1
    %p116 = scmp.eq.s32.totalorder %s17, 1
    %p117 = scmp.ne.s32.totalorder %s112, %s114
    %p118 = scmp.eq.s32.totalorder %s17, 0
    %p119 = por %p117, %p118
    %p120 = scmp.ne.s32.totalorder %s112, %s114
    %p121 = scmp.eq.s32.totalorder %s22, 1
    %p122 = por %p120, %p121
    %p123 = scmp.ne.s32.totalorder %s114, %s115
    %p124 = scmp.eq.s32.totalorder %s22, 0
    %p125 = por %p123, %p124
    %p126 = scmp.ne.s32.totalorder %s114, %s115
    %p127 = scmp.eq.s32.totalorder %s23, 1
    %p128 = por %p126, %p127
    %p130 = scmp.ne.s32.totalorder %s115, %s129
    %p131 = scmp.eq.s32.totalorder %s23, 0
    %p132 = por %p130, %p131
    %s134 = sadd.s32 %s133, 1
    %p137 = scmp.eq.s32.totalorder %s17, 1
    %p138 = scmp.ne.s32.totalorder %s133, %s135
    %p139 = scmp.eq.s32.totalorder %s17, 0
    %p140 = por %p138, %p139
    %p141 = scmp.ne.s32.totalorder %s133, %s135
    %p142 = scmp.eq.s32.totalorder %s22, 1
    %p143 = por %p141, %p142
    %p144 = scmp.ne.s32.totalorder %s135, %s136
    %p145 = scmp.eq.s32.totalorder %s22, 0
    %p146 = por %p144, %p145
    %p147 = scmp.ne.s32.totalorder %s135, %s136
    %p148 = scmp.eq.s32.totalorder %s23, 1
    %p149 = por %p147, %p148
    %p151 = scmp.ne.s32.totalorder %s136, %s150
    %p152 = scmp.eq.s32.totalorder %s23, 0
    %p153 = por %p151, %p152
    %s155 = sadd.s32 %s154, 1
    %p158 = scmp.eq.s32.totalorder %s17, 1
    %p159 = scmp.ne.s32.totalorder %s154, %s156
    %p160 = scmp.eq.s32.totalorder %s17, 0
    %p161 = por %p159, %p160
    %p162 = scmp.ne.s32.totalorder %s154, %s156
    %p163 = scmp.eq.s32.totalorder %s22, 1
    %p164 = por %p162, %p163
    %p165 = scmp.ne.s32.totalorder %s156, %s157
    %p166 = scmp.eq.s32.totalorder %s22, 0
    %p167 = por %p165, %p166
    %p168 = scmp.ne.s32.totalorder %s156, %s157
    %p169 = scmp.eq.s32.totalorder %s23, 1
    %p170 = por %p168, %p169
    %p172 = scmp.ne.s32.totalorder %s157, %s171
    %p173 = scmp.eq.s32.totalorder %s23, 0
    %p174 = por %p172, %p173
    %s176 = sadd.s32 %s175, 1
    %p179 = scmp.eq.s32.totalorder %s17, 1
    %p180 = scmp.ne.s32.totalorder %s175, %s177
    %p181 = scmp.eq.s32.totalorder %s17, 0
    %p182 = por %p180, %p181
    %p183 = scmp.ne.s32.totalorder %s175, %s177
    %p184 = scmp.eq.s32.totalorder %s22, 1
    %p185 = por %p183, %p184
    %p186 = scmp.ne.s32.totalorder %s177, %s178
    %p187 = scmp.eq.s32.totalorder %s22, 0
    %p188 = por %p186, %p187
    %p189 = scmp.ne.s32.totalorder %s177, %s178
    %p190 = scmp.eq.s32.totalorder %s23, 1
    %p191 = por %p189, %p190
    %p193 = scmp.ne.s32.totalorder %s178, %s192
    %p194 = scmp.eq.s32.totalorder %s23, 0
    %p195 = por %p193, %p194
    %s197 = sadd.s32 %s196, 1
    %p200 = scmp.eq.s32.totalorder %s17, 1
    %p201 = scmp.ne.s32.totalorder %s196, %s198
    %p202 = scmp.eq.s32.totalorder %s17, 0
    %p203 = por %p201, %p202
    %p204 = scmp.ne.s32.totalorder %s196, %s198
    %p205 = scmp.eq.s32.totalorder %s22, 1
    %p206 = por %p204, %p205
    %p207 = scmp.ne.s32.totalorder %s198, %s199
    %p208 = scmp.eq.s32.totalorder %s22, 0
    %p209 = por %p207, %p208
    %p210 = scmp.ne.s32.totalorder %s198, %s199
    %p211 = scmp.eq.s32.totalorder %s23, 1
    %p212 = por %p210, %p211
    %p214 = scmp.ne.s32.totalorder %s199, %s213
    %p215 = scmp.eq.s32.totalorder %s23, 0
    %p216 = por %p214, %p215
    %s218 = sadd.s32 %s217, 1
    %p221 = scmp.eq.s32.totalorder %s17, 1
    %p222 = scmp.ne.s32.totalorder %s217, %s219
    %p223 = scmp.eq.s32.totalorder %s17, 0
    %p224 = por %p222, %p223
    %p225 = scmp.ne.s32.totalorder %s217, %s219
    %p226 = scmp.eq.s32.totalorder %s22, 1
    %p227 = por %p225, %p226
    %p228 = scmp.ne.s32.totalorder %s219, %s220
    %p229 = scmp.eq.s32.totalorder %s22, 0
    %p230 = por %p228, %p229
    %p231 = scmp.ne.s32.totalorder %s219, %s220
    %p232 = scmp.eq.s32.totalorder %s23, 1
    %p233 = por %p231, %p232
    %p235 = scmp.ne.s32.totalorder %s220, %s234
    %p236 = scmp.eq.s32.totalorder %s23, 0
    %p237 = por %p235, %p236
    %s239 = sadd.s32 %s238, 1
    %p242 = scmp.eq.s32.totalorder %s17, 1
    %p243 = scmp.ne.s32.totalorder %s238, %s240
    %p244 = scmp.eq.s32.totalorder %s17, 0
    %p245 = por %p243, %p244
    %p246 = scmp.ne.s32.totalorder %s238, %s240
    %p247 = scmp.eq.s32.totalorder %s22, 1
    %p248 = por %p246, %p247
    %p249 = scmp.ne.s32.totalorder %s240, %s241
    %p250 = scmp.eq.s32.totalorder %s22, 0
    %p251 = por %p249, %p250
    %p252 = scmp.ne.s32.totalorder %s240, %s241
    %p253 = scmp.eq.s32.totalorder %s23, 1
    %p254 = por %p252, %p253
    %p256 = scmp.ne.s32.totalorder %s241, %s255
    %p257 = scmp.eq.s32.totalorder %s23, 0
    %p258 = por %p256, %p257
    %s260 = sadd.s32 %s259, 1
    %p263 = scmp.eq.s32.totalorder %s17, 1
    %p264 = scmp.ne.s32.totalorder %s259, %s261
    %p265 = scmp.eq.s32.totalorder %s17, 0
    %p266 = por %p264, %p265
    %p267 = scmp.ne.s32.totalorder %s259, %s261
    %p268 = scmp.eq.s32.totalorder %s22, 1
    %p269 = por %p267, %p268
    %p270 = scmp.ne.s32.totalorder %s261, %s262
    %p271 = scmp.eq.s32.totalorder %s22, 0
    %p272 = por %p270, %p271
    %p273 = scmp.ne.s32.totalorder %s261, %s262
    %p274 = scmp.eq.s32.totalorder %s23, 1
    %p275 = por %p273, %p274
    %p277 = scmp.ne.s32.totalorder %s262, %s276
    %p278 = scmp.eq.s32.totalorder %s23, 0
    %p279 = por %p277, %p278
    %s280 = ssub.s32 %s24, %s36
    %s281 = ssub.s32 %s25, %s32
    %s282 = sor.u32 %s280, %s281
    %p283 = scmp.eq.s32.totalorder %s282, 0
    %s285 = sadd.s32 %s284, 1
    %s286 = scalar_select %p283, %s284, %s285
    %p289 = pneg %p283
    %p290 = scmp.eq.s32.totalorder %s17, 1
    %p291 = por %p289, %p290
    %p292 = scmp.ne.s32.totalorder %s284, %s287
    %p293 = scmp.eq.s32.totalorder %s17, 0
    %p294 = por %p292, %p293
    %p295 = scmp.ne.s32.totalorder %s284, %s287
    %p296 = scmp.eq.s32.totalorder %s22, 1
    %p297 = por %p295, %p296
    %p298 = scmp.ne.s32.totalorder %s287, %s288
    %p299 = scmp.eq.s32.totalorder %s22, 0
    %p300 = por %p298, %p299
    %p301 = scmp.ne.s32.totalorder %s287, %s288
    %p302 = scmp.eq.s32.totalorder %s23, 1
    %p303 = por %p301, %p302
    %p305 = scmp.ne.s32.totalorder %s288, %s304
    %p306 = scmp.eq.s32.totalorder %s23, 0
    %p307 = por %p305, %p306
    %p308 = scmp.le.s32.totalorder 1, %s17
    %p309 = scmp.lt.s32.totalorder %s17, 3
    %p310 = pnand %p308, %p309
    %p311 = pneg %p310
    // Predicated region
    $region9: #{inverted_residual_forward.1} parent=5 // pred_check
      _
    $region10: #{inverted_residual_forward.1} parent=5 // pred_check_branch
      %313 = sbr.rel (%p310) target = $region12
    $region11: #{inverted_residual_forward.1} parent=5 // pred_region
      %s314 = ssub.s32 %s17, 1
      // Predicated region
      $region13: #{inverted_residual_forward.1} parent=11 // pred_check
        %p315 = pneg %p104
      $region14: #{inverted_residual_forward.1} parent=11 // pred_check_branch
        %317 = sbr.rel (%p315) target = $region16
      $region15: #{inverted_residual_forward.1} parent=11 // pred_region
        _
      $region16: #{inverted_residual_forward.1} parent=11 // pred_fallthru
        _
      // Predicated region
      $region17: #{inverted_residual_forward.1} parent=11 // pred_check
        %p318 = pneg %p125
      $region18: #{inverted_residual_forward.1} parent=11 // pred_check_branch
        %320 = sbr.rel (%p318) target = $region20
      $region19: #{inverted_residual_forward.1} parent=11 // pred_region
        _
      $region20: #{inverted_residual_forward.1} parent=11 // pred_fallthru
        _
      // Predicated region
      $region21: #{inverted_residual_forward.1} parent=11 // pred_check
        %p321 = pneg %p146
      $region22: #{inverted_residual_forward.1} parent=11 // pred_check_branch
        %323 = sbr.rel (%p321) target = $region24
      $region23: #{inverted_residual_forward.1} parent=11 // pred_region
        _
      $region24: #{inverted_residual_forward.1} parent=11 // pred_fallthru
        _
      // Predicated region
      $region25: #{inverted_residual_forward.1} parent=11 // pred_check
        %p324 = pneg %p167
      $region26: #{inverted_residual_forward.1} parent=11 // pred_check_branch
        %326 = sbr.rel (%p324) target = $region28
      $region27: #{inverted_residual_forward.1} parent=11 // pred_region
        _
      $region28: #{inverted_residual_forward.1} parent=11 // pred_fallthru
        _
      // Predicated region
      $region29: #{inverted_residual_forward.1} parent=11 // pred_check
        %p327 = pneg %p188
      $region30: #{inverted_residual_forward.1} parent=11 // pred_check_branch
        %329 = sbr.rel (%p327) target = $region32
      $region31: #{inverted_residual_forward.1} parent=11 // pred_region
        _
      $region32: #{inverted_residual_forward.1} parent=11 // pred_fallthru
        _
      // Predicated region
      $region33: #{inverted_residual_forward.1} parent=11 // pred_check
        %p330 = pneg %p209
      $region34: #{inverted_residual_forward.1} parent=11 // pred_check_branch
        %332 = sbr.rel (%p330) target = $region36
      $region35: #{inverted_residual_forward.1} parent=11 // pred_region
        _
      $region36: #{inverted_residual_forward.1} parent=11 // pred_fallthru
        _
      // Predicated region
      $region37: #{inverted_residual_forward.1} parent=11 // pred_check
        %p333 = pneg %p230
      $region38: #{inverted_residual_forward.1} parent=11 // pred_check_branch
        %335 = sbr.rel (%p333) target = $region40
      $region39: #{inverted_residual_forward.1} parent=11 // pred_region
        _
      $region40: #{inverted_residual_forward.1} parent=11 // pred_fallthru
        _
      // Predicated region
      $region41: #{inverted_residual_forward.1} parent=11 // pred_check
        %p336 = pneg %p251
      $region42: #{inverted_residual_forward.1} parent=11 // pred_check_branch
        %338 = sbr.rel (%p336) target = $region44
      $region43: #{inverted_residual_forward.1} parent=11 // pred_region
        _
      $region44: #{inverted_residual_forward.1} parent=11 // pred_fallthru
        _
      // Predicated region
      $region45: #{inverted_residual_forward.1} parent=11 // pred_check
        %p339 = pneg %p272
      $region46: #{inverted_residual_forward.1} parent=11 // pred_check_branch
        %341 = sbr.rel (%p339) target = $region48
      $region47: #{inverted_residual_forward.1} parent=11 // pred_region
        _
      $region48: #{inverted_residual_forward.1} parent=11 // pred_fallthru
        _
    $region12: #{inverted_residual_forward.1} parent=5 // pred_fallthru
      _
    %p342 = scmp.lt.s32.totalorder %s17, 2
    // Predicated region
    $region49: #{inverted_residual_forward.1} parent=5 // pred_check
      %p343 = pneg %p342
    $region50: #{inverted_residual_forward.1} parent=5 // pred_check_branch
      %345 = sbr.rel (%p343) target = $region52
    $region51: #{inverted_residual_forward.1} parent=5 // pred_region
      // Predicated region
      $region53: #{inverted_residual_forward.1} parent=51 // pred_check
        %p346 = pneg %p49
      $region54: #{inverted_residual_forward.1} parent=51 // pred_check_branch
        %348 = sbr.rel (%p346) target = $region56
      $region55: #{inverted_residual_forward.1} parent=51 // pred_region
        %p349 = scmp.lt.s32.totalorder %s24, 1
        %s350 = scalar_select %p349, %s24, 1
        %s351 = smul.addr %s350, 32
        %s352 = smul.addr %s351, 8
        %s353 = scalar_lea.vmem %s0, %s352
      $region56: #{inverted_residual_forward.1} parent=51 // pred_fallthru
        _
      // Predicated region
      $region57: #{inverted_residual_forward.1} parent=51 // pred_check
        %p354 = pneg %p77
      $region58: #{inverted_residual_forward.1} parent=51 // pred_check_branch
        %356 = sbr.rel (%p354) target = $region60
      $region59: #{inverted_residual_forward.1} parent=51 // pred_region
        %s357 = smul.u32 2, %s25
        %p358 = scmp.lt.s32.totalorder %s24, 1
        %s359 = scalar_select %p358, %s24, 1
        %p360 = scmp.lt.s32.totalorder %s357, 1
        %s361 = scalar_select %p360, %s357, 1
        %s362 = smul.addr %s359, 2
        %s363 = sadd.s32 %s361, %s362
        %s364 = smul.addr %s363, 4
        %s365 = scalar_lea.vmem %s1, %s364
        %s366 = smul.u32 2, %s25
      $region60: #{inverted_residual_forward.1} parent=51 // pred_fallthru
        _
    $region52: #{inverted_residual_forward.1} parent=5 // pred_fallthru
      _
    %p367 = scmp.le.s32.totalorder 1, %s17
    %p368 = scmp.lt.s32.totalorder %s17, 3
    %p369 = pnand %p367, %p368
    %p370 = pneg %p369
    // Predicated region
    $region61: #{inverted_residual_forward.1} parent=5 // pred_check
      _
    $region62: #{inverted_residual_forward.1} parent=5 // pred_check_branch
      %372 = sbr.rel (%p369) target = $region64
    $region63: #{inverted_residual_forward.1} parent=5 // pred_region
      %s373 = ssub.s32 %s17, 1
      %p374 = scmp.lt.s32.totalorder %s26, 1
      %s375 = scalar_select %p374, %s26, 1
      %s376 = smul.addr %s375, 32
      %s377 = smul.addr %s376, 8
      %s378 = scalar_lea.vmem %s0, %s377
      %p379 = pneg %p55
      %p380 = pneg %p52
      %s381 = smul.u32 2, %s27
      %p382 = scmp.lt.s32.totalorder %s26, 1
      %s383 = scalar_select %p382, %s26, 1
      %p384 = scmp.lt.s32.totalorder %s381, 1
      %s385 = scalar_select %p384, %s381, 1
      %s386 = smul.addr %s383, 2
      %s387 = sadd.s32 %s385, %s386
      %s388 = smul.addr %s387, 4
      %s389 = scalar_lea.vmem %s1, %s388
      %p390 = pneg %p83
      %p391 = pneg %p80
      %p392 = pneg %p104
      %p393 = pneg %p101
      %p394 = pneg %p125
      %p395 = pneg %p122
      %p396 = pneg %p146
      %p397 = pneg %p143
      %p398 = pneg %p167
      %p399 = pneg %p164
      %p400 = pneg %p188
      %p401 = pneg %p185
      %p402 = pneg %p209
      %p403 = pneg %p206
      %p404 = pneg %p230
      %p405 = pneg %p227
      %p406 = pneg %p251
      %p407 = pneg %p248
      %p408 = pneg %p272
      %p409 = pneg %p269
      %p410 = pneg %p300
      %p411 = pneg %p297
      %s412 = smul.u32 2, %s27
      %p413 = scmp.lt.s32.totalorder %s26, 1
      %s414 = scalar_select %p413, %s26, 1
      %p415 = scmp.lt.s32.totalorder %s412, 1
      %s416 = scalar_select %p415, %s412, 1
      %s417 = smul.addr %s414, 2
      %s418 = sadd.s32 %s416, %s417
      %s419 = smul.addr %s418, 4
      %s420 = scalar_lea.vmem %s11, %s419
      %p421 = scmp.lt.s32.totalorder %s26, 1
      %s422 = scalar_select %p421, %s26, 1
      %s423 = smul.addr %s422, 32
      %s424 = smul.addr %s423, 8
      %s425 = scalar_lea.vmem %s0, %s424
      %s426 = smul.u32 2, %s27
      %p427 = scmp.lt.s32.totalorder %s26, 1
      %s428 = scalar_select %p427, %s26, 1
      %p429 = scmp.lt.s32.totalorder %s426, 1
      %s430 = scalar_select %p429, %s426, 1
      %s431 = smul.addr %s428, 2
      %s432 = sadd.s32 %s430, %s431
      %s433 = smul.addr %s432, 4
      %s434 = scalar_lea.vmem %s1, %s433
      %s435 = smul.u32 2, %s27
      %s436 = smul.u32 2, %s27
      %p437 = scmp.lt.s32.totalorder %s26, 1
      %s438 = scalar_select %p437, %s26, 1
      %p439 = scmp.lt.s32.totalorder %s436, 1
      %s440 = scalar_select %p439, %s436, 1
      %s441 = smul.addr %s438, 2
      %s442 = sadd.s32 %s440, %s441
      %s443 = smul.addr %s442, 4
      %s444 = scalar_lea.vmem %s11, %s443
      %s445 = smul.u32 2, %s27
      %s447 = smul.u32 %s27, 16
      %s448 = ssub.s32 %s447, 1
      %p449 = scmp.gt.s32.totalorder %s448, 0
      %s450 = scalar_select %p449, %s448, 0
      %s451 = sadd.s32 %s447, 16
      %p452 = scmp.lt.s32.totalorder %s451, 15
      %s453 = scalar_select %p452, %s451, 15
      %s454 = smul.u32 %s450, 16
      %s455 = scalar_lea.vmem %s425, %s454
      %v456 = vld [vmem:[%s455] sm:$0xff]
      %v457 = vld [vmem:[%s455 + $0x8] sm:$0xff]
      %s458 = smul.u32 %s447, 16
      %s459 = scalar_lea.vmem %s425, %s458
      %v460 = vld [vmem:[%s459] sm:$0xff]
      %v461 = vld [vmem:[%s459 + $0x8] sm:$0xff]
      %v462 = vld [vmem:[%s459 + $0x10] sm:$0xff]
      %v463 = vld [vmem:[%s459 + $0x18] sm:$0xff]
      %v464 = vld [vmem:[%s459 + $0x20] sm:$0xff]
      %v465 = vld [vmem:[%s459 + $0x28] sm:$0xff]
      %v466 = vld [vmem:[%s459 + $0x30] sm:$0xff]
      %v467 = vld [vmem:[%s459 + $0x38] sm:$0xff]
      %v468 = vld [vmem:[%s459 + $0x40] sm:$0xff]
      %v469 = vld [vmem:[%s459 + $0x48] sm:$0xff]
      %v470 = vld [vmem:[%s459 + $0x50] sm:$0xff]
      %v471 = vld [vmem:[%s459 + $0x58] sm:$0xff]
      %v472 = vld [vmem:[%s459 + $0x60] sm:$0xff]
      %v473 = vld [vmem:[%s459 + $0x68] sm:$0xff]
      %v474 = vld [vmem:[%s459 + $0x70] sm:$0xff]
      %v475 = vld [vmem:[%s459 + $0x78] sm:$0xff]
      %v476 = vld [vmem:[%s459 + $0x80] sm:$0xff]
      %v477 = vld [vmem:[%s459 + $0x88] sm:$0xff]
      %v478 = vld [vmem:[%s459 + $0x90] sm:$0xff]
      %v479 = vld [vmem:[%s459 + $0x98] sm:$0xff]
      %v480 = vld [vmem:[%s459 + $0xa0] sm:$0xff]
      %v481 = vld [vmem:[%s459 + $0xa8] sm:$0xff]
      %v482 = vld [vmem:[%s459 + $0xb0] sm:$0xff]
      %v483 = vld [vmem:[%s459 + $0xb8] sm:$0xff]
      %v484 = vld [vmem:[%s459 + $0xc0] sm:$0xff]
      %v485 = vld [vmem:[%s459 + $0xc8] sm:$0xff]
      %v486 = vld [vmem:[%s459 + $0xd0] sm:$0xff]
      %v487 = vld [vmem:[%s459 + $0xd8] sm:$0xff]
      %v488 = vld [vmem:[%s459 + $0xe0] sm:$0xff]
      %v489 = vld [vmem:[%s459 + $0xe8] sm:$0xff]
      %v490 = vld [vmem:[%s459 + $0xf0] sm:$0xff]
      %v491 = vld [vmem:[%s459 + $0xf8] sm:$0xff]
      %s492 = smul.u32 %s453, 16
      %s493 = scalar_lea.vmem %s425, %s492
      %v494 = vld [vmem:[%s493] sm:$0xff]
      %v495 = vld [vmem:[%s493 + $0x8] sm:$0xff]
      %v496 = vpack.c.bf16 %v457, %v456
      %v497 = vpack.c.bf16 %v461, %v460
      %v498 = vpack.c.bf16 %v463, %v462
      %v499 = vpack.c.bf16 %v465, %v464
      %v500 = vpack.c.bf16 %v467, %v466
      %v501 = vpack.c.bf16 %v469, %v468
      %v502 = vpack.c.bf16 %v471, %v470
      %v503 = vpack.c.bf16 %v473, %v472
      %v504 = vpack.c.bf16 %v475, %v474
      %v505 = vpack.c.bf16 %v477, %v476
      %v506 = vpack.c.bf16 %v479, %v478
      %v507 = vpack.c.bf16 %v481, %v480
      %v508 = vpack.c.bf16 %v483, %v482
      %v509 = vpack.c.bf16 %v485, %v484
      %v510 = vpack.c.bf16 %v487, %v486
      %v511 = vpack.c.bf16 %v489, %v488
      %v512 = vpack.c.bf16 %v491, %v490
      %v513 = vpack.c.bf16 %v495, %v494
      %v514 = vld [vmem:[%s2] sm:$0x3]
      %vm515 = vcmask 31744
      %v517 = vsel %vm515, %v496, 0
      %v520 = vsel %vm515, %v497, 0
      %v523 = vsel %vm515, %v498, 0
      %v526 = vsel %vm515, %v499, 0
      %v529 = vsel %vm515, %v500, 0
      %v532 = vsel %vm515, %v501, 0
      %v535 = vsel %vm515, %v502, 0
      %v538 = vsel %vm515, %v503, 0
      %v541 = vsel %vm515, %v504, 0
      %v544 = vsel %vm515, %v505, 0
      %v547 = vsel %vm515, %v506, 0
      %v550 = vsel %vm515, %v507, 0
      %v553 = vsel %vm515, %v508, 0
      %v556 = vsel %vm515, %v509, 0
      %v559 = vsel %vm515, %v510, 0
      %v562 = vsel %vm515, %v511, 0
      %v565 = vsel %vm515, %v512, 0
      %v568 = vsel %vm515, %v513, 0
      %vm570 = vcmask 1041408
      %v572 = vsel %vm570, %v514, 0
      %574 = vmatprep.subr.bf16.mxu0 0
      %575 = vmatpush1.bf16.msra.mxu0 0
      %576 = vmatprep.subr.bf16.mxu0 0
      %577 = vmatpush1.bf16.msra.mxu0 0
      %578 = vmatprep.subr.bf16.mxu0 0
      %579 = vmatpush1.bf16.msra.mxu0 0
      %580 = vmatprep.subr.bf16.mxu0 0
      %581 = vmatpush1.bf16.msra.mxu0 0
      %582 = vmatprep.subr.bf16.mxu0 0
      %583 = vmatpush1.bf16.msra.mxu0 0
      %584 = vmatprep.subr.bf16.mxu0 0
      %585 = vmatpush1.bf16.msra.mxu0 0
      %586 = vmatprep.subr.bf16.mxu0 0
      %587 = vmatpush1.bf16.msra.mxu0 0
      %588 = vmatprep.subr.bf16.mxu0 0
      %589 = vmatpush1.bf16.msra.mxu0 %v572
      %590 = vmatprep.subr.bf16.mxu0 0
      %591 = vmatpush2.bf16.msra.mxu0 0
      %592 = vmatprep.subr.bf16.mxu0 0
      %593 = vmatpush2.bf16.msra.mxu0 0
      %594 = vmatprep.subr.bf16.mxu0 0
      %595 = vmatpush2.bf16.msra.mxu0 0
      %596 = vmatprep.subr.bf16.mxu0 0
      %597 = vmatpush2.bf16.msra.mxu0 0
      %598 = vmatprep.subr.bf16.mxu0 0
      %599 = vmatpush2.bf16.msra.mxu0 0
      %600 = vmatprep.subr.bf16.mxu0 0
      %601 = vmatpush2.bf16.msra.mxu0 0
      %602 = vmatprep.subr.bf16.mxu0 0
      %603 = vmatpush2.bf16.msra.mxu0 0
      %604 = vmatprep.subr.bf16.mxu0 0
      %605 = vmatpush2.bf16.msra.mxu0 0
      %606 = vmatprep.mubr.bf16.mxu0 0
      %607 = vmatmul.mubr.bf16.gmra.mxu0 %v517
      %v608 = vpop.f32.mrf.mxu0
      %v609 = vadd.f32 0.0, %v608
      %v610 = vpop.f32.mrf.mxu0
      %v611 = vpop.f32.mrf.mxu0
      %v612 = vadd.f32 0.0, %v611
      %v613 = vpop.f32.mrf.mxu0
      %614 = vmatprep.mubr.bf16.mxu0 0
      %615 = vmatmul.mubr.bf16.gmra.mxu0 %v520
      %v616 = vpop.f32.mrf.mxu0
      %v617 = vadd.f32 0.0, %v616
      %v618 = vpop.f32.mrf.mxu0
      %v619 = vpop.f32.mrf.mxu0
      %v620 = vadd.f32 0.0, %v619
      %v621 = vpop.f32.mrf.mxu0
      %622 = vmatprep.mubr.bf16.mxu0 0
      %623 = vmatmul.mubr.bf16.gmra.mxu0 %v523
      %v624 = vpop.f32.mrf.mxu0
      %v625 = vadd.f32 0.0, %v624
      %v626 = vpop.f32.mrf.mxu0
      %v627 = vpop.f32.mrf.mxu0
      %v628 = vadd.f32 0.0, %v627
      %v629 = vpop.f32.mrf.mxu0
      %630 = vmatprep.mubr.bf16.mxu0 0
      %631 = vmatmul.mubr.bf16.gmra.mxu0 %v526
      %v632 = vpop.f32.mrf.mxu0
      %v633 = vadd.f32 0.0, %v632
      %v634 = vpop.f32.mrf.mxu0
      %v635 = vpop.f32.mrf.mxu0
      %v636 = vadd.f32 0.0, %v635
      %v637 = vpop.f32.mrf.mxu0
      %638 = vmatprep.mubr.bf16.mxu0 0
      %639 = vmatmul.mubr.bf16.gmra.mxu0 %v529
      %v640 = vpop.f32.mrf.mxu0
      %v641 = vadd.f32 0.0, %v640
      %v642 = vpop.f32.mrf.mxu0
      %v643 = vpop.f32.mrf.mxu0
      %v644 = vadd.f32 0.0, %v643
      %v645 = vpop.f32.mrf.mxu0
      %646 = vmatprep.mubr.bf16.mxu0 0
      %647 = vmatmul.mubr.bf16.gmra.mxu0 %v532
      %v648 = vpop.f32.mrf.mxu0
      %v649 = vadd.f32 0.0, %v648
      %v650 = vpop.f32.mrf.mxu0
      %v651 = vpop.f32.mrf.mxu0
      %v652 = vadd.f32 0.0, %v651
      %v653 = vpop.f32.mrf.mxu0
      %654 = vmatprep.mubr.bf16.mxu0 0
      %655 = vmatmul.mubr.bf16.gmra.mxu0 %v535
      %v656 = vpop.f32.mrf.mxu0
      %v657 = vadd.f32 0.0, %v656
      %v658 = vpop.f32.mrf.mxu0
      %v659 = vpop.f32.mrf.mxu0
      %v660 = vadd.f32 0.0, %v659
      %v661 = vpop.f32.mrf.mxu0
      %662 = vmatprep.mubr.bf16.mxu0 0
      %663 = vmatmul.mubr.bf16.gmra.mxu0 %v538
      %v664 = vpop.f32.mrf.mxu0
      %v665 = vadd.f32 0.0, %v664
      %v666 = vpop.f32.mrf.mxu0
      %v667 = vpop.f32.mrf.mxu0
      %v668 = vadd.f32 0.0, %v667
      %v669 = vpop.f32.mrf.mxu0
      %670 = vmatprep.mubr.bf16.mxu0 0
      %671 = vmatmul.mubr.bf16.gmra.mxu0 %v541
      %v672 = vpop.f32.mrf.mxu0
      %v673 = vadd.f32 0.0, %v672
      %v674 = vpop.f32.mrf.mxu0
      %v675 = vpop.f32.mrf.mxu0
      %v676 = vadd.f32 0.0, %v675
      %v677 = vpop.f32.mrf.mxu0
      %678 = vmatprep.mubr.bf16.mxu0 0
      %679 = vmatmul.mubr.bf16.gmra.mxu0 %v544
      %v680 = vpop.f32.mrf.mxu0
      %v681 = vadd.f32 0.0, %v680
      %v682 = vpop.f32.mrf.mxu0
      %v683 = vpop.f32.mrf.mxu0
      %v684 = vadd.f32 0.0, %v683
      %v685 = vpop.f32.mrf.mxu0
      %686 = vmatprep.mubr.bf16.mxu0 0
      %687 = vmatmul.mubr.bf16.gmra.mxu0 %v547
      %v688 = vpop.f32.mrf.mxu0
      %v689 = vadd.f32 0.0, %v688
      %v690 = vpop.f32.mrf.mxu0
      %v691 = vpop.f32.mrf.mxu0
      %v692 = vadd.f32 0.0, %v691
      %v693 = vpop.f32.mrf.mxu0
      %694 = vmatprep.mubr.bf16.mxu0 0
      %695 = vmatmul.mubr.bf16.gmra.mxu0 %v550
      %v696 = vpop.f32.mrf.mxu0
      %v697 = vadd.f32 0.0, %v696
      %v698 = vpop.f32.mrf.mxu0
      %v699 = vpop.f32.mrf.mxu0
      %v700 = vadd.f32 0.0, %v699
      %v701 = vpop.f32.mrf.mxu0
      %702 = vmatprep.mubr.bf16.mxu0 0
      %703 = vmatmul.mubr.bf16.gmra.mxu0 %v553
      %v704 = vpop.f32.mrf.mxu0
      %v705 = vadd.f32 0.0, %v704
      %v706 = vpop.f32.mrf.mxu0
      %v707 = vpop.f32.mrf.mxu0
      %v708 = vadd.f32 0.0, %v707
      %v709 = vpop.f32.mrf.mxu0
      %710 = vmatprep.mubr.bf16.mxu0 0
      %711 = vmatmul.mubr.bf16.gmra.mxu0 %v556
      %v712 = vpop.f32.mrf.mxu0
      %v713 = vadd.f32 0.0, %v712
      %v714 = vpop.f32.mrf.mxu0
      %v715 = vpop.f32.mrf.mxu0
      %v716 = vadd.f32 0.0, %v715
      %v717 = vpop.f32.mrf.mxu0
      %718 = vmatprep.mubr.bf16.mxu0 0
      %719 = vmatmul.mubr.bf16.gmra.mxu0 %v559
      %v720 = vpop.f32.mrf.mxu0
      %v721 = vadd.f32 0.0, %v720
      %v722 = vpop.f32.mrf.mxu0
      %v723 = vpop.f32.mrf.mxu0
      %v724 = vadd.f32 0.0, %v723
      %v725 = vpop.f32.mrf.mxu0
      %726 = vmatprep.mubr.bf16.mxu0 0
      %727 = vmatmul.mubr.bf16.gmra.mxu0 %v562
      %v728 = vpop.f32.mrf.mxu0
      %v729 = vadd.f32 0.0, %v728
      %v730 = vpop.f32.mrf.mxu0
      %v731 = vpop.f32.mrf.mxu0
      %v732 = vadd.f32 0.0, %v731
      %v733 = vpop.f32.mrf.mxu0
      %734 = vmatprep.mubr.bf16.mxu0 0
      %735 = vmatmul.mubr.bf16.gmra.mxu0 %v565
      %v736 = vpop.f32.mrf.mxu0
      %v737 = vadd.f32 0.0, %v736
      %v738 = vpop.f32.mrf.mxu0
      %v739 = vpop.f32.mrf.mxu0
      %v740 = vadd.f32 0.0, %v739
      %v741 = vpop.f32.mrf.mxu0
      %742 = vmatprep.mubr.bf16.mxu0 0
      %743 = vmatmul.mubr.bf16.gmra.mxu0 %v568
      %v744 = vpop.f32.mrf.mxu0
      %v745 = vadd.f32 0.0, %v744
      %v746 = vpop.f32.mrf.mxu0
      %v747 = vpop.f32.mrf.mxu0
      %v748 = vadd.f32 0.0, %v747
      %v749 = vpop.f32.mrf.mxu0
      %750 = vdwg.mxu0
      %v751 = vld [vmem:[%s3] sm:$0x1]
      %v753 = vlaneseq
      %v754 = vshrl.u32 %v753, 7
      %v755 = vsub.s32 0, %v754
      %v756 = vrot.slane %v751, %v755
      %v758 = vmul.f32 %v609, %v756
      %v759 = vmul.f32 %v612, %v756
      %v760 = vmul.f32 %v617, %v756
      %v761 = vmul.f32 %v620, %v756
      %v762 = vmul.f32 %v625, %v756
      %v763 = vmul.f32 %v628, %v756
      %v764 = vmul.f32 %v633, %v756
      %v765 = vmul.f32 %v636, %v756
      %v766 = vmul.f32 %v641, %v756
      %v767 = vmul.f32 %v644, %v756
      %v768 = vmul.f32 %v649, %v756
      %v769 = vmul.f32 %v652, %v756
      %v770 = vmul.f32 %v657, %v756
      %v771 = vmul.f32 %v660, %v756
      %v772 = vmul.f32 %v665, %v756
      %v773 = vmul.f32 %v668, %v756
      %v774 = vmul.f32 %v673, %v756
      %v775 = vmul.f32 %v676, %v756
      %v776 = vmul.f32 %v681, %v756
      %v777 = vmul.f32 %v684, %v756
      %v778 = vmul.f32 %v689, %v756
      %v779 = vmul.f32 %v692, %v756
      %v780 = vmul.f32 %v697, %v756
      %v781 = vmul.f32 %v700, %v756
      %v782 = vmul.f32 %v705, %v756
      %v783 = vmul.f32 %v708, %v756
      %v784 = vmul.f32 %v713, %v756
      %v785 = vmul.f32 %v716, %v756
      %v786 = vmul.f32 %v721, %v756
      %v787 = vmul.f32 %v724, %v756
      %v788 = vmul.f32 %v729, %v756
      %v789 = vmul.f32 %v732, %v756
      %v790 = vmul.f32 %v737, %v756
      %v791 = vmul.f32 %v740, %v756
      %v792 = vmul.f32 %v745, %v756
      %v793 = vmul.f32 %v748, %v756
      %v794 = vld [vmem:[%s4] sm:$0x1]
      %v796 = vlaneseq
      %v797 = vshrl.u32 %v796, 7
      %v798 = vsub.s32 0, %v797
      %v799 = vrot.slane %v794, %v798
      %v801 = vadd.f32 %v758, %v799
      %v802 = vadd.f32 %v759, %v799
      %v803 = vadd.f32 %v760, %v799
      %v804 = vadd.f32 %v761, %v799
      %v805 = vadd.f32 %v762, %v799
      %v806 = vadd.f32 %v763, %v799
      %v807 = vadd.f32 %v764, %v799
      %v808 = vadd.f32 %v765, %v799
      %v809 = vadd.f32 %v766, %v799
      %v810 = vadd.f32 %v767, %v799
      %v811 = vadd.f32 %v768, %v799
      %v812 = vadd.f32 %v769, %v799
      %v813 = vadd.f32 %v770, %v799
      %v814 = vadd.f32 %v771, %v799
      %v815 = vadd.f32 %v772, %v799
      %v816 = vadd.f32 %v773, %v799
      %v817 = vadd.f32 %v774, %v799
      %v818 = vadd.f32 %v775, %v799
      %v819 = vadd.f32 %v776, %v799
      %v820 = vadd.f32 %v777, %v799
      %v821 = vadd.f32 %v778, %v799
      %v822 = vadd.f32 %v779, %v799
      %v823 = vadd.f32 %v780, %v799
      %v824 = vadd.f32 %v781, %v799
      %v825 = vadd.f32 %v782, %v799
      %v826 = vadd.f32 %v783, %v799
      %v827 = vadd.f32 %v784, %v799
      %v828 = vadd.f32 %v785, %v799
      %v829 = vadd.f32 %v786, %v799
      %v830 = vadd.f32 %v787, %v799
      %v831 = vadd.f32 %v788, %v799
      %v832 = vadd.f32 %v789, %v799
      %v833 = vadd.f32 %v790, %v799
      %v834 = vadd.f32 %v791, %v799
      %v835 = vadd.f32 %v792, %v799
      %v836 = vadd.f32 %v793, %v799
      %v837 = vmax.f32 %v801, 0.0
      %v838 = vmax.f32 %v802, 0.0
      %v839 = vmax.f32 %v803, 0.0
      %v840 = vmax.f32 %v804, 0.0
      %v841 = vmax.f32 %v805, 0.0
      %v842 = vmax.f32 %v806, 0.0
      %v843 = vmax.f32 %v807, 0.0
      %v844 = vmax.f32 %v808, 0.0
      %v845 = vmax.f32 %v809, 0.0
      %v846 = vmax.f32 %v810, 0.0
      %v847 = vmax.f32 %v811, 0.0
      %v848 = vmax.f32 %v812, 0.0
      %v849 = vmax.f32 %v813, 0.0
      %v850 = vmax.f32 %v814, 0.0
      %v851 = vmax.f32 %v815, 0.0
      %v852 = vmax.f32 %v816, 0.0
      %v853 = vmax.f32 %v817, 0.0
      %v854 = vmax.f32 %v818, 0.0
      %v855 = vmax.f32 %v819, 0.0
      %v856 = vmax.f32 %v820, 0.0
      %v857 = vmax.f32 %v821, 0.0
      %v858 = vmax.f32 %v822, 0.0
      %v859 = vmax.f32 %v823, 0.0
      %v860 = vmax.f32 %v824, 0.0
      %v861 = vmax.f32 %v825, 0.0
      %v862 = vmax.f32 %v826, 0.0
      %v863 = vmax.f32 %v827, 0.0
      %v864 = vmax.f32 %v828, 0.0
      %v865 = vmax.f32 %v829, 0.0
      %v866 = vmax.f32 %v830, 0.0
      %v867 = vmax.f32 %v831, 0.0
      %v868 = vmax.f32 %v832, 0.0
      %v869 = vmax.f32 %v833, 0.0
      %v870 = vmax.f32 %v834, 0.0
      %v871 = vmax.f32 %v835, 0.0
      %v872 = vmax.f32 %v836, 0.0
      %v873 = vmin.f32 %v837, 6.0
      %v874 = vmin.f32 %v838, 6.0
      %v875 = vmin.f32 %v839, 6.0
      %v876 = vmin.f32 %v840, 6.0
      %v877 = vmin.f32 %v841, 6.0
      %v878 = vmin.f32 %v842, 6.0
      %v879 = vmin.f32 %v843, 6.0
      %v880 = vmin.f32 %v844, 6.0
      %v881 = vmin.f32 %v845, 6.0
      %v882 = vmin.f32 %v846, 6.0
      %v883 = vmin.f32 %v847, 6.0
      %v884 = vmin.f32 %v848, 6.0
      %v885 = vmin.f32 %v849, 6.0
      %v886 = vmin.f32 %v850, 6.0
      %v887 = vmin.f32 %v851, 6.0
      %v888 = vmin.f32 %v852, 6.0
      %v889 = vmin.f32 %v853, 6.0
      %v890 = vmin.f32 %v854, 6.0
      %v891 = vmin.f32 %v855, 6.0
      %v892 = vmin.f32 %v856, 6.0
      %v893 = vmin.f32 %v857, 6.0
      %v894 = vmin.f32 %v858, 6.0
      %v895 = vmin.f32 %v859, 6.0
      %v896 = vmin.f32 %v860, 6.0
      %v897 = vmin.f32 %v861, 6.0
      %v898 = vmin.f32 %v862, 6.0
      %v899 = vmin.f32 %v863, 6.0
      %v900 = vmin.f32 %v864, 6.0
      %v901 = vmin.f32 %v865, 6.0
      %v902 = vmin.f32 %v866, 6.0
      %v903 = vmin.f32 %v867, 6.0
      %v904 = vmin.f32 %v868, 6.0
      %v905 = vmin.f32 %v869, 6.0
      %v906 = vmin.f32 %v870, 6.0
      %v907 = vmin.f32 %v871, 6.0
      %v908 = vmin.f32 %v872, 6.0
      %v909 = vstv %s448
      %v910 = vadd.s32 %v909, 1
      %v911 = vadd.s32 %v909, 2
      %v912 = vadd.s32 %v909, 3
      %v913 = vadd.s32 %v909, 4
      %v914 = vadd.s32 %v909, 5
      %v915 = vadd.s32 %v909, 6
      %v916 = vadd.s32 %v909, 7
      %v917 = vadd.s32 %v909, 8
      %v918 = vadd.s32 %v909, 9
      %v919 = vadd.s32 %v909, 10
      %v920 = vadd.s32 %v909, 11
      %v921 = vadd.s32 %v909, 12
      %v922 = vadd.s32 %v909, 13
      %v923 = vadd.s32 %v909, 14
      %v924 = vadd.s32 %v909, 15
      %v925 = vadd.s32 %v909, 16
      %v926 = vadd.s32 %v909, 17
      %vm927 = vcmp.ge.s32.totalorder %v909, 0
      %vm928 = vcmp.ge.s32.totalorder %v910, 0
      %vm929 = vcmp.ge.s32.totalorder %v911, 0
      %vm930 = vcmp.ge.s32.totalorder %v912, 0
      %vm931 = vcmp.ge.s32.totalorder %v913, 0
      %vm932 = vcmp.ge.s32.totalorder %v914, 0
      %vm933 = vcmp.ge.s32.totalorder %v915, 0
      %vm934 = vcmp.ge.s32.totalorder %v916, 0
      %vm935 = vcmp.ge.s32.totalorder %v917, 0
      %vm936 = vcmp.ge.s32.totalorder %v918, 0
      %vm937 = vcmp.ge.s32.totalorder %v919, 0
      %vm938 = vcmp.ge.s32.totalorder %v920, 0
      %vm939 = vcmp.ge.s32.totalorder %v921, 0
      %vm940 = vcmp.ge.s32.totalorder %v922, 0
      %vm941 = vcmp.ge.s32.totalorder %v923, 0
      %vm942 = vcmp.ge.s32.totalorder %v924, 0
      %vm943 = vcmp.ge.s32.totalorder %v925, 0
      %vm944 = vcmp.ge.s32.totalorder %v926, 0
      %vm945 = vcmp.lt.s32.totalorder %v909, 16
      %vm946 = vcmp.lt.s32.totalorder %v910, 16
      %vm947 = vcmp.lt.s32.totalorder %v911, 16
      %vm948 = vcmp.lt.s32.totalorder %v912, 16
      %vm949 = vcmp.lt.s32.totalorder %v913, 16
      %vm950 = vcmp.lt.s32.totalorder %v914, 16
      %vm951 = vcmp.lt.s32.totalorder %v915, 16
      %vm952 = vcmp.lt.s32.totalorder %v916, 16
      %vm953 = vcmp.lt.s32.totalorder %v917, 16
      %vm954 = vcmp.lt.s32.totalorder %v918, 16
      %vm955 = vcmp.lt.s32.totalorder %v919, 16
      %vm956 = vcmp.lt.s32.totalorder %v920, 16
      %vm957 = vcmp.lt.s32.totalorder %v921, 16
      %vm958 = vcmp.lt.s32.totalorder %v922, 16
      %vm959 = vcmp.lt.s32.totalorder %v923, 16
      %vm960 = vcmp.lt.s32.totalorder %v924, 16
      %vm961 = vcmp.lt.s32.totalorder %v925, 16
      %vm962 = vcmp.lt.s32.totalorder %v926, 16
      %vm963 = vmand %vm927, %vm945
      %vm964 = vmand %vm928, %vm946
      %vm965 = vmand %vm929, %vm947
      %vm966 = vmand %vm930, %vm948
      %vm967 = vmand %vm931, %vm949
      %vm968 = vmand %vm932, %vm950
      %vm969 = vmand %vm933, %vm951
      %vm970 = vmand %vm934, %vm952
      %vm971 = vmand %vm935, %vm953
      %vm972 = vmand %vm936, %vm954
      %vm973 = vmand %vm937, %vm955
      %vm974 = vmand %vm938, %vm956
      %vm975 = vmand %vm939, %vm957
      %vm976 = vmand %vm940, %vm958
      %vm977 = vmand %vm941, %vm959
      %vm978 = vmand %vm942, %vm960
      %vm979 = vmand %vm943, %vm961
      %vm980 = vmand %vm944, %vm962
      %v981 = vsel %vm963, 1, 0
      %v982 = vsel %vm964, 1, 0
      %v983 = vsel %vm965, 1, 0
      %v984 = vsel %vm966, 1, 0
      %v985 = vsel %vm967, 1, 0
      %v986 = vsel %vm968, 1, 0
      %v987 = vsel %vm969, 1, 0
      %v988 = vsel %vm970, 1, 0
      %v989 = vsel %vm971, 1, 0
      %v990 = vsel %vm972, 1, 0
      %v991 = vsel %vm973, 1, 0
      %v992 = vsel %vm974, 1, 0
      %v993 = vsel %vm975, 1, 0
      %v994 = vsel %vm976, 1, 0
      %v995 = vsel %vm977, 1, 0
      %v996 = vsel %vm978, 1, 0
      %v997 = vsel %vm979, 1, 0
      %v998 = vsel %vm980, 1, 0
      %vm999 = vcmp.eq.s32.totalorder %v981, 1
      %vm1000 = vcmp.eq.s32.totalorder %v982, 1
      %vm1001 = vcmp.eq.s32.totalorder %v983, 1
      %vm1002 = vcmp.eq.s32.totalorder %v984, 1
      %vm1003 = vcmp.eq.s32.totalorder %v985, 1
      %vm1004 = vcmp.eq.s32.totalorder %v986, 1
      %vm1005 = vcmp.eq.s32.totalorder %v987, 1
      %vm1006 = vcmp.eq.s32.totalorder %v988, 1
      %vm1007 = vcmp.eq.s32.totalorder %v989, 1
      %vm1008 = vcmp.eq.s32.totalorder %v990, 1
      %vm1009 = vcmp.eq.s32.totalorder %v991, 1
      %vm1010 = vcmp.eq.s32.totalorder %v992, 1
      %vm1011 = vcmp.eq.s32.totalorder %v993, 1
      %vm1012 = vcmp.eq.s32.totalorder %v994, 1
      %vm1013 = vcmp.eq.s32.totalorder %v995, 1
      %vm1014 = vcmp.eq.s32.totalorder %v996, 1
      %vm1015 = vcmp.eq.s32.totalorder %v997, 1
      %vm1016 = vcmp.eq.s32.totalorder %v998, 1
      %v1017 = vsel %vm999, %v873, 0.0
      %v1018 = vsel %vm999, %v874, 0.0
      %v1019 = vsel %vm1000, %v875, 0.0
      %v1020 = vsel %vm1000, %v876, 0.0
      %v1021 = vsel %vm1001, %v877, 0.0
      %v1022 = vsel %vm1001, %v878, 0.0
      %v1023 = vsel %vm1002, %v879, 0.0
      %v1024 = vsel %vm1002, %v880, 0.0
      %v1025 = vsel %vm1003, %v881, 0.0
      %v1026 = vsel %vm1003, %v882, 0.0
      %v1027 = vsel %vm1004, %v883, 0.0
      %v1028 = vsel %vm1004, %v884, 0.0
      %v1029 = vsel %vm1005, %v885, 0.0
      %v1030 = vsel %vm1005, %v886, 0.0
      %v1031 = vsel %vm1006, %v887, 0.0
      %v1032 = vsel %vm1006, %v888, 0.0
      %v1033 = vsel %vm1007, %v889, 0.0
      %v1034 = vsel %vm1007, %v890, 0.0
      %v1035 = vsel %vm1008, %v891, 0.0
      %v1036 = vsel %vm1008, %v892, 0.0
      %v1037 = vsel %vm1009, %v893, 0.0
      %v1038 = vsel %vm1009, %v894, 0.0
      %v1039 = vsel %vm1010, %v895, 0.0
      %v1040 = vsel %vm1010, %v896, 0.0
      %v1041 = vsel %vm1011, %v897, 0.0
      %v1042 = vsel %vm1011, %v898, 0.0
      %v1043 = vsel %vm1012, %v899, 0.0
      %v1044 = vsel %vm1012, %v900, 0.0
      %v1045 = vsel %vm1013, %v901, 0.0
      %v1046 = vsel %vm1013, %v902, 0.0
      %v1047 = vsel %vm1014, %v903, 0.0
      %v1048 = vsel %vm1014, %v904, 0.0
      %v1049 = vsel %vm1015, %v905, 0.0
      %v1050 = vsel %vm1015, %v906, 0.0
      %v1051 = vsel %vm1016, %v907, 0.0
      %v1052 = vsel %vm1016, %v908, 0.0
      %v1053 = vpack.c.bf16 %v1018, %v1017
      %v1054 = vpack.c.bf16 %v1020, %v1019
      %v1055 = vpack.c.bf16 %v1022, %v1021
      %v1056 = vpack.c.bf16 %v1024, %v1023
      %v1057 = vpack.c.bf16 %v1026, %v1025
      %v1058 = vpack.c.bf16 %v1028, %v1027
      %v1059 = vpack.c.bf16 %v1030, %v1029
      %v1060 = vpack.c.bf16 %v1032, %v1031
      %v1061 = vpack.c.bf16 %v1034, %v1033
      %v1062 = vpack.c.bf16 %v1036, %v1035
      %v1063 = vpack.c.bf16 %v1038, %v1037
      %v1064 = vpack.c.bf16 %v1040, %v1039
      %v1065 = vpack.c.bf16 %v1042, %v1041
      %v1066 = vpack.c.bf16 %v1044, %v1043
      %v1067 = vpack.c.bf16 %v1046, %v1045
      %v1068 = vpack.c.bf16 %v1048, %v1047
      %v1069 = vpack.c.bf16 %v1050, %v1049
      %v1070 = vpack.c.bf16 %v1052, %v1051
      %v1089 = vunpack.c.l.b16 %v1053
      %v1090 = vunpack.c.h.b16 %v1053
      %v1091 = vunpack.c.l.b16 %v1054
      %v1092 = vunpack.c.h.b16 %v1054
      %v1093 = vunpack.c.l.b16 %v1055
      %v1094 = vunpack.c.h.b16 %v1055
      %v1095 = vunpack.c.l.b16 %v1056
      %v1096 = vunpack.c.h.b16 %v1056
      %v1097 = vunpack.c.l.b16 %v1057
      %v1098 = vunpack.c.h.b16 %v1057
      %v1099 = vunpack.c.l.b16 %v1058
      %v1100 = vunpack.c.h.b16 %v1058
      %v1101 = vunpack.c.l.b16 %v1059
      %v1102 = vunpack.c.h.b16 %v1059
      %v1103 = vunpack.c.l.b16 %v1060
      %v1104 = vunpack.c.h.b16 %v1060
      %v1105 = vunpack.c.l.b16 %v1061
      %v1106 = vunpack.c.h.b16 %v1061
      %v1107 = vunpack.c.l.b16 %v1062
      %v1108 = vunpack.c.h.b16 %v1062
      %v1109 = vunpack.c.l.b16 %v1063
      %v1110 = vunpack.c.h.b16 %v1063
      %v1111 = vunpack.c.l.b16 %v1064
      %v1112 = vunpack.c.h.b16 %v1064
      %v1113 = vunpack.c.l.b16 %v1065
      %v1114 = vunpack.c.h.b16 %v1065
      %v1115 = vunpack.c.l.b16 %v1066
      %v1116 = vunpack.c.h.b16 %v1066
      %v1117 = vunpack.c.l.b16 %v1067
      %v1118 = vunpack.c.h.b16 %v1067
      %v1119 = vunpack.c.l.b16 %v1068
      %v1120 = vunpack.c.h.b16 %v1068
      %v1121 = vunpack.c.l.b16 %v1069
      %v1122 = vunpack.c.h.b16 %v1069
      %v1123 = vunpack.c.l.b16 %v1070
      %v1124 = vunpack.c.h.b16 %v1070
      %v1125 = vpack.c.b16 %v1089, %v1089
      %v1126 = vpack.c.b16 %v1090, %v1090
      %v1127 = vpack.c.b16 %v1091, %v1091
      %v1128 = vpack.c.b16 %v1092, %v1092
      %v1129 = vpack.c.b16 %v1093, %v1093
      %v1130 = vpack.c.b16 %v1094, %v1094
      %v1131 = vpack.c.b16 %v1095, %v1095
      %v1132 = vpack.c.b16 %v1096, %v1096
      %v1133 = vpack.c.b16 %v1097, %v1097
      %v1134 = vpack.c.b16 %v1098, %v1098
      %v1135 = vpack.c.b16 %v1099, %v1099
      %v1136 = vpack.c.b16 %v1100, %v1100
      %v1137 = vpack.c.b16 %v1101, %v1101
      %v1138 = vpack.c.b16 %v1102, %v1102
      %v1139 = vpack.c.b16 %v1103, %v1103
      %v1140 = vpack.c.b16 %v1104, %v1104
      %v1141 = vpack.c.b16 %v1105, %v1105
      %v1142 = vpack.c.b16 %v1106, %v1106
      %v1143 = vpack.c.b16 %v1107, %v1107
      %v1144 = vpack.c.b16 %v1108, %v1108
      %v1145 = vpack.c.b16 %v1109, %v1109
      %v1146 = vpack.c.b16 %v1110, %v1110
      %v1147 = vpack.c.b16 %v1111, %v1111
      %v1148 = vpack.c.b16 %v1112, %v1112
      %v1149 = vpack.c.b16 %v1113, %v1113
      %v1150 = vpack.c.b16 %v1114, %v1114
      %v1151 = vpack.c.b16 %v1115, %v1115
      %v1152 = vpack.c.b16 %v1116, %v1116
      %v1153 = vpack.c.b16 %v1117, %v1117
      %v1154 = vpack.c.b16 %v1118, %v1118
      %v1155 = vpack.c.b16 %v1119, %v1119
      %v1156 = vpack.c.b16 %v1120, %v1120
      %v1157 = vpack.c.b16 %v1121, %v1121
      %v1158 = vpack.c.b16 %v1122, %v1122
      %v1159 = vpack.c.b16 %v1123, %v1123
      %v1160 = vpack.c.b16 %v1124, %v1124
      %vm1161 = vsmask.f32 256
      %vm1162 = vsmask.f32 4368
      %vm1163 = vmor %vm1161, %vm1162
      %v1165 = vshrl.u32 %v1125, 16
      %v1167 = vrot.slane %v1165, 7
      %v1168 = vshll.u32 %v1125, 16
      %v1170 = vor.u32 %v1167, %v1168
      %v1171 = vrot.slane %v1167, 4
      %v1173 = vshrl.u32 %v1126, 16
      %v1175 = vrot.slane %v1173, 7
      %v1176 = vshll.u32 %v1126, 16
      %v1178 = vor.u32 %v1175, %v1176
      %v1179 = vsel %vm1163, %v1171, %v1178
      %v1180 = vrot.slane %v1175, 4
      %v1182 = vshrl.u32 %v1127, 16
      %v1184 = vrot.slane %v1182, 7
      %v1185 = vshll.u32 %v1127, 16
      %v1187 = vor.u32 %v1184, %v1185
      %v1188 = vrot.slane %v1184, 4
      %v1190 = vshrl.u32 %v1128, 16
      %v1192 = vrot.slane %v1190, 7
      %v1193 = vshll.u32 %v1128, 16
      %v1195 = vor.u32 %v1192, %v1193
      %v1196 = vsel %vm1163, %v1188, %v1195
      %v1197 = vrot.slane %v1192, 4
      %v1199 = vshrl.u32 %v1129, 16
      %v1201 = vrot.slane %v1199, 7
      %v1202 = vshll.u32 %v1129, 16
      %v1204 = vor.u32 %v1201, %v1202
      %v1205 = vrot.slane %v1201, 4
      %v1207 = vshrl.u32 %v1130, 16
      %v1209 = vrot.slane %v1207, 7
      %v1210 = vshll.u32 %v1130, 16
      %v1212 = vor.u32 %v1209, %v1210
      %v1213 = vsel %vm1163, %v1205, %v1212
      %v1214 = vrot.slane %v1209, 4
      %v1216 = vshrl.u32 %v1131, 16
      %v1218 = vrot.slane %v1216, 7
      %v1219 = vshll.u32 %v1131, 16
      %v1221 = vor.u32 %v1218, %v1219
      %v1222 = vrot.slane %v1218, 4
      %v1224 = vshrl.u32 %v1132, 16
      %v1226 = vrot.slane %v1224, 7
      %v1227 = vshll.u32 %v1132, 16
      %v1229 = vor.u32 %v1226, %v1227
      %v1230 = vsel %vm1163, %v1222, %v1229
      %v1231 = vrot.slane %v1226, 4
      %v1233 = vshrl.u32 %v1133, 16
      %v1235 = vrot.slane %v1233, 7
      %v1236 = vshll.u32 %v1133, 16
      %v1238 = vor.u32 %v1235, %v1236
      %v1239 = vrot.slane %v1235, 4
      %v1241 = vshrl.u32 %v1134, 16
      %v1243 = vrot.slane %v1241, 7
      %v1244 = vshll.u32 %v1134, 16
      %v1246 = vor.u32 %v1243, %v1244
      %v1247 = vsel %vm1163, %v1239, %v1246
      %v1248 = vrot.slane %v1243, 4
      %v1250 = vshrl.u32 %v1135, 16
      %v1252 = vrot.slane %v1250, 7
      %v1253 = vshll.u32 %v1135, 16
      %v1255 = vor.u32 %v1252, %v1253
      %v1256 = vrot.slane %v1252, 4
      %v1258 = vshrl.u32 %v1136, 16
      %v1260 = vrot.slane %v1258, 7
      %v1261 = vshll.u32 %v1136, 16
      %v1263 = vor.u32 %v1260, %v1261
      %v1264 = vsel %vm1163, %v1256, %v1263
      %v1265 = vrot.slane %v1260, 4
      %v1267 = vshrl.u32 %v1137, 16
      %v1269 = vrot.slane %v1267, 7
      %v1270 = vshll.u32 %v1137, 16
      %v1272 = vor.u32 %v1269, %v1270
      %v1273 = vrot.slane %v1269, 4
      %v1275 = vshrl.u32 %v1138, 16
      %v1277 = vrot.slane %v1275, 7
      %v1278 = vshll.u32 %v1138, 16
      %v1280 = vor.u32 %v1277, %v1278
      %v1281 = vsel %vm1163, %v1273, %v1280
      %v1282 = vrot.slane %v1277, 4
      %v1284 = vshrl.u32 %v1139, 16
      %v1286 = vrot.slane %v1284, 7
      %v1287 = vshll.u32 %v1139, 16
      %v1289 = vor.u32 %v1286, %v1287
      %v1290 = vrot.slane %v1286, 4
      %v1292 = vshrl.u32 %v1140, 16
      %v1294 = vrot.slane %v1292, 7
      %v1295 = vshll.u32 %v1140, 16
      %v1297 = vor.u32 %v1294, %v1295
      %v1298 = vsel %vm1163, %v1290, %v1297
      %v1299 = vrot.slane %v1294, 4
      %v1301 = vshrl.u32 %v1141, 16
      %v1303 = vrot.slane %v1301, 7
      %v1304 = vshll.u32 %v1141, 16
      %v1306 = vor.u32 %v1303, %v1304
      %v1307 = vrot.slane %v1303, 4
      %v1309 = vshrl.u32 %v1142, 16
      %v1311 = vrot.slane %v1309, 7
      %v1312 = vshll.u32 %v1142, 16
      %v1314 = vor.u32 %v1311, %v1312
      %v1315 = vsel %vm1163, %v1307, %v1314
      %v1316 = vrot.slane %v1311, 4
      %v1318 = vshrl.u32 %v1143, 16
      %v1320 = vrot.slane %v1318, 7
      %v1321 = vshll.u32 %v1143, 16
      %v1323 = vor.u32 %v1320, %v1321
      %v1324 = vrot.slane %v1320, 4
      %v1326 = vshrl.u32 %v1144, 16
      %v1328 = vrot.slane %v1326, 7
      %v1329 = vshll.u32 %v1144, 16
      %v1331 = vor.u32 %v1328, %v1329
      %v1332 = vsel %vm1163, %v1324, %v1331
      %v1333 = vrot.slane %v1328, 4
      %v1335 = vshrl.u32 %v1145, 16
      %v1337 = vrot.slane %v1335, 7
      %v1338 = vshll.u32 %v1145, 16
      %v1340 = vor.u32 %v1337, %v1338
      %v1341 = vrot.slane %v1337, 4
      %v1343 = vshrl.u32 %v1146, 16
      %v1345 = vrot.slane %v1343, 7
      %v1346 = vshll.u32 %v1146, 16
      %v1348 = vor.u32 %v1345, %v1346
      %v1349 = vsel %vm1163, %v1341, %v1348
      %v1350 = vrot.slane %v1345, 4
      %v1352 = vshrl.u32 %v1147, 16
      %v1354 = vrot.slane %v1352, 7
      %v1355 = vshll.u32 %v1147, 16
      %v1357 = vor.u32 %v1354, %v1355
      %v1358 = vrot.slane %v1354, 4
      %v1360 = vshrl.u32 %v1148, 16
      %v1362 = vrot.slane %v1360, 7
      %v1363 = vshll.u32 %v1148, 16
      %v1365 = vor.u32 %v1362, %v1363
      %v1366 = vsel %vm1163, %v1358, %v1365
      %v1367 = vrot.slane %v1362, 4
      %v1369 = vshrl.u32 %v1149, 16
      %v1371 = vrot.slane %v1369, 7
      %v1372 = vshll.u32 %v1149, 16
      %v1374 = vor.u32 %v1371, %v1372
      %v1375 = vrot.slane %v1371, 4
      %v1377 = vshrl.u32 %v1150, 16
      %v1379 = vrot.slane %v1377, 7
      %v1380 = vshll.u32 %v1150, 16
      %v1382 = vor.u32 %v1379, %v1380
      %v1383 = vsel %vm1163, %v1375, %v1382
      %v1384 = vrot.slane %v1379, 4
      %v1386 = vshrl.u32 %v1151, 16
      %v1388 = vrot.slane %v1386, 7
      %v1389 = vshll.u32 %v1151, 16
      %v1391 = vor.u32 %v1388, %v1389
      %v1392 = vrot.slane %v1388, 4
      %v1394 = vshrl.u32 %v1152, 16
      %v1396 = vrot.slane %v1394, 7
      %v1397 = vshll.u32 %v1152, 16
      %v1399 = vor.u32 %v1396, %v1397
      %v1400 = vsel %vm1163, %v1392, %v1399
      %v1401 = vrot.slane %v1396, 4
      %v1403 = vshrl.u32 %v1153, 16
      %v1405 = vrot.slane %v1403, 7
      %v1406 = vshll.u32 %v1153, 16
      %v1408 = vor.u32 %v1405, %v1406
      %v1409 = vrot.slane %v1405, 4
      %v1411 = vshrl.u32 %v1154, 16
      %v1413 = vrot.slane %v1411, 7
      %v1414 = vshll.u32 %v1154, 16
      %v1416 = vor.u32 %v1413, %v1414
      %v1417 = vsel %vm1163, %v1409, %v1416
      %v1418 = vrot.slane %v1413, 4
      %v1420 = vshrl.u32 %v1155, 16
      %v1422 = vrot.slane %v1420, 7
      %v1423 = vshll.u32 %v1155, 16
      %v1425 = vor.u32 %v1422, %v1423
      %v1426 = vrot.slane %v1422, 4
      %v1428 = vshrl.u32 %v1156, 16
      %v1430 = vrot.slane %v1428, 7
      %v1431 = vshll.u32 %v1156, 16
      %v1433 = vor.u32 %v1430, %v1431
      %v1434 = vsel %vm1163, %v1426, %v1433
      %v1435 = vrot.slane %v1430, 4
      %v1437 = vshrl.u32 %v1157, 16
      %v1439 = vrot.slane %v1437, 7
      %v1440 = vshll.u32 %v1157, 16
      %v1442 = vor.u32 %v1439, %v1440
      %v1443 = vrot.slane %v1439, 4
      %v1445 = vshrl.u32 %v1158, 16
      %v1447 = vrot.slane %v1445, 7
      %v1448 = vshll.u32 %v1158, 16
      %v1450 = vor.u32 %v1447, %v1448
      %v1451 = vsel %vm1163, %v1443, %v1450
      %v1452 = vrot.slane %v1447, 4
      %v1454 = vshrl.u32 %v1159, 16
      %v1456 = vrot.slane %v1454, 7
      %v1457 = vshll.u32 %v1159, 16
      %v1459 = vor.u32 %v1456, %v1457
      %v1460 = vrot.slane %v1456, 4
      %v1462 = vshrl.u32 %v1160, 16
      %v1464 = vrot.slane %v1462, 7
      %v1465 = vshll.u32 %v1160, 16
      %v1467 = vor.u32 %v1464, %v1465
      %v1468 = vsel %vm1163, %v1460, %v1467
      %v1469 = vrot.slane %v1464, 4
      %vm1524 = vcmask 1043456
      %vm1525 = vsmask.f32 7938
      %vm1526 = vmand %vm1524, %vm1525
      %v1527 = vld [vmem:[#allocation3] sm:$0xf]
      %v1528 = vsel %vm1526, %v1170, %v1527
      %1529 = vst [vmem:[#allocation3] sm:$0xf] %v1528
      %1530 = vst [vmem:[#allocation3 + $0x4] sm:$0xf] %v1179
      %vm1531 = vcmask 1040384
      %vm1532 = vmand %vm1531, %vm1161
      %v1533 = vld [vmem:[#allocation3 + $0x8] sm:$0x1]
      %v1534 = vsel %vm1532, %v1180, %v1533
      %1535 = vst [vmem:[#allocation3 + $0x8] sm:$0x1] %v1534
      %v1536 = vld [vmem:[#allocation3 + $0xc] sm:$0xf]
      %v1537 = vsel %vm1526, %v1187, %v1536
      %1538 = vst [vmem:[#allocation3 + $0xc] sm:$0xf] %v1537
      %1539 = vst [vmem:[#allocation3 + $0x10] sm:$0xf] %v1196
      %v1540 = vld [vmem:[#allocation3 + $0x14] sm:$0x1]
      %v1541 = vsel %vm1532, %v1197, %v1540
      %1542 = vst [vmem:[#allocation3 + $0x14] sm:$0x1] %v1541
      %v1543 = vld [vmem:[#allocation3 + $0x18] sm:$0xf]
      %v1544 = vsel %vm1526, %v1204, %v1543
      %1545 = vst [vmem:[#allocation3 + $0x18] sm:$0xf] %v1544
      %1546 = vst [vmem:[#allocation3 + $0x1c] sm:$0xf] %v1213
      %v1547 = vld [vmem:[#allocation3 + $0x20] sm:$0x1]
      %v1548 = vsel %vm1532, %v1214, %v1547
      %1549 = vst [vmem:[#allocation3 + $0x20] sm:$0x1] %v1548
      %v1550 = vld [vmem:[#allocation3 + $0x24] sm:$0xf]
      %v1551 = vsel %vm1526, %v1221, %v1550
      %1552 = vst [vmem:[#allocation3 + $0x24] sm:$0xf] %v1551
      %1553 = vst [vmem:[#allocation3 + $0x28] sm:$0xf] %v1230
      %v1554 = vld [vmem:[#allocation3 + $0x2c] sm:$0x1]
      %v1555 = vsel %vm1532, %v1231, %v1554
      %1556 = vst [vmem:[#allocation3 + $0x2c] sm:$0x1] %v1555
      %v1557 = vld [vmem:[#allocation3 + $0x30] sm:$0xf]
      %v1558 = vsel %vm1526, %v1238, %v1557
      %1559 = vst [vmem:[#allocation3 + $0x30] sm:$0xf] %v1558
      %1560 = vst [vmem:[#allocation3 + $0x34] sm:$0xf] %v1247
      %v1561 = vld [vmem:[#allocation3 + $0x38] sm:$0x1]
      %v1562 = vsel %vm1532, %v1248, %v1561
      %1563 = vst [vmem:[#allocation3 + $0x38] sm:$0x1] %v1562
      %v1564 = vld [vmem:[#allocation3 + $0x3c] sm:$0xf]
      %v1565 = vsel %vm1526, %v1255, %v1564
      %1566 = vst [vmem:[#allocation3 + $0x3c] sm:$0xf] %v1565
      %1567 = vst [vmem:[#allocation3 + $0x40] sm:$0xf] %v1264
      %v1568 = vld [vmem:[#allocation3 + $0x44] sm:$0x1]
      %v1569 = vsel %vm1532, %v1265, %v1568
      %1570 = vst [vmem:[#allocation3 + $0x44] sm:$0x1] %v1569
      %v1571 = vld [vmem:[#allocation3 + $0x48] sm:$0xf]
      %v1572 = vsel %vm1526, %v1272, %v1571
      %1573 = vst [vmem:[#allocation3 + $0x48] sm:$0xf] %v1572
      %1574 = vst [vmem:[#allocation3 + $0x4c] sm:$0xf] %v1281
      %v1575 = vld [vmem:[#allocation3 + $0x50] sm:$0x1]
      %v1576 = vsel %vm1532, %v1282, %v1575
      %1577 = vst [vmem:[#allocation3 + $0x50] sm:$0x1] %v1576
      %v1578 = vld [vmem:[#allocation3 + $0x54] sm:$0xf]
      %v1579 = vsel %vm1526, %v1289, %v1578
      %1580 = vst [vmem:[#allocation3 + $0x54] sm:$0xf] %v1579
      %1581 = vst [vmem:[#allocation3 + $0x58] sm:$0xf] %v1298
      %v1582 = vld [vmem:[#allocation3 + $0x5c] sm:$0x1]
      %v1583 = vsel %vm1532, %v1299, %v1582
      %1584 = vst [vmem:[#allocation3 + $0x5c] sm:$0x1] %v1583
      %v1585 = vld [vmem:[#allocation3 + $0x60] sm:$0xf]
      %v1586 = vsel %vm1526, %v1306, %v1585
      %1587 = vst [vmem:[#allocation3 + $0x60] sm:$0xf] %v1586
      %1588 = vst [vmem:[#allocation3 + $0x64] sm:$0xf] %v1315
      %v1589 = vld [vmem:[#allocation3 + $0x68] sm:$0x1]
      %v1590 = vsel %vm1532, %v1316, %v1589
      %1591 = vst [vmem:[#allocation3 + $0x68] sm:$0x1] %v1590
      %v1592 = vld [vmem:[#allocation3 + $0x6c] sm:$0xf]
      %v1593 = vsel %vm1526, %v1323, %v1592
      %1594 = vst [vmem:[#allocation3 + $0x6c] sm:$0xf] %v1593
      %1595 = vst [vmem:[#allocation3 + $0x70] sm:$0xf] %v1332
      %v1596 = vld [vmem:[#allocation3 + $0x74] sm:$0x1]
      %v1597 = vsel %vm1532, %v1333, %v1596
      %1598 = vst [vmem:[#allocation3 + $0x74] sm:$0x1] %v1597
      %v1599 = vld [vmem:[#allocation3 + $0x78] sm:$0xf]
      %v1600 = vsel %vm1526, %v1340, %v1599
      %1601 = vst [vmem:[#allocation3 + $0x78] sm:$0xf] %v1600
      %1602 = vst [vmem:[#allocation3 + $0x7c] sm:$0xf] %v1349
      %v1603 = vld [vmem:[#allocation3 + $0x80] sm:$0x1]
      %v1604 = vsel %vm1532, %v1350, %v1603
      %1605 = vst [vmem:[#allocation3 + $0x80] sm:$0x1] %v1604
      %v1606 = vld [vmem:[#allocation3 + $0x84] sm:$0xf]
      %v1607 = vsel %vm1526, %v1357, %v1606
      %1608 = vst [vmem:[#allocation3 + $0x84] sm:$0xf] %v1607
      %1609 = vst [vmem:[#allocation3 + $0x88] sm:$0xf] %v1366
      %v1610 = vld [vmem:[#allocation3 + $0x8c] sm:$0x1]
      %v1611 = vsel %vm1532, %v1367, %v1610
      %1612 = vst [vmem:[#allocation3 + $0x8c] sm:$0x1] %v1611
      %v1613 = vld [vmem:[#allocation3 + $0x90] sm:$0xf]
      %v1614 = vsel %vm1526, %v1374, %v1613
      %1615 = vst [vmem:[#allocation3 + $0x90] sm:$0xf] %v1614
      %1616 = vst [vmem:[#allocation3 + $0x94] sm:$0xf] %v1383
      %v1617 = vld [vmem:[#allocation3 + $0x98] sm:$0x1]
      %v1618 = vsel %vm1532, %v1384, %v1617
      %1619 = vst [vmem:[#allocation3 + $0x98] sm:$0x1] %v1618
      %v1620 = vld [vmem:[#allocation3 + $0x9c] sm:$0xf]
      %v1621 = vsel %vm1526, %v1391, %v1620
      %1622 = vst [vmem:[#allocation3 + $0x9c] sm:$0xf] %v1621
      %1623 = vst [vmem:[#allocation3 + $0xa0] sm:$0xf] %v1400
      %v1624 = vld [vmem:[#allocation3 + $0xa4] sm:$0x1]
      %v1625 = vsel %vm1532, %v1401, %v1624
      %1626 = vst [vmem:[#allocation3 + $0xa4] sm:$0x1] %v1625
      %v1627 = vld [vmem:[#allocation3 + $0xa8] sm:$0xf]
      %v1628 = vsel %vm1526, %v1408, %v1627
      %1629 = vst [vmem:[#allocation3 + $0xa8] sm:$0xf] %v1628
      %1630 = vst [vmem:[#allocation3 + $0xac] sm:$0xf] %v1417
      %v1631 = vld [vmem:[#allocation3 + $0xb0] sm:$0x1]
      %v1632 = vsel %vm1532, %v1418, %v1631
      %1633 = vst [vmem:[#allocation3 + $0xb0] sm:$0x1] %v1632
      %v1634 = vld [vmem:[#allocation3 + $0xb4] sm:$0xf]
      %v1635 = vsel %vm1526, %v1425, %v1634
      %1636 = vst [vmem:[#allocation3 + $0xb4] sm:$0xf] %v1635
      %1637 = vst [vmem:[#allocation3 + $0xb8] sm:$0xf] %v1434
      %v1638 = vld [vmem:[#allocation3 + $0xbc] sm:$0x1]
      %v1639 = vsel %vm1532, %v1435, %v1638
      %1640 = vst [vmem:[#allocation3 + $0xbc] sm:$0x1] %v1639
      %v1641 = vld [vmem:[#allocation3 + $0xc0] sm:$0xf]
      %v1642 = vsel %vm1526, %v1442, %v1641
      %1643 = vst [vmem:[#allocation3 + $0xc0] sm:$0xf] %v1642
      %1644 = vst [vmem:[#allocation3 + $0xc4] sm:$0xf] %v1451
      %v1645 = vld [vmem:[#allocation3 + $0xc8] sm:$0x1]
      %v1646 = vsel %vm1532, %v1452, %v1645
      %1647 = vst [vmem:[#allocation3 + $0xc8] sm:$0x1] %v1646
      %v1648 = vld [vmem:[#allocation3 + $0xcc] sm:$0xf]
      %v1649 = vsel %vm1526, %v1459, %v1648
      %1650 = vst [vmem:[#allocation3 + $0xcc] sm:$0xf] %v1649
      %1651 = vst [vmem:[#allocation3 + $0xd0] sm:$0xf] %v1468
      %v1652 = vld [vmem:[#allocation3 + $0xd4] sm:$0x1]
      %v1653 = vsel %vm1532, %v1469, %v1652
      %1654 = vst [vmem:[#allocation3 + $0xd4] sm:$0x1] %v1653
      %v1655 = vld [vmem:[#allocation3] sm:$0x1]
      %v1656 = vsel %vm1532, 0, %v1655
      %1657 = vst [vmem:[#allocation3] sm:$0x1] %v1656
      %v1658 = vld [vmem:[#allocation3 + $0xc] sm:$0x1]
      %v1659 = vsel %vm1532, 0, %v1658
      %1660 = vst [vmem:[#allocation3 + $0xc] sm:$0x1] %v1659
      %v1661 = vld [vmem:[#allocation3 + $0x18] sm:$0x1]
      %v1662 = vsel %vm1532, 0, %v1661
      %1663 = vst [vmem:[#allocation3 + $0x18] sm:$0x1] %v1662
      %v1664 = vld [vmem:[#allocation3 + $0x24] sm:$0x1]
      %v1665 = vsel %vm1532, 0, %v1664
      %1666 = vst [vmem:[#allocation3 + $0x24] sm:$0x1] %v1665
      %v1667 = vld [vmem:[#allocation3 + $0x30] sm:$0x1]
      %v1668 = vsel %vm1532, 0, %v1667
      %1669 = vst [vmem:[#allocation3 + $0x30] sm:$0x1] %v1668
      %v1670 = vld [vmem:[#allocation3 + $0x3c] sm:$0x1]
      %v1671 = vsel %vm1532, 0, %v1670
      %1672 = vst [vmem:[#allocation3 + $0x3c] sm:$0x1] %v1671
      %v1673 = vld [vmem:[#allocation3 + $0x48] sm:$0x1]
      %v1674 = vsel %vm1532, 0, %v1673
      %1675 = vst [vmem:[#allocation3 + $0x48] sm:$0x1] %v1674
      %v1676 = vld [vmem:[#allocation3 + $0x54] sm:$0x1]
      %v1677 = vsel %vm1532, 0, %v1676
      %1678 = vst [vmem:[#allocation3 + $0x54] sm:$0x1] %v1677
      %v1679 = vld [vmem:[#allocation3 + $0x60] sm:$0x1]
      %v1680 = vsel %vm1532, 0, %v1679
      %1681 = vst [vmem:[#allocation3 + $0x60] sm:$0x1] %v1680
      %v1682 = vld [vmem:[#allocation3 + $0x6c] sm:$0x1]
      %v1683 = vsel %vm1532, 0, %v1682
      %1684 = vst [vmem:[#allocation3 + $0x6c] sm:$0x1] %v1683
      %v1685 = vld [vmem:[#allocation3 + $0x78] sm:$0x1]
      %v1686 = vsel %vm1532, 0, %v1685
      %1687 = vst [vmem:[#allocation3 + $0x78] sm:$0x1] %v1686
      %v1688 = vld [vmem:[#allocation3 + $0x84] sm:$0x1]
      %v1689 = vsel %vm1532, 0, %v1688
      %1690 = vst [vmem:[#allocation3 + $0x84] sm:$0x1] %v1689
      %v1691 = vld [vmem:[#allocation3 + $0x90] sm:$0x1]
      %v1692 = vsel %vm1532, 0, %v1691
      %1693 = vst [vmem:[#allocation3 + $0x90] sm:$0x1] %v1692
      %v1694 = vld [vmem:[#allocation3 + $0x9c] sm:$0x1]
      %v1695 = vsel %vm1532, 0, %v1694
      %1696 = vst [vmem:[#allocation3 + $0x9c] sm:$0x1] %v1695
      %v1697 = vld [vmem:[#allocation3 + $0xa8] sm:$0x1]
      %v1698 = vsel %vm1532, 0, %v1697
      %1699 = vst [vmem:[#allocation3 + $0xa8] sm:$0x1] %v1698
      %v1700 = vld [vmem:[#allocation3 + $0xb4] sm:$0x1]
      %v1701 = vsel %vm1532, 0, %v1700
      %1702 = vst [vmem:[#allocation3 + $0xb4] sm:$0x1] %v1701
      %v1703 = vld [vmem:[#allocation3 + $0xc0] sm:$0x1]
      %v1704 = vsel %vm1532, 0, %v1703
      %1705 = vst [vmem:[#allocation3 + $0xc0] sm:$0x1] %v1704
      %v1706 = vld [vmem:[#allocation3 + $0xcc] sm:$0x1]
      %v1707 = vsel %vm1532, 0, %v1706
      %1708 = vst [vmem:[#allocation3 + $0xcc] sm:$0x1] %v1707
      %vm1709 = vmand %vm1531, %vm1525
      %v1710 = vld [vmem:[#allocation3 + $0x8] sm:$0x1]
      %v1711 = vsel %vm1709, 0, %v1710
      %1712 = vst [vmem:[#allocation3 + $0x8] sm:$0x1] %v1711
      %v1713 = vld [vmem:[#allocation3 + $0x14] sm:$0x1]
      %v1714 = vsel %vm1709, 0, %v1713
      %1715 = vst [vmem:[#allocation3 + $0x14] sm:$0x1] %v1714
      %v1716 = vld [vmem:[#allocation3 + $0x20] sm:$0x1]
      %v1717 = vsel %vm1709, 0, %v1716
      %1718 = vst [vmem:[#allocation3 + $0x20] sm:$0x1] %v1717
      %v1719 = vld [vmem:[#allocation3 + $0x2c] sm:$0x1]
      %v1720 = vsel %vm1709, 0, %v1719
      %1721 = vst [vmem:[#allocation3 + $0x2c] sm:$0x1] %v1720
      %v1722 = vld [vmem:[#allocation3 + $0x38] sm:$0x1]
      %v1723 = vsel %vm1709, 0, %v1722
      %1724 = vst [vmem:[#allocation3 + $0x38] sm:$0x1] %v1723
      %v1725 = vld [vmem:[#allocation3 + $0x44] sm:$0x1]
      %v1726 = vsel %vm1709, 0, %v1725
      %1727 = vst [vmem:[#allocation3 + $0x44] sm:$0x1] %v1726
      %v1728 = vld [vmem:[#allocation3 + $0x50] sm:$0x1]
      %v1729 = vsel %vm1709, 0, %v1728
      %1730 = vst [vmem:[#allocation3 + $0x50] sm:$0x1] %v1729
      %v1731 = vld [vmem:[#allocation3 + $0x5c] sm:$0x1]
      %v1732 = vsel %vm1709, 0, %v1731
      %1733 = vst [vmem:[#allocation3 + $0x5c] sm:$0x1] %v1732
      %v1734 = vld [vmem:[#allocation3 + $0x68] sm:$0x1]
      %v1735 = vsel %vm1709, 0, %v1734
      %1736 = vst [vmem:[#allocation3 + $0x68] sm:$0x1] %v1735
      %v1737 = vld [vmem:[#allocation3 + $0x74] sm:$0x1]
      %v1738 = vsel %vm1709, 0, %v1737
      %1739 = vst [vmem:[#allocation3 + $0x74] sm:$0x1] %v1738
      %v1740 = vld [vmem:[#allocation3 + $0x80] sm:$0x1]
      %v1741 = vsel %vm1709, 0, %v1740
      %1742 = vst [vmem:[#allocation3 + $0x80] sm:$0x1] %v1741
      %v1743 = vld [vmem:[#allocation3 + $0x8c] sm:$0x1]
      %v1744 = vsel %vm1709, 0, %v1743
      %1745 = vst [vmem:[#allocation3 + $0x8c] sm:$0x1] %v1744
      %v1746 = vld [vmem:[#allocation3 + $0x98] sm:$0x1]
      %v1747 = vsel %vm1709, 0, %v1746
      %1748 = vst [vmem:[#allocation3 + $0x98] sm:$0x1] %v1747
      %v1749 = vld [vmem:[#allocation3 + $0xa4] sm:$0x1]
      %v1750 = vsel %vm1709, 0, %v1749
      %1751 = vst [vmem:[#allocation3 + $0xa4] sm:$0x1] %v1750
      %v1752 = vld [vmem:[#allocation3 + $0xb0] sm:$0x1]
      %v1753 = vsel %vm1709, 0, %v1752
      %1754 = vst [vmem:[#allocation3 + $0xb0] sm:$0x1] %v1753
      %v1755 = vld [vmem:[#allocation3 + $0xbc] sm:$0x1]
      %v1756 = vsel %vm1709, 0, %v1755
      %1757 = vst [vmem:[#allocation3 + $0xbc] sm:$0x1] %v1756
      %v1758 = vld [vmem:[#allocation3 + $0xc8] sm:$0x1]
      %v1759 = vsel %vm1709, 0, %v1758
      %1760 = vst [vmem:[#allocation3 + $0xc8] sm:$0x1] %v1759
      %v1761 = vld [vmem:[#allocation3 + $0xd4] sm:$0x1]
      %v1762 = vsel %vm1709, 0, %v1761
      %1763 = vst [vmem:[#allocation3 + $0xd4] sm:$0x1] %v1762
      %v1764 = vld [vmem:[%s5] sm:$0x7]
      %v1765 = vld [vmem:[%s5 + $0x4] sm:$0x7]
      %v1766 = vld [vmem:[%s5 + $0x8] sm:$0x7]
      %v1767 = vld [vmem:[%s6] sm:$0x1]
      %v1768 = vld [vmem:[%s7] sm:$0x1]
      %v1769 = vld [vmem:[#allocation3] sm:$0xf]
      %v1770 = vld [vmem:[#allocation3 + $0x4] sm:$0xf]
      %v1771 = vunpack.c.l.bf16 %v1769
      %v1772 = vunpack.c.l.bf16 %v1770
      %v1773 = vlaneseq
      %v1774 = vshrl.u32 %v1773, 7
      %v1775 = vsub.s32 0, %v1774
      %v1776 = vrot.slane %v1764, %v1775
      %v1777 = vmul.f32 %v1771, %v1776
      %v1778 = vmul.f32 %v1772, %v1776
      %v1779 = vadd.f32 %v1777, 0.0
      %v1780 = vadd.f32 %v1778, 0.0
      %v1781 = vld [vmem:[#allocation3 + $0x8] sm:$0x1]
      %v1782 = vunpack.c.l.bf16 %v1781
      %v1783 = vlaneseq
      %v1784 = vshrl.u32 %v1783, 7
      %v1785 = vsub.s32 1, %v1784
      %v1786 = vrot.slane %v1764, %v1785
      %v1787 = vmul.f32 %v1771, %v1786
      %v1788 = vmul.f32 %v1772, %v1786
      %v1789 = vmul.f32 %v1782, %v1786
      %vm1793 = vcmask 1046528
      %v1794 = vrot.slane %v1787, 1
      %v1795 = vrot.slane %v1788, 1
      %v1796 = vsel %vm1793, %v1794, %v1795
      %v1797 = vrot.slane %v1789, 1
      %v1798 = vsel %vm1793, %v1795, %v1797
      %v1801 = vadd.f32 %v1779, %v1796
      %v1802 = vadd.f32 %v1780, %v1798
      %v1803 = vld [vmem:[#allocation3] sm:$0xe]
      %v1804 = vunpack.c.l.bf16 %v1803
      %v1805 = vlaneseq
      %v1806 = vshrl.u32 %v1805, 7
      %v1807 = vsub.s32 2, %v1806
      %v1808 = vrot.slane %v1764, %v1807
      %v1809 = vmul.f32 %v1804, %v1808
      %v1810 = vmul.f32 %v1772, %v1808
      %v1811 = vmul.f32 %v1782, %v1808
      %vm1815 = vcmask 1045504
      %v1816 = vrot.slane %v1809, 2
      %v1817 = vrot.slane %v1810, 2
      %v1818 = vsel %vm1815, %v1816, %v1817
      %v1819 = vrot.slane %v1811, 2
      %v1820 = vsel %vm1815, %v1817, %v1819
      %v1823 = vadd.f32 %v1801, %v1818
      %v1824 = vadd.f32 %v1802, %v1820
      %s1825 = scalar_lea.vmem [#allocation3], 12
      %v1826 = vld [vmem:[%s1825] sm:$0xf]
      %v1827 = vld [vmem:[%s1825 + $0x4] sm:$0xf]
      %v1828 = vunpack.c.l.bf16 %v1826
      %v1829 = vunpack.c.l.bf16 %v1827
      %v1830 = vlaneseq
      %v1831 = vshrl.u32 %v1830, 7
      %v1832 = vsub.s32 0, %v1831
      %v1833 = vrot.slane %v1765, %v1832
      %v1834 = vmul.f32 %v1828, %v1833
      %v1835 = vmul.f32 %v1829, %v1833
      %v1836 = vadd.f32 %v1823, %v1834
      %v1837 = vadd.f32 %v1824, %v1835
      %v1838 = vld [vmem:[%s1825 + $0x8] sm:$0x1]
      %v1839 = vunpack.c.l.bf16 %v1838
      %v1840 = vlaneseq
      %v1841 = vshrl.u32 %v1840, 7
      %v1842 = vsub.s32 1, %v1841
      %v1843 = vrot.slane %v1765, %v1842
      %v1844 = vmul.f32 %v1828, %v1843
      %v1845 = vmul.f32 %v1829, %v1843
      %v1846 = vmul.f32 %v1839, %v1843
      %v1850 = vrot.slane %v1844, 1
      %v1851 = vrot.slane %v1845, 1
      %v1852 = vsel %vm1793, %v1850, %v1851
      %v1853 = vrot.slane %v1846, 1
      %v1854 = vsel %vm1793, %v1851, %v1853
      %v1857 = vadd.f32 %v1836, %v1852
      %v1858 = vadd.f32 %v1837, %v1854
      %v1859 = vld [vmem:[%s1825] sm:$0xe]
      %v1860 = vunpack.c.l.bf16 %v1859
      %v1861 = vlaneseq
      %v1862 = vshrl.u32 %v1861, 7
      %v1863 = vsub.s32 2, %v1862
      %v1864 = vrot.slane %v1765, %v1863
      %v1865 = vmul.f32 %v1860, %v1864
      %v1866 = vmul.f32 %v1829, %v1864
      %v1867 = vmul.f32 %v1839, %v1864
      %v1871 = vrot.slane %v1865, 2
      %v1872 = vrot.slane %v1866, 2
      %v1873 = vsel %vm1815, %v1871, %v1872
      %v1874 = vrot.slane %v1867, 2
      %v1875 = vsel %vm1815, %v1872, %v1874
      %v1878 = vadd.f32 %v1857, %v1873
      %v1879 = vadd.f32 %v1858, %v1875
      %s1880 = scalar_lea.vmem [#allocation3], 24
      %v1881 = vld [vmem:[%s1880] sm:$0xf]
      %v1882 = vld [vmem:[%s1880 + $0x4] sm:$0xf]
      %v1883 = vunpack.c.l.bf16 %v1881
      %v1884 = vunpack.c.l.bf16 %v1882
      %v1885 = vlaneseq
      %v1886 = vshrl.u32 %v1885, 7
      %v1887 = vsub.s32 0, %v1886
      %v1888 = vrot.slane %v1766, %v1887
      %v1889 = vmul.f32 %v1883, %v1888
      %v1890 = vmul.f32 %v1884, %v1888
      %v1891 = vadd.f32 %v1878, %v1889
      %v1892 = vadd.f32 %v1879, %v1890
      %v1893 = vld [vmem:[%s1880 + $0x8] sm:$0x1]
      %v1894 = vunpack.c.l.bf16 %v1893
      %v1895 = vlaneseq
      %v1896 = vshrl.u32 %v1895, 7
      %v1897 = vsub.s32 1, %v1896
      %v1898 = vrot.slane %v1766, %v1897
      %v1899 = vmul.f32 %v1883, %v1898
      %v1900 = vmul.f32 %v1884, %v1898
      %v1901 = vmul.f32 %v1894, %v1898
      %v1905 = vrot.slane %v1899, 1
      %v1906 = vrot.slane %v1900, 1
      %v1907 = vsel %vm1793, %v1905, %v1906
      %v1908 = vrot.slane %v1901, 1
      %v1909 = vsel %vm1793, %v1906, %v1908
      %v1912 = vadd.f32 %v1891, %v1907
      %v1913 = vadd.f32 %v1892, %v1909
      %v1914 = vld [vmem:[%s1880] sm:$0xe]
      %v1915 = vunpack.c.l.bf16 %v1914
      %v1916 = vlaneseq
      %v1917 = vshrl.u32 %v1916, 7
      %v1918 = vsub.s32 2, %v1917
      %v1919 = vrot.slane %v1766, %v1918
      %v1920 = vmul.f32 %v1915, %v1919
      %v1921 = vmul.f32 %v1884, %v1919
      %v1922 = vmul.f32 %v1894, %v1919
      %v1926 = vrot.slane %v1920, 2
      %v1927 = vrot.slane %v1921, 2
      %v1928 = vsel %vm1815, %v1926, %v1927
      %v1929 = vrot.slane %v1922, 2
      %v1930 = vsel %vm1815, %v1927, %v1929
      %v1933 = vadd.f32 %v1912, %v1928
      %v1934 = vadd.f32 %v1913, %v1930
      %v1936 = vlaneseq
      %v1937 = vshrl.u32 %v1936, 7
      %v1938 = vsub.s32 0, %v1937
      %v1939 = vrot.slane %v1767, %v1938
      %v1941 = vmul.f32 %v1933, %v1939
      %v1942 = vmul.f32 %v1934, %v1939
      %v1944 = vlaneseq
      %v1945 = vshrl.u32 %v1944, 7
      %v1946 = vsub.s32 0, %v1945
      %v1947 = vrot.slane %v1768, %v1946
      %v1949 = vadd.f32 %v1941, %v1947
      %v1950 = vadd.f32 %v1942, %v1947
      %v1951 = vmax.f32 %v1949, 0.0
      %v1952 = vmax.f32 %v1950, 0.0
      %v1953 = vmin.f32 %v1951, 6.0
      %v1954 = vmin.f32 %v1952, 6.0
      %v1955 = vpack.c.bf16 %v1954, %v1953
      %v1957 = vunpack.c.l.b16 %v1955
      %v1958 = vunpack.c.h.b16 %v1955
      %v1959 = vpack.c.b16 %v1957, %v1957
      %v1960 = vpack.c.b16 %v1958, %v1958
      %1963 = vst [vmem:[#allocation2] sm:$0xf] %v1959
      %1964 = vst [vmem:[#allocation2 + $0x4] sm:$0xf] %v1960
      %v1965 = vld [vmem:[%s1825] sm:$0xf]
      %v1966 = vld [vmem:[%s1825 + $0x4] sm:$0xf]
      %v1967 = vunpack.c.l.bf16 %v1965
      %v1968 = vunpack.c.l.bf16 %v1966
      %v1969 = vmul.f32 %v1967, %v1776
      %v1970 = vmul.f32 %v1968, %v1776
      %v1971 = vadd.f32 %v1969, 0.0
      %v1972 = vadd.f32 %v1970, 0.0
      %v1973 = vld [vmem:[%s1825 + $0x8] sm:$0x1]
      %v1974 = vunpack.c.l.bf16 %v1973
      %v1975 = vmul.f32 %v1967, %v1786
      %v1976 = vmul.f32 %v1968, %v1786
      %v1977 = vmul.f32 %v1974, %v1786
      %v1981 = vrot.slane %v1975, 1
      %v1982 = vrot.slane %v1976, 1
      %v1983 = vsel %vm1793, %v1981, %v1982
      %v1984 = vrot.slane %v1977, 1
      %v1985 = vsel %vm1793, %v1982, %v1984
      %v1988 = vadd.f32 %v1971, %v1983
      %v1989 = vadd.f32 %v1972, %v1985
      %v1990 = vld [vmem:[%s1825] sm:$0xe]
      %v1991 = vunpack.c.l.bf16 %v1990
      %v1992 = vmul.f32 %v1991, %v1808
      %v1993 = vmul.f32 %v1968, %v1808
      %v1994 = vmul.f32 %v1974, %v1808
      %v1998 = vrot.slane %v1992, 2
      %v1999 = vrot.slane %v1993, 2
      %v2000 = vsel %vm1815, %v1998, %v1999
      %v2001 = vrot.slane %v1994, 2
      %v2002 = vsel %vm1815, %v1999, %v2001
      %v2005 = vadd.f32 %v1988, %v2000
      %v2006 = vadd.f32 %v1989, %v2002
      %v2007 = vld [vmem:[%s1880] sm:$0xf]
      %v2008 = vld [vmem:[%s1880 + $0x4] sm:$0xf]
      %v2009 = vunpack.c.l.bf16 %v2007
      %v2010 = vunpack.c.l.bf16 %v2008
      %v2011 = vmul.f32 %v2009, %v1833
      %v2012 = vmul.f32 %v2010, %v1833
      %v2013 = vadd.f32 %v2005, %v2011
      %v2014 = vadd.f32 %v2006, %v2012
      %v2015 = vld [vmem:[%s1880 + $0x8] sm:$0x1]
      %v2016 = vunpack.c.l.bf16 %v2015
      %v2017 = vmul.f32 %v2009, %v1843
      %v2018 = vmul.f32 %v2010, %v1843
      %v2019 = vmul.f32 %v2016, %v1843
      %v2023 = vrot.slane %v2017, 1
      %v2024 = vrot.slane %v2018, 1
      %v2025 = vsel %vm1793, %v2023, %v2024
      %v2026 = vrot.slane %v2019, 1
      %v2027 = vsel %vm1793, %v2024, %v2026
      %v2030 = vadd.f32 %v2013, %v2025
      %v2031 = vadd.f32 %v2014, %v2027
      %v2032 = vld [vmem:[%s1880] sm:$0xe]
      %v2033 = vunpack.c.l.bf16 %v2032
      %v2034 = vmul.f32 %v2033, %v1864
      %v2035 = vmul.f32 %v2010, %v1864
      %v2036 = vmul.f32 %v2016, %v1864
      %v2040 = vrot.slane %v2034, 2
      %v2041 = vrot.slane %v2035, 2
      %v2042 = vsel %vm1815, %v2040, %v2041
      %v2043 = vrot.slane %v2036, 2
      %v2044 = vsel %vm1815, %v2041, %v2043
      %v2047 = vadd.f32 %v2030, %v2042
      %v2048 = vadd.f32 %v2031, %v2044
      %s2049 = scalar_lea.vmem [#allocation3], 36
      %v2050 = vld [vmem:[%s2049] sm:$0xf]
      %v2051 = vld [vmem:[%s2049 + $0x4] sm:$0xf]
      %v2052 = vunpack.c.l.bf16 %v2050
      %v2053 = vunpack.c.l.bf16 %v2051
      %v2054 = vmul.f32 %v2052, %v1888
      %v2055 = vmul.f32 %v2053, %v1888
      %v2056 = vadd.f32 %v2047, %v2054
      %v2057 = vadd.f32 %v2048, %v2055
      %v2058 = vld [vmem:[%s2049 + $0x8] sm:$0x1]
      %v2059 = vunpack.c.l.bf16 %v2058
      %v2060 = vmul.f32 %v2052, %v1898
      %v2061 = vmul.f32 %v2053, %v1898
      %v2062 = vmul.f32 %v2059, %v1898
      %v2066 = vrot.slane %v2060, 1
      %v2067 = vrot.slane %v2061, 1
      %v2068 = vsel %vm1793, %v2066, %v2067
      %v2069 = vrot.slane %v2062, 1
      %v2070 = vsel %vm1793, %v2067, %v2069
      %v2073 = vadd.f32 %v2056, %v2068
      %v2074 = vadd.f32 %v2057, %v2070
      %v2075 = vld [vmem:[%s2049] sm:$0xe]
      %v2076 = vunpack.c.l.bf16 %v2075
      %v2077 = vmul.f32 %v2076, %v1919
      %v2078 = vmul.f32 %v2053, %v1919
      %v2079 = vmul.f32 %v2059, %v1919
      %v2083 = vrot.slane %v2077, 2
      %v2084 = vrot.slane %v2078, 2
      %v2085 = vsel %vm1815, %v2083, %v2084
      %v2086 = vrot.slane %v2079, 2
      %v2087 = vsel %vm1815, %v2084, %v2086
      %v2090 = vadd.f32 %v2073, %v2085
      %v2091 = vadd.f32 %v2074, %v2087
      %v2092 = vmul.f32 %v2090, %v1939
      %v2093 = vmul.f32 %v2091, %v1939
      %v2094 = vadd.f32 %v2092, %v1947
      %v2095 = vadd.f32 %v2093, %v1947
      %v2096 = vmax.f32 %v2094, 0.0
      %v2097 = vmax.f32 %v2095, 0.0
      %v2098 = vmin.f32 %v2096, 6.0
      %v2099 = vmin.f32 %v2097, 6.0
      %v2100 = vpack.c.bf16 %v2099, %v2098
      %v2102 = vunpack.c.l.b16 %v2100
      %v2103 = vunpack.c.h.b16 %v2100
      %v2104 = vpack.c.b16 %v2102, %v2102
      %v2105 = vpack.c.b16 %v2103, %v2103
      %2108 = vst [vmem:[#allocation2 + $0x8] sm:$0xf] %v2104
      %2109 = vst [vmem:[#allocation2 + $0xc] sm:$0xf] %v2105
      %v2110 = vld [vmem:[%s1880] sm:$0xf]
      %v2111 = vld [vmem:[%s1880 + $0x4] sm:$0xf]
      %v2112 = vunpack.c.l.bf16 %v2110
      %v2113 = vunpack.c.l.bf16 %v2111
      %v2114 = vmul.f32 %v2112, %v1776
      %v2115 = vmul.f32 %v2113, %v1776
      %v2116 = vadd.f32 %v2114, 0.0
      %v2117 = vadd.f32 %v2115, 0.0
      %v2118 = vld [vmem:[%s1880 + $0x8] sm:$0x1]
      %v2119 = vunpack.c.l.bf16 %v2118
      %v2120 = vmul.f32 %v2112, %v1786
      %v2121 = vmul.f32 %v2113, %v1786
      %v2122 = vmul.f32 %v2119, %v1786
      %v2126 = vrot.slane %v2120, 1
      %v2127 = vrot.slane %v2121, 1
      %v2128 = vsel %vm1793, %v2126, %v2127
      %v2129 = vrot.slane %v2122, 1
      %v2130 = vsel %vm1793, %v2127, %v2129
      %v2133 = vadd.f32 %v2116, %v2128
      %v2134 = vadd.f32 %v2117, %v2130
      %v2135 = vld [vmem:[%s1880] sm:$0xe]
      %v2136 = vunpack.c.l.bf16 %v2135
      %v2137 = vmul.f32 %v2136, %v1808
      %v2138 = vmul.f32 %v2113, %v1808
      %v2139 = vmul.f32 %v2119, %v1808
      %v2143 = vrot.slane %v2137, 2
      %v2144 = vrot.slane %v2138, 2
      %v2145 = vsel %vm1815, %v2143, %v2144
      %v2146 = vrot.slane %v2139, 2
      %v2147 = vsel %vm1815, %v2144, %v2146
      %v2150 = vadd.f32 %v2133, %v2145
      %v2151 = vadd.f32 %v2134, %v2147
      %v2152 = vld [vmem:[%s2049] sm:$0xf]
      %v2153 = vld [vmem:[%s2049 + $0x4] sm:$0xf]
      %v2154 = vunpack.c.l.bf16 %v2152
      %v2155 = vunpack.c.l.bf16 %v2153
      %v2156 = vmul.f32 %v2154, %v1833
      %v2157 = vmul.f32 %v2155, %v1833
      %v2158 = vadd.f32 %v2150, %v2156
      %v2159 = vadd.f32 %v2151, %v2157
      %v2160 = vld [vmem:[%s2049 + $0x8] sm:$0x1]
      %v2161 = vunpack.c.l.bf16 %v2160
      %v2162 = vmul.f32 %v2154, %v1843
      %v2163 = vmul.f32 %v2155, %v1843
      %v2164 = vmul.f32 %v2161, %v1843
      %v2168 = vrot.slane %v2162, 1
      %v2169 = vrot.slane %v2163, 1
      %v2170 = vsel %vm1793, %v2168, %v2169
      %v2171 = vrot.slane %v2164, 1
      %v2172 = vsel %vm1793, %v2169, %v2171
      %v2175 = vadd.f32 %v2158, %v2170
      %v2176 = vadd.f32 %v2159, %v2172
      %v2177 = vld [vmem:[%s2049] sm:$0xe]
      %v2178 = vunpack.c.l.bf16 %v2177
      %v2179 = vmul.f32 %v2178, %v1864
      %v2180 = vmul.f32 %v2155, %v1864
      %v2181 = vmul.f32 %v2161, %v1864
      %v2185 = vrot.slane %v2179, 2
      %v2186 = vrot.slane %v2180, 2
      %v2187 = vsel %vm1815, %v2185, %v2186
      %v2188 = vrot.slane %v2181, 2
      %v2189 = vsel %vm1815, %v2186, %v2188
      %v2192 = vadd.f32 %v2175, %v2187
      %v2193 = vadd.f32 %v2176, %v2189
      %s2194 = scalar_lea.vmem [#allocation3], 48
      %v2195 = vld [vmem:[%s2194] sm:$0xf]
      %v2196 = vld [vmem:[%s2194 + $0x4] sm:$0xf]
      %v2197 = vunpack.c.l.bf16 %v2195
      %v2198 = vunpack.c.l.bf16 %v2196
      %v2199 = vmul.f32 %v2197, %v1888
      %v2200 = vmul.f32 %v2198, %v1888
      %v2201 = vadd.f32 %v2192, %v2199
      %v2202 = vadd.f32 %v2193, %v2200
      %v2203 = vld [vmem:[%s2194 + $0x8] sm:$0x1]
      %v2204 = vunpack.c.l.bf16 %v2203
      %v2205 = vmul.f32 %v2197, %v1898
      %v2206 = vmul.f32 %v2198, %v1898
      %v2207 = vmul.f32 %v2204, %v1898
      %v2211 = vrot.slane %v2205, 1
      %v2212 = vrot.slane %v2206, 1
      %v2213 = vsel %vm1793, %v2211, %v2212
      %v2214 = vrot.slane %v2207, 1
      %v2215 = vsel %vm1793, %v2212, %v2214
      %v2218 = vadd.f32 %v2201, %v2213
      %v2219 = vadd.f32 %v2202, %v2215
      %v2220 = vld [vmem:[%s2194] sm:$0xe]
      %v2221 = vunpack.c.l.bf16 %v2220
      %v2222 = vmul.f32 %v2221, %v1919
      %v2223 = vmul.f32 %v2198, %v1919
      %v2224 = vmul.f32 %v2204, %v1919
      %v2228 = vrot.slane %v2222, 2
      %v2229 = vrot.slane %v2223, 2
      %v2230 = vsel %vm1815, %v2228, %v2229
      %v2231 = vrot.slane %v2224, 2
      %v2232 = vsel %vm1815, %v2229, %v2231
      %v2235 = vadd.f32 %v2218, %v2230
      %v2236 = vadd.f32 %v2219, %v2232
      %v2237 = vmul.f32 %v2235, %v1939
      %v2238 = vmul.f32 %v2236, %v1939
      %v2239 = vadd.f32 %v2237, %v1947
      %v2240 = vadd.f32 %v2238, %v1947
      %v2241 = vmax.f32 %v2239, 0.0
      %v2242 = vmax.f32 %v2240, 0.0
      %v2243 = vmin.f32 %v2241, 6.0
      %v2244 = vmin.f32 %v2242, 6.0
      %v2245 = vpack.c.bf16 %v2244, %v2243
      %v2247 = vunpack.c.l.b16 %v2245
      %v2248 = vunpack.c.h.b16 %v2245
      %v2249 = vpack.c.b16 %v2247, %v2247
      %v2250 = vpack.c.b16 %v2248, %v2248
      %2253 = vst [vmem:[#allocation2 + $0x10] sm:$0xf] %v2249
      %2254 = vst [vmem:[#allocation2 + $0x14] sm:$0xf] %v2250
      %v2255 = vld [vmem:[%s2049] sm:$0xf]
      %v2256 = vld [vmem:[%s2049 + $0x4] sm:$0xf]
      %v2257 = vunpack.c.l.bf16 %v2255
      %v2258 = vunpack.c.l.bf16 %v2256
      %v2259 = vmul.f32 %v2257, %v1776
      %v2260 = vmul.f32 %v2258, %v1776
      %v2261 = vadd.f32 %v2259, 0.0
      %v2262 = vadd.f32 %v2260, 0.0
      %v2263 = vld [vmem:[%s2049 + $0x8] sm:$0x1]
      %v2264 = vunpack.c.l.bf16 %v2263
      %v2265 = vmul.f32 %v2257, %v1786
      %v2266 = vmul.f32 %v2258, %v1786
      %v2267 = vmul.f32 %v2264, %v1786
      %v2271 = vrot.slane %v2265, 1
      %v2272 = vrot.slane %v2266, 1
      %v2273 = vsel %vm1793, %v2271, %v2272
      %v2274 = vrot.slane %v2267, 1
      %v2275 = vsel %vm1793, %v2272, %v2274
      %v2278 = vadd.f32 %v2261, %v2273
      %v2279 = vadd.f32 %v2262, %v2275
      %v2280 = vld [vmem:[%s2049] sm:$0xe]
      %v2281 = vunpack.c.l.bf16 %v2280
      %v2282 = vmul.f32 %v2281, %v1808
      %v2283 = vmul.f32 %v2258, %v1808
      %v2284 = vmul.f32 %v2264, %v1808
      %v2288 = vrot.slane %v2282, 2
      %v2289 = vrot.slane %v2283, 2
      %v2290 = vsel %vm1815, %v2288, %v2289
      %v2291 = vrot.slane %v2284, 2
      %v2292 = vsel %vm1815, %v2289, %v2291
      %v2295 = vadd.f32 %v2278, %v2290
      %v2296 = vadd.f32 %v2279, %v2292
      %v2297 = vld [vmem:[%s2194] sm:$0xf]
      %v2298 = vld [vmem:[%s2194 + $0x4] sm:$0xf]
      %v2299 = vunpack.c.l.bf16 %v2297
      %v2300 = vunpack.c.l.bf16 %v2298
      %v2301 = vmul.f32 %v2299, %v1833
      %v2302 = vmul.f32 %v2300, %v1833
      %v2303 = vadd.f32 %v2295, %v2301
      %v2304 = vadd.f32 %v2296, %v2302
      %v2305 = vld [vmem:[%s2194 + $0x8] sm:$0x1]
      %v2306 = vunpack.c.l.bf16 %v2305
      %v2307 = vmul.f32 %v2299, %v1843
      %v2308 = vmul.f32 %v2300, %v1843
      %v2309 = vmul.f32 %v2306, %v1843
      %v2313 = vrot.slane %v2307, 1
      %v2314 = vrot.slane %v2308, 1
      %v2315 = vsel %vm1793, %v2313, %v2314
      %v2316 = vrot.slane %v2309, 1
      %v2317 = vsel %vm1793, %v2314, %v2316
      %v2320 = vadd.f32 %v2303, %v2315
      %v2321 = vadd.f32 %v2304, %v2317
      %v2322 = vld [vmem:[%s2194] sm:$0xe]
      %v2323 = vunpack.c.l.bf16 %v2322
      %v2324 = vmul.f32 %v2323, %v1864
      %v2325 = vmul.f32 %v2300, %v1864
      %v2326 = vmul.f32 %v2306, %v1864
      %v2330 = vrot.slane %v2324, 2
      %v2331 = vrot.slane %v2325, 2
      %v2332 = vsel %vm1815, %v2330, %v2331
      %v2333 = vrot.slane %v2326, 2
      %v2334 = vsel %vm1815, %v2331, %v2333
      %v2337 = vadd.f32 %v2320, %v2332
      %v2338 = vadd.f32 %v2321, %v2334
      %s2339 = scalar_lea.vmem [#allocation3], 60
      %v2340 = vld [vmem:[%s2339] sm:$0xf]
      %v2341 = vld [vmem:[%s2339 + $0x4] sm:$0xf]
      %v2342 = vunpack.c.l.bf16 %v2340
      %v2343 = vunpack.c.l.bf16 %v2341
      %v2344 = vmul.f32 %v2342, %v1888
      %v2345 = vmul.f32 %v2343, %v1888
      %v2346 = vadd.f32 %v2337, %v2344
      %v2347 = vadd.f32 %v2338, %v2345
      %v2348 = vld [vmem:[%s2339 + $0x8] sm:$0x1]
      %v2349 = vunpack.c.l.bf16 %v2348
      %v2350 = vmul.f32 %v2342, %v1898
      %v2351 = vmul.f32 %v2343, %v1898
      %v2352 = vmul.f32 %v2349, %v1898
      %v2356 = vrot.slane %v2350, 1
      %v2357 = vrot.slane %v2351, 1
      %v2358 = vsel %vm1793, %v2356, %v2357
      %v2359 = vrot.slane %v2352, 1
      %v2360 = vsel %vm1793, %v2357, %v2359
      %v2363 = vadd.f32 %v2346, %v2358
      %v2364 = vadd.f32 %v2347, %v2360
      %v2365 = vld [vmem:[%s2339] sm:$0xe]
      %v2366 = vunpack.c.l.bf16 %v2365
      %v2367 = vmul.f32 %v2366, %v1919
      %v2368 = vmul.f32 %v2343, %v1919
      %v2369 = vmul.f32 %v2349, %v1919
      %v2373 = vrot.slane %v2367, 2
      %v2374 = vrot.slane %v2368, 2
      %v2375 = vsel %vm1815, %v2373, %v2374
      %v2376 = vrot.slane %v2369, 2
      %v2377 = vsel %vm1815, %v2374, %v2376
      %v2380 = vadd.f32 %v2363, %v2375
      %v2381 = vadd.f32 %v2364, %v2377
      %v2382 = vmul.f32 %v2380, %v1939
      %v2383 = vmul.f32 %v2381, %v1939
      %v2384 = vadd.f32 %v2382, %v1947
      %v2385 = vadd.f32 %v2383, %v1947
      %v2386 = vmax.f32 %v2384, 0.0
      %v2387 = vmax.f32 %v2385, 0.0
      %v2388 = vmin.f32 %v2386, 6.0
      %v2389 = vmin.f32 %v2387, 6.0
      %v2390 = vpack.c.bf16 %v2389, %v2388
      %v2392 = vunpack.c.l.b16 %v2390
      %v2393 = vunpack.c.h.b16 %v2390
      %v2394 = vpack.c.b16 %v2392, %v2392
      %v2395 = vpack.c.b16 %v2393, %v2393
      %2398 = vst [vmem:[#allocation2 + $0x18] sm:$0xf] %v2394
      %2399 = vst [vmem:[#allocation2 + $0x1c] sm:$0xf] %v2395
      %v2400 = vld [vmem:[%s2194] sm:$0xf]
      %v2401 = vld [vmem:[%s2194 + $0x4] sm:$0xf]
      %v2402 = vunpack.c.l.bf16 %v2400
      %v2403 = vunpack.c.l.bf16 %v2401
      %v2404 = vmul.f32 %v2402, %v1776
      %v2405 = vmul.f32 %v2403, %v1776
      %v2406 = vadd.f32 %v2404, 0.0
      %v2407 = vadd.f32 %v2405, 0.0
      %v2408 = vld [vmem:[%s2194 + $0x8] sm:$0x1]
      %v2409 = vunpack.c.l.bf16 %v2408
      %v2410 = vmul.f32 %v2402, %v1786
      %v2411 = vmul.f32 %v2403, %v1786
      %v2412 = vmul.f32 %v2409, %v1786
      %v2416 = vrot.slane %v2410, 1
      %v2417 = vrot.slane %v2411, 1
      %v2418 = vsel %vm1793, %v2416, %v2417
      %v2419 = vrot.slane %v2412, 1
      %v2420 = vsel %vm1793, %v2417, %v2419
      %v2423 = vadd.f32 %v2406, %v2418
      %v2424 = vadd.f32 %v2407, %v2420
      %v2425 = vld [vmem:[%s2194] sm:$0xe]
      %v2426 = vunpack.c.l.bf16 %v2425
      %v2427 = vmul.f32 %v2426, %v1808
      %v2428 = vmul.f32 %v2403, %v1808
      %v2429 = vmul.f32 %v2409, %v1808
      %v2433 = vrot.slane %v2427, 2
      %v2434 = vrot.slane %v2428, 2
      %v2435 = vsel %vm1815, %v2433, %v2434
      %v2436 = vrot.slane %v2429, 2
      %v2437 = vsel %vm1815, %v2434, %v2436
      %v2440 = vadd.f32 %v2423, %v2435
      %v2441 = vadd.f32 %v2424, %v2437
      %v2442 = vld [vmem:[%s2339] sm:$0xf]
      %v2443 = vld [vmem:[%s2339 + $0x4] sm:$0xf]
      %v2444 = vunpack.c.l.bf16 %v2442
      %v2445 = vunpack.c.l.bf16 %v2443
      %v2446 = vmul.f32 %v2444, %v1833
      %v2447 = vmul.f32 %v2445, %v1833
      %v2448 = vadd.f32 %v2440, %v2446
      %v2449 = vadd.f32 %v2441, %v2447
      %v2450 = vld [vmem:[%s2339 + $0x8] sm:$0x1]
      %v2451 = vunpack.c.l.bf16 %v2450
      %v2452 = vmul.f32 %v2444, %v1843
      %v2453 = vmul.f32 %v2445, %v1843
      %v2454 = vmul.f32 %v2451, %v1843
      %v2458 = vrot.slane %v2452, 1
      %v2459 = vrot.slane %v2453, 1
      %v2460 = vsel %vm1793, %v2458, %v2459
      %v2461 = vrot.slane %v2454, 1
      %v2462 = vsel %vm1793, %v2459, %v2461
      %v2465 = vadd.f32 %v2448, %v2460
      %v2466 = vadd.f32 %v2449, %v2462
      %v2467 = vld [vmem:[%s2339] sm:$0xe]
      %v2468 = vunpack.c.l.bf16 %v2467
      %v2469 = vmul.f32 %v2468, %v1864
      %v2470 = vmul.f32 %v2445, %v1864
      %v2471 = vmul.f32 %v2451, %v1864
      %v2475 = vrot.slane %v2469, 2
      %v2476 = vrot.slane %v2470, 2
      %v2477 = vsel %vm1815, %v2475, %v2476
      %v2478 = vrot.slane %v2471, 2
      %v2479 = vsel %vm1815, %v2476, %v2478
      %v2482 = vadd.f32 %v2465, %v2477
      %v2483 = vadd.f32 %v2466, %v2479
      %s2484 = scalar_lea.vmem [#allocation3], 72
      %v2485 = vld [vmem:[%s2484] sm:$0xf]
      %v2486 = vld [vmem:[%s2484 + $0x4] sm:$0xf]
      %v2487 = vunpack.c.l.bf16 %v2485
      %v2488 = vunpack.c.l.bf16 %v2486
      %v2489 = vmul.f32 %v2487, %v1888
      %v2490 = vmul.f32 %v2488, %v1888
      %v2491 = vadd.f32 %v2482, %v2489
      %v2492 = vadd.f32 %v2483, %v2490
      %v2493 = vld [vmem:[%s2484 + $0x8] sm:$0x1]
      %v2494 = vunpack.c.l.bf16 %v2493
      %v2495 = vmul.f32 %v2487, %v1898
      %v2496 = vmul.f32 %v2488, %v1898
      %v2497 = vmul.f32 %v2494, %v1898
      %v2501 = vrot.slane %v2495, 1
      %v2502 = vrot.slane %v2496, 1
      %v2503 = vsel %vm1793, %v2501, %v2502
      %v2504 = vrot.slane %v2497, 1
      %v2505 = vsel %vm1793, %v2502, %v2504
      %v2508 = vadd.f32 %v2491, %v2503
      %v2509 = vadd.f32 %v2492, %v2505
      %v2510 = vld [vmem:[%s2484] sm:$0xe]
      %v2511 = vunpack.c.l.bf16 %v2510
      %v2512 = vmul.f32 %v2511, %v1919
      %v2513 = vmul.f32 %v2488, %v1919
      %v2514 = vmul.f32 %v2494, %v1919
      %v2518 = vrot.slane %v2512, 2
      %v2519 = vrot.slane %v2513, 2
      %v2520 = vsel %vm1815, %v2518, %v2519
      %v2521 = vrot.slane %v2514, 2
      %v2522 = vsel %vm1815, %v2519, %v2521
      %v2525 = vadd.f32 %v2508, %v2520
      %v2526 = vadd.f32 %v2509, %v2522
      %v2527 = vmul.f32 %v2525, %v1939
      %v2528 = vmul.f32 %v2526, %v1939
      %v2529 = vadd.f32 %v2527, %v1947
      %v2530 = vadd.f32 %v2528, %v1947
      %v2531 = vmax.f32 %v2529, 0.0
      %v2532 = vmax.f32 %v2530, 0.0
      %v2533 = vmin.f32 %v2531, 6.0
      %v2534 = vmin.f32 %v2532, 6.0
      %v2535 = vpack.c.bf16 %v2534, %v2533
      %v2537 = vunpack.c.l.b16 %v2535
      %v2538 = vunpack.c.h.b16 %v2535
      %v2539 = vpack.c.b16 %v2537, %v2537
      %v2540 = vpack.c.b16 %v2538, %v2538
      %2543 = vst [vmem:[#allocation2 + $0x20] sm:$0xf] %v2539
      %2544 = vst [vmem:[#allocation2 + $0x24] sm:$0xf] %v2540
      %v2545 = vld [vmem:[%s2339] sm:$0xf]
      %v2546 = vld [vmem:[%s2339 + $0x4] sm:$0xf]
      %v2547 = vunpack.c.l.bf16 %v2545
      %v2548 = vunpack.c.l.bf16 %v2546
      %v2549 = vmul.f32 %v2547, %v1776
      %v2550 = vmul.f32 %v2548, %v1776
      %v2551 = vadd.f32 %v2549, 0.0
      %v2552 = vadd.f32 %v2550, 0.0
      %v2553 = vld [vmem:[%s2339 + $0x8] sm:$0x1]
      %v2554 = vunpack.c.l.bf16 %v2553
      %v2555 = vmul.f32 %v2547, %v1786
      %v2556 = vmul.f32 %v2548, %v1786
      %v2557 = vmul.f32 %v2554, %v1786
      %v2561 = vrot.slane %v2555, 1
      %v2562 = vrot.slane %v2556, 1
      %v2563 = vsel %vm1793, %v2561, %v2562
      %v2564 = vrot.slane %v2557, 1
      %v2565 = vsel %vm1793, %v2562, %v2564
      %v2568 = vadd.f32 %v2551, %v2563
      %v2569 = vadd.f32 %v2552, %v2565
      %v2570 = vld [vmem:[%s2339] sm:$0xe]
      %v2571 = vunpack.c.l.bf16 %v2570
      %v2572 = vmul.f32 %v2571, %v1808
      %v2573 = vmul.f32 %v2548, %v1808
      %v2574 = vmul.f32 %v2554, %v1808
      %v2578 = vrot.slane %v2572, 2
      %v2579 = vrot.slane %v2573, 2
      %v2580 = vsel %vm1815, %v2578, %v2579
      %v2581 = vrot.slane %v2574, 2
      %v2582 = vsel %vm1815, %v2579, %v2581
      %v2585 = vadd.f32 %v2568, %v2580
      %v2586 = vadd.f32 %v2569, %v2582
      %v2587 = vld [vmem:[%s2484] sm:$0xf]
      %v2588 = vld [vmem:[%s2484 + $0x4] sm:$0xf]
      %v2589 = vunpack.c.l.bf16 %v2587
      %v2590 = vunpack.c.l.bf16 %v2588
      %v2591 = vmul.f32 %v2589, %v1833
      %v2592 = vmul.f32 %v2590, %v1833
      %v2593 = vadd.f32 %v2585, %v2591
      %v2594 = vadd.f32 %v2586, %v2592
      %v2595 = vld [vmem:[%s2484 + $0x8] sm:$0x1]
      %v2596 = vunpack.c.l.bf16 %v2595
      %v2597 = vmul.f32 %v2589, %v1843
      %v2598 = vmul.f32 %v2590, %v1843
      %v2599 = vmul.f32 %v2596, %v1843
      %v2603 = vrot.slane %v2597, 1
      %v2604 = vrot.slane %v2598, 1
      %v2605 = vsel %vm1793, %v2603, %v2604
      %v2606 = vrot.slane %v2599, 1
      %v2607 = vsel %vm1793, %v2604, %v2606
      %v2610 = vadd.f32 %v2593, %v2605
      %v2611 = vadd.f32 %v2594, %v2607
      %v2612 = vld [vmem:[%s2484] sm:$0xe]
      %v2613 = vunpack.c.l.bf16 %v2612
      %v2614 = vmul.f32 %v2613, %v1864
      %v2615 = vmul.f32 %v2590, %v1864
      %v2616 = vmul.f32 %v2596, %v1864
      %v2620 = vrot.slane %v2614, 2
      %v2621 = vrot.slane %v2615, 2
      %v2622 = vsel %vm1815, %v2620, %v2621
      %v2623 = vrot.slane %v2616, 2
      %v2624 = vsel %vm1815, %v2621, %v2623
      %v2627 = vadd.f32 %v2610, %v2622
      %v2628 = vadd.f32 %v2611, %v2624
      %s2629 = scalar_lea.vmem [#allocation3], 84
      %v2630 = vld [vmem:[%s2629] sm:$0xf]
      %v2631 = vld [vmem:[%s2629 + $0x4] sm:$0xf]
      %v2632 = vunpack.c.l.bf16 %v2630
      %v2633 = vunpack.c.l.bf16 %v2631
      %v2634 = vmul.f32 %v2632, %v1888
      %v2635 = vmul.f32 %v2633, %v1888
      %v2636 = vadd.f32 %v2627, %v2634
      %v2637 = vadd.f32 %v2628, %v2635
      %v2638 = vld [vmem:[%s2629 + $0x8] sm:$0x1]
      %v2639 = vunpack.c.l.bf16 %v2638
      %v2640 = vmul.f32 %v2632, %v1898
      %v2641 = vmul.f32 %v2633, %v1898
      %v2642 = vmul.f32 %v2639, %v1898
      %v2646 = vrot.slane %v2640, 1
      %v2647 = vrot.slane %v2641, 1
      %v2648 = vsel %vm1793, %v2646, %v2647
      %v2649 = vrot.slane %v2642, 1
      %v2650 = vsel %vm1793, %v2647, %v2649
      %v2653 = vadd.f32 %v2636, %v2648
      %v2654 = vadd.f32 %v2637, %v2650
      %v2655 = vld [vmem:[%s2629] sm:$0xe]
      %v2656 = vunpack.c.l.bf16 %v2655
      %v2657 = vmul.f32 %v2656, %v1919
      %v2658 = vmul.f32 %v2633, %v1919
      %v2659 = vmul.f32 %v2639, %v1919
      %v2663 = vrot.slane %v2657, 2
      %v2664 = vrot.slane %v2658, 2
      %v2665 = vsel %vm1815, %v2663, %v2664
      %v2666 = vrot.slane %v2659, 2
      %v2667 = vsel %vm1815, %v2664, %v2666
      %v2670 = vadd.f32 %v2653, %v2665
      %v2671 = vadd.f32 %v2654, %v2667
      %v2672 = vmul.f32 %v2670, %v1939
      %v2673 = vmul.f32 %v2671, %v1939
      %v2674 = vadd.f32 %v2672, %v1947
      %v2675 = vadd.f32 %v2673, %v1947
      %v2676 = vmax.f32 %v2674, 0.0
      %v2677 = vmax.f32 %v2675, 0.0
      %v2678 = vmin.f32 %v2676, 6.0
      %v2679 = vmin.f32 %v2677, 6.0
      %v2680 = vpack.c.bf16 %v2679, %v2678
      %v2682 = vunpack.c.l.b16 %v2680
      %v2683 = vunpack.c.h.b16 %v2680
      %v2684 = vpack.c.b16 %v2682, %v2682
      %v2685 = vpack.c.b16 %v2683, %v2683
      %2688 = vst [vmem:[#allocation2 + $0x28] sm:$0xf] %v2684
      %2689 = vst [vmem:[#allocation2 + $0x2c] sm:$0xf] %v2685
      %v2690 = vld [vmem:[%s2484] sm:$0xf]
      %v2691 = vld [vmem:[%s2484 + $0x4] sm:$0xf]
      %v2692 = vunpack.c.l.bf16 %v2690
      %v2693 = vunpack.c.l.bf16 %v2691
      %v2694 = vmul.f32 %v2692, %v1776
      %v2695 = vmul.f32 %v2693, %v1776
      %v2696 = vadd.f32 %v2694, 0.0
      %v2697 = vadd.f32 %v2695, 0.0
      %v2698 = vld [vmem:[%s2484 + $0x8] sm:$0x1]
      %v2699 = vunpack.c.l.bf16 %v2698
      %v2700 = vmul.f32 %v2692, %v1786
      %v2701 = vmul.f32 %v2693, %v1786
      %v2702 = vmul.f32 %v2699, %v1786
      %v2706 = vrot.slane %v2700, 1
      %v2707 = vrot.slane %v2701, 1
      %v2708 = vsel %vm1793, %v2706, %v2707
      %v2709 = vrot.slane %v2702, 1
      %v2710 = vsel %vm1793, %v2707, %v2709
      %v2713 = vadd.f32 %v2696, %v2708
      %v2714 = vadd.f32 %v2697, %v2710
      %v2715 = vld [vmem:[%s2484] sm:$0xe]
      %v2716 = vunpack.c.l.bf16 %v2715
      %v2717 = vmul.f32 %v2716, %v1808
      %v2718 = vmul.f32 %v2693, %v1808
      %v2719 = vmul.f32 %v2699, %v1808
      %v2723 = vrot.slane %v2717, 2
      %v2724 = vrot.slane %v2718, 2
      %v2725 = vsel %vm1815, %v2723, %v2724
      %v2726 = vrot.slane %v2719, 2
      %v2727 = vsel %vm1815, %v2724, %v2726
      %v2730 = vadd.f32 %v2713, %v2725
      %v2731 = vadd.f32 %v2714, %v2727
      %v2732 = vld [vmem:[%s2629] sm:$0xf]
      %v2733 = vld [vmem:[%s2629 + $0x4] sm:$0xf]
      %v2734 = vunpack.c.l.bf16 %v2732
      %v2735 = vunpack.c.l.bf16 %v2733
      %v2736 = vmul.f32 %v2734, %v1833
      %v2737 = vmul.f32 %v2735, %v1833
      %v2738 = vadd.f32 %v2730, %v2736
      %v2739 = vadd.f32 %v2731, %v2737
      %v2740 = vld [vmem:[%s2629 + $0x8] sm:$0x1]
      %v2741 = vunpack.c.l.bf16 %v2740
      %v2742 = vmul.f32 %v2734, %v1843
      %v2743 = vmul.f32 %v2735, %v1843
      %v2744 = vmul.f32 %v2741, %v1843
      %v2748 = vrot.slane %v2742, 1
      %v2749 = vrot.slane %v2743, 1
      %v2750 = vsel %vm1793, %v2748, %v2749
      %v2751 = vrot.slane %v2744, 1
      %v2752 = vsel %vm1793, %v2749, %v2751
      %v2755 = vadd.f32 %v2738, %v2750
      %v2756 = vadd.f32 %v2739, %v2752
      %v2757 = vld [vmem:[%s2629] sm:$0xe]
      %v2758 = vunpack.c.l.bf16 %v2757
      %v2759 = vmul.f32 %v2758, %v1864
      %v2760 = vmul.f32 %v2735, %v1864
      %v2761 = vmul.f32 %v2741, %v1864
      %v2765 = vrot.slane %v2759, 2
      %v2766 = vrot.slane %v2760, 2
      %v2767 = vsel %vm1815, %v2765, %v2766
      %v2768 = vrot.slane %v2761, 2
      %v2769 = vsel %vm1815, %v2766, %v2768
      %v2772 = vadd.f32 %v2755, %v2767
      %v2773 = vadd.f32 %v2756, %v2769
      %s2774 = scalar_lea.vmem [#allocation3], 96
      %v2775 = vld [vmem:[%s2774] sm:$0xf]
      %v2776 = vld [vmem:[%s2774 + $0x4] sm:$0xf]
      %v2777 = vunpack.c.l.bf16 %v2775
      %v2778 = vunpack.c.l.bf16 %v2776
      %v2779 = vmul.f32 %v2777, %v1888
      %v2780 = vmul.f32 %v2778, %v1888
      %v2781 = vadd.f32 %v2772, %v2779
      %v2782 = vadd.f32 %v2773, %v2780
      %v2783 = vld [vmem:[%s2774 + $0x8] sm:$0x1]
      %v2784 = vunpack.c.l.bf16 %v2783
      %v2785 = vmul.f32 %v2777, %v1898
      %v2786 = vmul.f32 %v2778, %v1898
      %v2787 = vmul.f32 %v2784, %v1898
      %v2791 = vrot.slane %v2785, 1
      %v2792 = vrot.slane %v2786, 1
      %v2793 = vsel %vm1793, %v2791, %v2792
      %v2794 = vrot.slane %v2787, 1
      %v2795 = vsel %vm1793, %v2792, %v2794
      %v2798 = vadd.f32 %v2781, %v2793
      %v2799 = vadd.f32 %v2782, %v2795
      %v2800 = vld [vmem:[%s2774] sm:$0xe]
      %v2801 = vunpack.c.l.bf16 %v2800
      %v2802 = vmul.f32 %v2801, %v1919
      %v2803 = vmul.f32 %v2778, %v1919
      %v2804 = vmul.f32 %v2784, %v1919
      %v2808 = vrot.slane %v2802, 2
      %v2809 = vrot.slane %v2803, 2
      %v2810 = vsel %vm1815, %v2808, %v2809
      %v2811 = vrot.slane %v2804, 2
      %v2812 = vsel %vm1815, %v2809, %v2811
      %v2815 = vadd.f32 %v2798, %v2810
      %v2816 = vadd.f32 %v2799, %v2812
      %v2817 = vmul.f32 %v2815, %v1939
      %v2818 = vmul.f32 %v2816, %v1939
      %v2819 = vadd.f32 %v2817, %v1947
      %v2820 = vadd.f32 %v2818, %v1947
      %v2821 = vmax.f32 %v2819, 0.0
      %v2822 = vmax.f32 %v2820, 0.0
      %v2823 = vmin.f32 %v2821, 6.0
      %v2824 = vmin.f32 %v2822, 6.0
      %v2825 = vpack.c.bf16 %v2824, %v2823
      %v2827 = vunpack.c.l.b16 %v2825
      %v2828 = vunpack.c.h.b16 %v2825
      %v2829 = vpack.c.b16 %v2827, %v2827
      %v2830 = vpack.c.b16 %v2828, %v2828
      %2833 = vst [vmem:[#allocation2 + $0x30] sm:$0xf] %v2829
      %2834 = vst [vmem:[#allocation2 + $0x34] sm:$0xf] %v2830
      %v2835 = vld [vmem:[%s2629] sm:$0xf]
      %v2836 = vld [vmem:[%s2629 + $0x4] sm:$0xf]
      %v2837 = vunpack.c.l.bf16 %v2835
      %v2838 = vunpack.c.l.bf16 %v2836
      %v2839 = vmul.f32 %v2837, %v1776
      %v2840 = vmul.f32 %v2838, %v1776
      %v2841 = vadd.f32 %v2839, 0.0
      %v2842 = vadd.f32 %v2840, 0.0
      %v2843 = vld [vmem:[%s2629 + $0x8] sm:$0x1]
      %v2844 = vunpack.c.l.bf16 %v2843
      %v2845 = vmul.f32 %v2837, %v1786
      %v2846 = vmul.f32 %v2838, %v1786
      %v2847 = vmul.f32 %v2844, %v1786
      %v2851 = vrot.slane %v2845, 1
      %v2852 = vrot.slane %v2846, 1
      %v2853 = vsel %vm1793, %v2851, %v2852
      %v2854 = vrot.slane %v2847, 1
      %v2855 = vsel %vm1793, %v2852, %v2854
      %v2858 = vadd.f32 %v2841, %v2853
      %v2859 = vadd.f32 %v2842, %v2855
      %v2860 = vld [vmem:[%s2629] sm:$0xe]
      %v2861 = vunpack.c.l.bf16 %v2860
      %v2862 = vmul.f32 %v2861, %v1808
      %v2863 = vmul.f32 %v2838, %v1808
      %v2864 = vmul.f32 %v2844, %v1808
      %v2868 = vrot.slane %v2862, 2
      %v2869 = vrot.slane %v2863, 2
      %v2870 = vsel %vm1815, %v2868, %v2869
      %v2871 = vrot.slane %v2864, 2
      %v2872 = vsel %vm1815, %v2869, %v2871
      %v2875 = vadd.f32 %v2858, %v2870
      %v2876 = vadd.f32 %v2859, %v2872
      %v2877 = vld [vmem:[%s2774] sm:$0xf]
      %v2878 = vld [vmem:[%s2774 + $0x4] sm:$0xf]
      %v2879 = vunpack.c.l.bf16 %v2877
      %v2880 = vunpack.c.l.bf16 %v2878
      %v2881 = vmul.f32 %v2879, %v1833
      %v2882 = vmul.f32 %v2880, %v1833
      %v2883 = vadd.f32 %v2875, %v2881
      %v2884 = vadd.f32 %v2876, %v2882
      %v2885 = vld [vmem:[%s2774 + $0x8] sm:$0x1]
      %v2886 = vunpack.c.l.bf16 %v2885
      %v2887 = vmul.f32 %v2879, %v1843
      %v2888 = vmul.f32 %v2880, %v1843
      %v2889 = vmul.f32 %v2886, %v1843
      %v2893 = vrot.slane %v2887, 1
      %v2894 = vrot.slane %v2888, 1
      %v2895 = vsel %vm1793, %v2893, %v2894
      %v2896 = vrot.slane %v2889, 1
      %v2897 = vsel %vm1793, %v2894, %v2896
      %v2900 = vadd.f32 %v2883, %v2895
      %v2901 = vadd.f32 %v2884, %v2897
      %v2902 = vld [vmem:[%s2774] sm:$0xe]
      %v2903 = vunpack.c.l.bf16 %v2902
      %v2904 = vmul.f32 %v2903, %v1864
      %v2905 = vmul.f32 %v2880, %v1864
      %v2906 = vmul.f32 %v2886, %v1864
      %v2910 = vrot.slane %v2904, 2
      %v2911 = vrot.slane %v2905, 2
      %v2912 = vsel %vm1815, %v2910, %v2911
      %v2913 = vrot.slane %v2906, 2
      %v2914 = vsel %vm1815, %v2911, %v2913
      %v2917 = vadd.f32 %v2900, %v2912
      %v2918 = vadd.f32 %v2901, %v2914
      %s2919 = scalar_lea.vmem [#allocation3], 108
      %v2920 = vld [vmem:[%s2919] sm:$0xf]
      %v2921 = vld [vmem:[%s2919 + $0x4] sm:$0xf]
      %v2922 = vunpack.c.l.bf16 %v2920
      %v2923 = vunpack.c.l.bf16 %v2921
      %v2924 = vmul.f32 %v2922, %v1888
      %v2925 = vmul.f32 %v2923, %v1888
      %v2926 = vadd.f32 %v2917, %v2924
      %v2927 = vadd.f32 %v2918, %v2925
      %v2928 = vld [vmem:[%s2919 + $0x8] sm:$0x1]
      %v2929 = vunpack.c.l.bf16 %v2928
      %v2930 = vmul.f32 %v2922, %v1898
      %v2931 = vmul.f32 %v2923, %v1898
      %v2932 = vmul.f32 %v2929, %v1898
      %v2936 = vrot.slane %v2930, 1
      %v2937 = vrot.slane %v2931, 1
      %v2938 = vsel %vm1793, %v2936, %v2937
      %v2939 = vrot.slane %v2932, 1
      %v2940 = vsel %vm1793, %v2937, %v2939
      %v2943 = vadd.f32 %v2926, %v2938
      %v2944 = vadd.f32 %v2927, %v2940
      %v2945 = vld [vmem:[%s2919] sm:$0xe]
      %v2946 = vunpack.c.l.bf16 %v2945
      %v2947 = vmul.f32 %v2946, %v1919
      %v2948 = vmul.f32 %v2923, %v1919
      %v2949 = vmul.f32 %v2929, %v1919
      %v2953 = vrot.slane %v2947, 2
      %v2954 = vrot.slane %v2948, 2
      %v2955 = vsel %vm1815, %v2953, %v2954
      %v2956 = vrot.slane %v2949, 2
      %v2957 = vsel %vm1815, %v2954, %v2956
      %v2960 = vadd.f32 %v2943, %v2955
      %v2961 = vadd.f32 %v2944, %v2957
      %v2962 = vmul.f32 %v2960, %v1939
      %v2963 = vmul.f32 %v2961, %v1939
      %v2964 = vadd.f32 %v2962, %v1947
      %v2965 = vadd.f32 %v2963, %v1947
      %v2966 = vmax.f32 %v2964, 0.0
      %v2967 = vmax.f32 %v2965, 0.0
      %v2968 = vmin.f32 %v2966, 6.0
      %v2969 = vmin.f32 %v2967, 6.0
      %v2970 = vpack.c.bf16 %v2969, %v2968
      %v2972 = vunpack.c.l.b16 %v2970
      %v2973 = vunpack.c.h.b16 %v2970
      %v2974 = vpack.c.b16 %v2972, %v2972
      %v2975 = vpack.c.b16 %v2973, %v2973
      %2978 = vst [vmem:[#allocation2 + $0x38] sm:$0xf] %v2974
      %2979 = vst [vmem:[#allocation2 + $0x3c] sm:$0xf] %v2975
      %v2980 = vld [vmem:[%s2774] sm:$0xf]
      %v2981 = vld [vmem:[%s2774 + $0x4] sm:$0xf]
      %v2982 = vunpack.c.l.bf16 %v2980
      %v2983 = vunpack.c.l.bf16 %v2981
      %v2984 = vmul.f32 %v2982, %v1776
      %v2985 = vmul.f32 %v2983, %v1776
      %v2986 = vadd.f32 %v2984, 0.0
      %v2987 = vadd.f32 %v2985, 0.0
      %v2988 = vld [vmem:[%s2774 + $0x8] sm:$0x1]
      %v2989 = vunpack.c.l.bf16 %v2988
      %v2990 = vmul.f32 %v2982, %v1786
      %v2991 = vmul.f32 %v2983, %v1786
      %v2992 = vmul.f32 %v2989, %v1786
      %v2996 = vrot.slane %v2990, 1
      %v2997 = vrot.slane %v2991, 1
      %v2998 = vsel %vm1793, %v2996, %v2997
      %v2999 = vrot.slane %v2992, 1
      %v3000 = vsel %vm1793, %v2997, %v2999
      %v3003 = vadd.f32 %v2986, %v2998
      %v3004 = vadd.f32 %v2987, %v3000
      %v3005 = vld [vmem:[%s2774] sm:$0xe]
      %v3006 = vunpack.c.l.bf16 %v3005
      %v3007 = vmul.f32 %v3006, %v1808
      %v3008 = vmul.f32 %v2983, %v1808
      %v3009 = vmul.f32 %v2989, %v1808
      %v3013 = vrot.slane %v3007, 2
      %v3014 = vrot.slane %v3008, 2
      %v3015 = vsel %vm1815, %v3013, %v3014
      %v3016 = vrot.slane %v3009, 2
      %v3017 = vsel %vm1815, %v3014, %v3016
      %v3020 = vadd.f32 %v3003, %v3015
      %v3021 = vadd.f32 %v3004, %v3017
      %v3022 = vld [vmem:[%s2919] sm:$0xf]
      %v3023 = vld [vmem:[%s2919 + $0x4] sm:$0xf]
      %v3024 = vunpack.c.l.bf16 %v3022
      %v3025 = vunpack.c.l.bf16 %v3023
      %v3026 = vmul.f32 %v3024, %v1833
      %v3027 = vmul.f32 %v3025, %v1833
      %v3028 = vadd.f32 %v3020, %v3026
      %v3029 = vadd.f32 %v3021, %v3027
      %v3030 = vld [vmem:[%s2919 + $0x8] sm:$0x1]
      %v3031 = vunpack.c.l.bf16 %v3030
      %v3032 = vmul.f32 %v3024, %v1843
      %v3033 = vmul.f32 %v3025, %v1843
      %v3034 = vmul.f32 %v3031, %v1843
      %v3038 = vrot.slane %v3032, 1
      %v3039 = vrot.slane %v3033, 1
      %v3040 = vsel %vm1793, %v3038, %v3039
      %v3041 = vrot.slane %v3034, 1
      %v3042 = vsel %vm1793, %v3039, %v3041
      %v3045 = vadd.f32 %v3028, %v3040
      %v3046 = vadd.f32 %v3029, %v3042
      %v3047 = vld [vmem:[%s2919] sm:$0xe]
      %v3048 = vunpack.c.l.bf16 %v3047
      %v3049 = vmul.f32 %v3048, %v1864
      %v3050 = vmul.f32 %v3025, %v1864
      %v3051 = vmul.f32 %v3031, %v1864
      %v3055 = vrot.slane %v3049, 2
      %v3056 = vrot.slane %v3050, 2
      %v3057 = vsel %vm1815, %v3055, %v3056
      %v3058 = vrot.slane %v3051, 2
      %v3059 = vsel %vm1815, %v3056, %v3058
      %v3062 = vadd.f32 %v3045, %v3057
      %v3063 = vadd.f32 %v3046, %v3059
      %s3064 = scalar_lea.vmem [#allocation3], 120
      %v3065 = vld [vmem:[%s3064] sm:$0xf]
      %v3066 = vld [vmem:[%s3064 + $0x4] sm:$0xf]
      %v3067 = vunpack.c.l.bf16 %v3065
      %v3068 = vunpack.c.l.bf16 %v3066
      %v3069 = vmul.f32 %v3067, %v1888
      %v3070 = vmul.f32 %v3068, %v1888
      %v3071 = vadd.f32 %v3062, %v3069
      %v3072 = vadd.f32 %v3063, %v3070
      %v3073 = vld [vmem:[%s3064 + $0x8] sm:$0x1]
      %v3074 = vunpack.c.l.bf16 %v3073
      %v3075 = vmul.f32 %v3067, %v1898
      %v3076 = vmul.f32 %v3068, %v1898
      %v3077 = vmul.f32 %v3074, %v1898
      %v3081 = vrot.slane %v3075, 1
      %v3082 = vrot.slane %v3076, 1
      %v3083 = vsel %vm1793, %v3081, %v3082
      %v3084 = vrot.slane %v3077, 1
      %v3085 = vsel %vm1793, %v3082, %v3084
      %v3088 = vadd.f32 %v3071, %v3083
      %v3089 = vadd.f32 %v3072, %v3085
      %v3090 = vld [vmem:[%s3064] sm:$0xe]
      %v3091 = vunpack.c.l.bf16 %v3090
      %v3092 = vmul.f32 %v3091, %v1919
      %v3093 = vmul.f32 %v3068, %v1919
      %v3094 = vmul.f32 %v3074, %v1919
      %v3098 = vrot.slane %v3092, 2
      %v3099 = vrot.slane %v3093, 2
      %v3100 = vsel %vm1815, %v3098, %v3099
      %v3101 = vrot.slane %v3094, 2
      %v3102 = vsel %vm1815, %v3099, %v3101
      %v3105 = vadd.f32 %v3088, %v3100
      %v3106 = vadd.f32 %v3089, %v3102
      %v3107 = vmul.f32 %v3105, %v1939
      %v3108 = vmul.f32 %v3106, %v1939
      %v3109 = vadd.f32 %v3107, %v1947
      %v3110 = vadd.f32 %v3108, %v1947
      %v3111 = vmax.f32 %v3109, 0.0
      %v3112 = vmax.f32 %v3110, 0.0
      %v3113 = vmin.f32 %v3111, 6.0
      %v3114 = vmin.f32 %v3112, 6.0
      %v3115 = vpack.c.bf16 %v3114, %v3113
      %v3117 = vunpack.c.l.b16 %v3115
      %v3118 = vunpack.c.h.b16 %v3115
      %v3119 = vpack.c.b16 %v3117, %v3117
      %v3120 = vpack.c.b16 %v3118, %v3118
      %3123 = vst [vmem:[#allocation2 + $0x40] sm:$0xf] %v3119
      %3124 = vst [vmem:[#allocation2 + $0x44] sm:$0xf] %v3120
      %v3125 = vld [vmem:[%s2919] sm:$0xf]
      %v3126 = vld [vmem:[%s2919 + $0x4] sm:$0xf]
      %v3127 = vunpack.c.l.bf16 %v3125
      %v3128 = vunpack.c.l.bf16 %v3126
      %v3129 = vmul.f32 %v3127, %v1776
      %v3130 = vmul.f32 %v3128, %v1776
      %v3131 = vadd.f32 %v3129, 0.0
      %v3132 = vadd.f32 %v3130, 0.0
      %v3133 = vld [vmem:[%s2919 + $0x8] sm:$0x1]
      %v3134 = vunpack.c.l.bf16 %v3133
      %v3135 = vmul.f32 %v3127, %v1786
      %v3136 = vmul.f32 %v3128, %v1786
      %v3137 = vmul.f32 %v3134, %v1786
      %v3141 = vrot.slane %v3135, 1
      %v3142 = vrot.slane %v3136, 1
      %v3143 = vsel %vm1793, %v3141, %v3142
      %v3144 = vrot.slane %v3137, 1
      %v3145 = vsel %vm1793, %v3142, %v3144
      %v3148 = vadd.f32 %v3131, %v3143
      %v3149 = vadd.f32 %v3132, %v3145
      %v3150 = vld [vmem:[%s2919] sm:$0xe]
      %v3151 = vunpack.c.l.bf16 %v3150
      %v3152 = vmul.f32 %v3151, %v1808
      %v3153 = vmul.f32 %v3128, %v1808
      %v3154 = vmul.f32 %v3134, %v1808
      %v3158 = vrot.slane %v3152, 2
      %v3159 = vrot.slane %v3153, 2
      %v3160 = vsel %vm1815, %v3158, %v3159
      %v3161 = vrot.slane %v3154, 2
      %v3162 = vsel %vm1815, %v3159, %v3161
      %v3165 = vadd.f32 %v3148, %v3160
      %v3166 = vadd.f32 %v3149, %v3162
      %v3167 = vld [vmem:[%s3064] sm:$0xf]
      %v3168 = vld [vmem:[%s3064 + $0x4] sm:$0xf]
      %v3169 = vunpack.c.l.bf16 %v3167
      %v3170 = vunpack.c.l.bf16 %v3168
      %v3171 = vmul.f32 %v3169, %v1833
      %v3172 = vmul.f32 %v3170, %v1833
      %v3173 = vadd.f32 %v3165, %v3171
      %v3174 = vadd.f32 %v3166, %v3172
      %v3175 = vld [vmem:[%s3064 + $0x8] sm:$0x1]
      %v3176 = vunpack.c.l.bf16 %v3175
      %v3177 = vmul.f32 %v3169, %v1843
      %v3178 = vmul.f32 %v3170, %v1843
      %v3179 = vmul.f32 %v3176, %v1843
      %v3183 = vrot.slane %v3177, 1
      %v3184 = vrot.slane %v3178, 1
      %v3185 = vsel %vm1793, %v3183, %v3184
      %v3186 = vrot.slane %v3179, 1
      %v3187 = vsel %vm1793, %v3184, %v3186
      %v3190 = vadd.f32 %v3173, %v3185
      %v3191 = vadd.f32 %v3174, %v3187
      %v3192 = vld [vmem:[%s3064] sm:$0xe]
      %v3193 = vunpack.c.l.bf16 %v3192
      %v3194 = vmul.f32 %v3193, %v1864
      %v3195 = vmul.f32 %v3170, %v1864
      %v3196 = vmul.f32 %v3176, %v1864
      %v3200 = vrot.slane %v3194, 2
      %v3201 = vrot.slane %v3195, 2
      %v3202 = vsel %vm1815, %v3200, %v3201
      %v3203 = vrot.slane %v3196, 2
      %v3204 = vsel %vm1815, %v3201, %v3203
      %v3207 = vadd.f32 %v3190, %v3202
      %v3208 = vadd.f32 %v3191, %v3204
      %s3209 = scalar_lea.vmem [#allocation3], 132
      %v3210 = vld [vmem:[%s3209] sm:$0xf]
      %v3211 = vld [vmem:[%s3209 + $0x4] sm:$0xf]
      %v3212 = vunpack.c.l.bf16 %v3210
      %v3213 = vunpack.c.l.bf16 %v3211
      %v3214 = vmul.f32 %v3212, %v1888
      %v3215 = vmul.f32 %v3213, %v1888
      %v3216 = vadd.f32 %v3207, %v3214
      %v3217 = vadd.f32 %v3208, %v3215
      %v3218 = vld [vmem:[%s3209 + $0x8] sm:$0x1]
      %v3219 = vunpack.c.l.bf16 %v3218
      %v3220 = vmul.f32 %v3212, %v1898
      %v3221 = vmul.f32 %v3213, %v1898
      %v3222 = vmul.f32 %v3219, %v1898
      %v3226 = vrot.slane %v3220, 1
      %v3227 = vrot.slane %v3221, 1
      %v3228 = vsel %vm1793, %v3226, %v3227
      %v3229 = vrot.slane %v3222, 1
      %v3230 = vsel %vm1793, %v3227, %v3229
      %v3233 = vadd.f32 %v3216, %v3228
      %v3234 = vadd.f32 %v3217, %v3230
      %v3235 = vld [vmem:[%s3209] sm:$0xe]
      %v3236 = vunpack.c.l.bf16 %v3235
      %v3237 = vmul.f32 %v3236, %v1919
      %v3238 = vmul.f32 %v3213, %v1919
      %v3239 = vmul.f32 %v3219, %v1919
      %v3243 = vrot.slane %v3237, 2
      %v3244 = vrot.slane %v3238, 2
      %v3245 = vsel %vm1815, %v3243, %v3244
      %v3246 = vrot.slane %v3239, 2
      %v3247 = vsel %vm1815, %v3244, %v3246
      %v3250 = vadd.f32 %v3233, %v3245
      %v3251 = vadd.f32 %v3234, %v3247
      %v3252 = vmul.f32 %v3250, %v1939
      %v3253 = vmul.f32 %v3251, %v1939
      %v3254 = vadd.f32 %v3252, %v1947
      %v3255 = vadd.f32 %v3253, %v1947
      %v3256 = vmax.f32 %v3254, 0.0
      %v3257 = vmax.f32 %v3255, 0.0
      %v3258 = vmin.f32 %v3256, 6.0
      %v3259 = vmin.f32 %v3257, 6.0
      %v3260 = vpack.c.bf16 %v3259, %v3258
      %v3262 = vunpack.c.l.b16 %v3260
      %v3263 = vunpack.c.h.b16 %v3260
      %v3264 = vpack.c.b16 %v3262, %v3262
      %v3265 = vpack.c.b16 %v3263, %v3263
      %3268 = vst [vmem:[#allocation2 + $0x48] sm:$0xf] %v3264
      %3269 = vst [vmem:[#allocation2 + $0x4c] sm:$0xf] %v3265
      %v3270 = vld [vmem:[%s3064] sm:$0xf]
      %v3271 = vld [vmem:[%s3064 + $0x4] sm:$0xf]
      %v3272 = vunpack.c.l.bf16 %v3270
      %v3273 = vunpack.c.l.bf16 %v3271
      %v3274 = vmul.f32 %v3272, %v1776
      %v3275 = vmul.f32 %v3273, %v1776
      %v3276 = vadd.f32 %v3274, 0.0
      %v3277 = vadd.f32 %v3275, 0.0
      %v3278 = vld [vmem:[%s3064 + $0x8] sm:$0x1]
      %v3279 = vunpack.c.l.bf16 %v3278
      %v3280 = vmul.f32 %v3272, %v1786
      %v3281 = vmul.f32 %v3273, %v1786
      %v3282 = vmul.f32 %v3279, %v1786
      %v3286 = vrot.slane %v3280, 1
      %v3287 = vrot.slane %v3281, 1
      %v3288 = vsel %vm1793, %v3286, %v3287
      %v3289 = vrot.slane %v3282, 1
      %v3290 = vsel %vm1793, %v3287, %v3289
      %v3293 = vadd.f32 %v3276, %v3288
      %v3294 = vadd.f32 %v3277, %v3290
      %v3295 = vld [vmem:[%s3064] sm:$0xe]
      %v3296 = vunpack.c.l.bf16 %v3295
      %v3297 = vmul.f32 %v3296, %v1808
      %v3298 = vmul.f32 %v3273, %v1808
      %v3299 = vmul.f32 %v3279, %v1808
      %v3303 = vrot.slane %v3297, 2
      %v3304 = vrot.slane %v3298, 2
      %v3305 = vsel %vm1815, %v3303, %v3304
      %v3306 = vrot.slane %v3299, 2
      %v3307 = vsel %vm1815, %v3304, %v3306
      %v3310 = vadd.f32 %v3293, %v3305
      %v3311 = vadd.f32 %v3294, %v3307
      %v3312 = vld [vmem:[%s3209] sm:$0xf]
      %v3313 = vld [vmem:[%s3209 + $0x4] sm:$0xf]
      %v3314 = vunpack.c.l.bf16 %v3312
      %v3315 = vunpack.c.l.bf16 %v3313
      %v3316 = vmul.f32 %v3314, %v1833
      %v3317 = vmul.f32 %v3315, %v1833
      %v3318 = vadd.f32 %v3310, %v3316
      %v3319 = vadd.f32 %v3311, %v3317
      %v3320 = vld [vmem:[%s3209 + $0x8] sm:$0x1]
      %v3321 = vunpack.c.l.bf16 %v3320
      %v3322 = vmul.f32 %v3314, %v1843
      %v3323 = vmul.f32 %v3315, %v1843
      %v3324 = vmul.f32 %v3321, %v1843
      %v3328 = vrot.slane %v3322, 1
      %v3329 = vrot.slane %v3323, 1
      %v3330 = vsel %vm1793, %v3328, %v3329
      %v3331 = vrot.slane %v3324, 1
      %v3332 = vsel %vm1793, %v3329, %v3331
      %v3335 = vadd.f32 %v3318, %v3330
      %v3336 = vadd.f32 %v3319, %v3332
      %v3337 = vld [vmem:[%s3209] sm:$0xe]
      %v3338 = vunpack.c.l.bf16 %v3337
      %v3339 = vmul.f32 %v3338, %v1864
      %v3340 = vmul.f32 %v3315, %v1864
      %v3341 = vmul.f32 %v3321, %v1864
      %v3345 = vrot.slane %v3339, 2
      %v3346 = vrot.slane %v3340, 2
      %v3347 = vsel %vm1815, %v3345, %v3346
      %v3348 = vrot.slane %v3341, 2
      %v3349 = vsel %vm1815, %v3346, %v3348
      %v3352 = vadd.f32 %v3335, %v3347
      %v3353 = vadd.f32 %v3336, %v3349
      %s3354 = scalar_lea.vmem [#allocation3], 144
      %v3355 = vld [vmem:[%s3354] sm:$0xf]
      %v3356 = vld [vmem:[%s3354 + $0x4] sm:$0xf]
      %v3357 = vunpack.c.l.bf16 %v3355
      %v3358 = vunpack.c.l.bf16 %v3356
      %v3359 = vmul.f32 %v3357, %v1888
      %v3360 = vmul.f32 %v3358, %v1888
      %v3361 = vadd.f32 %v3352, %v3359
      %v3362 = vadd.f32 %v3353, %v3360
      %v3363 = vld [vmem:[%s3354 + $0x8] sm:$0x1]
      %v3364 = vunpack.c.l.bf16 %v3363
      %v3365 = vmul.f32 %v3357, %v1898
      %v3366 = vmul.f32 %v3358, %v1898
      %v3367 = vmul.f32 %v3364, %v1898
      %v3371 = vrot.slane %v3365, 1
      %v3372 = vrot.slane %v3366, 1
      %v3373 = vsel %vm1793, %v3371, %v3372
      %v3374 = vrot.slane %v3367, 1
      %v3375 = vsel %vm1793, %v3372, %v3374
      %v3378 = vadd.f32 %v3361, %v3373
      %v3379 = vadd.f32 %v3362, %v3375
      %v3380 = vld [vmem:[%s3354] sm:$0xe]
      %v3381 = vunpack.c.l.bf16 %v3380
      %v3382 = vmul.f32 %v3381, %v1919
      %v3383 = vmul.f32 %v3358, %v1919
      %v3384 = vmul.f32 %v3364, %v1919
      %v3388 = vrot.slane %v3382, 2
      %v3389 = vrot.slane %v3383, 2
      %v3390 = vsel %vm1815, %v3388, %v3389
      %v3391 = vrot.slane %v3384, 2
      %v3392 = vsel %vm1815, %v3389, %v3391
      %v3395 = vadd.f32 %v3378, %v3390
      %v3396 = vadd.f32 %v3379, %v3392
      %v3397 = vmul.f32 %v3395, %v1939
      %v3398 = vmul.f32 %v3396, %v1939
      %v3399 = vadd.f32 %v3397, %v1947
      %v3400 = vadd.f32 %v3398, %v1947
      %v3401 = vmax.f32 %v3399, 0.0
      %v3402 = vmax.f32 %v3400, 0.0
      %v3403 = vmin.f32 %v3401, 6.0
      %v3404 = vmin.f32 %v3402, 6.0
      %v3405 = vpack.c.bf16 %v3404, %v3403
      %v3407 = vunpack.c.l.b16 %v3405
      %v3408 = vunpack.c.h.b16 %v3405
      %v3409 = vpack.c.b16 %v3407, %v3407
      %v3410 = vpack.c.b16 %v3408, %v3408
      %3413 = vst [vmem:[#allocation2 + $0x50] sm:$0xf] %v3409
      %3414 = vst [vmem:[#allocation2 + $0x54] sm:$0xf] %v3410
      %v3415 = vld [vmem:[%s3209] sm:$0xf]
      %v3416 = vld [vmem:[%s3209 + $0x4] sm:$0xf]
      %v3417 = vunpack.c.l.bf16 %v3415
      %v3418 = vunpack.c.l.bf16 %v3416
      %v3419 = vmul.f32 %v3417, %v1776
      %v3420 = vmul.f32 %v3418, %v1776
      %v3421 = vadd.f32 %v3419, 0.0
      %v3422 = vadd.f32 %v3420, 0.0
      %v3423 = vld [vmem:[%s3209 + $0x8] sm:$0x1]
      %v3424 = vunpack.c.l.bf16 %v3423
      %v3425 = vmul.f32 %v3417, %v1786
      %v3426 = vmul.f32 %v3418, %v1786
      %v3427 = vmul.f32 %v3424, %v1786
      %v3431 = vrot.slane %v3425, 1
      %v3432 = vrot.slane %v3426, 1
      %v3433 = vsel %vm1793, %v3431, %v3432
      %v3434 = vrot.slane %v3427, 1
      %v3435 = vsel %vm1793, %v3432, %v3434
      %v3438 = vadd.f32 %v3421, %v3433
      %v3439 = vadd.f32 %v3422, %v3435
      %v3440 = vld [vmem:[%s3209] sm:$0xe]
      %v3441 = vunpack.c.l.bf16 %v3440
      %v3442 = vmul.f32 %v3441, %v1808
      %v3443 = vmul.f32 %v3418, %v1808
      %v3444 = vmul.f32 %v3424, %v1808
      %v3448 = vrot.slane %v3442, 2
      %v3449 = vrot.slane %v3443, 2
      %v3450 = vsel %vm1815, %v3448, %v3449
      %v3451 = vrot.slane %v3444, 2
      %v3452 = vsel %vm1815, %v3449, %v3451
      %v3455 = vadd.f32 %v3438, %v3450
      %v3456 = vadd.f32 %v3439, %v3452
      %v3457 = vld [vmem:[%s3354] sm:$0xf]
      %v3458 = vld [vmem:[%s3354 + $0x4] sm:$0xf]
      %v3459 = vunpack.c.l.bf16 %v3457
      %v3460 = vunpack.c.l.bf16 %v3458
      %v3461 = vmul.f32 %v3459, %v1833
      %v3462 = vmul.f32 %v3460, %v1833
      %v3463 = vadd.f32 %v3455, %v3461
      %v3464 = vadd.f32 %v3456, %v3462
      %v3465 = vld [vmem:[%s3354 + $0x8] sm:$0x1]
      %v3466 = vunpack.c.l.bf16 %v3465
      %v3467 = vmul.f32 %v3459, %v1843
      %v3468 = vmul.f32 %v3460, %v1843
      %v3469 = vmul.f32 %v3466, %v1843
      %v3473 = vrot.slane %v3467, 1
      %v3474 = vrot.slane %v3468, 1
      %v3475 = vsel %vm1793, %v3473, %v3474
      %v3476 = vrot.slane %v3469, 1
      %v3477 = vsel %vm1793, %v3474, %v3476
      %v3480 = vadd.f32 %v3463, %v3475
      %v3481 = vadd.f32 %v3464, %v3477
      %v3482 = vld [vmem:[%s3354] sm:$0xe]
      %v3483 = vunpack.c.l.bf16 %v3482
      %v3484 = vmul.f32 %v3483, %v1864
      %v3485 = vmul.f32 %v3460, %v1864
      %v3486 = vmul.f32 %v3466, %v1864
      %v3490 = vrot.slane %v3484, 2
      %v3491 = vrot.slane %v3485, 2
      %v3492 = vsel %vm1815, %v3490, %v3491
      %v3493 = vrot.slane %v3486, 2
      %v3494 = vsel %vm1815, %v3491, %v3493
      %v3497 = vadd.f32 %v3480, %v3492
      %v3498 = vadd.f32 %v3481, %v3494
      %s3499 = scalar_lea.vmem [#allocation3], 156
      %v3500 = vld [vmem:[%s3499] sm:$0xf]
      %v3501 = vld [vmem:[%s3499 + $0x4] sm:$0xf]
      %v3502 = vunpack.c.l.bf16 %v3500
      %v3503 = vunpack.c.l.bf16 %v3501
      %v3504 = vmul.f32 %v3502, %v1888
      %v3505 = vmul.f32 %v3503, %v1888
      %v3506 = vadd.f32 %v3497, %v3504
      %v3507 = vadd.f32 %v3498, %v3505
      %v3508 = vld [vmem:[%s3499 + $0x8] sm:$0x1]
      %v3509 = vunpack.c.l.bf16 %v3508
      %v3510 = vmul.f32 %v3502, %v1898
      %v3511 = vmul.f32 %v3503, %v1898
      %v3512 = vmul.f32 %v3509, %v1898
      %v3516 = vrot.slane %v3510, 1
      %v3517 = vrot.slane %v3511, 1
      %v3518 = vsel %vm1793, %v3516, %v3517
      %v3519 = vrot.slane %v3512, 1
      %v3520 = vsel %vm1793, %v3517, %v3519
      %v3523 = vadd.f32 %v3506, %v3518
      %v3524 = vadd.f32 %v3507, %v3520
      %v3525 = vld [vmem:[%s3499] sm:$0xe]
      %v3526 = vunpack.c.l.bf16 %v3525
      %v3527 = vmul.f32 %v3526, %v1919
      %v3528 = vmul.f32 %v3503, %v1919
      %v3529 = vmul.f32 %v3509, %v1919
      %v3533 = vrot.slane %v3527, 2
      %v3534 = vrot.slane %v3528, 2
      %v3535 = vsel %vm1815, %v3533, %v3534
      %v3536 = vrot.slane %v3529, 2
      %v3537 = vsel %vm1815, %v3534, %v3536
      %v3540 = vadd.f32 %v3523, %v3535
      %v3541 = vadd.f32 %v3524, %v3537
      %v3542 = vmul.f32 %v3540, %v1939
      %v3543 = vmul.f32 %v3541, %v1939
      %v3544 = vadd.f32 %v3542, %v1947
      %v3545 = vadd.f32 %v3543, %v1947
      %v3546 = vmax.f32 %v3544, 0.0
      %v3547 = vmax.f32 %v3545, 0.0
      %v3548 = vmin.f32 %v3546, 6.0
      %v3549 = vmin.f32 %v3547, 6.0
      %v3550 = vpack.c.bf16 %v3549, %v3548
      %v3552 = vunpack.c.l.b16 %v3550
      %v3553 = vunpack.c.h.b16 %v3550
      %v3554 = vpack.c.b16 %v3552, %v3552
      %v3555 = vpack.c.b16 %v3553, %v3553
      %3558 = vst [vmem:[#allocation2 + $0x58] sm:$0xf] %v3554
      %3559 = vst [vmem:[#allocation2 + $0x5c] sm:$0xf] %v3555
      %v3560 = vld [vmem:[%s3354] sm:$0xf]
      %v3561 = vld [vmem:[%s3354 + $0x4] sm:$0xf]
      %v3562 = vunpack.c.l.bf16 %v3560
      %v3563 = vunpack.c.l.bf16 %v3561
      %v3564 = vmul.f32 %v3562, %v1776
      %v3565 = vmul.f32 %v3563, %v1776
      %v3566 = vadd.f32 %v3564, 0.0
      %v3567 = vadd.f32 %v3565, 0.0
      %v3568 = vld [vmem:[%s3354 + $0x8] sm:$0x1]
      %v3569 = vunpack.c.l.bf16 %v3568
      %v3570 = vmul.f32 %v3562, %v1786
      %v3571 = vmul.f32 %v3563, %v1786
      %v3572 = vmul.f32 %v3569, %v1786
      %v3576 = vrot.slane %v3570, 1
      %v3577 = vrot.slane %v3571, 1
      %v3578 = vsel %vm1793, %v3576, %v3577
      %v3579 = vrot.slane %v3572, 1
      %v3580 = vsel %vm1793, %v3577, %v3579
      %v3583 = vadd.f32 %v3566, %v3578
      %v3584 = vadd.f32 %v3567, %v3580
      %v3585 = vld [vmem:[%s3354] sm:$0xe]
      %v3586 = vunpack.c.l.bf16 %v3585
      %v3587 = vmul.f32 %v3586, %v1808
      %v3588 = vmul.f32 %v3563, %v1808
      %v3589 = vmul.f32 %v3569, %v1808
      %v3593 = vrot.slane %v3587, 2
      %v3594 = vrot.slane %v3588, 2
      %v3595 = vsel %vm1815, %v3593, %v3594
      %v3596 = vrot.slane %v3589, 2
      %v3597 = vsel %vm1815, %v3594, %v3596
      %v3600 = vadd.f32 %v3583, %v3595
      %v3601 = vadd.f32 %v3584, %v3597
      %v3602 = vld [vmem:[%s3499] sm:$0xf]
      %v3603 = vld [vmem:[%s3499 + $0x4] sm:$0xf]
      %v3604 = vunpack.c.l.bf16 %v3602
      %v3605 = vunpack.c.l.bf16 %v3603
      %v3606 = vmul.f32 %v3604, %v1833
      %v3607 = vmul.f32 %v3605, %v1833
      %v3608 = vadd.f32 %v3600, %v3606
      %v3609 = vadd.f32 %v3601, %v3607
      %v3610 = vld [vmem:[%s3499 + $0x8] sm:$0x1]
      %v3611 = vunpack.c.l.bf16 %v3610
      %v3612 = vmul.f32 %v3604, %v1843
      %v3613 = vmul.f32 %v3605, %v1843
      %v3614 = vmul.f32 %v3611, %v1843
      %v3618 = vrot.slane %v3612, 1
      %v3619 = vrot.slane %v3613, 1
      %v3620 = vsel %vm1793, %v3618, %v3619
      %v3621 = vrot.slane %v3614, 1
      %v3622 = vsel %vm1793, %v3619, %v3621
      %v3625 = vadd.f32 %v3608, %v3620
      %v3626 = vadd.f32 %v3609, %v3622
      %v3627 = vld [vmem:[%s3499] sm:$0xe]
      %v3628 = vunpack.c.l.bf16 %v3627
      %v3629 = vmul.f32 %v3628, %v1864
      %v3630 = vmul.f32 %v3605, %v1864
      %v3631 = vmul.f32 %v3611, %v1864
      %v3635 = vrot.slane %v3629, 2
      %v3636 = vrot.slane %v3630, 2
      %v3637 = vsel %vm1815, %v3635, %v3636
      %v3638 = vrot.slane %v3631, 2
      %v3639 = vsel %vm1815, %v3636, %v3638
      %v3642 = vadd.f32 %v3625, %v3637
      %v3643 = vadd.f32 %v3626, %v3639
      %s3644 = scalar_lea.vmem [#allocation3], 168
      %v3645 = vld [vmem:[%s3644] sm:$0xf]
      %v3646 = vld [vmem:[%s3644 + $0x4] sm:$0xf]
      %v3647 = vunpack.c.l.bf16 %v3645
      %v3648 = vunpack.c.l.bf16 %v3646
      %v3649 = vmul.f32 %v3647, %v1888
      %v3650 = vmul.f32 %v3648, %v1888
      %v3651 = vadd.f32 %v3642, %v3649
      %v3652 = vadd.f32 %v3643, %v3650
      %v3653 = vld [vmem:[%s3644 + $0x8] sm:$0x1]
      %v3654 = vunpack.c.l.bf16 %v3653
      %v3655 = vmul.f32 %v3647, %v1898
      %v3656 = vmul.f32 %v3648, %v1898
      %v3657 = vmul.f32 %v3654, %v1898
      %v3661 = vrot.slane %v3655, 1
      %v3662 = vrot.slane %v3656, 1
      %v3663 = vsel %vm1793, %v3661, %v3662
      %v3664 = vrot.slane %v3657, 1
      %v3665 = vsel %vm1793, %v3662, %v3664
      %v3668 = vadd.f32 %v3651, %v3663
      %v3669 = vadd.f32 %v3652, %v3665
      %v3670 = vld [vmem:[%s3644] sm:$0xe]
      %v3671 = vunpack.c.l.bf16 %v3670
      %v3672 = vmul.f32 %v3671, %v1919
      %v3673 = vmul.f32 %v3648, %v1919
      %v3674 = vmul.f32 %v3654, %v1919
      %v3678 = vrot.slane %v3672, 2
      %v3679 = vrot.slane %v3673, 2
      %v3680 = vsel %vm1815, %v3678, %v3679
      %v3681 = vrot.slane %v3674, 2
      %v3682 = vsel %vm1815, %v3679, %v3681
      %v3685 = vadd.f32 %v3668, %v3680
      %v3686 = vadd.f32 %v3669, %v3682
      %v3687 = vmul.f32 %v3685, %v1939
      %v3688 = vmul.f32 %v3686, %v1939
      %v3689 = vadd.f32 %v3687, %v1947
      %v3690 = vadd.f32 %v3688, %v1947
      %v3691 = vmax.f32 %v3689, 0.0
      %v3692 = vmax.f32 %v3690, 0.0
      %v3693 = vmin.f32 %v3691, 6.0
      %v3694 = vmin.f32 %v3692, 6.0
      %v3695 = vpack.c.bf16 %v3694, %v3693
      %v3697 = vunpack.c.l.b16 %v3695
      %v3698 = vunpack.c.h.b16 %v3695
      %v3699 = vpack.c.b16 %v3697, %v3697
      %v3700 = vpack.c.b16 %v3698, %v3698
      %3703 = vst [vmem:[#allocation2 + $0x60] sm:$0xf] %v3699
      %3704 = vst [vmem:[#allocation2 + $0x64] sm:$0xf] %v3700
      %v3705 = vld [vmem:[%s3499] sm:$0xf]
      %v3706 = vld [vmem:[%s3499 + $0x4] sm:$0xf]
      %v3707 = vunpack.c.l.bf16 %v3705
      %v3708 = vunpack.c.l.bf16 %v3706
      %v3709 = vmul.f32 %v3707, %v1776
      %v3710 = vmul.f32 %v3708, %v1776
      %v3711 = vadd.f32 %v3709, 0.0
      %v3712 = vadd.f32 %v3710, 0.0
      %v3713 = vld [vmem:[%s3499 + $0x8] sm:$0x1]
      %v3714 = vunpack.c.l.bf16 %v3713
      %v3715 = vmul.f32 %v3707, %v1786
      %v3716 = vmul.f32 %v3708, %v1786
      %v3717 = vmul.f32 %v3714, %v1786
      %v3721 = vrot.slane %v3715, 1
      %v3722 = vrot.slane %v3716, 1
      %v3723 = vsel %vm1793, %v3721, %v3722
      %v3724 = vrot.slane %v3717, 1
      %v3725 = vsel %vm1793, %v3722, %v3724
      %v3728 = vadd.f32 %v3711, %v3723
      %v3729 = vadd.f32 %v3712, %v3725
      %v3730 = vld [vmem:[%s3499] sm:$0xe]
      %v3731 = vunpack.c.l.bf16 %v3730
      %v3732 = vmul.f32 %v3731, %v1808
      %v3733 = vmul.f32 %v3708, %v1808
      %v3734 = vmul.f32 %v3714, %v1808
      %v3738 = vrot.slane %v3732, 2
      %v3739 = vrot.slane %v3733, 2
      %v3740 = vsel %vm1815, %v3738, %v3739
      %v3741 = vrot.slane %v3734, 2
      %v3742 = vsel %vm1815, %v3739, %v3741
      %v3745 = vadd.f32 %v3728, %v3740
      %v3746 = vadd.f32 %v3729, %v3742
      %v3747 = vld [vmem:[%s3644] sm:$0xf]
      %v3748 = vld [vmem:[%s3644 + $0x4] sm:$0xf]
      %v3749 = vunpack.c.l.bf16 %v3747
      %v3750 = vunpack.c.l.bf16 %v3748
      %v3751 = vmul.f32 %v3749, %v1833
      %v3752 = vmul.f32 %v3750, %v1833
      %v3753 = vadd.f32 %v3745, %v3751
      %v3754 = vadd.f32 %v3746, %v3752
      %v3755 = vld [vmem:[%s3644 + $0x8] sm:$0x1]
      %v3756 = vunpack.c.l.bf16 %v3755
      %v3757 = vmul.f32 %v3749, %v1843
      %v3758 = vmul.f32 %v3750, %v1843
      %v3759 = vmul.f32 %v3756, %v1843
      %v3763 = vrot.slane %v3757, 1
      %v3764 = vrot.slane %v3758, 1
      %v3765 = vsel %vm1793, %v3763, %v3764
      %v3766 = vrot.slane %v3759, 1
      %v3767 = vsel %vm1793, %v3764, %v3766
      %v3770 = vadd.f32 %v3753, %v3765
      %v3771 = vadd.f32 %v3754, %v3767
      %v3772 = vld [vmem:[%s3644] sm:$0xe]
      %v3773 = vunpack.c.l.bf16 %v3772
      %v3774 = vmul.f32 %v3773, %v1864
      %v3775 = vmul.f32 %v3750, %v1864
      %v3776 = vmul.f32 %v3756, %v1864
      %v3780 = vrot.slane %v3774, 2
      %v3781 = vrot.slane %v3775, 2
      %v3782 = vsel %vm1815, %v3780, %v3781
      %v3783 = vrot.slane %v3776, 2
      %v3784 = vsel %vm1815, %v3781, %v3783
      %v3787 = vadd.f32 %v3770, %v3782
      %v3788 = vadd.f32 %v3771, %v3784
      %s3789 = scalar_lea.vmem [#allocation3], 180
      %v3790 = vld [vmem:[%s3789] sm:$0xf]
      %v3791 = vld [vmem:[%s3789 + $0x4] sm:$0xf]
      %v3792 = vunpack.c.l.bf16 %v3790
      %v3793 = vunpack.c.l.bf16 %v3791
      %v3794 = vmul.f32 %v3792, %v1888
      %v3795 = vmul.f32 %v3793, %v1888
      %v3796 = vadd.f32 %v3787, %v3794
      %v3797 = vadd.f32 %v3788, %v3795
      %v3798 = vld [vmem:[%s3789 + $0x8] sm:$0x1]
      %v3799 = vunpack.c.l.bf16 %v3798
      %v3800 = vmul.f32 %v3792, %v1898
      %v3801 = vmul.f32 %v3793, %v1898
      %v3802 = vmul.f32 %v3799, %v1898
      %v3806 = vrot.slane %v3800, 1
      %v3807 = vrot.slane %v3801, 1
      %v3808 = vsel %vm1793, %v3806, %v3807
      %v3809 = vrot.slane %v3802, 1
      %v3810 = vsel %vm1793, %v3807, %v3809
      %v3813 = vadd.f32 %v3796, %v3808
      %v3814 = vadd.f32 %v3797, %v3810
      %v3815 = vld [vmem:[%s3789] sm:$0xe]
      %v3816 = vunpack.c.l.bf16 %v3815
      %v3817 = vmul.f32 %v3816, %v1919
      %v3818 = vmul.f32 %v3793, %v1919
      %v3819 = vmul.f32 %v3799, %v1919
      %v3823 = vrot.slane %v3817, 2
      %v3824 = vrot.slane %v3818, 2
      %v3825 = vsel %vm1815, %v3823, %v3824
      %v3826 = vrot.slane %v3819, 2
      %v3827 = vsel %vm1815, %v3824, %v3826
      %v3830 = vadd.f32 %v3813, %v3825
      %v3831 = vadd.f32 %v3814, %v3827
      %v3832 = vmul.f32 %v3830, %v1939
      %v3833 = vmul.f32 %v3831, %v1939
      %v3834 = vadd.f32 %v3832, %v1947
      %v3835 = vadd.f32 %v3833, %v1947
      %v3836 = vmax.f32 %v3834, 0.0
      %v3837 = vmax.f32 %v3835, 0.0
      %v3838 = vmin.f32 %v3836, 6.0
      %v3839 = vmin.f32 %v3837, 6.0
      %v3840 = vpack.c.bf16 %v3839, %v3838
      %v3842 = vunpack.c.l.b16 %v3840
      %v3843 = vunpack.c.h.b16 %v3840
      %v3844 = vpack.c.b16 %v3842, %v3842
      %v3845 = vpack.c.b16 %v3843, %v3843
      %3848 = vst [vmem:[#allocation2 + $0x68] sm:$0xf] %v3844
      %3849 = vst [vmem:[#allocation2 + $0x6c] sm:$0xf] %v3845
      %v3850 = vld [vmem:[%s3644] sm:$0xf]
      %v3851 = vld [vmem:[%s3644 + $0x4] sm:$0xf]
      %v3852 = vunpack.c.l.bf16 %v3850
      %v3853 = vunpack.c.l.bf16 %v3851
      %v3854 = vmul.f32 %v3852, %v1776
      %v3855 = vmul.f32 %v3853, %v1776
      %v3856 = vadd.f32 %v3854, 0.0
      %v3857 = vadd.f32 %v3855, 0.0
      %v3858 = vld [vmem:[%s3644 + $0x8] sm:$0x1]
      %v3859 = vunpack.c.l.bf16 %v3858
      %v3860 = vmul.f32 %v3852, %v1786
      %v3861 = vmul.f32 %v3853, %v1786
      %v3862 = vmul.f32 %v3859, %v1786
      %v3866 = vrot.slane %v3860, 1
      %v3867 = vrot.slane %v3861, 1
      %v3868 = vsel %vm1793, %v3866, %v3867
      %v3869 = vrot.slane %v3862, 1
      %v3870 = vsel %vm1793, %v3867, %v3869
      %v3873 = vadd.f32 %v3856, %v3868
      %v3874 = vadd.f32 %v3857, %v3870
      %v3875 = vld [vmem:[%s3644] sm:$0xe]
      %v3876 = vunpack.c.l.bf16 %v3875
      %v3877 = vmul.f32 %v3876, %v1808
      %v3878 = vmul.f32 %v3853, %v1808
      %v3879 = vmul.f32 %v3859, %v1808
      %v3883 = vrot.slane %v3877, 2
      %v3884 = vrot.slane %v3878, 2
      %v3885 = vsel %vm1815, %v3883, %v3884
      %v3886 = vrot.slane %v3879, 2
      %v3887 = vsel %vm1815, %v3884, %v3886
      %v3890 = vadd.f32 %v3873, %v3885
      %v3891 = vadd.f32 %v3874, %v3887
      %v3892 = vld [vmem:[%s3789] sm:$0xf]
      %v3893 = vld [vmem:[%s3789 + $0x4] sm:$0xf]
      %v3894 = vunpack.c.l.bf16 %v3892
      %v3895 = vunpack.c.l.bf16 %v3893
      %v3896 = vmul.f32 %v3894, %v1833
      %v3897 = vmul.f32 %v3895, %v1833
      %v3898 = vadd.f32 %v3890, %v3896
      %v3899 = vadd.f32 %v3891, %v3897
      %v3900 = vld [vmem:[%s3789 + $0x8] sm:$0x1]
      %v3901 = vunpack.c.l.bf16 %v3900
      %v3902 = vmul.f32 %v3894, %v1843
      %v3903 = vmul.f32 %v3895, %v1843
      %v3904 = vmul.f32 %v3901, %v1843
      %v3908 = vrot.slane %v3902, 1
      %v3909 = vrot.slane %v3903, 1
      %v3910 = vsel %vm1793, %v3908, %v3909
      %v3911 = vrot.slane %v3904, 1
      %v3912 = vsel %vm1793, %v3909, %v3911
      %v3915 = vadd.f32 %v3898, %v3910
      %v3916 = vadd.f32 %v3899, %v3912
      %v3917 = vld [vmem:[%s3789] sm:$0xe]
      %v3918 = vunpack.c.l.bf16 %v3917
      %v3919 = vmul.f32 %v3918, %v1864
      %v3920 = vmul.f32 %v3895, %v1864
      %v3921 = vmul.f32 %v3901, %v1864
      %v3925 = vrot.slane %v3919, 2
      %v3926 = vrot.slane %v3920, 2
      %v3927 = vsel %vm1815, %v3925, %v3926
      %v3928 = vrot.slane %v3921, 2
      %v3929 = vsel %vm1815, %v3926, %v3928
      %v3932 = vadd.f32 %v3915, %v3927
      %v3933 = vadd.f32 %v3916, %v3929
      %s3934 = scalar_lea.vmem [#allocation3], 192
      %v3935 = vld [vmem:[%s3934] sm:$0xf]
      %v3936 = vld [vmem:[%s3934 + $0x4] sm:$0xf]
      %v3937 = vunpack.c.l.bf16 %v3935
      %v3938 = vunpack.c.l.bf16 %v3936
      %v3939 = vmul.f32 %v3937, %v1888
      %v3940 = vmul.f32 %v3938, %v1888
      %v3941 = vadd.f32 %v3932, %v3939
      %v3942 = vadd.f32 %v3933, %v3940
      %v3943 = vld [vmem:[%s3934 + $0x8] sm:$0x1]
      %v3944 = vunpack.c.l.bf16 %v3943
      %v3945 = vmul.f32 %v3937, %v1898
      %v3946 = vmul.f32 %v3938, %v1898
      %v3947 = vmul.f32 %v3944, %v1898
      %v3951 = vrot.slane %v3945, 1
      %v3952 = vrot.slane %v3946, 1
      %v3953 = vsel %vm1793, %v3951, %v3952
      %v3954 = vrot.slane %v3947, 1
      %v3955 = vsel %vm1793, %v3952, %v3954
      %v3958 = vadd.f32 %v3941, %v3953
      %v3959 = vadd.f32 %v3942, %v3955
      %v3960 = vld [vmem:[%s3934] sm:$0xe]
      %v3961 = vunpack.c.l.bf16 %v3960
      %v3962 = vmul.f32 %v3961, %v1919
      %v3963 = vmul.f32 %v3938, %v1919
      %v3964 = vmul.f32 %v3944, %v1919
      %v3968 = vrot.slane %v3962, 2
      %v3969 = vrot.slane %v3963, 2
      %v3970 = vsel %vm1815, %v3968, %v3969
      %v3971 = vrot.slane %v3964, 2
      %v3972 = vsel %vm1815, %v3969, %v3971
      %v3975 = vadd.f32 %v3958, %v3970
      %v3976 = vadd.f32 %v3959, %v3972
      %v3977 = vmul.f32 %v3975, %v1939
      %v3978 = vmul.f32 %v3976, %v1939
      %v3979 = vadd.f32 %v3977, %v1947
      %v3980 = vadd.f32 %v3978, %v1947
      %v3981 = vmax.f32 %v3979, 0.0
      %v3982 = vmax.f32 %v3980, 0.0
      %v3983 = vmin.f32 %v3981, 6.0
      %v3984 = vmin.f32 %v3982, 6.0
      %v3985 = vpack.c.bf16 %v3984, %v3983
      %v3987 = vunpack.c.l.b16 %v3985
      %v3988 = vunpack.c.h.b16 %v3985
      %v3989 = vpack.c.b16 %v3987, %v3987
      %v3990 = vpack.c.b16 %v3988, %v3988
      %3993 = vst [vmem:[#allocation2 + $0x70] sm:$0xf] %v3989
      %3994 = vst [vmem:[#allocation2 + $0x74] sm:$0xf] %v3990
      %v3995 = vld [vmem:[%s3789] sm:$0xf]
      %v3996 = vld [vmem:[%s3789 + $0x4] sm:$0xf]
      %v3997 = vunpack.c.l.bf16 %v3995
      %v3998 = vunpack.c.l.bf16 %v3996
      %v3999 = vmul.f32 %v3997, %v1776
      %v4000 = vmul.f32 %v3998, %v1776
      %v4001 = vadd.f32 %v3999, 0.0
      %v4002 = vadd.f32 %v4000, 0.0
      %v4003 = vld [vmem:[%s3789 + $0x8] sm:$0x1]
      %v4004 = vunpack.c.l.bf16 %v4003
      %v4005 = vmul.f32 %v3997, %v1786
      %v4006 = vmul.f32 %v3998, %v1786
      %v4007 = vmul.f32 %v4004, %v1786
      %v4011 = vrot.slane %v4005, 1
      %v4012 = vrot.slane %v4006, 1
      %v4013 = vsel %vm1793, %v4011, %v4012
      %v4014 = vrot.slane %v4007, 1
      %v4015 = vsel %vm1793, %v4012, %v4014
      %v4018 = vadd.f32 %v4001, %v4013
      %v4019 = vadd.f32 %v4002, %v4015
      %v4020 = vld [vmem:[%s3789] sm:$0xe]
      %v4021 = vunpack.c.l.bf16 %v4020
      %v4022 = vmul.f32 %v4021, %v1808
      %v4023 = vmul.f32 %v3998, %v1808
      %v4024 = vmul.f32 %v4004, %v1808
      %v4028 = vrot.slane %v4022, 2
      %v4029 = vrot.slane %v4023, 2
      %v4030 = vsel %vm1815, %v4028, %v4029
      %v4031 = vrot.slane %v4024, 2
      %v4032 = vsel %vm1815, %v4029, %v4031
      %v4035 = vadd.f32 %v4018, %v4030
      %v4036 = vadd.f32 %v4019, %v4032
      %v4037 = vld [vmem:[%s3934] sm:$0xf]
      %v4038 = vld [vmem:[%s3934 + $0x4] sm:$0xf]
      %v4039 = vunpack.c.l.bf16 %v4037
      %v4040 = vunpack.c.l.bf16 %v4038
      %v4041 = vmul.f32 %v4039, %v1833
      %v4042 = vmul.f32 %v4040, %v1833
      %v4043 = vadd.f32 %v4035, %v4041
      %v4044 = vadd.f32 %v4036, %v4042
      %v4045 = vld [vmem:[%s3934 + $0x8] sm:$0x1]
      %v4046 = vunpack.c.l.bf16 %v4045
      %v4047 = vmul.f32 %v4039, %v1843
      %v4048 = vmul.f32 %v4040, %v1843
      %v4049 = vmul.f32 %v4046, %v1843
      %v4053 = vrot.slane %v4047, 1
      %v4054 = vrot.slane %v4048, 1
      %v4055 = vsel %vm1793, %v4053, %v4054
      %v4056 = vrot.slane %v4049, 1
      %v4057 = vsel %vm1793, %v4054, %v4056
      %v4060 = vadd.f32 %v4043, %v4055
      %v4061 = vadd.f32 %v4044, %v4057
      %v4062 = vld [vmem:[%s3934] sm:$0xe]
      %v4063 = vunpack.c.l.bf16 %v4062
      %v4064 = vmul.f32 %v4063, %v1864
      %v4065 = vmul.f32 %v4040, %v1864
      %v4066 = vmul.f32 %v4046, %v1864
      %v4070 = vrot.slane %v4064, 2
      %v4071 = vrot.slane %v4065, 2
      %v4072 = vsel %vm1815, %v4070, %v4071
      %v4073 = vrot.slane %v4066, 2
      %v4074 = vsel %vm1815, %v4071, %v4073
      %v4077 = vadd.f32 %v4060, %v4072
      %v4078 = vadd.f32 %v4061, %v4074
      %s4079 = scalar_lea.vmem [#allocation3], 204
      %v4080 = vld [vmem:[%s4079] sm:$0xf]
      %v4081 = vld [vmem:[%s4079 + $0x4] sm:$0xf]
      %v4082 = vunpack.c.l.bf16 %v4080
      %v4083 = vunpack.c.l.bf16 %v4081
      %v4084 = vmul.f32 %v4082, %v1888
      %v4085 = vmul.f32 %v4083, %v1888
      %v4086 = vadd.f32 %v4077, %v4084
      %v4087 = vadd.f32 %v4078, %v4085
      %v4088 = vld [vmem:[%s4079 + $0x8] sm:$0x1]
      %v4089 = vunpack.c.l.bf16 %v4088
      %v4090 = vmul.f32 %v4082, %v1898
      %v4091 = vmul.f32 %v4083, %v1898
      %v4092 = vmul.f32 %v4089, %v1898
      %v4096 = vrot.slane %v4090, 1
      %v4097 = vrot.slane %v4091, 1
      %v4098 = vsel %vm1793, %v4096, %v4097
      %v4099 = vrot.slane %v4092, 1
      %v4100 = vsel %vm1793, %v4097, %v4099
      %v4103 = vadd.f32 %v4086, %v4098
      %v4104 = vadd.f32 %v4087, %v4100
      %v4105 = vld [vmem:[%s4079] sm:$0xe]
      %v4106 = vunpack.c.l.bf16 %v4105
      %v4107 = vmul.f32 %v4106, %v1919
      %v4108 = vmul.f32 %v4083, %v1919
      %v4109 = vmul.f32 %v4089, %v1919
      %v4113 = vrot.slane %v4107, 2
      %v4114 = vrot.slane %v4108, 2
      %v4115 = vsel %vm1815, %v4113, %v4114
      %v4116 = vrot.slane %v4109, 2
      %v4117 = vsel %vm1815, %v4114, %v4116
      %v4120 = vadd.f32 %v4103, %v4115
      %v4121 = vadd.f32 %v4104, %v4117
      %v4122 = vmul.f32 %v4120, %v1939
      %v4123 = vmul.f32 %v4121, %v1939
      %v4124 = vadd.f32 %v4122, %v1947
      %v4125 = vadd.f32 %v4123, %v1947
      %v4126 = vmax.f32 %v4124, 0.0
      %v4127 = vmax.f32 %v4125, 0.0
      %v4128 = vmin.f32 %v4126, 6.0
      %v4129 = vmin.f32 %v4127, 6.0
      %v4130 = vpack.c.bf16 %v4129, %v4128
      %v4132 = vunpack.c.l.b16 %v4130
      %v4133 = vunpack.c.h.b16 %v4130
      %v4134 = vpack.c.b16 %v4132, %v4132
      %v4135 = vpack.c.b16 %v4133, %v4133
      %4138 = vst [vmem:[#allocation2 + $0x78] sm:$0xf] %v4134
      %4139 = vst [vmem:[#allocation2 + $0x7c] sm:$0xf] %v4135
      %v4140 = vld [vmem:[%s8] sm:$0x3]
      %v4141 = vld [vmem:[#allocation2] sm:$0xf]
      %v4142 = vld [vmem:[#allocation2 + $0x4] sm:$0xf]
      %v4143 = vld [vmem:[#allocation2 + $0x8] sm:$0xf]
      %v4144 = vld [vmem:[#allocation2 + $0xc] sm:$0xf]
      %v4145 = vld [vmem:[#allocation2 + $0x10] sm:$0xf]
      %v4146 = vld [vmem:[#allocation2 + $0x14] sm:$0xf]
      %v4147 = vld [vmem:[#allocation2 + $0x18] sm:$0xf]
      %v4148 = vld [vmem:[#allocation2 + $0x1c] sm:$0xf]
      %v4149 = vld [vmem:[#allocation2 + $0x20] sm:$0xf]
      %v4150 = vld [vmem:[#allocation2 + $0x24] sm:$0xf]
      %v4151 = vld [vmem:[#allocation2 + $0x28] sm:$0xf]
      %v4152 = vld [vmem:[#allocation2 + $0x2c] sm:$0xf]
      %v4153 = vld [vmem:[#allocation2 + $0x30] sm:$0xf]
      %v4154 = vld [vmem:[#allocation2 + $0x34] sm:$0xf]
      %v4155 = vld [vmem:[#allocation2 + $0x38] sm:$0xf]
      %v4156 = vld [vmem:[#allocation2 + $0x3c] sm:$0xf]
      %v4157 = vld [vmem:[#allocation2 + $0x40] sm:$0xf]
      %v4158 = vld [vmem:[#allocation2 + $0x44] sm:$0xf]
      %v4159 = vld [vmem:[#allocation2 + $0x48] sm:$0xf]
      %v4160 = vld [vmem:[#allocation2 + $0x4c] sm:$0xf]
      %v4161 = vld [vmem:[#allocation2 + $0x50] sm:$0xf]
      %v4162 = vld [vmem:[#allocation2 + $0x54] sm:$0xf]
      %v4163 = vld [vmem:[#allocation2 + $0x58] sm:$0xf]
      %v4164 = vld [vmem:[#allocation2 + $0x5c] sm:$0xf]
      %v4165 = vld [vmem:[#allocation2 + $0x60] sm:$0xf]
      %v4166 = vld [vmem:[#allocation2 + $0x64] sm:$0xf]
      %v4167 = vld [vmem:[#allocation2 + $0x68] sm:$0xf]
      %v4168 = vld [vmem:[#allocation2 + $0x6c] sm:$0xf]
      %v4169 = vld [vmem:[#allocation2 + $0x70] sm:$0xf]
      %v4170 = vld [vmem:[#allocation2 + $0x74] sm:$0xf]
      %v4171 = vld [vmem:[#allocation2 + $0x78] sm:$0xf]
      %v4172 = vld [vmem:[#allocation2 + $0x7c] sm:$0xf]
      %v4205 = vunpack.c.l.b16 %v4141
      %v4206 = vunpack.c.l.b16 %v4142
      %v4207 = vunpack.c.l.b16 %v4143
      %v4208 = vunpack.c.l.b16 %v4144
      %v4209 = vunpack.c.l.b16 %v4145
      %v4210 = vunpack.c.l.b16 %v4146
      %v4211 = vunpack.c.l.b16 %v4147
      %v4212 = vunpack.c.l.b16 %v4148
      %v4213 = vunpack.c.l.b16 %v4149
      %v4214 = vunpack.c.l.b16 %v4150
      %v4215 = vunpack.c.l.b16 %v4151
      %v4216 = vunpack.c.l.b16 %v4152
      %v4217 = vunpack.c.l.b16 %v4153
      %v4218 = vunpack.c.l.b16 %v4154
      %v4219 = vunpack.c.l.b16 %v4155
      %v4220 = vunpack.c.l.b16 %v4156
      %v4221 = vunpack.c.l.b16 %v4157
      %v4222 = vunpack.c.l.b16 %v4158
      %v4223 = vunpack.c.l.b16 %v4159
      %v4224 = vunpack.c.l.b16 %v4160
      %v4225 = vunpack.c.l.b16 %v4161
      %v4226 = vunpack.c.l.b16 %v4162
      %v4227 = vunpack.c.l.b16 %v4163
      %v4228 = vunpack.c.l.b16 %v4164
      %v4229 = vunpack.c.l.b16 %v4165
      %v4230 = vunpack.c.l.b16 %v4166
      %v4231 = vunpack.c.l.b16 %v4167
      %v4232 = vunpack.c.l.b16 %v4168
      %v4233 = vunpack.c.l.b16 %v4169
      %v4234 = vunpack.c.l.b16 %v4170
      %v4235 = vunpack.c.l.b16 %v4171
      %v4236 = vunpack.c.l.b16 %v4172
      %v4237 = vpack.c.b16 %v4206, %v4205
      %v4238 = vpack.c.b16 %v4208, %v4207
      %v4239 = vpack.c.b16 %v4210, %v4209
      %v4240 = vpack.c.b16 %v4212, %v4211
      %v4241 = vpack.c.b16 %v4214, %v4213
      %v4242 = vpack.c.b16 %v4216, %v4215
      %v4243 = vpack.c.b16 %v4218, %v4217
      %v4244 = vpack.c.b16 %v4220, %v4219
      %v4245 = vpack.c.b16 %v4222, %v4221
      %v4246 = vpack.c.b16 %v4224, %v4223
      %v4247 = vpack.c.b16 %v4226, %v4225
      %v4248 = vpack.c.b16 %v4228, %v4227
      %v4249 = vpack.c.b16 %v4230, %v4229
      %v4250 = vpack.c.b16 %v4232, %v4231
      %v4251 = vpack.c.b16 %v4234, %v4233
      %v4252 = vpack.c.b16 %v4236, %v4235
      %4269 = vmatprep.subr.bf16.mxu0 0
      %4270 = vmatpush1.bf16.xpose.msra.mxu0 %v4244
      %4271 = vmatprep.subr.bf16.mxu0 0
      %4272 = vmatpush1.bf16.xpose.msra.mxu0 %v4243
      %4273 = vmatprep.subr.bf16.mxu0 0
      %4274 = vmatpush1.bf16.xpose.msra.mxu0 %v4242
      %4275 = vmatprep.subr.bf16.mxu0 0
      %4276 = vmatpush1.bf16.xpose.msra.mxu0 %v4241
      %4277 = vmatprep.subr.bf16.mxu0 0
      %4278 = vmatpush1.bf16.xpose.msra.mxu0 %v4240
      %4279 = vmatprep.subr.bf16.mxu0 0
      %4280 = vmatpush1.bf16.xpose.msra.mxu0 %v4239
      %4281 = vmatprep.subr.bf16.mxu0 0
      %4282 = vmatpush1.bf16.xpose.msra.mxu0 %v4238
      %4283 = vmatprep.subr.bf16.mxu0 0
      %4284 = vmatpush1.bf16.xpose.msra.mxu0 %v4237
      %4285 = vmatprep.subr.bf16.mxu0 0
      %4286 = vmatpush2.bf16.xpose.msra.mxu0 %v4252
      %4287 = vmatprep.subr.bf16.mxu0 0
      %4288 = vmatpush2.bf16.xpose.msra.mxu0 %v4251
      %4289 = vmatprep.subr.bf16.mxu0 0
      %4290 = vmatpush2.bf16.xpose.msra.mxu0 %v4250
      %4291 = vmatprep.subr.bf16.mxu0 0
      %4292 = vmatpush2.bf16.xpose.msra.mxu0 %v4249
      %4293 = vmatprep.subr.bf16.mxu0 0
      %4294 = vmatpush2.bf16.xpose.msra.mxu0 %v4248
      %4295 = vmatprep.subr.bf16.mxu0 0
      %4296 = vmatpush2.bf16.xpose.msra.mxu0 %v4247
      %4297 = vmatprep.subr.bf16.mxu0 0
      %4298 = vmatpush2.bf16.xpose.msra.mxu0 %v4246
      %4299 = vmatprep.subr.bf16.mxu0 0
      %4300 = vmatpush2.bf16.xpose.msra.mxu0 %v4245
      %4301 = vmatprep.mubr.bf16.mxu0 0
      %4302 = vmatmul.mubr.bf16.gmra.mxu0 %v4140
      %v4303 = vpop.f32.mrf.mxu0
      %v4304 = vadd.f32 0.0, %v4303
      %v4305 = vpop.f32.mrf.mxu0
      %v4306 = vadd.f32 0.0, %v4305
      %v4307 = vpop.f32.mrf.mxu0
      %v4308 = vpop.f32.mrf.mxu0
      %4309 = vdwg.mxu0
      %v4310 = vld [vmem:[%s9] sm:$0xf]
      %4312 = vset.pattern.permute.xlu0 0
      %4313 = vperm.xlu0 %4312, %v4310
      %v4314 = vpop.permute.xlu0 %4313
      %v4316 = vmul.f32 %v4304, %v4314
      %v4317 = vmul.f32 %v4306, %v4314
      %v4318 = vld [vmem:[%s10] sm:$0xf]
      %4320 = vset.pattern.permute.xlu0 0
      %4321 = vperm.xlu0 %4320, %v4318
      %v4322 = vpop.permute.xlu0 %4321
      %v4324 = vadd.f32 %v4316, %v4322
      %v4325 = vadd.f32 %v4317, %v4322
      %v4326 = vld [vmem:[%s434] sm:$0xff]
      %v4328 = vcombine.high %v4326, %v4326
      %v4330 = vadd.f32 %v4324, %v4326
      %v4331 = vadd.f32 %v4325, %v4328
      %v4334 = vcombine.low %v4330, %v4331
      %4336 = vst [vmem:[%s444] sm:$0xff] %v4334
      %s4337 = smul.u32 2, %s27
      %p4338 = scmp.lt.s32.totalorder %s26, 1
      %s4339 = scalar_select %p4338, %s26, 1
      %p4340 = scmp.lt.s32.totalorder %s4337, 1
      %s4341 = scalar_select %p4340, %s4337, 1
      %s4342 = smul.addr %s4339, 2
      %s4343 = sadd.s32 %s4341, %s4342
      %s4344 = smul.addr %s4343, 4
      %s4345 = scalar_lea.vmem %s11, %s4344
      // Predicated region
      $region65: #{inverted_residual_forward.1} parent=63 // pred_check
        %p4346 = pneg %p297
      $region66: #{inverted_residual_forward.1} parent=63 // pred_check_branch
        %4348 = sbr.rel (%p4346) target = $region68
      $region67: #{inverted_residual_forward.1} parent=63 // pred_region
        %s4349 = smul.u32 2, %s27
      $region68: #{inverted_residual_forward.1} parent=63 // pred_fallthru
        _
    $region64: #{inverted_residual_forward.1} parent=5 // pred_fallthru
      _
    %p4350 = scmp.le.s32.totalorder 2, %s17
    // Predicated region
    $region69: #{inverted_residual_forward.1} parent=5 // pred_check
      %p4351 = pneg %p4350
    $region70: #{inverted_residual_forward.1} parent=5 // pred_check_branch
      %4353 = sbr.rel (%p4351) target = $region72
    $region71: #{inverted_residual_forward.1} parent=5 // pred_region
      %s4354 = ssub.s32 %s17, 2
      // Predicated region
      $region73: #{inverted_residual_forward.1} parent=71 // pred_check
        %p4355 = pneg %p303
      $region74: #{inverted_residual_forward.1} parent=71 // pred_check_branch
        %4357 = sbr.rel (%p4355) target = $region76
      $region75: #{inverted_residual_forward.1} parent=71 // pred_region
        %s4358 = smul.u32 2, %s29
        %p4359 = scmp.lt.s32.totalorder %s28, 1
        %s4360 = scalar_select %p4359, %s28, 1
        %p4361 = scmp.lt.s32.totalorder %s4358, 1
        %s4362 = scalar_select %p4361, %s4358, 1
        %s4363 = smul.addr %s4360, 2
        %s4364 = sadd.s32 %s4362, %s4363
        %s4365 = smul.addr %s4364, 4
        %s4366 = scalar_lea.vmem %s11, %s4365
      $region76: #{inverted_residual_forward.1} parent=71 // pred_fallthru
        _
    $region72: #{inverted_residual_forward.1} parent=5 // pred_fallthru
      _
  $region6: #{inverted_residual_forward.1} parent=0 // loop_footer
    %s21 = sadd.s32 1, %s17
  $region7: #{inverted_residual_forward.1} parent=0 // loop_footer_branch
    %16 = sbr.rel target = $region3
  $region8: #{inverted_residual_forward.1} parent=0 // loop_exit
    _

</llo_original>
